<compile_context>
chip_gen: v5e
topology: v5e:2x2
jax: 0.10.0
libtpu: 0.0.40
codegen_flags: <defaults>
</compile_context>

<pallas_src>
import functools

import jax
import jax.numpy as jnp
import numpy as np
from jax import lax
from jax.experimental import pallas as pl
from jax.experimental.pallas import tpu as pltpu


def _bottleneck_kernel(th, W,
                       x_hbm, xid_ref, w1_ref, w2_ref, w3_ref,
                       b1_ref, b2_ref, b3_ref,
                       o_ref, xbuf, sem):
    """One (batch, row-tile) grid cell.

    x_hbm  : (N, H+2, Wp, Cin) bf16, HBM (memory_space=ANY), zero-bordered NHWC
    xid_ref: (1, th*W, Cin)    bf16  -- aligned identity (residual) tile
    w1_ref : (Cin, P)          bf16  -- conv1 weight, bn1 scale folded in
    w2_ref : (9, P, P)         bf16  -- conv2 weight (tap, ci, co), bn2 folded
    w3_ref : (P, Cout)         bf16  -- conv3 weight, bn3 scale folded in
    b*_ref : (1, C)            f32   -- folded BN biases
    o_ref  : (1, th*W, Cout)   bf16  -- output row tile (flattened spatially)
    xbuf   : (2, th+2, Wp, Cin) bf16 VMEM -- double-buffered conv1 halo window
    sem    : DMA semaphores, shape (2,)
    """
    P = w1_ref.shape[1]
    Cin = xid_ref.shape[-1]
    Wp = xbuf.shape[2]

    n = pl.program_id(0)
    i = pl.program_id(1)
    nt = pl.num_programs(1)
    slot = lax.rem(i, 2)

    def halo_copy(row_tile, buf_slot):
        # rows [row_tile*th, row_tile*th + th + 2) of padded image n.
        return pltpu.make_async_copy(
            x_hbm.at[n, pl.ds(row_tile * th, th + 2)],
            xbuf.at[buf_slot], sem.at[buf_slot])

    # Prime this image's halo chain (first row tile only). The chain stays on
    # one core because the row-tile grid axis is "arbitrary" (sequential).
    @pl.when(i == 0)
    def _():
        halo_copy(0, 0).start()

    # Prefetch the next row tile of the same image into the other slot.
    @pl.when(i + 1 < nt)
    def _():
        halo_copy(i + 1, 1 - slot).start()

    halo_copy(i, slot).wait()
    x_halo = xbuf[slot]                                     # (th+2, Wp, Cin) bf16

    # ---- conv1 (1x1) + bn1 (scale pre-folded) + relu ----------------------
    t = jnp.dot(x_halo.reshape((th + 2) * Wp, Cin), w1_ref[...],
                preferred_element_type=jnp.float32)
    t = jnp.maximum(t + b1_ref[...], 0.0).reshape(th + 2, Wp, P)

    # Zero conv2's zero-padding border: padded columns always; the padded
    # top (bottom) row only exists in the first (last) row tile.  Single bf16
    # cast here (before the tap slices) halves the live footprint of t.
    col = lax.broadcasted_iota(jnp.int32, (1, Wp, 1), 1)
    row = lax.broadcasted_iota(jnp.int32, (th + 2, 1, 1), 0)
    col_ok = (col >= 1) & (col <= W)
    row_ok = jnp.logical_and(jnp.logical_or(i > 0, row >= 1),
                             jnp.logical_or(i < nt - 1, row <= th))
    t = jnp.where(col_ok & row_ok, t, 0.0).astype(jnp.bfloat16)

    # ---- conv2 (3x3, stride=1, pad=1): 9 accumulated MXU matmuls ----------
    acc = jnp.zeros((th * W, P), jnp.float32)
    for dy in range(3):
        for dx in range(3):
            tap = t[dy:dy + th, dx:dx + W, :].reshape(th * W, P)
            acc = acc + jnp.dot(tap, w2_ref[dy * 3 + dx],
                                preferred_element_type=jnp.float32)
    u = jnp.maximum(acc + b2_ref[...], 0.0).astype(jnp.bfloat16)

    # ---- conv3 (1x1 expansion) + bn3 (scale pre-folded) -------------------
    v = jnp.dot(u, w3_ref[...], preferred_element_type=jnp.float32) + b3_ref[...]

    # ---- residual add (downsample=None, noskip=False) + relu --------------
    ident = xid_ref[0].astype(jnp.float32)                  # aligned (th*W, Cin)
    o_ref[0] = jnp.maximum(v + ident, 0.0).astype(o_ref.dtype)


def bottleneck_nhwc_pallas(x_nhwc, w1, w2, w3, s1, b1, s2, b2, s3, b3, *,
                           tile_h=16):
    """NHWC-native Bottleneck forward (eval-mode BN folded). Returns bf16 NHWC."""
    N, H, W, Cin = x_nhwc.shape
    P = w1.shape[1]
    Cout = w3.shape[1]
    assert Cout == Cin, "identity skip requires inplanes == planes * expansion"
    tile_h = min(tile_h, H)
    assert H % tile_h == 0, "tile_h must divide H"
    # Keeps in-kernel bf16 sublane reshapes tile-aligned (bf16 packs 16 rows).
    assert W % 16 == 0, "kernel assumes W is a multiple of 16"
    n_tiles = H // tile_h
    Wp = ((W + 2 + 15) // 16) * 16                 # padded width, sublane aligned

    # bf16 activations.  The zero border + width-alignment pad is consumed only
    # by the manual halo DMA; the residual path reads the unpadded image.
    # TODO(synk): when chaining blocks in a full ResNet keep activations NHWC
    #             bf16 end-to-end so this pad/cast amortizes across the stage.
    x_bf = x_nhwc.astype(jnp.bfloat16)
    x_pad = jnp.pad(x_bf, ((0, 0), (1, 1), (1, Wp - W - 1), (0, 0)))
    x_id = x_bf.reshape(N, H * W, Cin)

    # Fold BN scales into the conv weights (f32 fold, bf16 store); only the
    # per-channel bias-add stays in the kernel.
    w1f = (w1 * s1[None, :]).astype(jnp.bfloat16)
    w2f = (w2 * s2[None, None, None, :]).reshape(9, P, P).astype(jnp.bfloat16)
    w3f = (w3 * s3[None, :]).astype(jnp.bfloat16)
    rowv = lambda a: a.reshape(1, -1).astype(jnp.float32)

    # VMEM budget: double-buffered blocked operands + halo scratch + headroom.
    blk = (2 * (tile_h * W * (Cin + Cout) * 2
                + (Cin * P + 9 * P * P + P * Cout) * 2
                + (2 * P + Cout) * 4)
           + 2 * (tile_h + 2) * Wp * Cin * 2)
    vmem_limit = int(min(4 * blk + (16 << 20), 64 << 20))

    kernel = functools.partial(_bottleneck_kernel, tile_h, W)
    out_flat = pl.pallas_call(
        kernel,
        out_shape=jax.ShapeDtypeStruct((N, H * W, Cout), jnp.bfloat16),
        grid=(N, n_tiles),
        in_specs=[
            pl.BlockSpec(memory_space=pl.ANY),                               # x (padded, stays in HBM)
            pl.BlockSpec((1, tile_h * W, Cin), lambda n, i: (n, i, 0)),      # identity tile
            pl.BlockSpec((Cin, P), lambda n, i: (0, 0)),                     # w1 (folded)
            pl.BlockSpec((9, P, P), lambda n, i: (0, 0, 0)),                 # w2 (folded, per-tap)
            pl.BlockSpec((P, Cout), lambda n, i: (0, 0)),                    # w3 (folded)
            pl.BlockSpec((1, P), lambda n, i: (0, 0)),                       # b1
            pl.BlockSpec((1, P), lambda n, i: (0, 0)),                       # b2
            pl.BlockSpec((1, Cout), lambda n, i: (0, 0)),                    # b3
        ],
        out_specs=pl.BlockSpec((1, tile_h * W, Cout), lambda n, i: (n, i, 0)),
        scratch_shapes=[
            pltpu.VMEM((2, tile_h + 2, Wp, Cin), jnp.bfloat16),              # halo double buffer
            pltpu.SemaphoreType.DMA((2,)),
        ],
        compiler_params=pltpu.CompilerParams(
            # Batch axis parallel (megacore); row-tile axis arbitrary so the
            # per-image halo prefetch chain stays on one core.
            dimension_semantics=("parallel", "arbitrary"),
            vmem_limit_bytes=vmem_limit),
    )(x_pad, x_id, w1f, w2f, w3f, rowv(b1), rowv(b2), rowv(b3))

    return out_flat.reshape(N, H, W, Cout)


def bottleneck_pallas(x_nchw, w1, w2, w3, s1, b1, s2, b2, s3, b3, *, tile_h=16):
    """Thin NCHW wrapper for parity with the PyTorch module interface."""
    x_nhwc = jnp.transpose(x_nchw, (0, 2, 3, 1))
    out = bottleneck_nhwc_pallas(x_nhwc, w1, w2, w3, s1, b1, s2, b2, s3, b3,
                                 tile_h=tile_h)
    return jnp.transpose(out, (0, 3, 1, 2)).astype(x_nchw.dtype)


def bottleneck_ref(x_nchw, w1, w2, w3, s1, b1, s2, b2, s3, b3):
    """Pure-JAX reference mirroring the kernel's bf16 operand rounding."""
    bf = lambda a: a.astype(jnp.bfloat16).astype(jnp.float32)
    x = bf(jnp.transpose(x_nchw, (0, 2, 3, 1)))
    w1f = bf(w1 * s1[None, :])
    w2f = bf(w2 * s2[None, None, None, :])
    w3f = bf(w3 * s3[None, :])
    t = jnp.einsum('nhwc,cp->nhwp', x, w1f) + b1
    t = bf(jax.nn.relu(t))
    u = lax.conv_general_dilated(t, w2f, window_strides=(1, 1),
                                 padding=((1, 1), (1, 1)),
                                 dimension_numbers=('NHWC', 'HWIO', 'NHWC'))
    u = bf(jax.nn.relu(u + b2))
    v = jnp.einsum('nhwp,pq->nhwq', u, w3f) + b3
    out = jax.nn.relu(v + x)
    return jnp.transpose(out, (0, 3, 1, 2))


if __name__ == "__main__":
    # Small but MXU/lane-friendly shapes: inplanes = planes * expansion so the
    # default (downsample=None) residual add is valid; Cout = 256 fills the
    # 256-wide MXU output columns on v6e/v7x; planes = 64 keeps conv2 sane.
    N, inplanes, planes, H, W = 2, 256, 64, 32, 32
    expansion = 4
    Cout = planes * expansion            # == inplanes

    key = jax.random.PRNGKey(0)
    ks = jax.random.split(key, 16)

    # conv weights (bias=False in the module)
    w1 = 0.1 * jax.random.normal(ks[0], (inplanes, planes), jnp.float32)       # (in, out)
    w2 = 0.1 * jax.random.normal(ks[1], (3, 3, planes, planes), jnp.float32)   # (dy, dx, in, out)
    w3 = 0.1 * jax.random.normal(ks[2], (planes, Cout), jnp.float32)           # (in, out)

    def bn_fold(kg, kb, km, kv, c, eps=1e-5):
        gamma = 1.0 + 0.1 * jax.random.normal(kg, (c,), jnp.float32)
        beta = 0.1 * jax.random.normal(kb, (c,), jnp.float32)
        mean = 0.1 * jax.random.normal(km, (c,), jnp.float32)
        var = 1.0 + jax.random.uniform(kv, (c,), jnp.float32)
        scale = gamma / jnp.sqrt(var + eps)
        bias = beta - mean * scale
        return scale, bias

    s1, b1 = bn_fold(ks[3], ks[4], ks[5], ks[6], planes)
    s2, b2 = bn_fold(ks[7], ks[8], ks[9], ks[10], planes)
    s3, b3 = bn_fold(ks[11], ks[12], ks[13], ks[14], Cout)

    x = jax.random.normal(ks[15], (N, inplanes, H, W), jnp.float32)

    out = bottleneck_pallas(x, w1, w2, w3, s1, b1, s2, b2, s3, b3, tile_h=16)
    out = jax.block_until_ready(out)

    ref = jax.block_until_ready(
        bottleneck_ref(x, w1, w2, w3, s1, b1, s2, b2, s3, b3))

    out_np = np.asarray(out, dtype=np.float32)
    ref_np = np.asarray(ref, dtype=np.float32)
    if not np.allclose(out_np, ref_np, atol=5e-2, rtol=3e-2):
        raise AssertionError(
            f"mismatch: max abs diff = {np.max(np.abs(out_np - ref_np))}")

    print("KERNEL_OK")
</pallas_src>

<mosaic_0001>
module attributes {stable_mosaic.version = 11 : i64} {
  func.func @_bottleneck_kernel(%arg0: i32, %arg1: i32, %arg2: memref<2x34x48x256xbf16, #tpu.memory_space<any>>, %arg3: memref<1x512x256xbf16, #tpu.memory_space<vmem>>, %arg4: memref<256x64xbf16, #tpu.memory_space<vmem>>, %arg5: memref<9x64x64xbf16, #tpu.memory_space<vmem>>, %arg6: memref<64x256xbf16, #tpu.memory_space<vmem>>, %arg7: memref<1x64xf32, #tpu.memory_space<vmem>>, %arg8: memref<1x64xf32, #tpu.memory_space<vmem>>, %arg9: memref<1x256xf32, #tpu.memory_space<vmem>>, %arg10: memref<1x512x256xbf16, #tpu.memory_space<vmem>>, %arg11: memref<2x18x48x256xbf16, #tpu.memory_space<vmem>>, %arg12: memref<2x!tpu.dma_semaphore, #tpu.memory_space<semaphore_mem>>) attributes {dimension_semantics = [#tpu.dimension_semantics<parallel>, #tpu.dimension_semantics<arbitrary>], iteration_bounds = array<i64: 2, 2>, scalar_prefetch = 0 : i64, scratch_operands = 2 : i64, tpu.core_type = #tpu.core_type<tc>, window_params = [{}, {transform_indices = @transform_1, window_bounds = array<i64: 1, 512, 256>}, {pipeline_mode = #tpu.pipeline_mode<synchronous>, transform_indices = @transform_2, window_bounds = array<i64: 256, 64>}, {pipeline_mode = #tpu.pipeline_mode<synchronous>, transform_indices = @transform_3, window_bounds = array<i64: 9, 64, 64>}, {pipeline_mode = #tpu.pipeline_mode<synchronous>, transform_indices = @transform_4, window_bounds = array<i64: 64, 256>}, {pipeline_mode = #tpu.pipeline_mode<synchronous>, transform_indices = @transform_5, window_bounds = array<i64: 1, 64>}, {pipeline_mode = #tpu.pipeline_mode<synchronous>, transform_indices = @transform_6, window_bounds = array<i64: 1, 64>}, {pipeline_mode = #tpu.pipeline_mode<synchronous>, transform_indices = @transform_7, window_bounds = array<i64: 1, 256>}, {transform_indices = @transform_8, window_bounds = array<i64: 1, 512, 256>}]} {
    %c2_i32 = arith.constant 2 : i32
    %0 = arith.remsi %arg1, %c2_i32 : i32
    %c0_i32 = arith.constant 0 : i32
    %1 = arith.cmpi eq, %arg1, %c0_i32 : i32
    %2 = arith.extui %1 : i1 to i32
    %c0_i32_0 = arith.constant 0 : i32
    %3 = arith.cmpi ne, %2, %c0_i32_0 : i32
    scf.if %3 {
      %c0_i32_65 = arith.constant 0 : i32
      %c0_i32_66 = arith.constant 0 : i32
      %c0_i32_67 = arith.constant 0 : i32
      %c0_i32_68 = arith.constant 0 : i32
      %c0_i32_69 = arith.constant 0 : i32
      %129 = tpu.memref_slice %arg2[%arg0, %c0_i32_67, %c0_i32_68, %c0_i32_69] : memref<2x34x48x256xbf16, #tpu.memory_space<any>> -> memref<1x18x48x256xbf16, #tpu.memory_space<any>>
      %130 = tpu.memref_squeeze %129 : memref<1x18x48x256xbf16, #tpu.memory_space<any>> -> memref<18x48x256xbf16, #tpu.memory_space<any>>
      %c0_i32_70 = arith.constant 0 : i32
      %c0_i32_71 = arith.constant 0 : i32
      %c0_i32_72 = arith.constant 0 : i32
      %131 = tpu.memref_slice %arg11[%c0_i32_65, %c0_i32_70, %c0_i32_71, %c0_i32_72] : memref<2x18x48x256xbf16, #tpu.memory_space<vmem>> -> memref<1x18x48x256xbf16, #tpu.memory_space<vmem>>
      %132 = tpu.memref_squeeze %131 : memref<1x18x48x256xbf16, #tpu.memory_space<vmem>> -> memref<18x48x256xbf16, #tpu.memory_space<vmem>>
      %133 = tpu.memref_slice %arg12[%c0_i32_66] : memref<2x!tpu.dma_semaphore, #tpu.memory_space<semaphore_mem>> -> memref<1x!tpu.dma_semaphore, #tpu.memory_space<semaphore_mem>>
      %134 = tpu.memref_squeeze %133 : memref<1x!tpu.dma_semaphore, #tpu.memory_space<semaphore_mem>> -> memref<!tpu.dma_semaphore, #tpu.memory_space<semaphore_mem>>
      tpu.enqueue_dma source(%130 : memref<18x48x256xbf16, #tpu.memory_space<any>>) target(%132 : memref<18x48x256xbf16, #tpu.memory_space<vmem>>) target_semaphore(%134 : memref<!tpu.dma_semaphore, #tpu.memory_space<semaphore_mem>>)
    } else {
    }
    %c1_i32 = arith.constant 1 : i32
    %4 = arith.addi %arg1, %c1_i32 : i32
    %c2_i32_1 = arith.constant 2 : i32
    %5 = arith.cmpi slt, %4, %c2_i32_1 : i32
    %6 = arith.extui %5 : i1 to i32
    %c0_i32_2 = arith.constant 0 : i32
    %7 = arith.cmpi ne, %6, %c0_i32_2 : i32
    scf.if %7 {
      %c1_i32_65 = arith.constant 1 : i32
      %129 = arith.addi %arg1, %c1_i32_65 : i32
      %c1_i32_66 = arith.constant 1 : i32
      %130 = arith.subi %c1_i32_66, %0 : i32
      %c16_i32_67 = arith.constant 16 : i32
      %131 = arith.muli %129, %c16_i32_67 : i32
      %c0_i32_68 = arith.constant 0 : i32
      %c0_i32_69 = arith.constant 0 : i32
      %132 = tpu.memref_slice %arg2[%arg0, %131, %c0_i32_68, %c0_i32_69] : memref<2x34x48x256xbf16, #tpu.memory_space<any>> -> memref<1x18x48x256xbf16, #tpu.memory_space<any>>
      %133 = tpu.memref_squeeze %132 : memref<1x18x48x256xbf16, #tpu.memory_space<any>> -> memref<18x48x256xbf16, #tpu.memory_space<any>>
      %c0_i32_70 = arith.constant 0 : i32
      %c0_i32_71 = arith.constant 0 : i32
      %c0_i32_72 = arith.constant 0 : i32
      %134 = tpu.memref_slice %arg11[%130, %c0_i32_70, %c0_i32_71, %c0_i32_72] : memref<2x18x48x256xbf16, #tpu.memory_space<vmem>> -> memref<1x18x48x256xbf16, #tpu.memory_space<vmem>>
      %135 = tpu.memref_squeeze %134 : memref<1x18x48x256xbf16, #tpu.memory_space<vmem>> -> memref<18x48x256xbf16, #tpu.memory_space<vmem>>
      %136 = tpu.memref_slice %arg12[%130] : memref<2x!tpu.dma_semaphore, #tpu.memory_space<semaphore_mem>> -> memref<1x!tpu.dma_semaphore, #tpu.memory_space<semaphore_mem>>
      %137 = tpu.memref_squeeze %136 : memref<1x!tpu.dma_semaphore, #tpu.memory_space<semaphore_mem>> -> memref<!tpu.dma_semaphore, #tpu.memory_space<semaphore_mem>>
      tpu.enqueue_dma source(%133 : memref<18x48x256xbf16, #tpu.memory_space<any>>) target(%135 : memref<18x48x256xbf16, #tpu.memory_space<vmem>>) target_semaphore(%137 : memref<!tpu.dma_semaphore, #tpu.memory_space<semaphore_mem>>)
    } else {
    }
    %c16_i32 = arith.constant 16 : i32
    %8 = arith.muli %arg1, %c16_i32 : i32
    %c0_i32_3 = arith.constant 0 : i32
    %c0_i32_4 = arith.constant 0 : i32
    %9 = tpu.memref_slice %arg2[%arg0, %8, %c0_i32_3, %c0_i32_4] : memref<2x34x48x256xbf16, #tpu.memory_space<any>> -> memref<1x18x48x256xbf16, #tpu.memory_space<any>>
    %10 = tpu.memref_squeeze %9 : memref<1x18x48x256xbf16, #tpu.memory_space<any>> -> memref<18x48x256xbf16, #tpu.memory_space<any>>
    %c0_i32_5 = arith.constant 0 : i32
    %c0_i32_6 = arith.constant 0 : i32
    %c0_i32_7 = arith.constant 0 : i32
    %11 = tpu.memref_slice %arg11[%0, %c0_i32_5, %c0_i32_6, %c0_i32_7] : memref<2x18x48x256xbf16, #tpu.memory_space<vmem>> -> memref<1x18x48x256xbf16, #tpu.memory_space<vmem>>
    %12 = tpu.memref_squeeze %11 : memref<1x18x48x256xbf16, #tpu.memory_space<vmem>> -> memref<18x48x256xbf16, #tpu.memory_space<vmem>>
    %13 = tpu.memref_slice %arg12[%0] : memref<2x!tpu.dma_semaphore, #tpu.memory_space<semaphore_mem>> -> memref<1x!tpu.dma_semaphore, #tpu.memory_space<semaphore_mem>>
    %14 = tpu.memref_squeeze %13 : memref<1x!tpu.dma_semaphore, #tpu.memory_space<semaphore_mem>> -> memref<!tpu.dma_semaphore, #tpu.memory_space<semaphore_mem>>
    tpu.wait_dma2 semaphore(%14 : memref<!tpu.dma_semaphore, #tpu.memory_space<semaphore_mem>>) src(%10 : memref<18x48x256xbf16, #tpu.memory_space<any>>) dst(%12 : memref<18x48x256xbf16, #tpu.memory_space<vmem>>)
    %15 = arith.index_cast %0 : i32 to index
    %c0 = arith.constant 0 : index
    %c0_8 = arith.constant 0 : index
    %c0_9 = arith.constant 0 : index
    %16 = vector.load %arg11[%15, %c0, %c0_8, %c0_9] : memref<2x18x48x256xbf16, #tpu.memory_space<vmem>>, vector<1x18x48x256xbf16>
    %17 = vector.shape_cast %16 : vector<1x18x48x256xbf16> to vector<18x48x256xbf16>
    %18 = vector.shape_cast %17 : vector<18x48x256xbf16> to vector<864x256xbf16>
    %c0_10 = arith.constant 0 : index
    %c0_11 = arith.constant 0 : index
    %19 = vector.load %arg4[%c0_10, %c0_11] : memref<256x64xbf16, #tpu.memory_space<vmem>>, vector<256x64xbf16>
    %cst = arith.constant dense<0.000000e+00> : vector<864x64xf32>
    %20 = tpu.matmul %18, %19, %cst {dimension_numbers = #tpu.dot_dimension_numbers<[1], [0], [0], [1], [0, 0, 1, 1], [], []>} : vector<864x256xbf16>, vector<256x64xbf16>, vector<864x64xf32> -> vector<864x64xf32>
    %c0_12 = arith.constant 0 : index
    %c0_13 = arith.constant 0 : index
    %21 = vector.load %arg7[%c0_12, %c0_13] : memref<1x64xf32, #tpu.memory_space<vmem>>, vector<1x64xf32>
    %22 = vector.broadcast %21 : vector<1x64xf32> to vector<864x64xf32>
    %23 = arith.addf %20, %22 : vector<864x64xf32>
    %cst_14 = arith.constant 0.000000e+00 : f32
    %24 = vector.broadcast %cst_14 : f32 to vector<864x64xf32>
    %25 = arith.maximumf %23, %24 : vector<864x64xf32>
    %26 = vector.shape_cast %25 : vector<864x64xf32> to vector<18x48x64xf32>
    %27 = tpu.iota {dimensions = array<i32: 1>} : vector<1x48x1xi32>
    %28 = tpu.iota {dimensions = array<i32: 0>} : vector<18x1x1xi32>
    %c1_i32_15 = arith.constant 1 : i32
    %29 = vector.broadcast %c1_i32_15 : i32 to vector<1x48x1xi32>
    %30 = arith.cmpi sge, %27, %29 : vector<1x48x1xi32>
    %c32_i32 = arith.constant 32 : i32
    %31 = vector.broadcast %c32_i32 : i32 to vector<1x48x1xi32>
    %32 = arith.cmpi sle, %27, %31 : vector<1x48x1xi32>
    %33 = arith.andi %30, %32 : vector<1x48x1xi1>
    %c0_i32_16 = arith.constant 0 : i32
    %34 = arith.cmpi sgt, %arg1, %c0_i32_16 : i32
    %c1_i32_17 = arith.constant 1 : i32
    %35 = vector.broadcast %c1_i32_17 : i32 to vector<18x1x1xi32>
    %36 = arith.cmpi sge, %28, %35 : vector<18x1x1xi32>
    %37 = vector.broadcast %34 : i1 to vector<18x1x1xi1>
    %38 = arith.ori %37, %36 : vector<18x1x1xi1>
    %c1_i32_18 = arith.constant 1 : i32
    %39 = arith.cmpi slt, %arg1, %c1_i32_18 : i32
    %c16_i32_19 = arith.constant 16 : i32
    %40 = vector.broadcast %c16_i32_19 : i32 to vector<18x1x1xi32>
    %41 = arith.cmpi sle, %28, %40 : vector<18x1x1xi32>
    %42 = vector.broadcast %39 : i1 to vector<18x1x1xi1>
    %43 = arith.ori %42, %41 : vector<18x1x1xi1>
    %44 = arith.andi %38, %43 : vector<18x1x1xi1>
    %45 = vector.broadcast %33 : vector<1x48x1xi1> to vector<18x48x1xi1>
    %46 = vector.broadcast %44 : vector<18x1x1xi1> to vector<18x48x1xi1>
    %47 = arith.andi %45, %46 : vector<18x48x1xi1>
    %cst_20 = arith.constant 0.000000e+00 : f32
    %48 = vector.shape_cast %47 : vector<18x48x1xi1> to vector<18x48x1xi1>
    %49 = vector.broadcast %48 : vector<18x48x1xi1> to vector<18x48x64xi1>
    %50 = vector.broadcast %cst_20 : f32 to vector<18x48x64xf32>
    %51 = arith.select %49, %26, %50 : vector<18x48x64xi1>, vector<18x48x64xf32>
    %52 = arith.truncf %51 : vector<18x48x64xf32> to vector<18x48x64xbf16>
    %cst_21 = arith.constant 0.000000e+00 : f32
    %53 = vector.broadcast %cst_21 : f32 to vector<512x64xf32>
    %54 = vector.extract_strided_slice %52 {offsets = [0, 0, 0], sizes = [16, 32, 64], strides = [1, 1, 1]} : vector<18x48x64xbf16> to vector<16x32x64xbf16>
    %55 = vector.shape_cast %54 : vector<16x32x64xbf16> to vector<512x64xbf16>
    %c0_22 = arith.constant 0 : index
    %c0_23 = arith.constant 0 : index
    %c0_24 = arith.constant 0 : index
    %56 = vector.load %arg5[%c0_22, %c0_23, %c0_24] : memref<9x64x64xbf16, #tpu.memory_space<vmem>>, vector<1x64x64xbf16>
    %57 = vector.shape_cast %56 : vector<1x64x64xbf16> to vector<64x64xbf16>
    %cst_25 = arith.constant dense<0.000000e+00> : vector<512x64xf32>
    %58 = tpu.matmul %55, %57, %cst_25 {dimension_numbers = #tpu.dot_dimension_numbers<[1], [0], [0], [1], [0, 0, 1, 1], [], []>} : vector<512x64xbf16>, vector<64x64xbf16>, vector<512x64xf32> -> vector<512x64xf32>
    %59 = arith.addf %53, %58 : vector<512x64xf32>
    %60 = vector.extract_strided_slice %52 {offsets = [0, 1, 0], sizes = [16, 32, 64], strides = [1, 1, 1]} : vector<18x48x64xbf16> to vector<16x32x64xbf16>
    %61 = vector.shape_cast %60 : vector<16x32x64xbf16> to vector<512x64xbf16>
    %c1 = arith.constant 1 : index
    %c0_26 = arith.constant 0 : index
    %c0_27 = arith.constant 0 : index
    %62 = vector.load %arg5[%c1, %c0_26, %c0_27] : memref<9x64x64xbf16, #tpu.memory_space<vmem>>, vector<1x64x64xbf16>
    %63 = vector.shape_cast %62 : vector<1x64x64xbf16> to vector<64x64xbf16>
    %cst_28 = arith.constant dense<0.000000e+00> : vector<512x64xf32>
    %64 = tpu.matmul %61, %63, %cst_28 {dimension_numbers = #tpu.dot_dimension_numbers<[1], [0], [0], [1], [0, 0, 1, 1], [], []>} : vector<512x64xbf16>, vector<64x64xbf16>, vector<512x64xf32> -> vector<512x64xf32>
    %65 = arith.addf %59, %64 : vector<512x64xf32>
    %66 = vector.extract_strided_slice %52 {offsets = [0, 2, 0], sizes = [16, 32, 64], strides = [1, 1, 1]} : vector<18x48x64xbf16> to vector<16x32x64xbf16>
    %67 = vector.shape_cast %66 : vector<16x32x64xbf16> to vector<512x64xbf16>
    %c2 = arith.constant 2 : index
    %c0_29 = arith.constant 0 : index
    %c0_30 = arith.constant 0 : index
    %68 = vector.load %arg5[%c2, %c0_29, %c0_30] : memref<9x64x64xbf16, #tpu.memory_space<vmem>>, vector<1x64x64xbf16>
    %69 = vector.shape_cast %68 : vector<1x64x64xbf16> to vector<64x64xbf16>
    %cst_31 = arith.constant dense<0.000000e+00> : vector<512x64xf32>
    %70 = tpu.matmul %67, %69, %cst_31 {dimension_numbers = #tpu.dot_dimension_numbers<[1], [0], [0], [1], [0, 0, 1, 1], [], []>} : vector<512x64xbf16>, vector<64x64xbf16>, vector<512x64xf32> -> vector<512x64xf32>
    %71 = arith.addf %65, %70 : vector<512x64xf32>
    %72 = vector.extract_strided_slice %52 {offsets = [1, 0, 0], sizes = [16, 32, 64], strides = [1, 1, 1]} : vector<18x48x64xbf16> to vector<16x32x64xbf16>
    %73 = vector.shape_cast %72 : vector<16x32x64xbf16> to vector<512x64xbf16>
    %c3 = arith.constant 3 : index
    %c0_32 = arith.constant 0 : index
    %c0_33 = arith.constant 0 : index
    %74 = vector.load %arg5[%c3, %c0_32, %c0_33] : memref<9x64x64xbf16, #tpu.memory_space<vmem>>, vector<1x64x64xbf16>
    %75 = vector.shape_cast %74 : vector<1x64x64xbf16> to vector<64x64xbf16>
    %cst_34 = arith.constant dense<0.000000e+00> : vector<512x64xf32>
    %76 = tpu.matmul %73, %75, %cst_34 {dimension_numbers = #tpu.dot_dimension_numbers<[1], [0], [0], [1], [0, 0, 1, 1], [], []>} : vector<512x64xbf16>, vector<64x64xbf16>, vector<512x64xf32> -> vector<512x64xf32>
    %77 = arith.addf %71, %76 : vector<512x64xf32>
    %78 = vector.extract_strided_slice %52 {offsets = [1, 1, 0], sizes = [16, 32, 64], strides = [1, 1, 1]} : vector<18x48x64xbf16> to vector<16x32x64xbf16>
    %79 = vector.shape_cast %78 : vector<16x32x64xbf16> to vector<512x64xbf16>
    %c4 = arith.constant 4 : index
    %c0_35 = arith.constant 0 : index
    %c0_36 = arith.constant 0 : index
    %80 = vector.load %arg5[%c4, %c0_35, %c0_36] : memref<9x64x64xbf16, #tpu.memory_space<vmem>>, vector<1x64x64xbf16>
    %81 = vector.shape_cast %80 : vector<1x64x64xbf16> to vector<64x64xbf16>
    %cst_37 = arith.constant dense<0.000000e+00> : vector<512x64xf32>
    %82 = tpu.matmul %79, %81, %cst_37 {dimension_numbers = #tpu.dot_dimension_numbers<[1], [0], [0], [1], [0, 0, 1, 1], [], []>} : vector<512x64xbf16>, vector<64x64xbf16>, vector<512x64xf32> -> vector<512x64xf32>
    %83 = arith.addf %77, %82 : vector<512x64xf32>
    %84 = vector.extract_strided_slice %52 {offsets = [1, 2, 0], sizes = [16, 32, 64], strides = [1, 1, 1]} : vector<18x48x64xbf16> to vector<16x32x64xbf16>
    %85 = vector.shape_cast %84 : vector<16x32x64xbf16> to vector<512x64xbf16>
    %c5 = arith.constant 5 : index
    %c0_38 = arith.constant 0 : index
    %c0_39 = arith.constant 0 : index
    %86 = vector.load %arg5[%c5, %c0_38, %c0_39] : memref<9x64x64xbf16, #tpu.memory_space<vmem>>, vector<1x64x64xbf16>
    %87 = vector.shape_cast %86 : vector<1x64x64xbf16> to vector<64x64xbf16>
    %cst_40 = arith.constant dense<0.000000e+00> : vector<512x64xf32>
    %88 = tpu.matmul %85, %87, %cst_40 {dimension_numbers = #tpu.dot_dimension_numbers<[1], [0], [0], [1], [0, 0, 1, 1], [], []>} : vector<512x64xbf16>, vector<64x64xbf16>, vector<512x64xf32> -> vector<512x64xf32>
    %89 = arith.addf %83, %88 : vector<512x64xf32>
    %90 = vector.extract_strided_slice %52 {offsets = [2, 0, 0], sizes = [16, 32, 64], strides = [1, 1, 1]} : vector<18x48x64xbf16> to vector<16x32x64xbf16>
    %91 = vector.shape_cast %90 : vector<16x32x64xbf16> to vector<512x64xbf16>
    %c6 = arith.constant 6 : index
    %c0_41 = arith.constant 0 : index
    %c0_42 = arith.constant 0 : index
    %92 = vector.load %arg5[%c6, %c0_41, %c0_42] : memref<9x64x64xbf16, #tpu.memory_space<vmem>>, vector<1x64x64xbf16>
    %93 = vector.shape_cast %92 : vector<1x64x64xbf16> to vector<64x64xbf16>
    %cst_43 = arith.constant dense<0.000000e+00> : vector<512x64xf32>
    %94 = tpu.matmul %91, %93, %cst_43 {dimension_numbers = #tpu.dot_dimension_numbers<[1], [0], [0], [1], [0, 0, 1, 1], [], []>} : vector<512x64xbf16>, vector<64x64xbf16>, vector<512x64xf32> -> vector<512x64xf32>
    %95 = arith.addf %89, %94 : vector<512x64xf32>
    %96 = vector.extract_strided_slice %52 {offsets = [2, 1, 0], sizes = [16, 32, 64], strides = [1, 1, 1]} : vector<18x48x64xbf16> to vector<16x32x64xbf16>
    %97 = vector.shape_cast %96 : vector<16x32x64xbf16> to vector<512x64xbf16>
    %c7 = arith.constant 7 : index
    %c0_44 = arith.constant 0 : index
    %c0_45 = arith.constant 0 : index
    %98 = vector.load %arg5[%c7, %c0_44, %c0_45] : memref<9x64x64xbf16, #tpu.memory_space<vmem>>, vector<1x64x64xbf16>
    %99 = vector.shape_cast %98 : vector<1x64x64xbf16> to vector<64x64xbf16>
    %cst_46 = arith.constant dense<0.000000e+00> : vector<512x64xf32>
    %100 = tpu.matmul %97, %99, %cst_46 {dimension_numbers = #tpu.dot_dimension_numbers<[1], [0], [0], [1], [0, 0, 1, 1], [], []>} : vector<512x64xbf16>, vector<64x64xbf16>, vector<512x64xf32> -> vector<512x64xf32>
    %101 = arith.addf %95, %100 : vector<512x64xf32>
    %102 = vector.extract_strided_slice %52 {offsets = [2, 2, 0], sizes = [16, 32, 64], strides = [1, 1, 1]} : vector<18x48x64xbf16> to vector<16x32x64xbf16>
    %103 = vector.shape_cast %102 : vector<16x32x64xbf16> to vector<512x64xbf16>
    %c8 = arith.constant 8 : index
    %c0_47 = arith.constant 0 : index
    %c0_48 = arith.constant 0 : index
    %104 = vector.load %arg5[%c8, %c0_47, %c0_48] : memref<9x64x64xbf16, #tpu.memory_space<vmem>>, vector<1x64x64xbf16>
    %105 = vector.shape_cast %104 : vector<1x64x64xbf16> to vector<64x64xbf16>
    %cst_49 = arith.constant dense<0.000000e+00> : vector<512x64xf32>
    %106 = tpu.matmul %103, %105, %cst_49 {dimension_numbers = #tpu.dot_dimension_numbers<[1], [0], [0], [1], [0, 0, 1, 1], [], []>} : vector<512x64xbf16>, vector<64x64xbf16>, vector<512x64xf32> -> vector<512x64xf32>
    %107 = arith.addf %101, %106 : vector<512x64xf32>
    %c0_50 = arith.constant 0 : index
    %c0_51 = arith.constant 0 : index
    %108 = vector.load %arg8[%c0_50, %c0_51] : memref<1x64xf32, #tpu.memory_space<vmem>>, vector<1x64xf32>
    %109 = vector.broadcast %108 : vector<1x64xf32> to vector<512x64xf32>
    %110 = arith.addf %107, %109 : vector<512x64xf32>
    %cst_52 = arith.constant 0.000000e+00 : f32
    %111 = vector.broadcast %cst_52 : f32 to vector<512x64xf32>
    %112 = arith.maximumf %110, %111 : vector<512x64xf32>
    %113 = arith.truncf %112 : vector<512x64xf32> to vector<512x64xbf16>
    %c0_53 = arith.constant 0 : index
    %c0_54 = arith.constant 0 : index
    %114 = vector.load %arg6[%c0_53, %c0_54] : memref<64x256xbf16, #tpu.memory_space<vmem>>, vector<64x256xbf16>
    %cst_55 = arith.constant dense<0.000000e+00> : vector<512x256xf32>
    %115 = tpu.matmul %113, %114, %cst_55 {dimension_numbers = #tpu.dot_dimension_numbers<[1], [0], [0], [1], [0, 0, 1, 1], [], []>} : vector<512x64xbf16>, vector<64x256xbf16>, vector<512x256xf32> -> vector<512x256xf32>
    %c0_56 = arith.constant 0 : index
    %c0_57 = arith.constant 0 : index
    %116 = vector.load %arg9[%c0_56, %c0_57] : memref<1x256xf32, #tpu.memory_space<vmem>>, vector<1x256xf32>
    %117 = vector.broadcast %116 : vector<1x256xf32> to vector<512x256xf32>
    %118 = arith.addf %115, %117 : vector<512x256xf32>
    %c0_58 = arith.constant 0 : index
    %c0_59 = arith.constant 0 : index
    %c0_60 = arith.constant 0 : index
    %119 = vector.load %arg3[%c0_58, %c0_59, %c0_60] : memref<1x512x256xbf16, #tpu.memory_space<vmem>>, vector<1x512x256xbf16>
    %120 = vector.shape_cast %119 : vector<1x512x256xbf16> to vector<512x256xbf16>
    %121 = arith.extf %120 : vector<512x256xbf16> to vector<512x256xf32>
    %122 = arith.addf %118, %121 : vector<512x256xf32>
    %cst_61 = arith.constant 0.000000e+00 : f32
    %123 = vector.broadcast %cst_61 : f32 to vector<512x256xf32>
    %124 = arith.maximumf %122, %123 : vector<512x256xf32>
    %125 = arith.truncf %124 : vector<512x256xf32> to vector<512x256xbf16>
    %c0_62 = arith.constant 0 : index
    %c0_63 = arith.constant 0 : index
    %c0_64 = arith.constant 0 : index
    %126 = vector.load %arg10[%c0_62, %c0_63, %c0_64] : memref<1x512x256xbf16, #tpu.memory_space<vmem>>, vector<1x512x256xbf16>
    %127 = vector.shape_cast %126 : vector<1x512x256xbf16> to vector<512x256xbf16>
    %128 = vector.shape_cast %125 : vector<512x256xbf16> to vector<1x512x256xbf16>
    tpu.vector_store %arg10[%c0_62, %c0_63, %c0_64], %128 {strides = array<i32>} : memref<1x512x256xbf16, #tpu.memory_space<vmem>>, vector<1x512x256xbf16>,
    return
  }
  func.func @transform_1(%arg0: i32, %arg1: i32) -> (i32, i32, i32) {
    %c0_i32 = arith.constant 0 : i32
    %c0_i32_0 = arith.constant 0 : i32
    return %arg0, %arg1, %c0_i32 : i32, i32, i32
  }
  func.func @transform_2(%arg0: i32, %arg1: i32) -> (i32, i32) {
    %c0_i32 = arith.constant 0 : i32
    %c0_i32_0 = arith.constant 0 : i32
    %c0_i32_1 = arith.constant 0 : i32
    return %c0_i32, %c0_i32_0 : i32, i32
  }
  func.func @transform_3(%arg0: i32, %arg1: i32) -> (i32, i32, i32) {
    %c0_i32 = arith.constant 0 : i32
    %c0_i32_0 = arith.constant 0 : i32
    %c0_i32_1 = arith.constant 0 : i32
    %c0_i32_2 = arith.constant 0 : i32
    return %c0_i32, %c0_i32_0, %c0_i32_1 : i32, i32, i32
  }
  func.func @transform_4(%arg0: i32, %arg1: i32) -> (i32, i32) {
    %c0_i32 = arith.constant 0 : i32
    %c0_i32_0 = arith.constant 0 : i32
    %c0_i32_1 = arith.constant 0 : i32
    return %c0_i32, %c0_i32_0 : i32, i32
  }
  func.func @transform_5(%arg0: i32, %arg1: i32) -> (i32, i32) {
    %c0_i32 = arith.constant 0 : i32
    %c0_i32_0 = arith.constant 0 : i32
    %c0_i32_1 = arith.constant 0 : i32
    return %c0_i32, %c0_i32_0 : i32, i32
  }
  func.func @transform_6(%arg0: i32, %arg1: i32) -> (i32, i32) {
    %c0_i32 = arith.constant 0 : i32
    %c0_i32_0 = arith.constant 0 : i32
    %c0_i32_1 = arith.constant 0 : i32
    return %c0_i32, %c0_i32_0 : i32, i32
  }
  func.func @transform_7(%arg0: i32, %arg1: i32) -> (i32, i32) {
    %c0_i32 = arith.constant 0 : i32
    %c0_i32_0 = arith.constant 0 : i32
    %c0_i32_1 = arith.constant 0 : i32
    return %c0_i32, %c0_i32_0 : i32, i32
  }
  func.func @transform_8(%arg0: i32, %arg1: i32) -> (i32, i32, i32) {
    %c0_i32 = arith.constant 0 : i32
    %c0_i32_0 = arith.constant 0 : i32
    return %arg0, %arg1, %c0_i32 : i32, i32, i32
  }
}

</mosaic_0001>

<llo_original>
// kernel: tpu_custom_call.1
$region0: #{tpu_custom_call.1}
  #allocation0 [shape = 'u32[]', space=smem, size = 0x4, offset = 0x4, fixed_abs, tag = 'smem constant byte address 0x4 - core index']
  #allocation1 [shape = 'u32[72,128]{1,0:T(1,128)}', space=vmem, size = 0x9000, scoped, tag = 'internal scratch']
  #allocation2 [shape = 'bf16[2,18,48,256]{3,2,1,0:T(8,128)(2,1)}', space=vmem, size = 0xd8000, scoped, tag = 'scratch operand']
  #allocation3 [shape = 's32[2]{0}', space=sflag, size = 0x8, scoped, tag = 'scratch operand']
  #allocation16 [shape = 's32[]', space=sflag, size = 0x4, offset = 0, fixed_abs, tag = 'sflag constant byte address 0x0 - dummy sync flag']
  #allocation17 [shape = 's32[]', space=sflag, size = 0x4, offset = 0, fixed_abs, tag = 'sflag constant byte address 0x0 - dummy sync flag']
  #allocation18 [shape = 'u32[]', space=smem, size = 0x4, offset = 0x44, fixed_abs, tag = 'smem constant byte address 0x44 - assertion arg 0']
  #allocation19 [shape = 'u32[]', space=smem, size = 0x4, offset = 0x48, fixed_abs, tag = 'smem constant byte address 0x48 - assertion arg 1']
  #allocation20 [shape = 's32[]', space=sflag, size = 0x4, offset = 0, fixed_abs, tag = 'sflag constant byte address 0x0 - dummy sync flag']
  #allocation21 [shape = 's32[]', space=sflag, size = 0x4, offset = 0, fixed_abs, tag = 'sflag constant byte address 0x0 - dummy sync flag']
  %s0 = inlined_call_operand.hbm [shape: bf16[2,34,48,256], index: 0, kind: input, shape index: {}]
  %s1 = inlined_call_operand.hbm [shape: bf16[2,1024,256], index: 1, kind: input, shape index: {}]
  %s2 = inlined_call_operand.vmem [shape: bf16[256,64], index: 2, kind: input, shape index: {}]
  %s3 = inlined_call_operand.hbm [shape: bf16[9,64,64], index: 3, kind: input, shape index: {}]
  %s4 = inlined_call_operand.hbm [shape: bf16[64,256], index: 4, kind: input, shape index: {}]
  %s5 = inlined_call_operand.hbm [shape: f32[1,64], index: 5, kind: input, shape index: {}]
  %s6 = inlined_call_operand.hbm [shape: f32[1,64], index: 6, kind: input, shape index: {}]
  %s7 = inlined_call_operand.hbm [shape: f32[1,256], index: 7, kind: input, shape index: {}]
  %s8 = inlined_call_operand.hbm [shape: bf16[2,1024,256], index: 8, kind: output, shape index: {}]
  %s9 = sld [smem:[#allocation0]]
  $region101: #{tpu_custom_call.1} parent=0
    _
  %s11 = ssub.s32 1, %s9
  %s12 = scalar_select 0, %s11, %s9
  $region1: #{tpu_custom_call.1} parent=0
    #allocation4 [shape = 'u8[524288]{0}', space=vmem, size = 0x80000, scoped, tag = 'input window, operand 1']
    #allocation5 [shape = 's32[2]{0}', space=sflag, size = 0x8, scoped, tag = 'scoped memory for tpu_custom_call.1']
    #allocation6 [shape = 's32[2]{0}', space=sflag, size = 0x8, scoped, tag = 'scoped memory for tpu_custom_call.1']
    #allocation7 [shape = 'u8[147456]{0}', space=vmem, size = 0x24000, scoped, tag = 'input window, operand 3, single buffered']
    #allocation8 [shape = 's32[1]{0}', space=sflag, size = 0x4, scoped, tag = 'scoped memory for tpu_custom_call.1']
    #allocation9 [shape = 'u8[32768]{0}', space=vmem, size = 0x8000, scoped, tag = 'input window, operand 4, single buffered']
    #allocation10 [shape = 'u8[512]{0}', space=vmem, size = 0x400, scoped, tag = 'input window, operand 5, single buffered']
    #allocation11 [shape = 's32[1]{0}', space=sflag, size = 0x4, scoped, tag = 'scoped memory for tpu_custom_call.1']
    #allocation12 [shape = 'u8[512]{0}', space=vmem, size = 0x400, scoped, tag = 'input window, operand 6, single buffered']
    #allocation13 [shape = 'u8[1024]{0}', space=vmem, size = 0x400, scoped, tag = 'input window, operand 7, single buffered']
    #allocation14 [shape = 's32[1]{0}', space=sflag, size = 0x4, scoped, tag = 'scoped memory for tpu_custom_call.1']
    #allocation15 [shape = 'u8[524288]{0}', space=vmem, size = 0x80000, scoped, tag = 'output window, operand 0']
    %13 = vsyncpa [#allocation5], 0
    %s14 = scalar_lea.sflag [#allocation5], 1
    %15 = vsyncpa %s14, 0
    %16 = vsyncpa [#allocation8], 0
    %17 = vsyncpa [#allocation11], 0
    %18 = vsyncpa [#allocation14], 0
    %19 = vsyncpa [#allocation6], 0
    %s20 = scalar_lea.sflag [#allocation6], 1
    %21 = vsyncpa %s20, 0
    loop: start=0, step=1, limit=6
    $region2: #{tpu_custom_call.1} parent=1 // loop_pre_header
      _
    $region3: #{tpu_custom_call.1} parent=1 // loop_header
      %s23 = sphi 0, %s27
      %p24 = scmp.ge.s32.totalorder %s23, 6
      %s30 = sphi 0, %s42
      %s31 = sphi 0, %s38
      %s32 = sphi 0, %s30
      %s33 = sphi 0, %s31
      %s34 = sphi 0, %s32
      %s35 = sphi 0, %s33
      %s47 = sphi 0, %s49
      %s50 = sphi 0, %s47
      %s51 = sphi 0, %s50
      %s67 = sphi 0, %s51
      %s71 = sphi 0, %s71
      %s73 = sphi 0, %s71
      %s74 = sphi 0, %s73
      %s88 = sphi 0, %s74
      %s92 = sphi 0, %s92
      %s94 = sphi 0, %s92
      %s95 = sphi 0, %s94
      %s109 = sphi 0, %s95
      %s113 = sphi 0, %s113
      %s115 = sphi 0, %s113
      %s116 = sphi 0, %s115
      %s130 = sphi 0, %s116
      %s134 = sphi 0, %s134
      %s136 = sphi 0, %s134
      %s137 = sphi 0, %s136
      %s151 = sphi 0, %s137
      %s155 = sphi 0, %s155
      %s157 = sphi 0, %s155
      %s158 = sphi 0, %s157
      %s172 = sphi 0, %s158
      %s176 = sphi 0, %s176
      %s178 = sphi 0, %s176
      %s179 = sphi 0, %s178
      %s193 = sphi 0, %s179
      %s201 = sphi 0, %s203
      %s204 = sphi 0, %s201
      %s205 = sphi 0, %s204
      %s221 = sphi 0, %s205
    $region4: #{tpu_custom_call.1} parent=1 // loop_header_branch
      %26 = sbr.rel (%p24) target = $region8
    $region5: #{tpu_custom_call.1} parent=1 // loop_body
      %s28 = ssub.s32 %s23, 1
      %s29 = ssub.s32 %s23, 2
      %s36 = sadd.s32 1, %s31
      %p37 = scmp.ge.s32.totalorder %s36, 2
      %s38 = scalar_select %p37, 0, %s36
      %s39 = sadd.s32 1, %s30
      %s40 = scalar_select %p37, %s39, %s30
      %p41 = scmp.ge.s32.totalorder %s40, 2
      %s42 = scalar_select %p41, 0, %s40
      %s43 = ssub.s32 %s30, %s42
      %s44 = ssub.s32 %s31, %s38
      %s45 = sor.u32 %s43, %s44
      %p46 = scmp.eq.s32.totalorder %s45, 0
      %s48 = sadd.s32 %s47, 1
      %s49 = scalar_select %p46, %s47, %s48
      %p52 = pneg %p46
      %p53 = scmp.eq.s32.totalorder %s23, 3
      %p54 = por %p52, %p53
      %p55 = scmp.ne.s32.totalorder %s47, %s50
      %p56 = scmp.eq.s32.totalorder %s23, 0
      %p57 = por %p55, %p56
      %p58 = scmp.ne.s32.totalorder %s47, %s50
      %p59 = scmp.eq.s32.totalorder %s28, 3
      %p60 = por %p58, %p59
      %p61 = scmp.ne.s32.totalorder %s50, %s51
      %p62 = scmp.eq.s32.totalorder %s28, 0
      %p63 = por %p61, %p62
      %p64 = scmp.ne.s32.totalorder %s50, %s51
      %p65 = scmp.eq.s32.totalorder %s29, 3
      %p66 = por %p64, %p65
      %p68 = scmp.ne.s32.totalorder %s51, %s67
      %p69 = scmp.eq.s32.totalorder %s29, 0
      %p70 = por %p68, %p69
      %s72 = sadd.s32 %s71, 1
      %p75 = scmp.eq.s32.totalorder %s23, 3
      %p76 = scmp.ne.s32.totalorder %s71, %s73
      %p77 = scmp.eq.s32.totalorder %s23, 0
      %p78 = por %p76, %p77
      %p79 = scmp.ne.s32.totalorder %s71, %s73
      %p80 = scmp.eq.s32.totalorder %s28, 3
      %p81 = por %p79, %p80
      %p82 = scmp.ne.s32.totalorder %s73, %s74
      %p83 = scmp.eq.s32.totalorder %s28, 0
      %p84 = por %p82, %p83
      %p85 = scmp.ne.s32.totalorder %s73, %s74
      %p86 = scmp.eq.s32.totalorder %s29, 3
      %p87 = por %p85, %p86
      %p89 = scmp.ne.s32.totalorder %s74, %s88
      %p90 = scmp.eq.s32.totalorder %s29, 0
      %p91 = por %p89, %p90
      %s93 = sadd.s32 %s92, 1
      %p96 = scmp.eq.s32.totalorder %s23, 3
      %p97 = scmp.ne.s32.totalorder %s92, %s94
      %p98 = scmp.eq.s32.totalorder %s23, 0
      %p99 = por %p97, %p98
      %p100 = scmp.ne.s32.totalorder %s92, %s94
      %p101 = scmp.eq.s32.totalorder %s28, 3
      %p102 = por %p100, %p101
      %p103 = scmp.ne.s32.totalorder %s94, %s95
      %p104 = scmp.eq.s32.totalorder %s28, 0
      %p105 = por %p103, %p104
      %p106 = scmp.ne.s32.totalorder %s94, %s95
      %p107 = scmp.eq.s32.totalorder %s29, 3
      %p108 = por %p106, %p107
      %p110 = scmp.ne.s32.totalorder %s95, %s109
      %p111 = scmp.eq.s32.totalorder %s29, 0
      %p112 = por %p110, %p111
      %s114 = sadd.s32 %s113, 1
      %p117 = scmp.eq.s32.totalorder %s23, 3
      %p118 = scmp.ne.s32.totalorder %s113, %s115
      %p119 = scmp.eq.s32.totalorder %s23, 0
      %p120 = por %p118, %p119
      %p121 = scmp.ne.s32.totalorder %s113, %s115
      %p122 = scmp.eq.s32.totalorder %s28, 3
      %p123 = por %p121, %p122
      %p124 = scmp.ne.s32.totalorder %s115, %s116
      %p125 = scmp.eq.s32.totalorder %s28, 0
      %p126 = por %p124, %p125
      %p127 = scmp.ne.s32.totalorder %s115, %s116
      %p128 = scmp.eq.s32.totalorder %s29, 3
      %p129 = por %p127, %p128
      %p131 = scmp.ne.s32.totalorder %s116, %s130
      %p132 = scmp.eq.s32.totalorder %s29, 0
      %p133 = por %p131, %p132
      %s135 = sadd.s32 %s134, 1
      %p138 = scmp.eq.s32.totalorder %s23, 3
      %p139 = scmp.ne.s32.totalorder %s134, %s136
      %p140 = scmp.eq.s32.totalorder %s23, 0
      %p141 = por %p139, %p140
      %p142 = scmp.ne.s32.totalorder %s134, %s136
      %p143 = scmp.eq.s32.totalorder %s28, 3
      %p144 = por %p142, %p143
      %p145 = scmp.ne.s32.totalorder %s136, %s137
      %p146 = scmp.eq.s32.totalorder %s28, 0
      %p147 = por %p145, %p146
      %p148 = scmp.ne.s32.totalorder %s136, %s137
      %p149 = scmp.eq.s32.totalorder %s29, 3
      %p150 = por %p148, %p149
      %p152 = scmp.ne.s32.totalorder %s137, %s151
      %p153 = scmp.eq.s32.totalorder %s29, 0
      %p154 = por %p152, %p153
      %s156 = sadd.s32 %s155, 1
      %p159 = scmp.eq.s32.totalorder %s23, 3
      %p160 = scmp.ne.s32.totalorder %s155, %s157
      %p161 = scmp.eq.s32.totalorder %s23, 0
      %p162 = por %p160, %p161
      %p163 = scmp.ne.s32.totalorder %s155, %s157
      %p164 = scmp.eq.s32.totalorder %s28, 3
      %p165 = por %p163, %p164
      %p166 = scmp.ne.s32.totalorder %s157, %s158
      %p167 = scmp.eq.s32.totalorder %s28, 0
      %p168 = por %p166, %p167
      %p169 = scmp.ne.s32.totalorder %s157, %s158
      %p170 = scmp.eq.s32.totalorder %s29, 3
      %p171 = por %p169, %p170
      %p173 = scmp.ne.s32.totalorder %s158, %s172
      %p174 = scmp.eq.s32.totalorder %s29, 0
      %p175 = por %p173, %p174
      %s177 = sadd.s32 %s176, 1
      %p180 = scmp.eq.s32.totalorder %s23, 3
      %p181 = scmp.ne.s32.totalorder %s176, %s178
      %p182 = scmp.eq.s32.totalorder %s23, 0
      %p183 = por %p181, %p182
      %p184 = scmp.ne.s32.totalorder %s176, %s178
      %p185 = scmp.eq.s32.totalorder %s28, 3
      %p186 = por %p184, %p185
      %p187 = scmp.ne.s32.totalorder %s178, %s179
      %p188 = scmp.eq.s32.totalorder %s28, 0
      %p189 = por %p187, %p188
      %p190 = scmp.ne.s32.totalorder %s178, %s179
      %p191 = scmp.eq.s32.totalorder %s29, 3
      %p192 = por %p190, %p191
      %p194 = scmp.ne.s32.totalorder %s179, %s193
      %p195 = scmp.eq.s32.totalorder %s29, 0
      %p196 = por %p194, %p195
      %s197 = ssub.s32 %s30, %s42
      %s198 = ssub.s32 %s31, %s38
      %s199 = sor.u32 %s197, %s198
      %p200 = scmp.eq.s32.totalorder %s199, 0
      %s202 = sadd.s32 %s201, 1
      %s203 = scalar_select %p200, %s201, %s202
      %p206 = pneg %p200
      %p207 = scmp.eq.s32.totalorder %s23, 3
      %p208 = por %p206, %p207
      %p209 = scmp.ne.s32.totalorder %s201, %s204
      %p210 = scmp.eq.s32.totalorder %s23, 0
      %p211 = por %p209, %p210
      %p212 = scmp.ne.s32.totalorder %s201, %s204
      %p213 = scmp.eq.s32.totalorder %s28, 3
      %p214 = por %p212, %p213
      %p215 = scmp.ne.s32.totalorder %s204, %s205
      %p216 = scmp.eq.s32.totalorder %s28, 0
      %p217 = por %p215, %p216
      %p218 = scmp.ne.s32.totalorder %s204, %s205
      %p219 = scmp.eq.s32.totalorder %s29, 3
      %p220 = por %p218, %p219
      %p222 = scmp.ne.s32.totalorder %s205, %s221
      %p223 = scmp.eq.s32.totalorder %s29, 0
      %p224 = por %p222, %p223
      %p225 = scmp.le.s32.totalorder 1, %s23
      %p226 = scmp.lt.s32.totalorder %s23, 5
      %p227 = pnand %p225, %p226
      %p228 = pneg %p227
      // Predicated region
      $region9: #{tpu_custom_call.1} parent=5 // pred_check
        _
      $region10: #{tpu_custom_call.1} parent=5 // pred_check_branch
        %230 = sbr.rel (%p227) target = $region12
      $region11: #{tpu_custom_call.1} parent=5 // pred_region
        %s231 = ssub.s32 %s23, 1
        // Predicated region
        $region13: #{tpu_custom_call.1} parent=11 // pred_check
          %p232 = pneg %p84
        $region14: #{tpu_custom_call.1} parent=11 // pred_check_branch
          %234 = sbr.rel (%p232) target = $region16
        $region15: #{tpu_custom_call.1} parent=11 // pred_region
          _
        $region16: #{tpu_custom_call.1} parent=11 // pred_fallthru
          _
        // Predicated region
        $region17: #{tpu_custom_call.1} parent=11 // pred_check
          %p235 = pneg %p105
        $region18: #{tpu_custom_call.1} parent=11 // pred_check_branch
          %237 = sbr.rel (%p235) target = $region20
        $region19: #{tpu_custom_call.1} parent=11 // pred_region
          %239 = vsyncadd [#allocation8], 0
          %s240 = sshll.u32 %s3, 4
          %s241 = int_to_ptr.hbm [resolvable:$true] %s240
          %s242 = sshll.u32 [#allocation7], 4
          %s243 = int_to_ptr.vmem [resolvable:$true] %s242
          %248 = dma.hbm_to_vmem [thread:$0]  %s241, 4608, %s243, [#allocation8], 64, 64, 4
        $region20: #{tpu_custom_call.1} parent=11 // pred_fallthru
          _
        // Predicated region
        $region21: #{tpu_custom_call.1} parent=11 // pred_check
          %p249 = pneg %p126
        $region22: #{tpu_custom_call.1} parent=11 // pred_check_branch
          %251 = sbr.rel (%p249) target = $region24
        $region23: #{tpu_custom_call.1} parent=11 // pred_region
          %253 = vsyncadd [#allocation8], 0
          %s254 = sshll.u32 %s4, 4
          %s255 = int_to_ptr.hbm [resolvable:$true] %s254
          %s256 = sshll.u32 [#allocation9], 4
          %s257 = int_to_ptr.vmem [resolvable:$true] %s256
          %262 = dma.hbm_to_vmem [thread:$0]  %s255, 1024, %s257, [#allocation8], 128, 128, 8
        $region24: #{tpu_custom_call.1} parent=11 // pred_fallthru
          _
        // Predicated region
        $region25: #{tpu_custom_call.1} parent=11 // pred_check
          %p263 = pneg %p147
        $region26: #{tpu_custom_call.1} parent=11 // pred_check_branch
          %265 = sbr.rel (%p263) target = $region28
        $region27: #{tpu_custom_call.1} parent=11 // pred_region
          %267 = vsyncadd [#allocation11], 0
          %s269 = sshll.u32 %s5, 4
          %s270 = int_to_ptr.hbm [resolvable:$true] %s269
          %s271 = sshll.u32 [#allocation10], 4
          %s272 = int_to_ptr.vmem [resolvable:$true] %s271
          %274 = dma.hbm_to_vmem [thread:$0]  %s270, 16, %s272, [#allocation11]
        $region28: #{tpu_custom_call.1} parent=11 // pred_fallthru
          _
        // Predicated region
        $region29: #{tpu_custom_call.1} parent=11 // pred_check
          %p275 = pneg %p168
        $region30: #{tpu_custom_call.1} parent=11 // pred_check_branch
          %277 = sbr.rel (%p275) target = $region32
        $region31: #{tpu_custom_call.1} parent=11 // pred_region
          %279 = vsyncadd [#allocation11], 0
          %s281 = sshll.u32 %s6, 4
          %s282 = int_to_ptr.hbm [resolvable:$true] %s281
          %s283 = sshll.u32 [#allocation12], 4
          %s284 = int_to_ptr.vmem [resolvable:$true] %s283
          %286 = dma.hbm_to_vmem [thread:$0]  %s282, 16, %s284, [#allocation11]
        $region32: #{tpu_custom_call.1} parent=11 // pred_fallthru
          _
        // Predicated region
        $region33: #{tpu_custom_call.1} parent=11 // pred_check
          %p287 = pneg %p189
        $region34: #{tpu_custom_call.1} parent=11 // pred_check_branch
          %289 = sbr.rel (%p287) target = $region36
        $region35: #{tpu_custom_call.1} parent=11 // pred_region
          %291 = vsyncadd [#allocation14], 0
          %s293 = sshll.u32 %s7, 4
          %s294 = int_to_ptr.hbm [resolvable:$true] %s293
          %s295 = sshll.u32 [#allocation13], 4
          %s296 = int_to_ptr.vmem [resolvable:$true] %s295
          %298 = dma.hbm_to_vmem [thread:$0]  %s294, 32, %s296, [#allocation14]
        $region36: #{tpu_custom_call.1} parent=11 // pred_fallthru
          _
      $region12: #{tpu_custom_call.1} parent=5 // pred_fallthru
        _
      %p299 = scmp.lt.s32.totalorder %s23, 4
      // Predicated region
      $region37: #{tpu_custom_call.1} parent=5 // pred_check
        %p300 = pneg %p299
      $region38: #{tpu_custom_call.1} parent=5 // pred_check_branch
        %302 = sbr.rel (%p300) target = $region40
      $region39: #{tpu_custom_call.1} parent=5 // pred_region
        // Predicated region
        $region41: #{tpu_custom_call.1} parent=39 // pred_check
          %p303 = pneg %p57
        $region42: #{tpu_custom_call.1} parent=39 // pred_check_branch
          %305 = sbr.rel (%p303) target = $region44
        $region43: #{tpu_custom_call.1} parent=39 // pred_region
          %s306 = sand.u32 %s47, 1
          %s307 = scalar_lea.sflag [#allocation5], %s306
          %s308 = sand.u32 %s47, 1
          %s309 = smul.addr %s308, 512
          %s310 = scalar_lea.vmem [#allocation4], %s309
          %s311 = smul.u32 64, %s31
          %313 = vsyncadd %s307, 0
          %s314 = smul.addr %s311, 2
          %s315 = smul.addr %s30, 256
          %s316 = sadd.s32 %s314, %s315
          %s317 = smul.addr %s316, 4
          %s318 = scalar_lea.hbm %s1, %s317
          %s319 = sshll.u32 %s318, 4
          %s320 = int_to_ptr.hbm [resolvable:$true] %s319
          %s321 = sshll.u32 %s310, 4
          %s322 = int_to_ptr.vmem [resolvable:$true] %s321
          %327 = dma.hbm_to_vmem [thread:$0]  %s320, 8192, %s322, %s307, 128, 128, 8
        $region44: #{tpu_custom_call.1} parent=39 // pred_fallthru
          _
      $region40: #{tpu_custom_call.1} parent=5 // pred_fallthru
        _
      %p328 = scmp.le.s32.totalorder 1, %s23
      %p329 = scmp.lt.s32.totalorder %s23, 5
      %p330 = pnand %p328, %p329
      %p331 = pneg %p330
      // Predicated region
      $region45: #{tpu_custom_call.1} parent=5 // pred_check
        _
      $region46: #{tpu_custom_call.1} parent=5 // pred_check_branch
        %333 = sbr.rel (%p330) target = $region48
      $region47: #{tpu_custom_call.1} parent=5 // pred_region
        %s334 = ssub.s32 %s23, 1
        %s335 = sand.u32 %s50, 1
        %s336 = scalar_lea.sflag [#allocation5], %s335
        %s337 = sand.u32 %s50, 1
        %s338 = smul.addr %s337, 512
        %s339 = scalar_lea.vmem [#allocation4], %s338
        // Predicated region
        $region49: #{tpu_custom_call.1} parent=47 // pred_check
          %p340 = pneg %p63
        $region50: #{tpu_custom_call.1} parent=47 // pred_check_branch
          %342 = sbr.rel (%p340) target = $region52
        $region51: #{tpu_custom_call.1} parent=47 // pred_region
          %344 = dma.done %s336, 8192
        $region52: #{tpu_custom_call.1} parent=47 // pred_fallthru
          _
        // Predicated region
        $region53: #{tpu_custom_call.1} parent=47 // pred_check
          %p345 = pneg %p105
        $region54: #{tpu_custom_call.1} parent=47 // pred_check_branch
          %347 = sbr.rel (%p345) target = $region56
        $region55: #{tpu_custom_call.1} parent=47 // pred_region
          %349 = dma.done [#allocation8], 4608
        $region56: #{tpu_custom_call.1} parent=47 // pred_fallthru
          _
        // Predicated region
        $region57: #{tpu_custom_call.1} parent=47 // pred_check
          %p350 = pneg %p126
        $region58: #{tpu_custom_call.1} parent=47 // pred_check_branch
          %352 = sbr.rel (%p350) target = $region60
        $region59: #{tpu_custom_call.1} parent=47 // pred_region
          %354 = dma.done [#allocation8], 1024
        $region60: #{tpu_custom_call.1} parent=47 // pred_fallthru
          _
        // Predicated region
        $region61: #{tpu_custom_call.1} parent=47 // pred_check
          %p355 = pneg %p147
        $region62: #{tpu_custom_call.1} parent=47 // pred_check_branch
          %357 = sbr.rel (%p355) target = $region64
        $region63: #{tpu_custom_call.1} parent=47 // pred_region
          %359 = dma.done [#allocation11], 16
        $region64: #{tpu_custom_call.1} parent=47 // pred_fallthru
          _
        // Predicated region
        $region65: #{tpu_custom_call.1} parent=47 // pred_check
          %p360 = pneg %p168
        $region66: #{tpu_custom_call.1} parent=47 // pred_check_branch
          %362 = sbr.rel (%p360) target = $region68
        $region67: #{tpu_custom_call.1} parent=47 // pred_region
          %364 = dma.done [#allocation11], 16
        $region68: #{tpu_custom_call.1} parent=47 // pred_fallthru
          _
        // Predicated region
        $region69: #{tpu_custom_call.1} parent=47 // pred_check
          %p365 = pneg %p189
        $region70: #{tpu_custom_call.1} parent=47 // pred_check_branch
          %367 = sbr.rel (%p365) target = $region72
        $region71: #{tpu_custom_call.1} parent=47 // pred_region
          %369 = dma.done [#allocation14], 32
        $region72: #{tpu_custom_call.1} parent=47 // pred_fallthru
          _
        %s370 = sand.u32 %s50, 1
        %s371 = scalar_lea.sflag [#allocation5], %s370
        %s372 = sand.u32 %s50, 1
        %s373 = smul.addr %s372, 512
        %s374 = scalar_lea.vmem [#allocation4], %s373
        %p375 = pneg %p63
        %p376 = pneg %p60
        %p377 = pneg %p84
        %p378 = pneg %p81
        %p379 = pneg %p105
        %p380 = pneg %p102
        %p381 = pneg %p126
        %p382 = pneg %p123
        %p383 = pneg %p147
        %p384 = pneg %p144
        %p385 = pneg %p168
        %p386 = pneg %p165
        %p387 = pneg %p189
        %p388 = pneg %p186
        %p389 = pneg %p217
        %p390 = pneg %p214
        %s391 = sand.u32 %s204, 1
        %s392 = scalar_lea.sflag [#allocation6], %s391
        %s393 = sand.u32 %s204, 1
        %s394 = smul.addr %s393, 512
        %s395 = scalar_lea.vmem [#allocation15], %s394
        %s396 = smul.u32 64, %s33
        %s397 = smul.u32 64, %s33
        %p399 = scmp.lt.s32.totalorder %s33, 0
        %s400 = ssub.s32 0, %s33
        %s401 = scalar_select %p399, %s400, %s33
        %s402 = sand.u32 %s401, 1
        %s403 = ssub.s32 0, %s402
        %s404 = scalar_select %p399, %s403, %s402
        %p405 = scmp.eq.s32.totalorder %s33, 0
        // Predicated region
        $region73: #{tpu_custom_call.1} parent=47 // pred_check
          %p406 = pneg %p405
        $region74: #{tpu_custom_call.1} parent=47 // pred_check_branch
          %408 = sbr.rel (%p406) target = $region76
        $region75: #{tpu_custom_call.1} parent=47 // pred_region
          %s409 = smul.u32 %s32, 408
          %s410 = smul.addr %s409, 4
          %s411 = scalar_lea.hbm %s0, %s410
          // Predicated region
          $region77: #{tpu_custom_call.1} parent=75 // pred_check
            _
          $region78: #{tpu_custom_call.1} parent=75 // pred_check_branch
            %413 = sbr.rel target = $region80
          $region79: #{tpu_custom_call.1} parent=75 // pred_region
            %414 = sst [smem:[#allocation18]] [#allocation17]
            %415 = sst [smem:[#allocation19]] [#allocation16]
          $region80: #{tpu_custom_call.1} parent=75 // pred_fallthru
            _
          %417 = shalt.err (0)
          %s419 = sshll.u32 %s411, 4
          %s420 = int_to_ptr.hbm [resolvable:$true] %s419
          %s421 = sshll.u32 [#allocation2], 4
          %s422 = int_to_ptr.vmem [resolvable:$true] %s421
          %424 = dma.hbm_to_vmem [thread:$0]  %s420, 13824, %s422, [#allocation3]
        $region76: #{tpu_custom_call.1} parent=47 // pred_fallthru
          _
        %s425 = sadd.s32 %s33, 1
        %p426 = scmp.lt.s32.totalorder %s425, 2
        // Predicated region
        $region81: #{tpu_custom_call.1} parent=47 // pred_check
          %p427 = pneg %p426
        $region82: #{tpu_custom_call.1} parent=47 // pred_check_branch
          %429 = sbr.rel (%p427) target = $region84
        $region83: #{tpu_custom_call.1} parent=47 // pred_region
          %s430 = ssub.s32 1, %s404
          %s431 = smul.u32 %s425, 16
          %s432 = smul.u32 %s431, 12
          %s433 = smul.u32 %s32, 408
          %s434 = sadd.s32 %s432, %s433
          %s435 = smul.addr %s434, 4
          %s436 = scalar_lea.hbm %s0, %s435
          %s437 = smul.u32 %s430, 216
          %s438 = smul.addr %s437, 4
          %s439 = scalar_lea.vmem [#allocation2], %s438
          %s440 = scalar_lea.sflag [#allocation3], %s430
          // Predicated region
          $region85: #{tpu_custom_call.1} parent=83 // pred_check
            _
          $region86: #{tpu_custom_call.1} parent=83 // pred_check_branch
            %442 = sbr.rel target = $region88
          $region87: #{tpu_custom_call.1} parent=83 // pred_region
            %443 = sst [smem:[#allocation18]] [#allocation21]
            %444 = sst [smem:[#allocation19]] [#allocation20]
          $region88: #{tpu_custom_call.1} parent=83 // pred_fallthru
            _
          %446 = shalt.err (0)
          %s448 = sshll.u32 %s436, 4
          %s449 = int_to_ptr.hbm [resolvable:$true] %s448
          %s450 = sshll.u32 %s439, 4
          %s451 = int_to_ptr.vmem [resolvable:$true] %s450
          %453 = dma.hbm_to_vmem [thread:$0]  %s449, 13824, %s451, %s440
        $region84: #{tpu_custom_call.1} parent=47 // pred_fallthru
          _
        %s454 = smul.u32 %s404, 216
        %s455 = smul.addr %s454, 4
        %s456 = scalar_lea.vmem [#allocation2], %s455
        %s457 = scalar_lea.sflag [#allocation3], %s404
        %s458 = smul.u32 4, 18
        %s459 = smul.u32 %s458, 6
        %s460 = smul.u32 %s459, 2
        %s461 = sshll.u32 %s460, 4
        %462 = dma.done %s457, %s461
        %v463 = vld [vmem:[%s456] sm:$0xff]
        %v464 = vld [vmem:[%s456 + $0x8] sm:$0xff]
        %v465 = vld [vmem:[%s456 + $0x10] sm:$0xff]
        %v466 = vld [vmem:[%s456 + $0x18] sm:$0xff]
        %v467 = vld [vmem:[%s456 + $0x20] sm:$0xff]
        %v468 = vld [vmem:[%s456 + $0x28] sm:$0xff]
        %v469 = vld [vmem:[%s456 + $0x30] sm:$0xff]
        %v470 = vld [vmem:[%s456 + $0x38] sm:$0xff]
        %v471 = vld [vmem:[%s456 + $0x40] sm:$0xff]
        %v472 = vld [vmem:[%s456 + $0x48] sm:$0xff]
        %v473 = vld [vmem:[%s456 + $0x50] sm:$0xff]
        %v474 = vld [vmem:[%s456 + $0x58] sm:$0xff]
        %v475 = vld [vmem:[%s456 + $0x60] sm:$0xff]
        %v476 = vld [vmem:[%s456 + $0x68] sm:$0xff]
        %v477 = vld [vmem:[%s456 + $0x70] sm:$0xff]
        %v478 = vld [vmem:[%s456 + $0x78] sm:$0xff]
        %v479 = vld [vmem:[%s456 + $0x80] sm:$0xff]
        %v480 = vld [vmem:[%s456 + $0x88] sm:$0xff]
        %v481 = vld [vmem:[%s456 + $0x90] sm:$0xff]
        %v482 = vld [vmem:[%s456 + $0x98] sm:$0xff]
        %v483 = vld [vmem:[%s456 + $0xa0] sm:$0xff]
        %v484 = vld [vmem:[%s456 + $0xa8] sm:$0xff]
        %v485 = vld [vmem:[%s456 + $0xb0] sm:$0xff]
        %v486 = vld [vmem:[%s456 + $0xb8] sm:$0xff]
        %v487 = vld [vmem:[%s456 + $0xc0] sm:$0xff]
        %v488 = vld [vmem:[%s456 + $0xc8] sm:$0xff]
        %v489 = vld [vmem:[%s456 + $0xd0] sm:$0xff]
        %v490 = vld [vmem:[%s456 + $0xd8] sm:$0xff]
        %v491 = vld [vmem:[%s456 + $0xe0] sm:$0xff]
        %v492 = vld [vmem:[%s456 + $0xe8] sm:$0xff]
        %v493 = vld [vmem:[%s456 + $0xf0] sm:$0xff]
        %v494 = vld [vmem:[%s456 + $0xf8] sm:$0xff]
        %v495 = vld [vmem:[%s456 + $0x100] sm:$0xff]
        %v496 = vld [vmem:[%s456 + $0x108] sm:$0xff]
        %v497 = vld [vmem:[%s456 + $0x110] sm:$0xff]
        %v498 = vld [vmem:[%s456 + $0x118] sm:$0xff]
        %v499 = vld [vmem:[%s456 + $0x120] sm:$0xff]
        %v500 = vld [vmem:[%s456 + $0x128] sm:$0xff]
        %v501 = vld [vmem:[%s456 + $0x130] sm:$0xff]
        %v502 = vld [vmem:[%s456 + $0x138] sm:$0xff]
        %v503 = vld [vmem:[%s456 + $0x140] sm:$0xff]
        %v504 = vld [vmem:[%s456 + $0x148] sm:$0xff]
        %v505 = vld [vmem:[%s456 + $0x150] sm:$0xff]
        %v506 = vld [vmem:[%s456 + $0x158] sm:$0xff]
        %v507 = vld [vmem:[%s456 + $0x160] sm:$0xff]
        %v508 = vld [vmem:[%s456 + $0x168] sm:$0xff]
        %v509 = vld [vmem:[%s456 + $0x170] sm:$0xff]
        %v510 = vld [vmem:[%s456 + $0x178] sm:$0xff]
        %v511 = vld [vmem:[%s456 + $0x180] sm:$0xff]
        %v512 = vld [vmem:[%s456 + $0x188] sm:$0xff]
        %v513 = vld [vmem:[%s456 + $0x190] sm:$0xff]
        %v514 = vld [vmem:[%s456 + $0x198] sm:$0xff]
        %v515 = vld [vmem:[%s456 + $0x1a0] sm:$0xff]
        %v516 = vld [vmem:[%s456 + $0x1a8] sm:$0xff]
        %v517 = vld [vmem:[%s456 + $0x1b0] sm:$0xff]
        %v518 = vld [vmem:[%s456 + $0x1b8] sm:$0xff]
        %v519 = vld [vmem:[%s456 + $0x1c0] sm:$0xff]
        %v520 = vld [vmem:[%s456 + $0x1c8] sm:$0xff]
        %v521 = vld [vmem:[%s456 + $0x1d0] sm:$0xff]
        %v522 = vld [vmem:[%s456 + $0x1d8] sm:$0xff]
        %v523 = vld [vmem:[%s456 + $0x1e0] sm:$0xff]
        %v524 = vld [vmem:[%s456 + $0x1e8] sm:$0xff]
        %v525 = vld [vmem:[%s456 + $0x1f0] sm:$0xff]
        %v526 = vld [vmem:[%s456 + $0x1f8] sm:$0xff]
        %v527 = vld [vmem:[%s456 + $0x200] sm:$0xff]
        %v528 = vld [vmem:[%s456 + $0x208] sm:$0xff]
        %v529 = vld [vmem:[%s456 + $0x210] sm:$0xff]
        %v530 = vld [vmem:[%s456 + $0x218] sm:$0xff]
        %v531 = vld [vmem:[%s456 + $0x220] sm:$0xff]
        %v532 = vld [vmem:[%s456 + $0x228] sm:$0xff]
        %v533 = vld [vmem:[%s456 + $0x230] sm:$0xff]
        %v534 = vld [vmem:[%s456 + $0x238] sm:$0xff]
        %v535 = vld [vmem:[%s456 + $0x240] sm:$0xff]
        %v536 = vld [vmem:[%s456 + $0x248] sm:$0xff]
        %v537 = vld [vmem:[%s456 + $0x250] sm:$0xff]
        %v538 = vld [vmem:[%s456 + $0x258] sm:$0xff]
        %v539 = vld [vmem:[%s456 + $0x260] sm:$0xff]
        %v540 = vld [vmem:[%s456 + $0x268] sm:$0xff]
        %v541 = vld [vmem:[%s456 + $0x270] sm:$0xff]
        %v542 = vld [vmem:[%s456 + $0x278] sm:$0xff]
        %v543 = vld [vmem:[%s456 + $0x280] sm:$0xff]
        %v544 = vld [vmem:[%s456 + $0x288] sm:$0xff]
        %v545 = vld [vmem:[%s456 + $0x290] sm:$0xff]
        %v546 = vld [vmem:[%s456 + $0x298] sm:$0xff]
        %v547 = vld [vmem:[%s456 + $0x2a0] sm:$0xff]
        %v548 = vld [vmem:[%s456 + $0x2a8] sm:$0xff]
        %v549 = vld [vmem:[%s456 + $0x2b0] sm:$0xff]
        %v550 = vld [vmem:[%s456 + $0x2b8] sm:$0xff]
        %v551 = vld [vmem:[%s456 + $0x2c0] sm:$0xff]
        %v552 = vld [vmem:[%s456 + $0x2c8] sm:$0xff]
        %v553 = vld [vmem:[%s456 + $0x2d0] sm:$0xff]
        %v554 = vld [vmem:[%s456 + $0x2d8] sm:$0xff]
        %v555 = vld [vmem:[%s456 + $0x2e0] sm:$0xff]
        %v556 = vld [vmem:[%s456 + $0x2e8] sm:$0xff]
        %v557 = vld [vmem:[%s456 + $0x2f0] sm:$0xff]
        %v558 = vld [vmem:[%s456 + $0x2f8] sm:$0xff]
        %v559 = vld [vmem:[%s456 + $0x300] sm:$0xff]
        %v560 = vld [vmem:[%s456 + $0x308] sm:$0xff]
        %v561 = vld [vmem:[%s456 + $0x310] sm:$0xff]
        %v562 = vld [vmem:[%s456 + $0x318] sm:$0xff]
        %v563 = vld [vmem:[%s456 + $0x320] sm:$0xff]
        %v564 = vld [vmem:[%s456 + $0x328] sm:$0xff]
        %v565 = vld [vmem:[%s456 + $0x330] sm:$0xff]
        %v566 = vld [vmem:[%s456 + $0x338] sm:$0xff]
        %v567 = vld [vmem:[%s456 + $0x340] sm:$0xff]
        %v568 = vld [vmem:[%s456 + $0x348] sm:$0xff]
        %v569 = vld [vmem:[%s456 + $0x350] sm:$0xff]
        %v570 = vld [vmem:[%s456 + $0x358] sm:$0xff]
        %v571 = vld [vmem:[%s2] sm:$0xf]
        %v572 = vld [vmem:[%s2 + $0x4] sm:$0xf]
        %v573 = vld [vmem:[%s2 + $0x8] sm:$0xf]
        %v574 = vld [vmem:[%s2 + $0xc] sm:$0xf]
        %v575 = vld [vmem:[%s2 + $0x10] sm:$0xf]
        %v576 = vld [vmem:[%s2 + $0x14] sm:$0xf]
        %v577 = vld [vmem:[%s2 + $0x18] sm:$0xf]
        %v578 = vld [vmem:[%s2 + $0x1c] sm:$0xf]
        %v579 = vld [vmem:[%s2 + $0x20] sm:$0xf]
        %v580 = vld [vmem:[%s2 + $0x24] sm:$0xf]
        %v581 = vld [vmem:[%s2 + $0x28] sm:$0xf]
        %v582 = vld [vmem:[%s2 + $0x2c] sm:$0xf]
        %v583 = vld [vmem:[%s2 + $0x30] sm:$0xf]
        %v584 = vld [vmem:[%s2 + $0x34] sm:$0xf]
        %v585 = vld [vmem:[%s2 + $0x38] sm:$0xf]
        %v586 = vld [vmem:[%s2 + $0x3c] sm:$0xf]
        %v587 = vld [vmem:[%s2 + $0x40] sm:$0xf]
        %v588 = vld [vmem:[%s2 + $0x44] sm:$0xf]
        %v589 = vld [vmem:[%s2 + $0x48] sm:$0xf]
        %v590 = vld [vmem:[%s2 + $0x4c] sm:$0xf]
        %v591 = vld [vmem:[%s2 + $0x50] sm:$0xf]
        %v592 = vld [vmem:[%s2 + $0x54] sm:$0xf]
        %v593 = vld [vmem:[%s2 + $0x58] sm:$0xf]
        %v594 = vld [vmem:[%s2 + $0x5c] sm:$0xf]
        %v595 = vld [vmem:[%s2 + $0x60] sm:$0xf]
        %v596 = vld [vmem:[%s2 + $0x64] sm:$0xf]
        %v597 = vld [vmem:[%s2 + $0x68] sm:$0xf]
        %v598 = vld [vmem:[%s2 + $0x6c] sm:$0xf]
        %v599 = vld [vmem:[%s2 + $0x70] sm:$0xf]
        %v600 = vld [vmem:[%s2 + $0x74] sm:$0xf]
        %v601 = vld [vmem:[%s2 + $0x78] sm:$0xf]
        %v602 = vld [vmem:[%s2 + $0x7c] sm:$0xf]
        %v603 = vld [vmem:[#allocation10] sm:$0x1]
        %v605 = vperm.slane %v603, 0
        %v715 = vunpack.c.l.b16 %v463
        %v716 = vunpack.c.h.b16 %v463
        %v717 = vunpack.c.l.b16 %v464
        %v718 = vunpack.c.h.b16 %v464
        %v719 = vunpack.c.l.b16 %v465
        %v720 = vunpack.c.h.b16 %v465
        %v721 = vunpack.c.l.b16 %v466
        %v722 = vunpack.c.h.b16 %v466
        %v723 = vunpack.c.l.b16 %v467
        %v724 = vunpack.c.h.b16 %v467
        %v725 = vunpack.c.l.b16 %v468
        %v726 = vunpack.c.h.b16 %v468
        %v727 = vunpack.c.l.b16 %v469
        %v728 = vunpack.c.h.b16 %v469
        %v729 = vunpack.c.l.b16 %v470
        %v730 = vunpack.c.h.b16 %v470
        %v731 = vunpack.c.l.b16 %v471
        %v732 = vunpack.c.h.b16 %v471
        %v733 = vunpack.c.l.b16 %v472
        %v734 = vunpack.c.h.b16 %v472
        %v735 = vunpack.c.l.b16 %v473
        %v736 = vunpack.c.h.b16 %v473
        %v737 = vunpack.c.l.b16 %v474
        %v738 = vunpack.c.h.b16 %v474
        %v739 = vunpack.c.l.b16 %v475
        %v740 = vunpack.c.h.b16 %v475
        %v741 = vunpack.c.l.b16 %v476
        %v742 = vunpack.c.h.b16 %v476
        %v743 = vunpack.c.l.b16 %v477
        %v744 = vunpack.c.h.b16 %v477
        %v745 = vunpack.c.l.b16 %v478
        %v746 = vunpack.c.h.b16 %v478
        %v747 = vunpack.c.l.b16 %v479
        %v748 = vunpack.c.h.b16 %v479
        %v749 = vunpack.c.l.b16 %v480
        %v750 = vunpack.c.h.b16 %v480
        %v751 = vunpack.c.l.b16 %v481
        %v752 = vunpack.c.h.b16 %v481
        %v753 = vunpack.c.l.b16 %v482
        %v754 = vunpack.c.h.b16 %v482
        %v755 = vunpack.c.l.b16 %v483
        %v756 = vunpack.c.h.b16 %v483
        %v757 = vunpack.c.l.b16 %v484
        %v758 = vunpack.c.h.b16 %v484
        %v759 = vunpack.c.l.b16 %v485
        %v760 = vunpack.c.h.b16 %v485
        %v761 = vunpack.c.l.b16 %v486
        %v762 = vunpack.c.h.b16 %v486
        %v763 = vunpack.c.l.b16 %v487
        %v764 = vunpack.c.h.b16 %v487
        %v765 = vunpack.c.l.b16 %v488
        %v766 = vunpack.c.h.b16 %v488
        %v767 = vunpack.c.l.b16 %v489
        %v768 = vunpack.c.h.b16 %v489
        %v769 = vunpack.c.l.b16 %v490
        %v770 = vunpack.c.h.b16 %v490
        %v771 = vunpack.c.l.b16 %v491
        %v772 = vunpack.c.h.b16 %v491
        %v773 = vunpack.c.l.b16 %v492
        %v774 = vunpack.c.h.b16 %v492
        %v775 = vunpack.c.l.b16 %v493
        %v776 = vunpack.c.h.b16 %v493
        %v777 = vunpack.c.l.b16 %v494
        %v778 = vunpack.c.h.b16 %v494
        %v779 = vunpack.c.l.b16 %v495
        %v780 = vunpack.c.h.b16 %v495
        %v781 = vunpack.c.l.b16 %v496
        %v782 = vunpack.c.h.b16 %v496
        %v783 = vunpack.c.l.b16 %v497
        %v784 = vunpack.c.h.b16 %v497
        %v785 = vunpack.c.l.b16 %v498
        %v786 = vunpack.c.h.b16 %v498
        %v787 = vunpack.c.l.b16 %v499
        %v788 = vunpack.c.h.b16 %v499
        %v789 = vunpack.c.l.b16 %v500
        %v790 = vunpack.c.h.b16 %v500
        %v791 = vunpack.c.l.b16 %v501
        %v792 = vunpack.c.h.b16 %v501
        %v793 = vunpack.c.l.b16 %v502
        %v794 = vunpack.c.h.b16 %v502
        %v795 = vunpack.c.l.b16 %v503
        %v796 = vunpack.c.h.b16 %v503
        %v797 = vunpack.c.l.b16 %v504
        %v798 = vunpack.c.h.b16 %v504
        %v799 = vunpack.c.l.b16 %v505
        %v800 = vunpack.c.h.b16 %v505
        %v801 = vunpack.c.l.b16 %v506
        %v802 = vunpack.c.h.b16 %v506
        %v803 = vunpack.c.l.b16 %v507
        %v804 = vunpack.c.h.b16 %v507
        %v805 = vunpack.c.l.b16 %v508
        %v806 = vunpack.c.h.b16 %v508
        %v807 = vunpack.c.l.b16 %v509
        %v808 = vunpack.c.h.b16 %v509
        %v809 = vunpack.c.l.b16 %v510
        %v810 = vunpack.c.h.b16 %v510
        %v811 = vunpack.c.l.b16 %v511
        %v812 = vunpack.c.h.b16 %v511
        %v813 = vunpack.c.l.b16 %v512
        %v814 = vunpack.c.h.b16 %v512
        %v815 = vunpack.c.l.b16 %v513
        %v816 = vunpack.c.h.b16 %v513
        %v817 = vunpack.c.l.b16 %v514
        %v818 = vunpack.c.h.b16 %v514
        %v819 = vunpack.c.l.b16 %v515
        %v820 = vunpack.c.h.b16 %v515
        %v821 = vunpack.c.l.b16 %v516
        %v822 = vunpack.c.h.b16 %v516
        %v823 = vunpack.c.l.b16 %v517
        %v824 = vunpack.c.h.b16 %v517
        %v825 = vunpack.c.l.b16 %v518
        %v826 = vunpack.c.h.b16 %v518
        %v827 = vunpack.c.l.b16 %v519
        %v828 = vunpack.c.h.b16 %v519
        %v829 = vunpack.c.l.b16 %v520
        %v830 = vunpack.c.h.b16 %v520
        %v831 = vunpack.c.l.b16 %v521
        %v832 = vunpack.c.h.b16 %v521
        %v833 = vunpack.c.l.b16 %v522
        %v834 = vunpack.c.h.b16 %v522
        %v835 = vunpack.c.l.b16 %v523
        %v836 = vunpack.c.h.b16 %v523
        %v837 = vunpack.c.l.b16 %v524
        %v838 = vunpack.c.h.b16 %v524
        %v839 = vunpack.c.l.b16 %v525
        %v840 = vunpack.c.h.b16 %v525
        %v841 = vunpack.c.l.b16 %v526
        %v842 = vunpack.c.h.b16 %v526
        %v843 = vunpack.c.l.b16 %v527
        %v844 = vunpack.c.h.b16 %v527
        %v845 = vunpack.c.l.b16 %v528
        %v846 = vunpack.c.h.b16 %v528
        %v847 = vunpack.c.l.b16 %v529
        %v848 = vunpack.c.h.b16 %v529
        %v849 = vunpack.c.l.b16 %v530
        %v850 = vunpack.c.h.b16 %v530
        %v851 = vunpack.c.l.b16 %v531
        %v852 = vunpack.c.h.b16 %v531
        %v853 = vunpack.c.l.b16 %v532
        %v854 = vunpack.c.h.b16 %v532
        %v855 = vunpack.c.l.b16 %v533
        %v856 = vunpack.c.h.b16 %v533
        %v857 = vunpack.c.l.b16 %v534
        %v858 = vunpack.c.h.b16 %v534
        %v859 = vunpack.c.l.b16 %v535
        %v860 = vunpack.c.h.b16 %v535
        %v861 = vunpack.c.l.b16 %v536
        %v862 = vunpack.c.h.b16 %v536
        %v863 = vunpack.c.l.b16 %v537
        %v864 = vunpack.c.h.b16 %v537
        %v865 = vunpack.c.l.b16 %v538
        %v866 = vunpack.c.h.b16 %v538
        %v867 = vunpack.c.l.b16 %v539
        %v868 = vunpack.c.h.b16 %v539
        %v869 = vunpack.c.l.b16 %v540
        %v870 = vunpack.c.h.b16 %v540
        %v871 = vunpack.c.l.b16 %v541
        %v872 = vunpack.c.h.b16 %v541
        %v873 = vunpack.c.l.b16 %v542
        %v874 = vunpack.c.h.b16 %v542
        %v875 = vunpack.c.l.b16 %v543
        %v876 = vunpack.c.h.b16 %v543
        %v877 = vunpack.c.l.b16 %v544
        %v878 = vunpack.c.h.b16 %v544
        %v879 = vunpack.c.l.b16 %v545
        %v880 = vunpack.c.h.b16 %v545
        %v881 = vunpack.c.l.b16 %v546
        %v882 = vunpack.c.h.b16 %v546
        %v883 = vunpack.c.l.b16 %v547
        %v884 = vunpack.c.h.b16 %v547
        %v885 = vunpack.c.l.b16 %v548
        %v886 = vunpack.c.h.b16 %v548
        %v887 = vunpack.c.l.b16 %v549
        %v888 = vunpack.c.h.b16 %v549
        %v889 = vunpack.c.l.b16 %v550
        %v890 = vunpack.c.h.b16 %v550
        %v891 = vunpack.c.l.b16 %v551
        %v892 = vunpack.c.h.b16 %v551
        %v893 = vunpack.c.l.b16 %v552
        %v894 = vunpack.c.h.b16 %v552
        %v895 = vunpack.c.l.b16 %v553
        %v896 = vunpack.c.h.b16 %v553
        %v897 = vunpack.c.l.b16 %v554
        %v898 = vunpack.c.h.b16 %v554
        %v899 = vunpack.c.l.b16 %v555
        %v900 = vunpack.c.h.b16 %v555
        %v901 = vunpack.c.l.b16 %v556
        %v902 = vunpack.c.h.b16 %v556
        %v903 = vunpack.c.l.b16 %v557
        %v904 = vunpack.c.h.b16 %v557
        %v905 = vunpack.c.l.b16 %v558
        %v906 = vunpack.c.h.b16 %v558
        %v907 = vunpack.c.l.b16 %v559
        %v908 = vunpack.c.h.b16 %v559
        %v909 = vunpack.c.l.b16 %v560
        %v910 = vunpack.c.h.b16 %v560
        %v911 = vunpack.c.l.b16 %v561
        %v912 = vunpack.c.h.b16 %v561
        %v913 = vunpack.c.l.b16 %v562
        %v914 = vunpack.c.h.b16 %v562
        %v915 = vunpack.c.l.b16 %v563
        %v916 = vunpack.c.h.b16 %v563
        %v917 = vunpack.c.l.b16 %v564
        %v918 = vunpack.c.h.b16 %v564
        %v919 = vunpack.c.l.b16 %v565
        %v920 = vunpack.c.h.b16 %v565
        %v921 = vunpack.c.l.b16 %v566
        %v922 = vunpack.c.h.b16 %v566
        %v923 = vunpack.c.l.b16 %v567
        %v924 = vunpack.c.h.b16 %v567
        %v925 = vunpack.c.l.b16 %v568
        %v926 = vunpack.c.h.b16 %v568
        %v927 = vunpack.c.l.b16 %v569
        %v928 = vunpack.c.h.b16 %v569
        %v929 = vunpack.c.l.b16 %v570
        %v930 = vunpack.c.h.b16 %v570
        %v931 = vpack.c.b16 %v717, %v715
        %v932 = vpack.c.b16 %v718, %v716
        %v933 = vpack.c.b16 %v721, %v719
        %v934 = vpack.c.b16 %v722, %v720
        %v935 = vpack.c.b16 %v725, %v723
        %v936 = vpack.c.b16 %v726, %v724
        %v937 = vpack.c.b16 %v729, %v727
        %v938 = vpack.c.b16 %v730, %v728
        %v939 = vpack.c.b16 %v733, %v731
        %v940 = vpack.c.b16 %v734, %v732
        %v941 = vpack.c.b16 %v737, %v735
        %v942 = vpack.c.b16 %v738, %v736
        %v943 = vpack.c.b16 %v741, %v739
        %v944 = vpack.c.b16 %v742, %v740
        %v945 = vpack.c.b16 %v745, %v743
        %v946 = vpack.c.b16 %v746, %v744
        %v947 = vpack.c.b16 %v749, %v747
        %v948 = vpack.c.b16 %v750, %v748
        %v949 = vpack.c.b16 %v753, %v751
        %v950 = vpack.c.b16 %v754, %v752
        %v951 = vpack.c.b16 %v757, %v755
        %v952 = vpack.c.b16 %v758, %v756
        %v953 = vpack.c.b16 %v761, %v759
        %v954 = vpack.c.b16 %v762, %v760
        %v955 = vpack.c.b16 %v765, %v763
        %v956 = vpack.c.b16 %v766, %v764
        %v957 = vpack.c.b16 %v769, %v767
        %v958 = vpack.c.b16 %v770, %v768
        %v959 = vpack.c.b16 %v773, %v771
        %v960 = vpack.c.b16 %v774, %v772
        %v961 = vpack.c.b16 %v777, %v775
        %v962 = vpack.c.b16 %v778, %v776
        %v963 = vpack.c.b16 %v781, %v779
        %v964 = vpack.c.b16 %v782, %v780
        %v965 = vpack.c.b16 %v785, %v783
        %v966 = vpack.c.b16 %v786, %v784
        %v967 = vpack.c.b16 %v789, %v787
        %v968 = vpack.c.b16 %v790, %v788
        %v969 = vpack.c.b16 %v793, %v791
        %v970 = vpack.c.b16 %v794, %v792
        %v971 = vpack.c.b16 %v797, %v795
        %v972 = vpack.c.b16 %v798, %v796
        %v973 = vpack.c.b16 %v801, %v799
        %v974 = vpack.c.b16 %v802, %v800
        %v975 = vpack.c.b16 %v805, %v803
        %v976 = vpack.c.b16 %v806, %v804
        %v977 = vpack.c.b16 %v809, %v807
        %v978 = vpack.c.b16 %v810, %v808
        %v979 = vpack.c.b16 %v813, %v811
        %v980 = vpack.c.b16 %v814, %v812
        %v981 = vpack.c.b16 %v817, %v815
        %v982 = vpack.c.b16 %v818, %v816
        %v983 = vpack.c.b16 %v821, %v819
        %v984 = vpack.c.b16 %v822, %v820
        %v985 = vpack.c.b16 %v825, %v823
        %v986 = vpack.c.b16 %v826, %v824
        %v987 = vpack.c.b16 %v829, %v827
        %v988 = vpack.c.b16 %v830, %v828
        %v989 = vpack.c.b16 %v833, %v831
        %v990 = vpack.c.b16 %v834, %v832
        %v991 = vpack.c.b16 %v837, %v835
        %v992 = vpack.c.b16 %v838, %v836
        %v993 = vpack.c.b16 %v841, %v839
        %v994 = vpack.c.b16 %v842, %v840
        %v995 = vpack.c.b16 %v845, %v843
        %v996 = vpack.c.b16 %v846, %v844
        %v997 = vpack.c.b16 %v849, %v847
        %v998 = vpack.c.b16 %v850, %v848
        %v999 = vpack.c.b16 %v853, %v851
        %v1000 = vpack.c.b16 %v854, %v852
        %v1001 = vpack.c.b16 %v857, %v855
        %v1002 = vpack.c.b16 %v858, %v856
        %v1003 = vpack.c.b16 %v861, %v859
        %v1004 = vpack.c.b16 %v862, %v860
        %v1005 = vpack.c.b16 %v865, %v863
        %v1006 = vpack.c.b16 %v866, %v864
        %v1007 = vpack.c.b16 %v869, %v867
        %v1008 = vpack.c.b16 %v870, %v868
        %v1009 = vpack.c.b16 %v873, %v871
        %v1010 = vpack.c.b16 %v874, %v872
        %v1011 = vpack.c.b16 %v877, %v875
        %v1012 = vpack.c.b16 %v878, %v876
        %v1013 = vpack.c.b16 %v881, %v879
        %v1014 = vpack.c.b16 %v882, %v880
        %v1015 = vpack.c.b16 %v885, %v883
        %v1016 = vpack.c.b16 %v886, %v884
        %v1017 = vpack.c.b16 %v889, %v887
        %v1018 = vpack.c.b16 %v890, %v888
        %v1019 = vpack.c.b16 %v893, %v891
        %v1020 = vpack.c.b16 %v894, %v892
        %v1021 = vpack.c.b16 %v897, %v895
        %v1022 = vpack.c.b16 %v898, %v896
        %v1023 = vpack.c.b16 %v901, %v899
        %v1024 = vpack.c.b16 %v902, %v900
        %v1025 = vpack.c.b16 %v905, %v903
        %v1026 = vpack.c.b16 %v906, %v904
        %v1027 = vpack.c.b16 %v909, %v907
        %v1028 = vpack.c.b16 %v910, %v908
        %v1029 = vpack.c.b16 %v913, %v911
        %v1030 = vpack.c.b16 %v914, %v912
        %v1031 = vpack.c.b16 %v917, %v915
        %v1032 = vpack.c.b16 %v918, %v916
        %v1033 = vpack.c.b16 %v921, %v919
        %v1034 = vpack.c.b16 %v922, %v920
        %v1035 = vpack.c.b16 %v925, %v923
        %v1036 = vpack.c.b16 %v926, %v924
        %v1037 = vpack.c.b16 %v929, %v927
        %v1038 = vpack.c.b16 %v930, %v928
        %v1179 = vunpack.c.l.b16 %v571
        %v1180 = vunpack.c.l.b16 %v572
        %v1181 = vunpack.c.l.b16 %v573
        %v1182 = vunpack.c.l.b16 %v574
        %v1183 = vunpack.c.l.b16 %v575
        %v1184 = vunpack.c.l.b16 %v576
        %v1185 = vunpack.c.l.b16 %v577
        %v1186 = vunpack.c.l.b16 %v578
        %v1187 = vunpack.c.l.b16 %v579
        %v1188 = vunpack.c.l.b16 %v580
        %v1189 = vunpack.c.l.b16 %v581
        %v1190 = vunpack.c.l.b16 %v582
        %v1191 = vunpack.c.l.b16 %v583
        %v1192 = vunpack.c.l.b16 %v584
        %v1193 = vunpack.c.l.b16 %v585
        %v1194 = vunpack.c.l.b16 %v586
        %v1195 = vunpack.c.l.b16 %v587
        %v1196 = vunpack.c.l.b16 %v588
        %v1197 = vunpack.c.l.b16 %v589
        %v1198 = vunpack.c.l.b16 %v590
        %v1199 = vunpack.c.l.b16 %v591
        %v1200 = vunpack.c.l.b16 %v592
        %v1201 = vunpack.c.l.b16 %v593
        %v1202 = vunpack.c.l.b16 %v594
        %v1203 = vunpack.c.l.b16 %v595
        %v1204 = vunpack.c.l.b16 %v596
        %v1205 = vunpack.c.l.b16 %v597
        %v1206 = vunpack.c.l.b16 %v598
        %v1207 = vunpack.c.l.b16 %v599
        %v1208 = vunpack.c.l.b16 %v600
        %v1209 = vunpack.c.l.b16 %v601
        %v1210 = vunpack.c.l.b16 %v602
        %v1211 = vpack.c.b16 %v1180, %v1179
        %v1212 = vpack.c.b16 %v1182, %v1181
        %v1213 = vpack.c.b16 %v1184, %v1183
        %v1214 = vpack.c.b16 %v1186, %v1185
        %v1215 = vpack.c.b16 %v1188, %v1187
        %v1216 = vpack.c.b16 %v1190, %v1189
        %v1217 = vpack.c.b16 %v1192, %v1191
        %v1218 = vpack.c.b16 %v1194, %v1193
        %v1219 = vpack.c.b16 %v1196, %v1195
        %v1220 = vpack.c.b16 %v1198, %v1197
        %v1221 = vpack.c.b16 %v1200, %v1199
        %v1222 = vpack.c.b16 %v1202, %v1201
        %v1223 = vpack.c.b16 %v1204, %v1203
        %v1224 = vpack.c.b16 %v1206, %v1205
        %v1225 = vpack.c.b16 %v1208, %v1207
        %v1226 = vpack.c.b16 %v1210, %v1209
        %1243 = vmatpush.bf16.msra.mxu0 %v1218
        %1244 = vmatpush.bf16.msra.mxu0 %v1217
        %1245 = vmatpush.bf16.msra.mxu0 %v1216
        %1246 = vmatpush.bf16.msra.mxu0 %v1215
        %1247 = vmatpush.bf16.msra.mxu0 %v1214
        %1248 = vmatpush.bf16.msra.mxu0 %v1213
        %1249 = vmatpush.bf16.msra.mxu0 %v1212
        %1250 = vmatpush.bf16.msra.mxu0 %v1211
        %1251 = vmatmul.bf16.gmra.mxu0 %v931
        %v1252 = vpop.f32.mrf.mxu0
        %v1253 = vadd.f32 %v605, %v1252
        %v1254 = vpop.f32.mrf.mxu0
        %v1255 = vadd.f32 %v605, %v1254
        %1256 = vmatmul.bf16.gmra.mxu0 %v933
        %v1257 = vpop.f32.mrf.mxu0
        %v1258 = vadd.f32 %v605, %v1257
        %v1259 = vpop.f32.mrf.mxu0
        %v1260 = vadd.f32 %v605, %v1259
        %1261 = vmatmul.bf16.gmra.mxu0 %v935
        %v1262 = vpop.f32.mrf.mxu0
        %v1263 = vadd.f32 %v605, %v1262
        %v1264 = vpop.f32.mrf.mxu0
        %1265 = vmatmul.bf16.gmra.mxu0 %v937
        %v1266 = vpop.f32.mrf.mxu0
        %v1267 = vadd.f32 %v605, %v1266
        %v1268 = vpop.f32.mrf.mxu0
        %v1269 = vadd.f32 %v605, %v1268
        %1270 = vmatmul.bf16.gmra.mxu0 %v939
        %v1271 = vpop.f32.mrf.mxu0
        %v1272 = vadd.f32 %v605, %v1271
        %v1273 = vpop.f32.mrf.mxu0
        %v1274 = vadd.f32 %v605, %v1273
        %1275 = vmatmul.bf16.gmra.mxu0 %v941
        %v1276 = vpop.f32.mrf.mxu0
        %v1277 = vadd.f32 %v605, %v1276
        %v1278 = vpop.f32.mrf.mxu0
        %1279 = vmatmul.bf16.gmra.mxu0 %v943
        %v1280 = vpop.f32.mrf.mxu0
        %v1281 = vadd.f32 %v605, %v1280
        %v1282 = vpop.f32.mrf.mxu0
        %v1283 = vadd.f32 %v605, %v1282
        %1284 = vmatmul.bf16.gmra.mxu0 %v945
        %v1285 = vpop.f32.mrf.mxu0
        %v1286 = vadd.f32 %v605, %v1285
        %v1287 = vpop.f32.mrf.mxu0
        %v1288 = vadd.f32 %v605, %v1287
        %1289 = vmatmul.bf16.gmra.mxu0 %v947
        %v1290 = vpop.f32.mrf.mxu0
        %v1291 = vadd.f32 %v605, %v1290
        %v1292 = vpop.f32.mrf.mxu0
        %1293 = vmatmul.bf16.gmra.mxu0 %v949
        %v1294 = vpop.f32.mrf.mxu0
        %v1295 = vadd.f32 %v605, %v1294
        %v1296 = vpop.f32.mrf.mxu0
        %v1297 = vadd.f32 %v605, %v1296
        %1298 = vmatmul.bf16.gmra.mxu0 %v951
        %v1299 = vpop.f32.mrf.mxu0
        %v1300 = vadd.f32 %v605, %v1299
        %v1301 = vpop.f32.mrf.mxu0
        %v1302 = vadd.f32 %v605, %v1301
        %1303 = vmatmul.bf16.gmra.mxu0 %v953
        %v1304 = vpop.f32.mrf.mxu0
        %v1305 = vadd.f32 %v605, %v1304
        %v1306 = vpop.f32.mrf.mxu0
        %1307 = vmatmul.bf16.gmra.mxu0 %v955
        %v1308 = vpop.f32.mrf.mxu0
        %v1309 = vadd.f32 %v605, %v1308
        %v1310 = vpop.f32.mrf.mxu0
        %v1311 = vadd.f32 %v605, %v1310
        %1312 = vmatmul.bf16.gmra.mxu0 %v957
        %v1313 = vpop.f32.mrf.mxu0
        %v1314 = vadd.f32 %v605, %v1313
        %v1315 = vpop.f32.mrf.mxu0
        %v1316 = vadd.f32 %v605, %v1315
        %1317 = vmatmul.bf16.gmra.mxu0 %v959
        %v1318 = vpop.f32.mrf.mxu0
        %v1319 = vadd.f32 %v605, %v1318
        %v1320 = vpop.f32.mrf.mxu0
        %1321 = vmatmul.bf16.gmra.mxu0 %v961
        %v1322 = vpop.f32.mrf.mxu0
        %v1323 = vadd.f32 %v605, %v1322
        %v1324 = vpop.f32.mrf.mxu0
        %v1325 = vadd.f32 %v605, %v1324
        %1326 = vmatmul.bf16.gmra.mxu0 %v963
        %v1327 = vpop.f32.mrf.mxu0
        %v1328 = vadd.f32 %v605, %v1327
        %v1329 = vpop.f32.mrf.mxu0
        %v1330 = vadd.f32 %v605, %v1329
        %1331 = vmatmul.bf16.gmra.mxu0 %v965
        %v1332 = vpop.f32.mrf.mxu0
        %v1333 = vadd.f32 %v605, %v1332
        %v1334 = vpop.f32.mrf.mxu0
        %1335 = vmatmul.bf16.gmra.mxu0 %v967
        %v1336 = vpop.f32.mrf.mxu0
        %v1337 = vadd.f32 %v605, %v1336
        %v1338 = vpop.f32.mrf.mxu0
        %v1339 = vadd.f32 %v605, %v1338
        %1340 = vmatmul.bf16.gmra.mxu0 %v969
        %v1341 = vpop.f32.mrf.mxu0
        %v1342 = vadd.f32 %v605, %v1341
        %v1343 = vpop.f32.mrf.mxu0
        %v1344 = vadd.f32 %v605, %v1343
        %1345 = vmatmul.bf16.gmra.mxu0 %v971
        %v1346 = vpop.f32.mrf.mxu0
        %v1347 = vadd.f32 %v605, %v1346
        %v1348 = vpop.f32.mrf.mxu0
        %1349 = vmatmul.bf16.gmra.mxu0 %v973
        %v1350 = vpop.f32.mrf.mxu0
        %v1351 = vadd.f32 %v605, %v1350
        %v1352 = vpop.f32.mrf.mxu0
        %v1353 = vadd.f32 %v605, %v1352
        %1354 = vmatmul.bf16.gmra.mxu0 %v975
        %v1355 = vpop.f32.mrf.mxu0
        %v1356 = vadd.f32 %v605, %v1355
        %v1357 = vpop.f32.mrf.mxu0
        %v1358 = vadd.f32 %v605, %v1357
        %1359 = vmatmul.bf16.gmra.mxu0 %v977
        %v1360 = vpop.f32.mrf.mxu0
        %v1361 = vadd.f32 %v605, %v1360
        %v1362 = vpop.f32.mrf.mxu0
        %1363 = vmatmul.bf16.gmra.mxu0 %v979
        %v1364 = vpop.f32.mrf.mxu0
        %v1365 = vadd.f32 %v605, %v1364
        %v1366 = vpop.f32.mrf.mxu0
        %v1367 = vadd.f32 %v605, %v1366
        %1368 = vmatmul.bf16.gmra.mxu0 %v981
        %v1369 = vpop.f32.mrf.mxu0
        %v1370 = vadd.f32 %v605, %v1369
        %v1371 = vpop.f32.mrf.mxu0
        %v1372 = vadd.f32 %v605, %v1371
        %1373 = vmatmul.bf16.gmra.mxu0 %v983
        %v1374 = vpop.f32.mrf.mxu0
        %v1375 = vadd.f32 %v605, %v1374
        %v1376 = vpop.f32.mrf.mxu0
        %1377 = vmatmul.bf16.gmra.mxu0 %v985
        %v1378 = vpop.f32.mrf.mxu0
        %v1379 = vadd.f32 %v605, %v1378
        %v1380 = vpop.f32.mrf.mxu0
        %v1381 = vadd.f32 %v605, %v1380
        %1382 = vmatmul.bf16.gmra.mxu0 %v987
        %v1383 = vpop.f32.mrf.mxu0
        %v1384 = vadd.f32 %v605, %v1383
        %v1385 = vpop.f32.mrf.mxu0
        %v1386 = vadd.f32 %v605, %v1385
        %1387 = vmatmul.bf16.gmra.mxu0 %v989
        %v1388 = vpop.f32.mrf.mxu0
        %v1389 = vadd.f32 %v605, %v1388
        %v1390 = vpop.f32.mrf.mxu0
        %1391 = vmatmul.bf16.gmra.mxu0 %v991
        %v1392 = vpop.f32.mrf.mxu0
        %v1393 = vadd.f32 %v605, %v1392
        %v1394 = vpop.f32.mrf.mxu0
        %v1395 = vadd.f32 %v605, %v1394
        %1396 = vmatmul.bf16.gmra.mxu0 %v993
        %v1397 = vpop.f32.mrf.mxu0
        %v1398 = vadd.f32 %v605, %v1397
        %v1399 = vpop.f32.mrf.mxu0
        %v1400 = vadd.f32 %v605, %v1399
        %1401 = vmatmul.bf16.gmra.mxu0 %v995
        %v1402 = vpop.f32.mrf.mxu0
        %v1403 = vadd.f32 %v605, %v1402
        %v1404 = vpop.f32.mrf.mxu0
        %1405 = vmatmul.bf16.gmra.mxu0 %v997
        %v1406 = vpop.f32.mrf.mxu0
        %v1407 = vadd.f32 %v605, %v1406
        %v1408 = vpop.f32.mrf.mxu0
        %v1409 = vadd.f32 %v605, %v1408
        %1410 = vmatmul.bf16.gmra.mxu0 %v999
        %v1411 = vpop.f32.mrf.mxu0
        %v1412 = vadd.f32 %v605, %v1411
        %v1413 = vpop.f32.mrf.mxu0
        %v1414 = vadd.f32 %v605, %v1413
        %1415 = vmatmul.bf16.gmra.mxu0 %v1001
        %v1416 = vpop.f32.mrf.mxu0
        %v1417 = vadd.f32 %v605, %v1416
        %v1418 = vpop.f32.mrf.mxu0
        %1419 = vmatmul.bf16.gmra.mxu0 %v1003
        %v1420 = vpop.f32.mrf.mxu0
        %v1421 = vadd.f32 %v605, %v1420
        %v1422 = vpop.f32.mrf.mxu0
        %v1423 = vadd.f32 %v605, %v1422
        %1424 = vmatmul.bf16.gmra.mxu0 %v1005
        %v1425 = vpop.f32.mrf.mxu0
        %v1426 = vadd.f32 %v605, %v1425
        %v1427 = vpop.f32.mrf.mxu0
        %v1428 = vadd.f32 %v605, %v1427
        %1429 = vmatmul.bf16.gmra.mxu0 %v1007
        %v1430 = vpop.f32.mrf.mxu0
        %v1431 = vadd.f32 %v605, %v1430
        %v1432 = vpop.f32.mrf.mxu0
        %1433 = vmatmul.bf16.gmra.mxu0 %v1009
        %v1434 = vpop.f32.mrf.mxu0
        %v1435 = vadd.f32 %v605, %v1434
        %v1436 = vpop.f32.mrf.mxu0
        %v1437 = vadd.f32 %v605, %v1436
        %1438 = vmatmul.bf16.gmra.mxu0 %v1011
        %v1439 = vpop.f32.mrf.mxu0
        %v1440 = vadd.f32 %v605, %v1439
        %v1441 = vpop.f32.mrf.mxu0
        %v1442 = vadd.f32 %v605, %v1441
        %1443 = vmatmul.bf16.gmra.mxu0 %v1013
        %v1444 = vpop.f32.mrf.mxu0
        %v1445 = vadd.f32 %v605, %v1444
        %v1446 = vpop.f32.mrf.mxu0
        %1447 = vmatmul.bf16.gmra.mxu0 %v1015
        %v1448 = vpop.f32.mrf.mxu0
        %v1449 = vadd.f32 %v605, %v1448
        %v1450 = vpop.f32.mrf.mxu0
        %v1451 = vadd.f32 %v605, %v1450
        %1452 = vmatmul.bf16.gmra.mxu0 %v1017
        %v1453 = vpop.f32.mrf.mxu0
        %v1454 = vadd.f32 %v605, %v1453
        %v1455 = vpop.f32.mrf.mxu0
        %v1456 = vadd.f32 %v605, %v1455
        %1457 = vmatmul.bf16.gmra.mxu0 %v1019
        %v1458 = vpop.f32.mrf.mxu0
        %v1459 = vadd.f32 %v605, %v1458
        %v1460 = vpop.f32.mrf.mxu0
        %1461 = vmatmul.bf16.gmra.mxu0 %v1021
        %v1462 = vpop.f32.mrf.mxu0
        %v1463 = vadd.f32 %v605, %v1462
        %v1464 = vpop.f32.mrf.mxu0
        %v1465 = vadd.f32 %v605, %v1464
        %1466 = vmatmul.bf16.gmra.mxu0 %v1023
        %v1467 = vpop.f32.mrf.mxu0
        %v1468 = vadd.f32 %v605, %v1467
        %v1469 = vpop.f32.mrf.mxu0
        %v1470 = vadd.f32 %v605, %v1469
        %1471 = vmatmul.bf16.gmra.mxu0 %v1025
        %v1472 = vpop.f32.mrf.mxu0
        %v1473 = vadd.f32 %v605, %v1472
        %v1474 = vpop.f32.mrf.mxu0
        %1475 = vmatmul.bf16.gmra.mxu0 %v1027
        %v1476 = vpop.f32.mrf.mxu0
        %v1477 = vadd.f32 %v605, %v1476
        %v1478 = vpop.f32.mrf.mxu0
        %v1479 = vadd.f32 %v605, %v1478
        %1480 = vmatmul.bf16.gmra.mxu0 %v1029
        %v1481 = vpop.f32.mrf.mxu0
        %v1482 = vadd.f32 %v605, %v1481
        %v1483 = vpop.f32.mrf.mxu0
        %v1484 = vadd.f32 %v605, %v1483
        %1485 = vmatmul.bf16.gmra.mxu0 %v1031
        %v1486 = vpop.f32.mrf.mxu0
        %v1487 = vadd.f32 %v605, %v1486
        %v1488 = vpop.f32.mrf.mxu0
        %1489 = vmatmul.bf16.gmra.mxu0 %v1033
        %v1490 = vpop.f32.mrf.mxu0
        %v1491 = vadd.f32 %v605, %v1490
        %v1492 = vpop.f32.mrf.mxu0
        %v1493 = vadd.f32 %v605, %v1492
        %1494 = vmatmul.bf16.gmra.mxu0 %v1035
        %v1495 = vpop.f32.mrf.mxu0
        %v1496 = vadd.f32 %v605, %v1495
        %v1497 = vpop.f32.mrf.mxu0
        %v1498 = vadd.f32 %v605, %v1497
        %1499 = vmatmul.bf16.gmra.mxu0 %v1037
        %v1500 = vpop.f32.mrf.mxu0
        %v1501 = vadd.f32 %v605, %v1500
        %v1502 = vpop.f32.mrf.mxu0
        %1503 = vdwg.mxu0
        %1504 = vmatpush.bf16.msra.mxu0 %v1226
        %1505 = vmatpush.bf16.msra.mxu0 %v1225
        %1506 = vmatpush.bf16.msra.mxu0 %v1224
        %1507 = vmatpush.bf16.msra.mxu0 %v1223
        %1508 = vmatpush.bf16.msra.mxu0 %v1222
        %1509 = vmatpush.bf16.msra.mxu0 %v1221
        %1510 = vmatpush.bf16.msra.mxu0 %v1220
        %1511 = vmatpush.bf16.msra.mxu0 %v1219
        %1512 = vmatmul.bf16.gmra.mxu0 %v932
        %v1513 = vpop.f32.mrf.mxu0
        %v1514 = vadd.f32 %v1253, %v1513
        %v1515 = vpop.f32.mrf.mxu0
        %v1516 = vadd.f32 %v1255, %v1515
        %1517 = vmatmul.bf16.gmra.mxu0 %v934
        %v1518 = vpop.f32.mrf.mxu0
        %v1519 = vadd.f32 %v1258, %v1518
        %v1520 = vpop.f32.mrf.mxu0
        %v1521 = vadd.f32 %v1260, %v1520
        %1522 = vmatmul.bf16.gmra.mxu0 %v936
        %v1523 = vpop.f32.mrf.mxu0
        %v1524 = vadd.f32 %v1263, %v1523
        %v1525 = vpop.f32.mrf.mxu0
        %1526 = vmatmul.bf16.gmra.mxu0 %v938
        %v1527 = vpop.f32.mrf.mxu0
        %v1528 = vadd.f32 %v1267, %v1527
        %v1529 = vpop.f32.mrf.mxu0
        %v1530 = vadd.f32 %v1269, %v1529
        %1531 = vmatmul.bf16.gmra.mxu0 %v940
        %v1532 = vpop.f32.mrf.mxu0
        %v1533 = vadd.f32 %v1272, %v1532
        %v1534 = vpop.f32.mrf.mxu0
        %v1535 = vadd.f32 %v1274, %v1534
        %1536 = vmatmul.bf16.gmra.mxu0 %v942
        %v1537 = vpop.f32.mrf.mxu0
        %v1538 = vadd.f32 %v1277, %v1537
        %v1539 = vpop.f32.mrf.mxu0
        %1540 = vmatmul.bf16.gmra.mxu0 %v944
        %v1541 = vpop.f32.mrf.mxu0
        %v1542 = vadd.f32 %v1281, %v1541
        %v1543 = vpop.f32.mrf.mxu0
        %v1544 = vadd.f32 %v1283, %v1543
        %1545 = vmatmul.bf16.gmra.mxu0 %v946
        %v1546 = vpop.f32.mrf.mxu0
        %v1547 = vadd.f32 %v1286, %v1546
        %v1548 = vpop.f32.mrf.mxu0
        %v1549 = vadd.f32 %v1288, %v1548
        %1550 = vmatmul.bf16.gmra.mxu0 %v948
        %v1551 = vpop.f32.mrf.mxu0
        %v1552 = vadd.f32 %v1291, %v1551
        %v1553 = vpop.f32.mrf.mxu0
        %1554 = vmatmul.bf16.gmra.mxu0 %v950
        %v1555 = vpop.f32.mrf.mxu0
        %v1556 = vadd.f32 %v1295, %v1555
        %v1557 = vpop.f32.mrf.mxu0
        %v1558 = vadd.f32 %v1297, %v1557
        %1559 = vmatmul.bf16.gmra.mxu0 %v952
        %v1560 = vpop.f32.mrf.mxu0
        %v1561 = vadd.f32 %v1300, %v1560
        %v1562 = vpop.f32.mrf.mxu0
        %v1563 = vadd.f32 %v1302, %v1562
        %1564 = vmatmul.bf16.gmra.mxu0 %v954
        %v1565 = vpop.f32.mrf.mxu0
        %v1566 = vadd.f32 %v1305, %v1565
        %v1567 = vpop.f32.mrf.mxu0
        %1568 = vmatmul.bf16.gmra.mxu0 %v956
        %v1569 = vpop.f32.mrf.mxu0
        %v1570 = vadd.f32 %v1309, %v1569
        %v1571 = vpop.f32.mrf.mxu0
        %v1572 = vadd.f32 %v1311, %v1571
        %1573 = vmatmul.bf16.gmra.mxu0 %v958
        %v1574 = vpop.f32.mrf.mxu0
        %v1575 = vadd.f32 %v1314, %v1574
        %v1576 = vpop.f32.mrf.mxu0
        %v1577 = vadd.f32 %v1316, %v1576
        %1578 = vmatmul.bf16.gmra.mxu0 %v960
        %v1579 = vpop.f32.mrf.mxu0
        %v1580 = vadd.f32 %v1319, %v1579
        %v1581 = vpop.f32.mrf.mxu0
        %1582 = vmatmul.bf16.gmra.mxu0 %v962
        %v1583 = vpop.f32.mrf.mxu0
        %v1584 = vadd.f32 %v1323, %v1583
        %v1585 = vpop.f32.mrf.mxu0
        %v1586 = vadd.f32 %v1325, %v1585
        %1587 = vmatmul.bf16.gmra.mxu0 %v964
        %v1588 = vpop.f32.mrf.mxu0
        %v1589 = vadd.f32 %v1328, %v1588
        %v1590 = vpop.f32.mrf.mxu0
        %v1591 = vadd.f32 %v1330, %v1590
        %1592 = vmatmul.bf16.gmra.mxu0 %v966
        %v1593 = vpop.f32.mrf.mxu0
        %v1594 = vadd.f32 %v1333, %v1593
        %v1595 = vpop.f32.mrf.mxu0
        %1596 = vmatmul.bf16.gmra.mxu0 %v968
        %v1597 = vpop.f32.mrf.mxu0
        %v1598 = vadd.f32 %v1337, %v1597
        %v1599 = vpop.f32.mrf.mxu0
        %v1600 = vadd.f32 %v1339, %v1599
        %1601 = vmatmul.bf16.gmra.mxu0 %v970
        %v1602 = vpop.f32.mrf.mxu0
        %v1603 = vadd.f32 %v1342, %v1602
        %v1604 = vpop.f32.mrf.mxu0
        %v1605 = vadd.f32 %v1344, %v1604
        %1606 = vmatmul.bf16.gmra.mxu0 %v972
        %v1607 = vpop.f32.mrf.mxu0
        %v1608 = vadd.f32 %v1347, %v1607
        %v1609 = vpop.f32.mrf.mxu0
        %1610 = vmatmul.bf16.gmra.mxu0 %v974
        %v1611 = vpop.f32.mrf.mxu0
        %v1612 = vadd.f32 %v1351, %v1611
        %v1613 = vpop.f32.mrf.mxu0
        %v1614 = vadd.f32 %v1353, %v1613
        %1615 = vmatmul.bf16.gmra.mxu0 %v976
        %v1616 = vpop.f32.mrf.mxu0
        %v1617 = vadd.f32 %v1356, %v1616
        %v1618 = vpop.f32.mrf.mxu0
        %v1619 = vadd.f32 %v1358, %v1618
        %1620 = vmatmul.bf16.gmra.mxu0 %v978
        %v1621 = vpop.f32.mrf.mxu0
        %v1622 = vadd.f32 %v1361, %v1621
        %v1623 = vpop.f32.mrf.mxu0
        %1624 = vmatmul.bf16.gmra.mxu0 %v980
        %v1625 = vpop.f32.mrf.mxu0
        %v1626 = vadd.f32 %v1365, %v1625
        %v1627 = vpop.f32.mrf.mxu0
        %v1628 = vadd.f32 %v1367, %v1627
        %1629 = vmatmul.bf16.gmra.mxu0 %v982
        %v1630 = vpop.f32.mrf.mxu0
        %v1631 = vadd.f32 %v1370, %v1630
        %v1632 = vpop.f32.mrf.mxu0
        %v1633 = vadd.f32 %v1372, %v1632
        %1634 = vmatmul.bf16.gmra.mxu0 %v984
        %v1635 = vpop.f32.mrf.mxu0
        %v1636 = vadd.f32 %v1375, %v1635
        %v1637 = vpop.f32.mrf.mxu0
        %1638 = vmatmul.bf16.gmra.mxu0 %v986
        %v1639 = vpop.f32.mrf.mxu0
        %v1640 = vadd.f32 %v1379, %v1639
        %v1641 = vpop.f32.mrf.mxu0
        %v1642 = vadd.f32 %v1381, %v1641
        %1643 = vmatmul.bf16.gmra.mxu0 %v988
        %v1644 = vpop.f32.mrf.mxu0
        %v1645 = vadd.f32 %v1384, %v1644
        %v1646 = vpop.f32.mrf.mxu0
        %v1647 = vadd.f32 %v1386, %v1646
        %1648 = vmatmul.bf16.gmra.mxu0 %v990
        %v1649 = vpop.f32.mrf.mxu0
        %v1650 = vadd.f32 %v1389, %v1649
        %v1651 = vpop.f32.mrf.mxu0
        %1652 = vmatmul.bf16.gmra.mxu0 %v992
        %v1653 = vpop.f32.mrf.mxu0
        %v1654 = vadd.f32 %v1393, %v1653
        %v1655 = vpop.f32.mrf.mxu0
        %v1656 = vadd.f32 %v1395, %v1655
        %1657 = vmatmul.bf16.gmra.mxu0 %v994
        %v1658 = vpop.f32.mrf.mxu0
        %v1659 = vadd.f32 %v1398, %v1658
        %v1660 = vpop.f32.mrf.mxu0
        %v1661 = vadd.f32 %v1400, %v1660
        %1662 = vmatmul.bf16.gmra.mxu0 %v996
        %v1663 = vpop.f32.mrf.mxu0
        %v1664 = vadd.f32 %v1403, %v1663
        %v1665 = vpop.f32.mrf.mxu0
        %1666 = vmatmul.bf16.gmra.mxu0 %v998
        %v1667 = vpop.f32.mrf.mxu0
        %v1668 = vadd.f32 %v1407, %v1667
        %v1669 = vpop.f32.mrf.mxu0
        %v1670 = vadd.f32 %v1409, %v1669
        %1671 = vmatmul.bf16.gmra.mxu0 %v1000
        %v1672 = vpop.f32.mrf.mxu0
        %v1673 = vadd.f32 %v1412, %v1672
        %v1674 = vpop.f32.mrf.mxu0
        %v1675 = vadd.f32 %v1414, %v1674
        %1676 = vmatmul.bf16.gmra.mxu0 %v1002
        %v1677 = vpop.f32.mrf.mxu0
        %v1678 = vadd.f32 %v1417, %v1677
        %v1679 = vpop.f32.mrf.mxu0
        %1680 = vmatmul.bf16.gmra.mxu0 %v1004
        %v1681 = vpop.f32.mrf.mxu0
        %v1682 = vadd.f32 %v1421, %v1681
        %v1683 = vpop.f32.mrf.mxu0
        %v1684 = vadd.f32 %v1423, %v1683
        %1685 = vmatmul.bf16.gmra.mxu0 %v1006
        %v1686 = vpop.f32.mrf.mxu0
        %v1687 = vadd.f32 %v1426, %v1686
        %v1688 = vpop.f32.mrf.mxu0
        %v1689 = vadd.f32 %v1428, %v1688
        %1690 = vmatmul.bf16.gmra.mxu0 %v1008
        %v1691 = vpop.f32.mrf.mxu0
        %v1692 = vadd.f32 %v1431, %v1691
        %v1693 = vpop.f32.mrf.mxu0
        %1694 = vmatmul.bf16.gmra.mxu0 %v1010
        %v1695 = vpop.f32.mrf.mxu0
        %v1696 = vadd.f32 %v1435, %v1695
        %v1697 = vpop.f32.mrf.mxu0
        %v1698 = vadd.f32 %v1437, %v1697
        %1699 = vmatmul.bf16.gmra.mxu0 %v1012
        %v1700 = vpop.f32.mrf.mxu0
        %v1701 = vadd.f32 %v1440, %v1700
        %v1702 = vpop.f32.mrf.mxu0
        %v1703 = vadd.f32 %v1442, %v1702
        %1704 = vmatmul.bf16.gmra.mxu0 %v1014
        %v1705 = vpop.f32.mrf.mxu0
        %v1706 = vadd.f32 %v1445, %v1705
        %v1707 = vpop.f32.mrf.mxu0
        %1708 = vmatmul.bf16.gmra.mxu0 %v1016
        %v1709 = vpop.f32.mrf.mxu0
        %v1710 = vadd.f32 %v1449, %v1709
        %v1711 = vpop.f32.mrf.mxu0
        %v1712 = vadd.f32 %v1451, %v1711
        %1713 = vmatmul.bf16.gmra.mxu0 %v1018
        %v1714 = vpop.f32.mrf.mxu0
        %v1715 = vadd.f32 %v1454, %v1714
        %v1716 = vpop.f32.mrf.mxu0
        %v1717 = vadd.f32 %v1456, %v1716
        %1718 = vmatmul.bf16.gmra.mxu0 %v1020
        %v1719 = vpop.f32.mrf.mxu0
        %v1720 = vadd.f32 %v1459, %v1719
        %v1721 = vpop.f32.mrf.mxu0
        %1722 = vmatmul.bf16.gmra.mxu0 %v1022
        %v1723 = vpop.f32.mrf.mxu0
        %v1724 = vadd.f32 %v1463, %v1723
        %v1725 = vpop.f32.mrf.mxu0
        %v1726 = vadd.f32 %v1465, %v1725
        %1727 = vmatmul.bf16.gmra.mxu0 %v1024
        %v1728 = vpop.f32.mrf.mxu0
        %v1729 = vadd.f32 %v1468, %v1728
        %v1730 = vpop.f32.mrf.mxu0
        %v1731 = vadd.f32 %v1470, %v1730
        %1732 = vmatmul.bf16.gmra.mxu0 %v1026
        %v1733 = vpop.f32.mrf.mxu0
        %v1734 = vadd.f32 %v1473, %v1733
        %v1735 = vpop.f32.mrf.mxu0
        %1736 = vmatmul.bf16.gmra.mxu0 %v1028
        %v1737 = vpop.f32.mrf.mxu0
        %v1738 = vadd.f32 %v1477, %v1737
        %v1739 = vpop.f32.mrf.mxu0
        %v1740 = vadd.f32 %v1479, %v1739
        %1741 = vmatmul.bf16.gmra.mxu0 %v1030
        %v1742 = vpop.f32.mrf.mxu0
        %v1743 = vadd.f32 %v1482, %v1742
        %v1744 = vpop.f32.mrf.mxu0
        %v1745 = vadd.f32 %v1484, %v1744
        %1746 = vmatmul.bf16.gmra.mxu0 %v1032
        %v1747 = vpop.f32.mrf.mxu0
        %v1748 = vadd.f32 %v1487, %v1747
        %v1749 = vpop.f32.mrf.mxu0
        %1750 = vmatmul.bf16.gmra.mxu0 %v1034
        %v1751 = vpop.f32.mrf.mxu0
        %v1752 = vadd.f32 %v1491, %v1751
        %v1753 = vpop.f32.mrf.mxu0
        %v1754 = vadd.f32 %v1493, %v1753
        %1755 = vmatmul.bf16.gmra.mxu0 %v1036
        %v1756 = vpop.f32.mrf.mxu0
        %v1757 = vadd.f32 %v1496, %v1756
        %v1758 = vpop.f32.mrf.mxu0
        %v1759 = vadd.f32 %v1498, %v1758
        %1760 = vmatmul.bf16.gmra.mxu0 %v1038
        %v1761 = vpop.f32.mrf.mxu0
        %v1762 = vadd.f32 %v1501, %v1761
        %v1763 = vpop.f32.mrf.mxu0
        %1764 = vdwg.mxu0
        %v1765 = vmax.f32 %v1514, 0.0
        %v1766 = vmax.f32 %v1516, 0.0
        %v1767 = vmax.f32 %v1519, 0.0
        %v1768 = vmax.f32 %v1521, 0.0
        %v1769 = vmax.f32 %v1524, 0.0
        %v1770 = vmax.f32 %v1528, 0.0
        %v1771 = vmax.f32 %v1530, 0.0
        %v1772 = vmax.f32 %v1533, 0.0
        %v1773 = vmax.f32 %v1535, 0.0
        %v1774 = vmax.f32 %v1538, 0.0
        %v1775 = vmax.f32 %v1542, 0.0
        %v1776 = vmax.f32 %v1544, 0.0
        %v1777 = vmax.f32 %v1547, 0.0
        %v1778 = vmax.f32 %v1549, 0.0
        %v1779 = vmax.f32 %v1552, 0.0
        %v1780 = vmax.f32 %v1556, 0.0
        %v1781 = vmax.f32 %v1558, 0.0
        %v1782 = vmax.f32 %v1561, 0.0
        %v1783 = vmax.f32 %v1563, 0.0
        %v1784 = vmax.f32 %v1566, 0.0
        %v1785 = vmax.f32 %v1570, 0.0
        %v1786 = vmax.f32 %v1572, 0.0
        %v1787 = vmax.f32 %v1575, 0.0
        %v1788 = vmax.f32 %v1577, 0.0
        %v1789 = vmax.f32 %v1580, 0.0
        %v1790 = vmax.f32 %v1584, 0.0
        %v1791 = vmax.f32 %v1586, 0.0
        %v1792 = vmax.f32 %v1589, 0.0
        %v1793 = vmax.f32 %v1591, 0.0
        %v1794 = vmax.f32 %v1594, 0.0
        %v1795 = vmax.f32 %v1598, 0.0
        %v1796 = vmax.f32 %v1600, 0.0
        %v1797 = vmax.f32 %v1603, 0.0
        %v1798 = vmax.f32 %v1605, 0.0
        %v1799 = vmax.f32 %v1608, 0.0
        %v1800 = vmax.f32 %v1612, 0.0
        %v1801 = vmax.f32 %v1614, 0.0
        %v1802 = vmax.f32 %v1617, 0.0
        %v1803 = vmax.f32 %v1619, 0.0
        %v1804 = vmax.f32 %v1622, 0.0
        %v1805 = vmax.f32 %v1626, 0.0
        %v1806 = vmax.f32 %v1628, 0.0
        %v1807 = vmax.f32 %v1631, 0.0
        %v1808 = vmax.f32 %v1633, 0.0
        %v1809 = vmax.f32 %v1636, 0.0
        %v1810 = vmax.f32 %v1640, 0.0
        %v1811 = vmax.f32 %v1642, 0.0
        %v1812 = vmax.f32 %v1645, 0.0
        %v1813 = vmax.f32 %v1647, 0.0
        %v1814 = vmax.f32 %v1650, 0.0
        %v1815 = vmax.f32 %v1654, 0.0
        %v1816 = vmax.f32 %v1656, 0.0
        %v1817 = vmax.f32 %v1659, 0.0
        %v1818 = vmax.f32 %v1661, 0.0
        %v1819 = vmax.f32 %v1664, 0.0
        %v1820 = vmax.f32 %v1668, 0.0
        %v1821 = vmax.f32 %v1670, 0.0
        %v1822 = vmax.f32 %v1673, 0.0
        %v1823 = vmax.f32 %v1675, 0.0
        %v1824 = vmax.f32 %v1678, 0.0
        %v1825 = vmax.f32 %v1682, 0.0
        %v1826 = vmax.f32 %v1684, 0.0
        %v1827 = vmax.f32 %v1687, 0.0
        %v1828 = vmax.f32 %v1689, 0.0
        %v1829 = vmax.f32 %v1692, 0.0
        %v1830 = vmax.f32 %v1696, 0.0
        %v1831 = vmax.f32 %v1698, 0.0
        %v1832 = vmax.f32 %v1701, 0.0
        %v1833 = vmax.f32 %v1703, 0.0
        %v1834 = vmax.f32 %v1706, 0.0
        %v1835 = vmax.f32 %v1710, 0.0
        %v1836 = vmax.f32 %v1712, 0.0
        %v1837 = vmax.f32 %v1715, 0.0
        %v1838 = vmax.f32 %v1717, 0.0
        %v1839 = vmax.f32 %v1720, 0.0
        %v1840 = vmax.f32 %v1724, 0.0
        %v1841 = vmax.f32 %v1726, 0.0
        %v1842 = vmax.f32 %v1729, 0.0
        %v1843 = vmax.f32 %v1731, 0.0
        %v1844 = vmax.f32 %v1734, 0.0
        %v1845 = vmax.f32 %v1738, 0.0
        %v1846 = vmax.f32 %v1740, 0.0
        %v1847 = vmax.f32 %v1743, 0.0
        %v1848 = vmax.f32 %v1745, 0.0
        %v1849 = vmax.f32 %v1748, 0.0
        %v1850 = vmax.f32 %v1752, 0.0
        %v1851 = vmax.f32 %v1754, 0.0
        %v1852 = vmax.f32 %v1757, 0.0
        %v1853 = vmax.f32 %v1759, 0.0
        %v1854 = vmax.f32 %v1762, 0.0
        %v1855 = vlaneseq
        %v1856 = vshrl.u32 %v1855, 7
        %v1857 = vadd.s32 %v1856, 8
        %v1858 = vadd.s32 %v1856, 16
        %v1859 = vadd.s32 %v1856, 24
        %v1860 = vadd.s32 %v1856, 32
        %vm1861 = vcmp.ge.s32.totalorder %v1856, 1
        %vm1862 = vcmp.ge.s32.totalorder %v1857, 1
        %vm1863 = vcmp.ge.s32.totalorder %v1858, 1
        %vm1864 = vcmp.ge.s32.totalorder %v1859, 1
        %vm1865 = vcmp.ge.s32.totalorder %v1860, 1
        %vm1866 = vcmp.le.s32.totalorder %v1856, 32
        %vm1867 = vcmp.le.s32.totalorder %v1857, 32
        %vm1868 = vcmp.le.s32.totalorder %v1858, 32
        %vm1869 = vcmp.le.s32.totalorder %v1859, 32
        %vm1870 = vcmp.le.s32.totalorder %v1860, 32
        %vm1871 = vmand %vm1861, %vm1866
        %vm1872 = vmand %vm1862, %vm1867
        %vm1873 = vmand %vm1863, %vm1868
        %vm1874 = vmand %vm1864, %vm1869
        %vm1875 = vmand %vm1865, %vm1870
        %p1876 = scmp.gt.s32.totalorder %s33, 0
        %s1877 = scalar_select %p1876, 1, 0
        %v1878 = vstv %s1877
        %vm1879 = vcmp.eq.s32.totalorder %v1878, 1
        %p1880 = scmp.lt.s32.totalorder %s33, 1
        %s1881 = scalar_select %p1880, 1, 0
        %v1882 = vstv %s1881
        %vm1883 = vcmp.eq.s32.totalorder %v1882, 1
        %v1884 = vsel %vm1871, 1, 0
        %v1885 = vsel %vm1872, 1, 0
        %v1886 = vsel %vm1873, 1, 0
        %v1887 = vsel %vm1874, 1, 0
        %v1888 = vsel %vm1875, 1, 0
        %vm1889 = vcmp.eq.s32.totalorder %v1884, 1
        %vm1890 = vcmp.eq.s32.totalorder %v1885, 1
        %vm1891 = vcmp.eq.s32.totalorder %v1886, 1
        %vm1892 = vcmp.eq.s32.totalorder %v1887, 1
        %vm1893 = vcmp.eq.s32.totalorder %v1888, 1
        %v1894 = vsel %vm1879, 1, 0
        %v1895 = vsel %vm1883, 1, 0
        %vm1896 = vcmp.eq.s32.totalorder %v1894, 1
        %vm1897 = vcmp.eq.s32.totalorder %v1895, 1
        %vm1898 = vmand %vm1889, %vm1896
        %vm1899 = vmand %vm1890, %vm1896
        %vm1900 = vmand %vm1891, %vm1896
        %vm1901 = vmand %vm1892, %vm1896
        %vm1902 = vmand %vm1893, %vm1896
        %vm1903 = vmand %vm1889, 1
        %vm1904 = vmand %vm1890, 1
        %vm1905 = vmand %vm1891, 1
        %vm1906 = vmand %vm1892, 1
        %vm1907 = vmand %vm1893, 1
        %vm1908 = vmand %vm1889, %vm1897
        %vm1909 = vmand %vm1890, %vm1897
        %vm1910 = vmand %vm1891, %vm1897
        %vm1911 = vmand %vm1892, %vm1897
        %vm1912 = vmand %vm1893, %vm1897
        %v1913 = vsel %vm1898, 1, 0
        %v1914 = vsel %vm1899, 1, 0
        %v1915 = vsel %vm1900, 1, 0
        %v1916 = vsel %vm1901, 1, 0
        %v1917 = vsel %vm1902, 1, 0
        %v1918 = vsel %vm1903, 1, 0
        %v1919 = vsel %vm1904, 1, 0
        %v1920 = vsel %vm1905, 1, 0
        %v1921 = vsel %vm1906, 1, 0
        %v1922 = vsel %vm1907, 1, 0
        %v1923 = vsel %vm1908, 1, 0
        %v1924 = vsel %vm1909, 1, 0
        %v1925 = vsel %vm1910, 1, 0
        %v1926 = vsel %vm1911, 1, 0
        %v1927 = vsel %vm1912, 1, 0
        %vm1928 = vcmp.eq.s32.totalorder %v1913, 1
        %vm1929 = vcmp.eq.s32.totalorder %v1914, 1
        %vm1930 = vcmp.eq.s32.totalorder %v1915, 1
        %vm1931 = vcmp.eq.s32.totalorder %v1916, 1
        %vm1932 = vcmp.eq.s32.totalorder %v1917, 1
        %vm1933 = vcmp.eq.s32.totalorder %v1918, 1
        %vm1934 = vcmp.eq.s32.totalorder %v1919, 1
        %vm1935 = vcmp.eq.s32.totalorder %v1920, 1
        %vm1936 = vcmp.eq.s32.totalorder %v1921, 1
        %vm1937 = vcmp.eq.s32.totalorder %v1922, 1
        %vm1938 = vcmp.eq.s32.totalorder %v1923, 1
        %vm1939 = vcmp.eq.s32.totalorder %v1924, 1
        %vm1940 = vcmp.eq.s32.totalorder %v1925, 1
        %vm1941 = vcmp.eq.s32.totalorder %v1926, 1
        %vm1942 = vcmp.eq.s32.totalorder %v1927, 1
        %v1943 = vsel %vm1928, %v1765, 0.0
        %v1944 = vsel %vm1929, %v1766, 0.0
        %v1945 = vsel %vm1930, %v1767, 0.0
        %v1946 = vsel %vm1931, %v1768, 0.0
        %v1947 = vsel %vm1932, %v1769, 0.0
        %v1948 = vsel %vm1933, %v1770, 0.0
        %v1949 = vsel %vm1934, %v1771, 0.0
        %v1950 = vsel %vm1935, %v1772, 0.0
        %v1951 = vsel %vm1936, %v1773, 0.0
        %v1952 = vsel %vm1937, %v1774, 0.0
        %v1953 = vsel %vm1933, %v1775, 0.0
        %v1954 = vsel %vm1934, %v1776, 0.0
        %v1955 = vsel %vm1935, %v1777, 0.0
        %v1956 = vsel %vm1936, %v1778, 0.0
        %v1957 = vsel %vm1937, %v1779, 0.0
        %v1958 = vsel %vm1933, %v1780, 0.0
        %v1959 = vsel %vm1934, %v1781, 0.0
        %v1960 = vsel %vm1935, %v1782, 0.0
        %v1961 = vsel %vm1936, %v1783, 0.0
        %v1962 = vsel %vm1937, %v1784, 0.0
        %v1963 = vsel %vm1933, %v1785, 0.0
        %v1964 = vsel %vm1934, %v1786, 0.0
        %v1965 = vsel %vm1935, %v1787, 0.0
        %v1966 = vsel %vm1936, %v1788, 0.0
        %v1967 = vsel %vm1937, %v1789, 0.0
        %v1968 = vsel %vm1933, %v1790, 0.0
        %v1969 = vsel %vm1934, %v1791, 0.0
        %v1970 = vsel %vm1935, %v1792, 0.0
        %v1971 = vsel %vm1936, %v1793, 0.0
        %v1972 = vsel %vm1937, %v1794, 0.0
        %v1973 = vsel %vm1933, %v1795, 0.0
        %v1974 = vsel %vm1934, %v1796, 0.0
        %v1975 = vsel %vm1935, %v1797, 0.0
        %v1976 = vsel %vm1936, %v1798, 0.0
        %v1977 = vsel %vm1937, %v1799, 0.0
        %v1978 = vsel %vm1933, %v1800, 0.0
        %v1979 = vsel %vm1934, %v1801, 0.0
        %v1980 = vsel %vm1935, %v1802, 0.0
        %v1981 = vsel %vm1936, %v1803, 0.0
        %v1982 = vsel %vm1937, %v1804, 0.0
        %v1983 = vsel %vm1933, %v1805, 0.0
        %v1984 = vsel %vm1934, %v1806, 0.0
        %v1985 = vsel %vm1935, %v1807, 0.0
        %v1986 = vsel %vm1936, %v1808, 0.0
        %v1987 = vsel %vm1937, %v1809, 0.0
        %v1988 = vsel %vm1933, %v1810, 0.0
        %v1989 = vsel %vm1934, %v1811, 0.0
        %v1990 = vsel %vm1935, %v1812, 0.0
        %v1991 = vsel %vm1936, %v1813, 0.0
        %v1992 = vsel %vm1937, %v1814, 0.0
        %v1993 = vsel %vm1933, %v1815, 0.0
        %v1994 = vsel %vm1934, %v1816, 0.0
        %v1995 = vsel %vm1935, %v1817, 0.0
        %v1996 = vsel %vm1936, %v1818, 0.0
        %v1997 = vsel %vm1937, %v1819, 0.0
        %v1998 = vsel %vm1933, %v1820, 0.0
        %v1999 = vsel %vm1934, %v1821, 0.0
        %v2000 = vsel %vm1935, %v1822, 0.0
        %v2001 = vsel %vm1936, %v1823, 0.0
        %v2002 = vsel %vm1937, %v1824, 0.0
        %v2003 = vsel %vm1933, %v1825, 0.0
        %v2004 = vsel %vm1934, %v1826, 0.0
        %v2005 = vsel %vm1935, %v1827, 0.0
        %v2006 = vsel %vm1936, %v1828, 0.0
        %v2007 = vsel %vm1937, %v1829, 0.0
        %v2008 = vsel %vm1933, %v1830, 0.0
        %v2009 = vsel %vm1934, %v1831, 0.0
        %v2010 = vsel %vm1935, %v1832, 0.0
        %v2011 = vsel %vm1936, %v1833, 0.0
        %v2012 = vsel %vm1937, %v1834, 0.0
        %v2013 = vsel %vm1933, %v1835, 0.0
        %v2014 = vsel %vm1934, %v1836, 0.0
        %v2015 = vsel %vm1935, %v1837, 0.0
        %v2016 = vsel %vm1936, %v1838, 0.0
        %v2017 = vsel %vm1937, %v1839, 0.0
        %v2018 = vsel %vm1933, %v1840, 0.0
        %v2019 = vsel %vm1934, %v1841, 0.0
        %v2020 = vsel %vm1935, %v1842, 0.0
        %v2021 = vsel %vm1936, %v1843, 0.0
        %v2022 = vsel %vm1937, %v1844, 0.0
        %v2023 = vsel %vm1933, %v1845, 0.0
        %v2024 = vsel %vm1934, %v1846, 0.0
        %v2025 = vsel %vm1935, %v1847, 0.0
        %v2026 = vsel %vm1936, %v1848, 0.0
        %v2027 = vsel %vm1937, %v1849, 0.0
        %v2028 = vsel %vm1938, %v1850, 0.0
        %v2029 = vsel %vm1939, %v1851, 0.0
        %v2030 = vsel %vm1940, %v1852, 0.0
        %v2031 = vsel %vm1941, %v1853, 0.0
        %v2032 = vsel %vm1942, %v1854, 0.0
        %v2033 = vpack.c.bf16 %v1943, %v1943
        %v2034 = vpack.c.bf16 %v1944, %v1944
        %v2035 = vpack.c.bf16 %v1945, %v1945
        %v2036 = vpack.c.bf16 %v1946, %v1946
        %v2037 = vpack.c.bf16 %v1947, %v1947
        %v2038 = vpack.c.bf16 %v1948, %v1948
        %v2039 = vpack.c.bf16 %v1949, %v1949
        %v2040 = vpack.c.bf16 %v1950, %v1950
        %v2041 = vpack.c.bf16 %v1951, %v1951
        %v2042 = vpack.c.bf16 %v1952, %v1952
        %v2043 = vpack.c.bf16 %v1953, %v1953
        %v2044 = vpack.c.bf16 %v1954, %v1954
        %v2045 = vpack.c.bf16 %v1955, %v1955
        %v2046 = vpack.c.bf16 %v1956, %v1956
        %v2047 = vpack.c.bf16 %v1957, %v1957
        %v2048 = vpack.c.bf16 %v1958, %v1958
        %v2049 = vpack.c.bf16 %v1959, %v1959
        %v2050 = vpack.c.bf16 %v1960, %v1960
        %v2051 = vpack.c.bf16 %v1961, %v1961
        %v2052 = vpack.c.bf16 %v1962, %v1962
        %v2053 = vpack.c.bf16 %v1963, %v1963
        %v2054 = vpack.c.bf16 %v1964, %v1964
        %v2055 = vpack.c.bf16 %v1965, %v1965
        %v2056 = vpack.c.bf16 %v1966, %v1966
        %v2057 = vpack.c.bf16 %v1967, %v1967
        %v2058 = vpack.c.bf16 %v1968, %v1968
        %v2059 = vpack.c.bf16 %v1969, %v1969
        %v2060 = vpack.c.bf16 %v1970, %v1970
        %v2061 = vpack.c.bf16 %v1971, %v1971
        %v2062 = vpack.c.bf16 %v1972, %v1972
        %v2063 = vpack.c.bf16 %v1973, %v1973
        %v2064 = vpack.c.bf16 %v1974, %v1974
        %v2065 = vpack.c.bf16 %v1975, %v1975
        %v2066 = vpack.c.bf16 %v1976, %v1976
        %v2067 = vpack.c.bf16 %v1977, %v1977
        %v2068 = vpack.c.bf16 %v1978, %v1978
        %v2069 = vpack.c.bf16 %v1979, %v1979
        %v2070 = vpack.c.bf16 %v1980, %v1980
        %v2071 = vpack.c.bf16 %v1981, %v1981
        %v2072 = vpack.c.bf16 %v1982, %v1982
        %v2073 = vpack.c.bf16 %v1983, %v1983
        %v2074 = vpack.c.bf16 %v1984, %v1984
        %v2075 = vpack.c.bf16 %v1985, %v1985
        %v2076 = vpack.c.bf16 %v1986, %v1986
        %v2077 = vpack.c.bf16 %v1987, %v1987
        %v2078 = vpack.c.bf16 %v1988, %v1988
        %v2079 = vpack.c.bf16 %v1989, %v1989
        %v2080 = vpack.c.bf16 %v1990, %v1990
        %v2081 = vpack.c.bf16 %v1991, %v1991
        %v2082 = vpack.c.bf16 %v1992, %v1992
        %v2083 = vpack.c.bf16 %v1993, %v1993
        %v2084 = vpack.c.bf16 %v1994, %v1994
        %v2085 = vpack.c.bf16 %v1995, %v1995
        %v2086 = vpack.c.bf16 %v1996, %v1996
        %v2087 = vpack.c.bf16 %v1997, %v1997
        %v2088 = vpack.c.bf16 %v1998, %v1998
        %v2089 = vpack.c.bf16 %v1999, %v1999
        %v2090 = vpack.c.bf16 %v2000, %v2000
        %v2091 = vpack.c.bf16 %v2001, %v2001
        %v2092 = vpack.c.bf16 %v2002, %v2002
        %v2093 = vpack.c.bf16 %v2003, %v2003
        %v2094 = vpack.c.bf16 %v2004, %v2004
        %v2095 = vpack.c.bf16 %v2005, %v2005
        %v2096 = vpack.c.bf16 %v2006, %v2006
        %v2097 = vpack.c.bf16 %v2007, %v2007
        %v2098 = vpack.c.bf16 %v2008, %v2008
        %v2099 = vpack.c.bf16 %v2009, %v2009
        %v2100 = vpack.c.bf16 %v2010, %v2010
        %v2101 = vpack.c.bf16 %v2011, %v2011
        %v2102 = vpack.c.bf16 %v2012, %v2012
        %v2103 = vpack.c.bf16 %v2013, %v2013
        %v2104 = vpack.c.bf16 %v2014, %v2014
        %v2105 = vpack.c.bf16 %v2015, %v2015
        %v2106 = vpack.c.bf16 %v2016, %v2016
        %v2107 = vpack.c.bf16 %v2017, %v2017
        %v2108 = vpack.c.bf16 %v2018, %v2018
        %v2109 = vpack.c.bf16 %v2019, %v2019
        %v2110 = vpack.c.bf16 %v2020, %v2020
        %v2111 = vpack.c.bf16 %v2021, %v2021
        %v2112 = vpack.c.bf16 %v2022, %v2022
        %v2113 = vpack.c.bf16 %v2023, %v2023
        %v2114 = vpack.c.bf16 %v2024, %v2024
        %v2115 = vpack.c.bf16 %v2025, %v2025
        %v2116 = vpack.c.bf16 %v2026, %v2026
        %v2117 = vpack.c.bf16 %v2027, %v2027
        %v2118 = vpack.c.bf16 %v2028, %v2028
        %v2119 = vpack.c.bf16 %v2029, %v2029
        %v2120 = vpack.c.bf16 %v2030, %v2030
        %v2121 = vpack.c.bf16 %v2031, %v2031
        %v2122 = vpack.c.bf16 %v2032, %v2032
        %v2123 = vld [vmem:[#allocation7] sm:$0xf]
        %v2124 = vld [vmem:[#allocation7 + $0x4] sm:$0xf]
        %v2125 = vld [vmem:[#allocation7 + $0x8] sm:$0xf]
        %v2126 = vld [vmem:[#allocation7 + $0xc] sm:$0xf]
        %v2127 = vld [vmem:[#allocation7 + $0x10] sm:$0xf]
        %v2128 = vld [vmem:[#allocation7 + $0x14] sm:$0xf]
        %v2129 = vld [vmem:[#allocation7 + $0x18] sm:$0xf]
        %v2130 = vld [vmem:[#allocation7 + $0x1c] sm:$0xf]
        %vm2131 = vsmask.f32 3328
        %vm2132 = vsmask.f32 7440
        %vm2133 = vmor %vm2131, %vm2132
        %v2135 = vshrl.u32 %v2033, 16
        %v2137 = vrot.slane %v2135, 4
        %v2138 = vshll.u32 %v2033, 16
        %v2140 = vrot.slane %v2138, 5
        %v2141 = vor.u32 %v2137, %v2140
        %v2142 = vrot.slane %v2141, 4
        %v2144 = vshll.u32 %v2034, 16
        %v2146 = vrot.slane %v2144, 5
        %v2147 = vsel %vm2133, %v2142, %v2146
        %v2148 = vshrl.u32 %v2034, 16
        %v2150 = vrot.slane %v2148, 4
        %v2151 = vor.u32 %v2150, %v2146
        %v2152 = vrot.slane %v2151, 4
        %v2154 = vshll.u32 %v2035, 16
        %v2156 = vrot.slane %v2154, 5
        %v2157 = vsel %vm2133, %v2152, %v2156
        %v2158 = vshrl.u32 %v2035, 16
        %v2160 = vrot.slane %v2158, 4
        %v2161 = vor.u32 %v2160, %v2156
        %v2162 = vrot.slane %v2161, 4
        %v2164 = vshll.u32 %v2036, 16
        %v2166 = vrot.slane %v2164, 5
        %v2167 = vsel %vm2133, %v2162, %v2166
        %v2168 = vshrl.u32 %v2036, 16
        %v2170 = vrot.slane %v2168, 4
        %v2171 = vor.u32 %v2170, %v2166
        %v2172 = vrot.slane %v2171, 4
        %v2174 = vshll.u32 %v2037, 16
        %v2176 = vrot.slane %v2174, 5
        %v2177 = vsel %vm2133, %v2172, %v2176
        %v2179 = vshrl.u32 %v2038, 16
        %v2181 = vrot.slane %v2179, 4
        %v2182 = vshll.u32 %v2038, 16
        %v2184 = vrot.slane %v2182, 5
        %v2185 = vor.u32 %v2181, %v2184
        %v2186 = vrot.slane %v2185, 4
        %v2188 = vshll.u32 %v2039, 16
        %v2190 = vrot.slane %v2188, 5
        %v2191 = vsel %vm2133, %v2186, %v2190
        %v2192 = vshrl.u32 %v2039, 16
        %v2194 = vrot.slane %v2192, 4
        %v2195 = vor.u32 %v2194, %v2190
        %v2196 = vrot.slane %v2195, 4
        %v2198 = vshll.u32 %v2040, 16
        %v2200 = vrot.slane %v2198, 5
        %v2201 = vsel %vm2133, %v2196, %v2200
        %v2202 = vshrl.u32 %v2040, 16
        %v2204 = vrot.slane %v2202, 4
        %v2205 = vor.u32 %v2204, %v2200
        %v2206 = vrot.slane %v2205, 4
        %v2208 = vshll.u32 %v2041, 16
        %v2210 = vrot.slane %v2208, 5
        %v2211 = vsel %vm2133, %v2206, %v2210
        %v2212 = vshrl.u32 %v2041, 16
        %v2214 = vrot.slane %v2212, 4
        %v2215 = vor.u32 %v2214, %v2210
        %v2216 = vrot.slane %v2215, 4
        %v2218 = vshll.u32 %v2042, 16
        %v2220 = vrot.slane %v2218, 5
        %v2221 = vsel %vm2133, %v2216, %v2220
        %v2223 = vshrl.u32 %v2043, 16
        %v2225 = vrot.slane %v2223, 4
        %v2226 = vshll.u32 %v2043, 16
        %v2228 = vrot.slane %v2226, 5
        %v2229 = vor.u32 %v2225, %v2228
        %v2230 = vrot.slane %v2229, 4
        %v2232 = vshll.u32 %v2044, 16
        %v2234 = vrot.slane %v2232, 5
        %v2235 = vsel %vm2133, %v2230, %v2234
        %v2236 = vshrl.u32 %v2044, 16
        %v2238 = vrot.slane %v2236, 4
        %v2239 = vor.u32 %v2238, %v2234
        %v2240 = vrot.slane %v2239, 4
        %v2242 = vshll.u32 %v2045, 16
        %v2244 = vrot.slane %v2242, 5
        %v2245 = vsel %vm2133, %v2240, %v2244
        %v2246 = vshrl.u32 %v2045, 16
        %v2248 = vrot.slane %v2246, 4
        %v2249 = vor.u32 %v2248, %v2244
        %v2250 = vrot.slane %v2249, 4
        %v2252 = vshll.u32 %v2046, 16
        %v2254 = vrot.slane %v2252, 5
        %v2255 = vsel %vm2133, %v2250, %v2254
        %v2256 = vshrl.u32 %v2046, 16
        %v2258 = vrot.slane %v2256, 4
        %v2259 = vor.u32 %v2258, %v2254
        %v2260 = vrot.slane %v2259, 4
        %v2262 = vshll.u32 %v2047, 16
        %v2264 = vrot.slane %v2262, 5
        %v2265 = vsel %vm2133, %v2260, %v2264
        %v2267 = vshrl.u32 %v2048, 16
        %v2269 = vrot.slane %v2267, 4
        %v2270 = vshll.u32 %v2048, 16
        %v2272 = vrot.slane %v2270, 5
        %v2273 = vor.u32 %v2269, %v2272
        %v2274 = vrot.slane %v2273, 4
        %v2276 = vshll.u32 %v2049, 16
        %v2278 = vrot.slane %v2276, 5
        %v2279 = vsel %vm2133, %v2274, %v2278
        %v2280 = vshrl.u32 %v2049, 16
        %v2282 = vrot.slane %v2280, 4
        %v2283 = vor.u32 %v2282, %v2278
        %v2284 = vrot.slane %v2283, 4
        %v2286 = vshll.u32 %v2050, 16
        %v2288 = vrot.slane %v2286, 5
        %v2289 = vsel %vm2133, %v2284, %v2288
        %v2290 = vshrl.u32 %v2050, 16
        %v2292 = vrot.slane %v2290, 4
        %v2293 = vor.u32 %v2292, %v2288
        %v2294 = vrot.slane %v2293, 4
        %v2296 = vshll.u32 %v2051, 16
        %v2298 = vrot.slane %v2296, 5
        %v2299 = vsel %vm2133, %v2294, %v2298
        %v2300 = vshrl.u32 %v2051, 16
        %v2302 = vrot.slane %v2300, 4
        %v2303 = vor.u32 %v2302, %v2298
        %v2304 = vrot.slane %v2303, 4
        %v2306 = vshll.u32 %v2052, 16
        %v2308 = vrot.slane %v2306, 5
        %v2309 = vsel %vm2133, %v2304, %v2308
        %v2311 = vshrl.u32 %v2053, 16
        %v2313 = vrot.slane %v2311, 4
        %v2314 = vshll.u32 %v2053, 16
        %v2316 = vrot.slane %v2314, 5
        %v2317 = vor.u32 %v2313, %v2316
        %v2318 = vrot.slane %v2317, 4
        %v2320 = vshll.u32 %v2054, 16
        %v2322 = vrot.slane %v2320, 5
        %v2323 = vsel %vm2133, %v2318, %v2322
        %v2324 = vshrl.u32 %v2054, 16
        %v2326 = vrot.slane %v2324, 4
        %v2327 = vor.u32 %v2326, %v2322
        %v2328 = vrot.slane %v2327, 4
        %v2330 = vshll.u32 %v2055, 16
        %v2332 = vrot.slane %v2330, 5
        %v2333 = vsel %vm2133, %v2328, %v2332
        %v2334 = vshrl.u32 %v2055, 16
        %v2336 = vrot.slane %v2334, 4
        %v2337 = vor.u32 %v2336, %v2332
        %v2338 = vrot.slane %v2337, 4
        %v2340 = vshll.u32 %v2056, 16
        %v2342 = vrot.slane %v2340, 5
        %v2343 = vsel %vm2133, %v2338, %v2342
        %v2344 = vshrl.u32 %v2056, 16
        %v2346 = vrot.slane %v2344, 4
        %v2347 = vor.u32 %v2346, %v2342
        %v2348 = vrot.slane %v2347, 4
        %v2350 = vshll.u32 %v2057, 16
        %v2352 = vrot.slane %v2350, 5
        %v2353 = vsel %vm2133, %v2348, %v2352
        %v2355 = vshrl.u32 %v2058, 16
        %v2357 = vrot.slane %v2355, 4
        %v2358 = vshll.u32 %v2058, 16
        %v2360 = vrot.slane %v2358, 5
        %v2361 = vor.u32 %v2357, %v2360
        %v2362 = vrot.slane %v2361, 4
        %v2364 = vshll.u32 %v2059, 16
        %v2366 = vrot.slane %v2364, 5
        %v2367 = vsel %vm2133, %v2362, %v2366
        %v2368 = vshrl.u32 %v2059, 16
        %v2370 = vrot.slane %v2368, 4
        %v2371 = vor.u32 %v2370, %v2366
        %v2372 = vrot.slane %v2371, 4
        %v2374 = vshll.u32 %v2060, 16
        %v2376 = vrot.slane %v2374, 5
        %v2377 = vsel %vm2133, %v2372, %v2376
        %v2378 = vshrl.u32 %v2060, 16
        %v2380 = vrot.slane %v2378, 4
        %v2381 = vor.u32 %v2380, %v2376
        %v2382 = vrot.slane %v2381, 4
        %v2384 = vshll.u32 %v2061, 16
        %v2386 = vrot.slane %v2384, 5
        %v2387 = vsel %vm2133, %v2382, %v2386
        %v2388 = vshrl.u32 %v2061, 16
        %v2390 = vrot.slane %v2388, 4
        %v2391 = vor.u32 %v2390, %v2386
        %v2392 = vrot.slane %v2391, 4
        %v2394 = vshll.u32 %v2062, 16
        %v2396 = vrot.slane %v2394, 5
        %v2397 = vsel %vm2133, %v2392, %v2396
        %v2399 = vshrl.u32 %v2063, 16
        %v2401 = vrot.slane %v2399, 4
        %v2402 = vshll.u32 %v2063, 16
        %v2404 = vrot.slane %v2402, 5
        %v2405 = vor.u32 %v2401, %v2404
        %v2406 = vrot.slane %v2405, 4
        %v2408 = vshll.u32 %v2064, 16
        %v2410 = vrot.slane %v2408, 5
        %v2411 = vsel %vm2133, %v2406, %v2410
        %v2412 = vshrl.u32 %v2064, 16
        %v2414 = vrot.slane %v2412, 4
        %v2415 = vor.u32 %v2414, %v2410
        %v2416 = vrot.slane %v2415, 4
        %v2418 = vshll.u32 %v2065, 16
        %v2420 = vrot.slane %v2418, 5
        %v2421 = vsel %vm2133, %v2416, %v2420
        %v2422 = vshrl.u32 %v2065, 16
        %v2424 = vrot.slane %v2422, 4
        %v2425 = vor.u32 %v2424, %v2420
        %v2426 = vrot.slane %v2425, 4
        %v2428 = vshll.u32 %v2066, 16
        %v2430 = vrot.slane %v2428, 5
        %v2431 = vsel %vm2133, %v2426, %v2430
        %v2432 = vshrl.u32 %v2066, 16
        %v2434 = vrot.slane %v2432, 4
        %v2435 = vor.u32 %v2434, %v2430
        %v2436 = vrot.slane %v2435, 4
        %v2438 = vshll.u32 %v2067, 16
        %v2440 = vrot.slane %v2438, 5
        %v2441 = vsel %vm2133, %v2436, %v2440
        %v2443 = vshrl.u32 %v2068, 16
        %v2445 = vrot.slane %v2443, 4
        %v2446 = vshll.u32 %v2068, 16
        %v2448 = vrot.slane %v2446, 5
        %v2449 = vor.u32 %v2445, %v2448
        %v2450 = vrot.slane %v2449, 4
        %v2452 = vshll.u32 %v2069, 16
        %v2454 = vrot.slane %v2452, 5
        %v2455 = vsel %vm2133, %v2450, %v2454
        %v2456 = vshrl.u32 %v2069, 16
        %v2458 = vrot.slane %v2456, 4
        %v2459 = vor.u32 %v2458, %v2454
        %v2460 = vrot.slane %v2459, 4
        %v2462 = vshll.u32 %v2070, 16
        %v2464 = vrot.slane %v2462, 5
        %v2465 = vsel %vm2133, %v2460, %v2464
        %v2466 = vshrl.u32 %v2070, 16
        %v2468 = vrot.slane %v2466, 4
        %v2469 = vor.u32 %v2468, %v2464
        %v2470 = vrot.slane %v2469, 4
        %v2472 = vshll.u32 %v2071, 16
        %v2474 = vrot.slane %v2472, 5
        %v2475 = vsel %vm2133, %v2470, %v2474
        %v2476 = vshrl.u32 %v2071, 16
        %v2478 = vrot.slane %v2476, 4
        %v2479 = vor.u32 %v2478, %v2474
        %v2480 = vrot.slane %v2479, 4
        %v2482 = vshll.u32 %v2072, 16
        %v2484 = vrot.slane %v2482, 5
        %v2485 = vsel %vm2133, %v2480, %v2484
        %v2487 = vshrl.u32 %v2073, 16
        %v2489 = vrot.slane %v2487, 4
        %v2490 = vshll.u32 %v2073, 16
        %v2492 = vrot.slane %v2490, 5
        %v2493 = vor.u32 %v2489, %v2492
        %v2494 = vrot.slane %v2493, 4
        %v2496 = vshll.u32 %v2074, 16
        %v2498 = vrot.slane %v2496, 5
        %v2499 = vsel %vm2133, %v2494, %v2498
        %v2500 = vshrl.u32 %v2074, 16
        %v2502 = vrot.slane %v2500, 4
        %v2503 = vor.u32 %v2502, %v2498
        %v2504 = vrot.slane %v2503, 4
        %v2506 = vshll.u32 %v2075, 16
        %v2508 = vrot.slane %v2506, 5
        %v2509 = vsel %vm2133, %v2504, %v2508
        %v2510 = vshrl.u32 %v2075, 16
        %v2512 = vrot.slane %v2510, 4
        %v2513 = vor.u32 %v2512, %v2508
        %v2514 = vrot.slane %v2513, 4
        %v2516 = vshll.u32 %v2076, 16
        %v2518 = vrot.slane %v2516, 5
        %v2519 = vsel %vm2133, %v2514, %v2518
        %v2520 = vshrl.u32 %v2076, 16
        %v2522 = vrot.slane %v2520, 4
        %v2523 = vor.u32 %v2522, %v2518
        %v2524 = vrot.slane %v2523, 4
        %v2526 = vshll.u32 %v2077, 16
        %v2528 = vrot.slane %v2526, 5
        %v2529 = vsel %vm2133, %v2524, %v2528
        %v2531 = vshrl.u32 %v2078, 16
        %v2533 = vrot.slane %v2531, 4
        %v2534 = vshll.u32 %v2078, 16
        %v2536 = vrot.slane %v2534, 5
        %v2537 = vor.u32 %v2533, %v2536
        %v2538 = vrot.slane %v2537, 4
        %v2540 = vshll.u32 %v2079, 16
        %v2542 = vrot.slane %v2540, 5
        %v2543 = vsel %vm2133, %v2538, %v2542
        %v2544 = vshrl.u32 %v2079, 16
        %v2546 = vrot.slane %v2544, 4
        %v2547 = vor.u32 %v2546, %v2542
        %v2548 = vrot.slane %v2547, 4
        %v2550 = vshll.u32 %v2080, 16
        %v2552 = vrot.slane %v2550, 5
        %v2553 = vsel %vm2133, %v2548, %v2552
        %v2554 = vshrl.u32 %v2080, 16
        %v2556 = vrot.slane %v2554, 4
        %v2557 = vor.u32 %v2556, %v2552
        %v2558 = vrot.slane %v2557, 4
        %v2560 = vshll.u32 %v2081, 16
        %v2562 = vrot.slane %v2560, 5
        %v2563 = vsel %vm2133, %v2558, %v2562
        %v2564 = vshrl.u32 %v2081, 16
        %v2566 = vrot.slane %v2564, 4
        %v2567 = vor.u32 %v2566, %v2562
        %v2568 = vrot.slane %v2567, 4
        %v2570 = vshll.u32 %v2082, 16
        %v2572 = vrot.slane %v2570, 5
        %v2573 = vsel %vm2133, %v2568, %v2572
        %v2575 = vshrl.u32 %v2083, 16
        %v2577 = vrot.slane %v2575, 4
        %v2578 = vshll.u32 %v2083, 16
        %v2580 = vrot.slane %v2578, 5
        %v2581 = vor.u32 %v2577, %v2580
        %v2582 = vrot.slane %v2581, 4
        %v2584 = vshll.u32 %v2084, 16
        %v2586 = vrot.slane %v2584, 5
        %v2587 = vsel %vm2133, %v2582, %v2586
        %v2588 = vshrl.u32 %v2084, 16
        %v2590 = vrot.slane %v2588, 4
        %v2591 = vor.u32 %v2590, %v2586
        %v2592 = vrot.slane %v2591, 4
        %v2594 = vshll.u32 %v2085, 16
        %v2596 = vrot.slane %v2594, 5
        %v2597 = vsel %vm2133, %v2592, %v2596
        %v2598 = vshrl.u32 %v2085, 16
        %v2600 = vrot.slane %v2598, 4
        %v2601 = vor.u32 %v2600, %v2596
        %v2602 = vrot.slane %v2601, 4
        %v2604 = vshll.u32 %v2086, 16
        %v2606 = vrot.slane %v2604, 5
        %v2607 = vsel %vm2133, %v2602, %v2606
        %v2608 = vshrl.u32 %v2086, 16
        %v2610 = vrot.slane %v2608, 4
        %v2611 = vor.u32 %v2610, %v2606
        %v2612 = vrot.slane %v2611, 4
        %v2614 = vshll.u32 %v2087, 16
        %v2616 = vrot.slane %v2614, 5
        %v2617 = vsel %vm2133, %v2612, %v2616
        %v2619 = vshrl.u32 %v2088, 16
        %v2621 = vrot.slane %v2619, 4
        %v2622 = vshll.u32 %v2088, 16
        %v2624 = vrot.slane %v2622, 5
        %v2625 = vor.u32 %v2621, %v2624
        %v2626 = vrot.slane %v2625, 4
        %v2628 = vshll.u32 %v2089, 16
        %v2630 = vrot.slane %v2628, 5
        %v2631 = vsel %vm2133, %v2626, %v2630
        %v2632 = vshrl.u32 %v2089, 16
        %v2634 = vrot.slane %v2632, 4
        %v2635 = vor.u32 %v2634, %v2630
        %v2636 = vrot.slane %v2635, 4
        %v2638 = vshll.u32 %v2090, 16
        %v2640 = vrot.slane %v2638, 5
        %v2641 = vsel %vm2133, %v2636, %v2640
        %v2642 = vshrl.u32 %v2090, 16
        %v2644 = vrot.slane %v2642, 4
        %v2645 = vor.u32 %v2644, %v2640
        %v2646 = vrot.slane %v2645, 4
        %v2648 = vshll.u32 %v2091, 16
        %v2650 = vrot.slane %v2648, 5
        %v2651 = vsel %vm2133, %v2646, %v2650
        %v2652 = vshrl.u32 %v2091, 16
        %v2654 = vrot.slane %v2652, 4
        %v2655 = vor.u32 %v2654, %v2650
        %v2656 = vrot.slane %v2655, 4
        %v2658 = vshll.u32 %v2092, 16
        %v2660 = vrot.slane %v2658, 5
        %v2661 = vsel %vm2133, %v2656, %v2660
        %v2663 = vshrl.u32 %v2093, 16
        %v2665 = vrot.slane %v2663, 4
        %v2666 = vshll.u32 %v2093, 16
        %v2668 = vrot.slane %v2666, 5
        %v2669 = vor.u32 %v2665, %v2668
        %v2670 = vrot.slane %v2669, 4
        %v2672 = vshll.u32 %v2094, 16
        %v2674 = vrot.slane %v2672, 5
        %v2675 = vsel %vm2133, %v2670, %v2674
        %v2676 = vshrl.u32 %v2094, 16
        %v2678 = vrot.slane %v2676, 4
        %v2679 = vor.u32 %v2678, %v2674
        %v2680 = vrot.slane %v2679, 4
        %v2682 = vshll.u32 %v2095, 16
        %v2684 = vrot.slane %v2682, 5
        %v2685 = vsel %vm2133, %v2680, %v2684
        %v2686 = vshrl.u32 %v2095, 16
        %v2688 = vrot.slane %v2686, 4
        %v2689 = vor.u32 %v2688, %v2684
        %v2690 = vrot.slane %v2689, 4
        %v2692 = vshll.u32 %v2096, 16
        %v2694 = vrot.slane %v2692, 5
        %v2695 = vsel %vm2133, %v2690, %v2694
        %v2696 = vshrl.u32 %v2096, 16
        %v2698 = vrot.slane %v2696, 4
        %v2699 = vor.u32 %v2698, %v2694
        %v2700 = vrot.slane %v2699, 4
        %v2702 = vshll.u32 %v2097, 16
        %v2704 = vrot.slane %v2702, 5
        %v2705 = vsel %vm2133, %v2700, %v2704
        %v2707 = vshrl.u32 %v2098, 16
        %v2709 = vrot.slane %v2707, 4
        %v2710 = vshll.u32 %v2098, 16
        %v2712 = vrot.slane %v2710, 5
        %v2713 = vor.u32 %v2709, %v2712
        %v2714 = vrot.slane %v2713, 4
        %v2716 = vshll.u32 %v2099, 16
        %v2718 = vrot.slane %v2716, 5
        %v2719 = vsel %vm2133, %v2714, %v2718
        %v2720 = vshrl.u32 %v2099, 16
        %v2722 = vrot.slane %v2720, 4
        %v2723 = vor.u32 %v2722, %v2718
        %v2724 = vrot.slane %v2723, 4
        %v2726 = vshll.u32 %v2100, 16
        %v2728 = vrot.slane %v2726, 5
        %v2729 = vsel %vm2133, %v2724, %v2728
        %v2730 = vshrl.u32 %v2100, 16
        %v2732 = vrot.slane %v2730, 4
        %v2733 = vor.u32 %v2732, %v2728
        %v2734 = vrot.slane %v2733, 4
        %v2736 = vshll.u32 %v2101, 16
        %v2738 = vrot.slane %v2736, 5
        %v2739 = vsel %vm2133, %v2734, %v2738
        %v2740 = vshrl.u32 %v2101, 16
        %v2742 = vrot.slane %v2740, 4
        %v2743 = vor.u32 %v2742, %v2738
        %v2744 = vrot.slane %v2743, 4
        %v2746 = vshll.u32 %v2102, 16
        %v2748 = vrot.slane %v2746, 5
        %v2749 = vsel %vm2133, %v2744, %v2748
        %v2751 = vshrl.u32 %v2103, 16
        %v2753 = vrot.slane %v2751, 4
        %v2754 = vshll.u32 %v2103, 16
        %v2756 = vrot.slane %v2754, 5
        %v2757 = vor.u32 %v2753, %v2756
        %v2758 = vrot.slane %v2757, 4
        %v2760 = vshll.u32 %v2104, 16
        %v2762 = vrot.slane %v2760, 5
        %v2763 = vsel %vm2133, %v2758, %v2762
        %v2764 = vshrl.u32 %v2104, 16
        %v2766 = vrot.slane %v2764, 4
        %v2767 = vor.u32 %v2766, %v2762
        %v2768 = vrot.slane %v2767, 4
        %v2770 = vshll.u32 %v2105, 16
        %v2772 = vrot.slane %v2770, 5
        %v2773 = vsel %vm2133, %v2768, %v2772
        %v2774 = vshrl.u32 %v2105, 16
        %v2776 = vrot.slane %v2774, 4
        %v2777 = vor.u32 %v2776, %v2772
        %v2778 = vrot.slane %v2777, 4
        %v2780 = vshll.u32 %v2106, 16
        %v2782 = vrot.slane %v2780, 5
        %v2783 = vsel %vm2133, %v2778, %v2782
        %v2784 = vshrl.u32 %v2106, 16
        %v2786 = vrot.slane %v2784, 4
        %v2787 = vor.u32 %v2786, %v2782
        %v2788 = vrot.slane %v2787, 4
        %v2790 = vshll.u32 %v2107, 16
        %v2792 = vrot.slane %v2790, 5
        %v2793 = vsel %vm2133, %v2788, %v2792
        %v2795 = vshrl.u32 %v2108, 16
        %v2797 = vrot.slane %v2795, 4
        %v2798 = vshll.u32 %v2108, 16
        %v2800 = vrot.slane %v2798, 5
        %v2801 = vor.u32 %v2797, %v2800
        %v2802 = vrot.slane %v2801, 4
        %v2804 = vshll.u32 %v2109, 16
        %v2806 = vrot.slane %v2804, 5
        %v2807 = vsel %vm2133, %v2802, %v2806
        %v2808 = vshrl.u32 %v2109, 16
        %v2810 = vrot.slane %v2808, 4
        %v2811 = vor.u32 %v2810, %v2806
        %v2812 = vrot.slane %v2811, 4
        %v2814 = vshll.u32 %v2110, 16
        %v2816 = vrot.slane %v2814, 5
        %v2817 = vsel %vm2133, %v2812, %v2816
        %v2818 = vshrl.u32 %v2110, 16
        %v2820 = vrot.slane %v2818, 4
        %v2821 = vor.u32 %v2820, %v2816
        %v2822 = vrot.slane %v2821, 4
        %v2824 = vshll.u32 %v2111, 16
        %v2826 = vrot.slane %v2824, 5
        %v2827 = vsel %vm2133, %v2822, %v2826
        %v2828 = vshrl.u32 %v2111, 16
        %v2830 = vrot.slane %v2828, 4
        %v2831 = vor.u32 %v2830, %v2826
        %v2832 = vrot.slane %v2831, 4
        %v2834 = vshll.u32 %v2112, 16
        %v2836 = vrot.slane %v2834, 5
        %v2837 = vsel %vm2133, %v2832, %v2836
        %s2838 = scalar_lea.vmem [#allocation7], 32
        %v2839 = vld [vmem:[%s2838] sm:$0xf]
        %v2840 = vld [vmem:[%s2838 + $0x4] sm:$0xf]
        %v2841 = vld [vmem:[%s2838 + $0x8] sm:$0xf]
        %v2842 = vld [vmem:[%s2838 + $0xc] sm:$0xf]
        %v2843 = vld [vmem:[%s2838 + $0x10] sm:$0xf]
        %v2844 = vld [vmem:[%s2838 + $0x14] sm:$0xf]
        %v2845 = vld [vmem:[%s2838 + $0x18] sm:$0xf]
        %v2846 = vld [vmem:[%s2838 + $0x1c] sm:$0xf]
        %v2847 = vunpack.c.l.b16 %v2147
        %v2848 = vunpack.c.l.b16 %v2157
        %v2849 = vunpack.c.l.b16 %v2167
        %v2850 = vunpack.c.l.b16 %v2177
        %v2851 = vunpack.c.l.b16 %v2191
        %v2852 = vunpack.c.l.b16 %v2201
        %v2853 = vunpack.c.l.b16 %v2211
        %v2854 = vunpack.c.l.b16 %v2221
        %v2855 = vunpack.c.l.b16 %v2235
        %v2856 = vunpack.c.l.b16 %v2245
        %v2857 = vunpack.c.l.b16 %v2255
        %v2858 = vunpack.c.l.b16 %v2265
        %v2859 = vunpack.c.l.b16 %v2279
        %v2860 = vunpack.c.l.b16 %v2289
        %v2861 = vunpack.c.l.b16 %v2299
        %v2862 = vunpack.c.l.b16 %v2309
        %v2863 = vunpack.c.l.b16 %v2323
        %v2864 = vunpack.c.l.b16 %v2333
        %v2865 = vunpack.c.l.b16 %v2343
        %v2866 = vunpack.c.l.b16 %v2353
        %v2867 = vunpack.c.l.b16 %v2367
        %v2868 = vunpack.c.l.b16 %v2377
        %v2869 = vunpack.c.l.b16 %v2387
        %v2870 = vunpack.c.l.b16 %v2397
        %v2871 = vunpack.c.l.b16 %v2411
        %v2872 = vunpack.c.l.b16 %v2421
        %v2873 = vunpack.c.l.b16 %v2431
        %v2874 = vunpack.c.l.b16 %v2441
        %v2875 = vunpack.c.l.b16 %v2455
        %v2876 = vunpack.c.l.b16 %v2465
        %v2877 = vunpack.c.l.b16 %v2475
        %v2878 = vunpack.c.l.b16 %v2485
        %v2879 = vunpack.c.l.b16 %v2499
        %v2880 = vunpack.c.l.b16 %v2509
        %v2881 = vunpack.c.l.b16 %v2519
        %v2882 = vunpack.c.l.b16 %v2529
        %v2883 = vunpack.c.l.b16 %v2543
        %v2884 = vunpack.c.l.b16 %v2553
        %v2885 = vunpack.c.l.b16 %v2563
        %v2886 = vunpack.c.l.b16 %v2573
        %v2887 = vunpack.c.l.b16 %v2587
        %v2888 = vunpack.c.l.b16 %v2597
        %v2889 = vunpack.c.l.b16 %v2607
        %v2890 = vunpack.c.l.b16 %v2617
        %v2891 = vunpack.c.l.b16 %v2631
        %v2892 = vunpack.c.l.b16 %v2641
        %v2893 = vunpack.c.l.b16 %v2651
        %v2894 = vunpack.c.l.b16 %v2661
        %v2895 = vunpack.c.l.b16 %v2675
        %v2896 = vunpack.c.l.b16 %v2685
        %v2897 = vunpack.c.l.b16 %v2695
        %v2898 = vunpack.c.l.b16 %v2705
        %v2899 = vunpack.c.l.b16 %v2719
        %v2900 = vunpack.c.l.b16 %v2729
        %v2901 = vunpack.c.l.b16 %v2739
        %v2902 = vunpack.c.l.b16 %v2749
        %v2903 = vunpack.c.l.b16 %v2763
        %v2904 = vunpack.c.l.b16 %v2773
        %v2905 = vunpack.c.l.b16 %v2783
        %v2906 = vunpack.c.l.b16 %v2793
        %v2907 = vunpack.c.l.b16 %v2807
        %v2908 = vunpack.c.l.b16 %v2817
        %v2909 = vunpack.c.l.b16 %v2827
        %v2910 = vunpack.c.l.b16 %v2837
        %v2911 = vpack.c.b16 %v2848, %v2847
        %v2912 = vpack.c.b16 %v2850, %v2849
        %v2913 = vpack.c.b16 %v2852, %v2851
        %v2914 = vpack.c.b16 %v2854, %v2853
        %v2915 = vpack.c.b16 %v2856, %v2855
        %v2916 = vpack.c.b16 %v2858, %v2857
        %v2917 = vpack.c.b16 %v2860, %v2859
        %v2918 = vpack.c.b16 %v2862, %v2861
        %v2919 = vpack.c.b16 %v2864, %v2863
        %v2920 = vpack.c.b16 %v2866, %v2865
        %v2921 = vpack.c.b16 %v2868, %v2867
        %v2922 = vpack.c.b16 %v2870, %v2869
        %v2923 = vpack.c.b16 %v2872, %v2871
        %v2924 = vpack.c.b16 %v2874, %v2873
        %v2925 = vpack.c.b16 %v2876, %v2875
        %v2926 = vpack.c.b16 %v2878, %v2877
        %v2927 = vpack.c.b16 %v2880, %v2879
        %v2928 = vpack.c.b16 %v2882, %v2881
        %v2929 = vpack.c.b16 %v2884, %v2883
        %v2930 = vpack.c.b16 %v2886, %v2885
        %v2931 = vpack.c.b16 %v2888, %v2887
        %v2932 = vpack.c.b16 %v2890, %v2889
        %v2933 = vpack.c.b16 %v2892, %v2891
        %v2934 = vpack.c.b16 %v2894, %v2893
        %v2935 = vpack.c.b16 %v2896, %v2895
        %v2936 = vpack.c.b16 %v2898, %v2897
        %v2937 = vpack.c.b16 %v2900, %v2899
        %v2938 = vpack.c.b16 %v2902, %v2901
        %v2939 = vpack.c.b16 %v2904, %v2903
        %v2940 = vpack.c.b16 %v2906, %v2905
        %v2941 = vpack.c.b16 %v2908, %v2907
        %v2942 = vpack.c.b16 %v2910, %v2909
        %v2951 = vunpack.c.l.b16 %v2839
        %v2952 = vunpack.c.l.b16 %v2840
        %v2953 = vunpack.c.l.b16 %v2841
        %v2954 = vunpack.c.l.b16 %v2842
        %v2955 = vunpack.c.l.b16 %v2843
        %v2956 = vunpack.c.l.b16 %v2844
        %v2957 = vunpack.c.l.b16 %v2845
        %v2958 = vunpack.c.l.b16 %v2846
        %v2959 = vpack.c.b16 %v2952, %v2951
        %v2960 = vpack.c.b16 %v2954, %v2953
        %v2961 = vpack.c.b16 %v2956, %v2955
        %v2962 = vpack.c.b16 %v2958, %v2957
        %vm2967 = vcmask 523264
        %v2969 = vsel %vm2967, %v2911, 0
        %v2972 = vsel %vm2967, %v2912, 0
        %v2975 = vsel %vm2967, %v2913, 0
        %v2978 = vsel %vm2967, %v2914, 0
        %v2981 = vsel %vm2967, %v2915, 0
        %v2984 = vsel %vm2967, %v2916, 0
        %v2987 = vsel %vm2967, %v2917, 0
        %v2990 = vsel %vm2967, %v2918, 0
        %v2993 = vsel %vm2967, %v2919, 0
        %v2996 = vsel %vm2967, %v2920, 0
        %v2999 = vsel %vm2967, %v2921, 0
        %v3002 = vsel %vm2967, %v2922, 0
        %v3005 = vsel %vm2967, %v2923, 0
        %v3008 = vsel %vm2967, %v2924, 0
        %v3011 = vsel %vm2967, %v2925, 0
        %v3014 = vsel %vm2967, %v2926, 0
        %v3017 = vsel %vm2967, %v2927, 0
        %v3020 = vsel %vm2967, %v2928, 0
        %v3023 = vsel %vm2967, %v2929, 0
        %v3026 = vsel %vm2967, %v2930, 0
        %v3029 = vsel %vm2967, %v2931, 0
        %v3032 = vsel %vm2967, %v2932, 0
        %v3035 = vsel %vm2967, %v2933, 0
        %v3038 = vsel %vm2967, %v2934, 0
        %v3041 = vsel %vm2967, %v2935, 0
        %v3044 = vsel %vm2967, %v2936, 0
        %v3047 = vsel %vm2967, %v2937, 0
        %v3050 = vsel %vm2967, %v2938, 0
        %v3053 = vsel %vm2967, %v2939, 0
        %v3056 = vsel %vm2967, %v2940, 0
        %v3059 = vsel %vm2967, %v2941, 0
        %v3062 = vsel %vm2967, %v2942, 0
        %3064 = vmatpush.bf16.msra.mxu0 0
        %3065 = vmatpush.bf16.msra.mxu0 0
        %3066 = vmatpush.bf16.msra.mxu0 0
        %3067 = vmatpush.bf16.msra.mxu0 0
        %3068 = vmatpush.bf16.msra.mxu0 %v2962
        %3069 = vmatpush.bf16.msra.mxu0 %v2961
        %3070 = vmatpush.bf16.msra.mxu0 %v2960
        %3071 = vmatpush.bf16.msra.mxu0 %v2959
        %3072 = vmatmul.bf16.gmra.mxu0 %v2969
        %v3073 = vpop.f32.mrf.mxu0
        %v3074 = vadd.f32 0.0, %v3073
        %v3075 = vpop.f32.mrf.mxu0
        %v3076 = vadd.f32 0.0, %v3075
        %3077 = vmatmul.bf16.gmra.mxu0 %v2972
        %v3078 = vpop.f32.mrf.mxu0
        %v3079 = vadd.f32 0.0, %v3078
        %v3080 = vpop.f32.mrf.mxu0
        %v3081 = vadd.f32 0.0, %v3080
        %3082 = vmatmul.bf16.gmra.mxu0 %v2975
        %v3083 = vpop.f32.mrf.mxu0
        %v3084 = vadd.f32 0.0, %v3083
        %v3085 = vpop.f32.mrf.mxu0
        %v3086 = vadd.f32 0.0, %v3085
        %3087 = vmatmul.bf16.gmra.mxu0 %v2978
        %v3088 = vpop.f32.mrf.mxu0
        %v3089 = vadd.f32 0.0, %v3088
        %v3090 = vpop.f32.mrf.mxu0
        %v3091 = vadd.f32 0.0, %v3090
        %3092 = vmatmul.bf16.gmra.mxu0 %v2981
        %v3093 = vpop.f32.mrf.mxu0
        %v3094 = vadd.f32 0.0, %v3093
        %v3095 = vpop.f32.mrf.mxu0
        %v3096 = vadd.f32 0.0, %v3095
        %3097 = vmatmul.bf16.gmra.mxu0 %v2984
        %v3098 = vpop.f32.mrf.mxu0
        %v3099 = vadd.f32 0.0, %v3098
        %v3100 = vpop.f32.mrf.mxu0
        %v3101 = vadd.f32 0.0, %v3100
        %3102 = vmatmul.bf16.gmra.mxu0 %v2987
        %v3103 = vpop.f32.mrf.mxu0
        %v3104 = vadd.f32 0.0, %v3103
        %v3105 = vpop.f32.mrf.mxu0
        %v3106 = vadd.f32 0.0, %v3105
        %3107 = vmatmul.bf16.gmra.mxu0 %v2990
        %v3108 = vpop.f32.mrf.mxu0
        %v3109 = vadd.f32 0.0, %v3108
        %v3110 = vpop.f32.mrf.mxu0
        %v3111 = vadd.f32 0.0, %v3110
        %3112 = vmatmul.bf16.gmra.mxu0 %v2993
        %v3113 = vpop.f32.mrf.mxu0
        %v3114 = vadd.f32 0.0, %v3113
        %v3115 = vpop.f32.mrf.mxu0
        %v3116 = vadd.f32 0.0, %v3115
        %3117 = vmatmul.bf16.gmra.mxu0 %v2996
        %v3118 = vpop.f32.mrf.mxu0
        %v3119 = vadd.f32 0.0, %v3118
        %v3120 = vpop.f32.mrf.mxu0
        %v3121 = vadd.f32 0.0, %v3120
        %3122 = vmatmul.bf16.gmra.mxu0 %v2999
        %v3123 = vpop.f32.mrf.mxu0
        %v3124 = vadd.f32 0.0, %v3123
        %v3125 = vpop.f32.mrf.mxu0
        %v3126 = vadd.f32 0.0, %v3125
        %3127 = vmatmul.bf16.gmra.mxu0 %v3002
        %v3128 = vpop.f32.mrf.mxu0
        %v3129 = vadd.f32 0.0, %v3128
        %v3130 = vpop.f32.mrf.mxu0
        %v3131 = vadd.f32 0.0, %v3130
        %3132 = vmatmul.bf16.gmra.mxu0 %v3005
        %v3133 = vpop.f32.mrf.mxu0
        %v3134 = vadd.f32 0.0, %v3133
        %v3135 = vpop.f32.mrf.mxu0
        %v3136 = vadd.f32 0.0, %v3135
        %3137 = vmatmul.bf16.gmra.mxu0 %v3008
        %v3138 = vpop.f32.mrf.mxu0
        %v3139 = vadd.f32 0.0, %v3138
        %v3140 = vpop.f32.mrf.mxu0
        %v3141 = vadd.f32 0.0, %v3140
        %3142 = vmatmul.bf16.gmra.mxu0 %v3011
        %v3143 = vpop.f32.mrf.mxu0
        %v3144 = vadd.f32 0.0, %v3143
        %v3145 = vpop.f32.mrf.mxu0
        %v3146 = vadd.f32 0.0, %v3145
        %3147 = vmatmul.bf16.gmra.mxu0 %v3014
        %v3148 = vpop.f32.mrf.mxu0
        %v3149 = vadd.f32 0.0, %v3148
        %v3150 = vpop.f32.mrf.mxu0
        %v3151 = vadd.f32 0.0, %v3150
        %3152 = vmatmul.bf16.gmra.mxu0 %v3017
        %v3153 = vpop.f32.mrf.mxu0
        %v3154 = vadd.f32 0.0, %v3153
        %v3155 = vpop.f32.mrf.mxu0
        %v3156 = vadd.f32 0.0, %v3155
        %3157 = vmatmul.bf16.gmra.mxu0 %v3020
        %v3158 = vpop.f32.mrf.mxu0
        %v3159 = vadd.f32 0.0, %v3158
        %v3160 = vpop.f32.mrf.mxu0
        %v3161 = vadd.f32 0.0, %v3160
        %3162 = vmatmul.bf16.gmra.mxu0 %v3023
        %v3163 = vpop.f32.mrf.mxu0
        %v3164 = vadd.f32 0.0, %v3163
        %v3165 = vpop.f32.mrf.mxu0
        %v3166 = vadd.f32 0.0, %v3165
        %3167 = vmatmul.bf16.gmra.mxu0 %v3026
        %v3168 = vpop.f32.mrf.mxu0
        %v3169 = vadd.f32 0.0, %v3168
        %v3170 = vpop.f32.mrf.mxu0
        %v3171 = vadd.f32 0.0, %v3170
        %3172 = vmatmul.bf16.gmra.mxu0 %v3029
        %v3173 = vpop.f32.mrf.mxu0
        %v3174 = vadd.f32 0.0, %v3173
        %v3175 = vpop.f32.mrf.mxu0
        %v3176 = vadd.f32 0.0, %v3175
        %3177 = vmatmul.bf16.gmra.mxu0 %v3032
        %v3178 = vpop.f32.mrf.mxu0
        %v3179 = vadd.f32 0.0, %v3178
        %v3180 = vpop.f32.mrf.mxu0
        %v3181 = vadd.f32 0.0, %v3180
        %3182 = vmatmul.bf16.gmra.mxu0 %v3035
        %v3183 = vpop.f32.mrf.mxu0
        %v3184 = vadd.f32 0.0, %v3183
        %v3185 = vpop.f32.mrf.mxu0
        %v3186 = vadd.f32 0.0, %v3185
        %3187 = vmatmul.bf16.gmra.mxu0 %v3038
        %v3188 = vpop.f32.mrf.mxu0
        %v3189 = vadd.f32 0.0, %v3188
        %v3190 = vpop.f32.mrf.mxu0
        %v3191 = vadd.f32 0.0, %v3190
        %3192 = vmatmul.bf16.gmra.mxu0 %v3041
        %v3193 = vpop.f32.mrf.mxu0
        %v3194 = vadd.f32 0.0, %v3193
        %v3195 = vpop.f32.mrf.mxu0
        %v3196 = vadd.f32 0.0, %v3195
        %3197 = vmatmul.bf16.gmra.mxu0 %v3044
        %v3198 = vpop.f32.mrf.mxu0
        %v3199 = vadd.f32 0.0, %v3198
        %v3200 = vpop.f32.mrf.mxu0
        %v3201 = vadd.f32 0.0, %v3200
        %3202 = vmatmul.bf16.gmra.mxu0 %v3047
        %v3203 = vpop.f32.mrf.mxu0
        %v3204 = vadd.f32 0.0, %v3203
        %v3205 = vpop.f32.mrf.mxu0
        %v3206 = vadd.f32 0.0, %v3205
        %3207 = vmatmul.bf16.gmra.mxu0 %v3050
        %v3208 = vpop.f32.mrf.mxu0
        %v3209 = vadd.f32 0.0, %v3208
        %v3210 = vpop.f32.mrf.mxu0
        %v3211 = vadd.f32 0.0, %v3210
        %3212 = vmatmul.bf16.gmra.mxu0 %v3053
        %v3213 = vpop.f32.mrf.mxu0
        %v3214 = vadd.f32 0.0, %v3213
        %v3215 = vpop.f32.mrf.mxu0
        %v3216 = vadd.f32 0.0, %v3215
        %3217 = vmatmul.bf16.gmra.mxu0 %v3056
        %v3218 = vpop.f32.mrf.mxu0
        %v3219 = vadd.f32 0.0, %v3218
        %v3220 = vpop.f32.mrf.mxu0
        %v3221 = vadd.f32 0.0, %v3220
        %3222 = vmatmul.bf16.gmra.mxu0 %v3059
        %v3223 = vpop.f32.mrf.mxu0
        %v3224 = vadd.f32 0.0, %v3223
        %v3225 = vpop.f32.mrf.mxu0
        %v3226 = vadd.f32 0.0, %v3225
        %3227 = vmatmul.bf16.gmra.mxu0 %v3062
        %v3228 = vpop.f32.mrf.mxu0
        %v3229 = vadd.f32 0.0, %v3228
        %v3230 = vpop.f32.mrf.mxu0
        %v3231 = vadd.f32 0.0, %v3230
        %3232 = vdwg.mxu0
        %v3297 = vunpack.c.l.b16 %v2033
        %v3298 = vunpack.c.l.b16 %v2034
        %v3299 = vunpack.c.l.b16 %v2035
        %v3300 = vunpack.c.l.b16 %v2036
        %v3301 = vunpack.c.l.b16 %v2038
        %v3302 = vunpack.c.l.b16 %v2039
        %v3303 = vunpack.c.l.b16 %v2040
        %v3304 = vunpack.c.l.b16 %v2041
        %v3305 = vunpack.c.l.b16 %v2043
        %v3306 = vunpack.c.l.b16 %v2044
        %v3307 = vunpack.c.l.b16 %v2045
        %v3308 = vunpack.c.l.b16 %v2046
        %v3309 = vunpack.c.l.b16 %v2048
        %v3310 = vunpack.c.l.b16 %v2049
        %v3311 = vunpack.c.l.b16 %v2050
        %v3312 = vunpack.c.l.b16 %v2051
        %v3313 = vunpack.c.l.b16 %v2053
        %v3314 = vunpack.c.l.b16 %v2054
        %v3315 = vunpack.c.l.b16 %v2055
        %v3316 = vunpack.c.l.b16 %v2056
        %v3317 = vunpack.c.l.b16 %v2058
        %v3318 = vunpack.c.l.b16 %v2059
        %v3319 = vunpack.c.l.b16 %v2060
        %v3320 = vunpack.c.l.b16 %v2061
        %v3321 = vunpack.c.l.b16 %v2063
        %v3322 = vunpack.c.l.b16 %v2064
        %v3323 = vunpack.c.l.b16 %v2065
        %v3324 = vunpack.c.l.b16 %v2066
        %v3325 = vunpack.c.l.b16 %v2068
        %v3326 = vunpack.c.l.b16 %v2069
        %v3327 = vunpack.c.l.b16 %v2070
        %v3328 = vunpack.c.l.b16 %v2071
        %v3329 = vunpack.c.l.b16 %v2073
        %v3330 = vunpack.c.l.b16 %v2074
        %v3331 = vunpack.c.l.b16 %v2075
        %v3332 = vunpack.c.l.b16 %v2076
        %v3333 = vunpack.c.l.b16 %v2078
        %v3334 = vunpack.c.l.b16 %v2079
        %v3335 = vunpack.c.l.b16 %v2080
        %v3336 = vunpack.c.l.b16 %v2081
        %v3337 = vunpack.c.l.b16 %v2083
        %v3338 = vunpack.c.l.b16 %v2084
        %v3339 = vunpack.c.l.b16 %v2085
        %v3340 = vunpack.c.l.b16 %v2086
        %v3341 = vunpack.c.l.b16 %v2088
        %v3342 = vunpack.c.l.b16 %v2089
        %v3343 = vunpack.c.l.b16 %v2090
        %v3344 = vunpack.c.l.b16 %v2091
        %v3345 = vunpack.c.l.b16 %v2093
        %v3346 = vunpack.c.l.b16 %v2094
        %v3347 = vunpack.c.l.b16 %v2095
        %v3348 = vunpack.c.l.b16 %v2096
        %v3349 = vunpack.c.l.b16 %v2098
        %v3350 = vunpack.c.l.b16 %v2099
        %v3351 = vunpack.c.l.b16 %v2100
        %v3352 = vunpack.c.l.b16 %v2101
        %v3353 = vunpack.c.l.b16 %v2103
        %v3354 = vunpack.c.l.b16 %v2104
        %v3355 = vunpack.c.l.b16 %v2105
        %v3356 = vunpack.c.l.b16 %v2106
        %v3357 = vunpack.c.l.b16 %v2108
        %v3358 = vunpack.c.l.b16 %v2109
        %v3359 = vunpack.c.l.b16 %v2110
        %v3360 = vunpack.c.l.b16 %v2111
        %v3361 = vpack.c.b16 %v3298, %v3297
        %v3362 = vpack.c.b16 %v3300, %v3299
        %v3363 = vpack.c.b16 %v3302, %v3301
        %v3364 = vpack.c.b16 %v3304, %v3303
        %v3365 = vpack.c.b16 %v3306, %v3305
        %v3366 = vpack.c.b16 %v3308, %v3307
        %v3367 = vpack.c.b16 %v3310, %v3309
        %v3368 = vpack.c.b16 %v3312, %v3311
        %v3369 = vpack.c.b16 %v3314, %v3313
        %v3370 = vpack.c.b16 %v3316, %v3315
        %v3371 = vpack.c.b16 %v3318, %v3317
        %v3372 = vpack.c.b16 %v3320, %v3319
        %v3373 = vpack.c.b16 %v3322, %v3321
        %v3374 = vpack.c.b16 %v3324, %v3323
        %v3375 = vpack.c.b16 %v3326, %v3325
        %v3376 = vpack.c.b16 %v3328, %v3327
        %v3377 = vpack.c.b16 %v3330, %v3329
        %v3378 = vpack.c.b16 %v3332, %v3331
        %v3379 = vpack.c.b16 %v3334, %v3333
        %v3380 = vpack.c.b16 %v3336, %v3335
        %v3381 = vpack.c.b16 %v3338, %v3337
        %v3382 = vpack.c.b16 %v3340, %v3339
        %v3383 = vpack.c.b16 %v3342, %v3341
        %v3384 = vpack.c.b16 %v3344, %v3343
        %v3385 = vpack.c.b16 %v3346, %v3345
        %v3386 = vpack.c.b16 %v3348, %v3347
        %v3387 = vpack.c.b16 %v3350, %v3349
        %v3388 = vpack.c.b16 %v3352, %v3351
        %v3389 = vpack.c.b16 %v3354, %v3353
        %v3390 = vpack.c.b16 %v3356, %v3355
        %v3391 = vpack.c.b16 %v3358, %v3357
        %v3392 = vpack.c.b16 %v3360, %v3359
        %v3401 = vunpack.c.l.b16 %v2123
        %v3402 = vunpack.c.l.b16 %v2124
        %v3403 = vunpack.c.l.b16 %v2125
        %v3404 = vunpack.c.l.b16 %v2126
        %v3405 = vunpack.c.l.b16 %v2127
        %v3406 = vunpack.c.l.b16 %v2128
        %v3407 = vunpack.c.l.b16 %v2129
        %v3408 = vunpack.c.l.b16 %v2130
        %v3409 = vpack.c.b16 %v3402, %v3401
        %v3410 = vpack.c.b16 %v3404, %v3403
        %v3411 = vpack.c.b16 %v3406, %v3405
        %v3412 = vpack.c.b16 %v3408, %v3407
        %v3418 = vsel %vm2967, %v3361, 0
        %v3421 = vsel %vm2967, %v3362, 0
        %v3424 = vsel %vm2967, %v3363, 0
        %v3427 = vsel %vm2967, %v3364, 0
        %v3430 = vsel %vm2967, %v3365, 0
        %v3433 = vsel %vm2967, %v3366, 0
        %v3436 = vsel %vm2967, %v3367, 0
        %v3439 = vsel %vm2967, %v3368, 0
        %v3442 = vsel %vm2967, %v3369, 0
        %v3445 = vsel %vm2967, %v3370, 0
        %v3448 = vsel %vm2967, %v3371, 0
        %v3451 = vsel %vm2967, %v3372, 0
        %v3454 = vsel %vm2967, %v3373, 0
        %v3457 = vsel %vm2967, %v3374, 0
        %v3460 = vsel %vm2967, %v3375, 0
        %v3463 = vsel %vm2967, %v3376, 0
        %v3466 = vsel %vm2967, %v3377, 0
        %v3469 = vsel %vm2967, %v3378, 0
        %v3472 = vsel %vm2967, %v3379, 0
        %v3475 = vsel %vm2967, %v3380, 0
        %v3478 = vsel %vm2967, %v3381, 0
        %v3481 = vsel %vm2967, %v3382, 0
        %v3484 = vsel %vm2967, %v3383, 0
        %v3487 = vsel %vm2967, %v3384, 0
        %v3490 = vsel %vm2967, %v3385, 0
        %v3493 = vsel %vm2967, %v3386, 0
        %v3496 = vsel %vm2967, %v3387, 0
        %v3499 = vsel %vm2967, %v3388, 0
        %v3502 = vsel %vm2967, %v3389, 0
        %v3505 = vsel %vm2967, %v3390, 0
        %v3508 = vsel %vm2967, %v3391, 0
        %v3511 = vsel %vm2967, %v3392, 0
        %3513 = vmatpush.bf16.msra.mxu0 0
        %3514 = vmatpush.bf16.msra.mxu0 0
        %3515 = vmatpush.bf16.msra.mxu0 0
        %3516 = vmatpush.bf16.msra.mxu0 0
        %3517 = vmatpush.bf16.msra.mxu0 %v3412
        %3518 = vmatpush.bf16.msra.mxu0 %v3411
        %3519 = vmatpush.bf16.msra.mxu0 %v3410
        %3520 = vmatpush.bf16.msra.mxu0 %v3409
        %3521 = vmatmul.bf16.gmra.mxu0 %v3418
        %v3522 = vpop.f32.mrf.mxu0
        %v3523 = vadd.f32 %v3074, %v3522
        %v3524 = vpop.f32.mrf.mxu0
        %v3525 = vadd.f32 %v3076, %v3524
        %3526 = vmatmul.bf16.gmra.mxu0 %v3421
        %v3527 = vpop.f32.mrf.mxu0
        %v3528 = vadd.f32 %v3079, %v3527
        %v3529 = vpop.f32.mrf.mxu0
        %v3530 = vadd.f32 %v3081, %v3529
        %3531 = vmatmul.bf16.gmra.mxu0 %v3424
        %v3532 = vpop.f32.mrf.mxu0
        %v3533 = vadd.f32 %v3084, %v3532
        %v3534 = vpop.f32.mrf.mxu0
        %v3535 = vadd.f32 %v3086, %v3534
        %3536 = vmatmul.bf16.gmra.mxu0 %v3427
        %v3537 = vpop.f32.mrf.mxu0
        %v3538 = vadd.f32 %v3089, %v3537
        %v3539 = vpop.f32.mrf.mxu0
        %v3540 = vadd.f32 %v3091, %v3539
        %3541 = vmatmul.bf16.gmra.mxu0 %v3430
        %v3542 = vpop.f32.mrf.mxu0
        %v3543 = vadd.f32 %v3094, %v3542
        %v3544 = vpop.f32.mrf.mxu0
        %v3545 = vadd.f32 %v3096, %v3544
        %3546 = vmatmul.bf16.gmra.mxu0 %v3433
        %v3547 = vpop.f32.mrf.mxu0
        %v3548 = vadd.f32 %v3099, %v3547
        %v3549 = vpop.f32.mrf.mxu0
        %v3550 = vadd.f32 %v3101, %v3549
        %3551 = vmatmul.bf16.gmra.mxu0 %v3436
        %v3552 = vpop.f32.mrf.mxu0
        %v3553 = vadd.f32 %v3104, %v3552
        %v3554 = vpop.f32.mrf.mxu0
        %v3555 = vadd.f32 %v3106, %v3554
        %3556 = vmatmul.bf16.gmra.mxu0 %v3439
        %v3557 = vpop.f32.mrf.mxu0
        %v3558 = vadd.f32 %v3109, %v3557
        %v3559 = vpop.f32.mrf.mxu0
        %v3560 = vadd.f32 %v3111, %v3559
        %3561 = vmatmul.bf16.gmra.mxu0 %v3442
        %v3562 = vpop.f32.mrf.mxu0
        %v3563 = vadd.f32 %v3114, %v3562
        %v3564 = vpop.f32.mrf.mxu0
        %v3565 = vadd.f32 %v3116, %v3564
        %3566 = vmatmul.bf16.gmra.mxu0 %v3445
        %v3567 = vpop.f32.mrf.mxu0
        %v3568 = vadd.f32 %v3119, %v3567
        %v3569 = vpop.f32.mrf.mxu0
        %v3570 = vadd.f32 %v3121, %v3569
        %3571 = vmatmul.bf16.gmra.mxu0 %v3448
        %v3572 = vpop.f32.mrf.mxu0
        %v3573 = vadd.f32 %v3124, %v3572
        %v3574 = vpop.f32.mrf.mxu0
        %v3575 = vadd.f32 %v3126, %v3574
        %3576 = vmatmul.bf16.gmra.mxu0 %v3451
        %v3577 = vpop.f32.mrf.mxu0
        %v3578 = vadd.f32 %v3129, %v3577
        %v3579 = vpop.f32.mrf.mxu0
        %v3580 = vadd.f32 %v3131, %v3579
        %3581 = vmatmul.bf16.gmra.mxu0 %v3454
        %v3582 = vpop.f32.mrf.mxu0
        %v3583 = vadd.f32 %v3134, %v3582
        %v3584 = vpop.f32.mrf.mxu0
        %v3585 = vadd.f32 %v3136, %v3584
        %3586 = vmatmul.bf16.gmra.mxu0 %v3457
        %v3587 = vpop.f32.mrf.mxu0
        %v3588 = vadd.f32 %v3139, %v3587
        %v3589 = vpop.f32.mrf.mxu0
        %v3590 = vadd.f32 %v3141, %v3589
        %3591 = vmatmul.bf16.gmra.mxu0 %v3460
        %v3592 = vpop.f32.mrf.mxu0
        %v3593 = vadd.f32 %v3144, %v3592
        %v3594 = vpop.f32.mrf.mxu0
        %v3595 = vadd.f32 %v3146, %v3594
        %3596 = vmatmul.bf16.gmra.mxu0 %v3463
        %v3597 = vpop.f32.mrf.mxu0
        %v3598 = vadd.f32 %v3149, %v3597
        %v3599 = vpop.f32.mrf.mxu0
        %v3600 = vadd.f32 %v3151, %v3599
        %3601 = vmatmul.bf16.gmra.mxu0 %v3466
        %v3602 = vpop.f32.mrf.mxu0
        %v3603 = vadd.f32 %v3154, %v3602
        %v3604 = vpop.f32.mrf.mxu0
        %v3605 = vadd.f32 %v3156, %v3604
        %3606 = vmatmul.bf16.gmra.mxu0 %v3469
        %v3607 = vpop.f32.mrf.mxu0
        %v3608 = vadd.f32 %v3159, %v3607
        %v3609 = vpop.f32.mrf.mxu0
        %v3610 = vadd.f32 %v3161, %v3609
        %3611 = vmatmul.bf16.gmra.mxu0 %v3472
        %v3612 = vpop.f32.mrf.mxu0
        %v3613 = vadd.f32 %v3164, %v3612
        %v3614 = vpop.f32.mrf.mxu0
        %v3615 = vadd.f32 %v3166, %v3614
        %3616 = vmatmul.bf16.gmra.mxu0 %v3475
        %v3617 = vpop.f32.mrf.mxu0
        %v3618 = vadd.f32 %v3169, %v3617
        %v3619 = vpop.f32.mrf.mxu0
        %v3620 = vadd.f32 %v3171, %v3619
        %3621 = vmatmul.bf16.gmra.mxu0 %v3478
        %v3622 = vpop.f32.mrf.mxu0
        %v3623 = vadd.f32 %v3174, %v3622
        %v3624 = vpop.f32.mrf.mxu0
        %v3625 = vadd.f32 %v3176, %v3624
        %3626 = vmatmul.bf16.gmra.mxu0 %v3481
        %v3627 = vpop.f32.mrf.mxu0
        %v3628 = vadd.f32 %v3179, %v3627
        %v3629 = vpop.f32.mrf.mxu0
        %v3630 = vadd.f32 %v3181, %v3629
        %3631 = vmatmul.bf16.gmra.mxu0 %v3484
        %v3632 = vpop.f32.mrf.mxu0
        %v3633 = vadd.f32 %v3184, %v3632
        %v3634 = vpop.f32.mrf.mxu0
        %v3635 = vadd.f32 %v3186, %v3634
        %3636 = vmatmul.bf16.gmra.mxu0 %v3487
        %v3637 = vpop.f32.mrf.mxu0
        %v3638 = vadd.f32 %v3189, %v3637
        %v3639 = vpop.f32.mrf.mxu0
        %v3640 = vadd.f32 %v3191, %v3639
        %3641 = vmatmul.bf16.gmra.mxu0 %v3490
        %v3642 = vpop.f32.mrf.mxu0
        %v3643 = vadd.f32 %v3194, %v3642
        %v3644 = vpop.f32.mrf.mxu0
        %v3645 = vadd.f32 %v3196, %v3644
        %3646 = vmatmul.bf16.gmra.mxu0 %v3493
        %v3647 = vpop.f32.mrf.mxu0
        %v3648 = vadd.f32 %v3199, %v3647
        %v3649 = vpop.f32.mrf.mxu0
        %v3650 = vadd.f32 %v3201, %v3649
        %3651 = vmatmul.bf16.gmra.mxu0 %v3496
        %v3652 = vpop.f32.mrf.mxu0
        %v3653 = vadd.f32 %v3204, %v3652
        %v3654 = vpop.f32.mrf.mxu0
        %v3655 = vadd.f32 %v3206, %v3654
        %3656 = vmatmul.bf16.gmra.mxu0 %v3499
        %v3657 = vpop.f32.mrf.mxu0
        %v3658 = vadd.f32 %v3209, %v3657
        %v3659 = vpop.f32.mrf.mxu0
        %v3660 = vadd.f32 %v3211, %v3659
        %3661 = vmatmul.bf16.gmra.mxu0 %v3502
        %v3662 = vpop.f32.mrf.mxu0
        %v3663 = vadd.f32 %v3214, %v3662
        %v3664 = vpop.f32.mrf.mxu0
        %v3665 = vadd.f32 %v3216, %v3664
        %3666 = vmatmul.bf16.gmra.mxu0 %v3505
        %v3667 = vpop.f32.mrf.mxu0
        %v3668 = vadd.f32 %v3219, %v3667
        %v3669 = vpop.f32.mrf.mxu0
        %v3670 = vadd.f32 %v3221, %v3669
        %3671 = vmatmul.bf16.gmra.mxu0 %v3508
        %v3672 = vpop.f32.mrf.mxu0
        %v3673 = vadd.f32 %v3224, %v3672
        %v3674 = vpop.f32.mrf.mxu0
        %v3675 = vadd.f32 %v3226, %v3674
        %3676 = vmatmul.bf16.gmra.mxu0 %v3511
        %v3677 = vpop.f32.mrf.mxu0
        %v3678 = vadd.f32 %v3229, %v3677
        %v3679 = vpop.f32.mrf.mxu0
        %v3680 = vadd.f32 %v3231, %v3679
        %3681 = vdwg.mxu0
        %vm3698 = vcmask 1042432
        %vm3699 = vcmask 1046532
        %vm3700 = vmor %vm3698, %vm3699
        %v3701 = vrot.slane %v2033, 5
        %v3702 = vrot.slane %v3701, 4
        %v3703 = vrot.slane %v2034, 5
        %v3704 = vsel %vm3700, %v3702, %v3703
        %v3705 = vrot.slane %v3703, 4
        %v3706 = vrot.slane %v2035, 5
        %v3707 = vsel %vm3700, %v3705, %v3706
        %v3708 = vrot.slane %v3706, 4
        %v3709 = vrot.slane %v2036, 5
        %v3710 = vsel %vm3700, %v3708, %v3709
        %v3711 = vrot.slane %v3709, 4
        %v3712 = vrot.slane %v2037, 5
        %v3713 = vsel %vm3700, %v3711, %v3712
        %v3714 = vrot.slane %v2038, 5
        %v3715 = vrot.slane %v3714, 4
        %v3716 = vrot.slane %v2039, 5
        %v3717 = vsel %vm3700, %v3715, %v3716
        %v3718 = vrot.slane %v3716, 4
        %v3719 = vrot.slane %v2040, 5
        %v3720 = vsel %vm3700, %v3718, %v3719
        %v3721 = vrot.slane %v3719, 4
        %v3722 = vrot.slane %v2041, 5
        %v3723 = vsel %vm3700, %v3721, %v3722
        %v3724 = vrot.slane %v3722, 4
        %v3725 = vrot.slane %v2042, 5
        %v3726 = vsel %vm3700, %v3724, %v3725
        %v3727 = vrot.slane %v2043, 5
        %v3728 = vrot.slane %v3727, 4
        %v3729 = vrot.slane %v2044, 5
        %v3730 = vsel %vm3700, %v3728, %v3729
        %v3731 = vrot.slane %v3729, 4
        %v3732 = vrot.slane %v2045, 5
        %v3733 = vsel %vm3700, %v3731, %v3732
        %v3734 = vrot.slane %v3732, 4
        %v3735 = vrot.slane %v2046, 5
        %v3736 = vsel %vm3700, %v3734, %v3735
        %v3737 = vrot.slane %v3735, 4
        %v3738 = vrot.slane %v2047, 5
        %v3739 = vsel %vm3700, %v3737, %v3738
        %v3740 = vrot.slane %v2048, 5
        %v3741 = vrot.slane %v3740, 4
        %v3742 = vrot.slane %v2049, 5
        %v3743 = vsel %vm3700, %v3741, %v3742
        %v3744 = vrot.slane %v3742, 4
        %v3745 = vrot.slane %v2050, 5
        %v3746 = vsel %vm3700, %v3744, %v3745
        %v3747 = vrot.slane %v3745, 4
        %v3748 = vrot.slane %v2051, 5
        %v3749 = vsel %vm3700, %v3747, %v3748
        %v3750 = vrot.slane %v3748, 4
        %v3751 = vrot.slane %v2052, 5
        %v3752 = vsel %vm3700, %v3750, %v3751
        %v3753 = vrot.slane %v2053, 5
        %v3754 = vrot.slane %v3753, 4
        %v3755 = vrot.slane %v2054, 5
        %v3756 = vsel %vm3700, %v3754, %v3755
        %v3757 = vrot.slane %v3755, 4
        %v3758 = vrot.slane %v2055, 5
        %v3759 = vsel %vm3700, %v3757, %v3758
        %v3760 = vrot.slane %v3758, 4
        %v3761 = vrot.slane %v2056, 5
        %v3762 = vsel %vm3700, %v3760, %v3761
        %v3763 = vrot.slane %v3761, 4
        %v3764 = vrot.slane %v2057, 5
        %v3765 = vsel %vm3700, %v3763, %v3764
        %v3766 = vrot.slane %v2058, 5
        %v3767 = vrot.slane %v3766, 4
        %v3768 = vrot.slane %v2059, 5
        %v3769 = vsel %vm3700, %v3767, %v3768
        %v3770 = vrot.slane %v3768, 4
        %v3771 = vrot.slane %v2060, 5
        %v3772 = vsel %vm3700, %v3770, %v3771
        %v3773 = vrot.slane %v3771, 4
        %v3774 = vrot.slane %v2061, 5
        %v3775 = vsel %vm3700, %v3773, %v3774
        %v3776 = vrot.slane %v3774, 4
        %v3777 = vrot.slane %v2062, 5
        %v3778 = vsel %vm3700, %v3776, %v3777
        %v3779 = vrot.slane %v2063, 5
        %v3780 = vrot.slane %v3779, 4
        %v3781 = vrot.slane %v2064, 5
        %v3782 = vsel %vm3700, %v3780, %v3781
        %v3783 = vrot.slane %v3781, 4
        %v3784 = vrot.slane %v2065, 5
        %v3785 = vsel %vm3700, %v3783, %v3784
        %v3786 = vrot.slane %v3784, 4
        %v3787 = vrot.slane %v2066, 5
        %v3788 = vsel %vm3700, %v3786, %v3787
        %v3789 = vrot.slane %v3787, 4
        %v3790 = vrot.slane %v2067, 5
        %v3791 = vsel %vm3700, %v3789, %v3790
        %v3792 = vrot.slane %v2068, 5
        %v3793 = vrot.slane %v3792, 4
        %v3794 = vrot.slane %v2069, 5
        %v3795 = vsel %vm3700, %v3793, %v3794
        %v3796 = vrot.slane %v3794, 4
        %v3797 = vrot.slane %v2070, 5
        %v3798 = vsel %vm3700, %v3796, %v3797
        %v3799 = vrot.slane %v3797, 4
        %v3800 = vrot.slane %v2071, 5
        %v3801 = vsel %vm3700, %v3799, %v3800
        %v3802 = vrot.slane %v3800, 4
        %v3803 = vrot.slane %v2072, 5
        %v3804 = vsel %vm3700, %v3802, %v3803
        %v3805 = vrot.slane %v2073, 5
        %v3806 = vrot.slane %v3805, 4
        %v3807 = vrot.slane %v2074, 5
        %v3808 = vsel %vm3700, %v3806, %v3807
        %v3809 = vrot.slane %v3807, 4
        %v3810 = vrot.slane %v2075, 5
        %v3811 = vsel %vm3700, %v3809, %v3810
        %v3812 = vrot.slane %v3810, 4
        %v3813 = vrot.slane %v2076, 5
        %v3814 = vsel %vm3700, %v3812, %v3813
        %v3815 = vrot.slane %v3813, 4
        %v3816 = vrot.slane %v2077, 5
        %v3817 = vsel %vm3700, %v3815, %v3816
        %v3818 = vrot.slane %v2078, 5
        %v3819 = vrot.slane %v3818, 4
        %v3820 = vrot.slane %v2079, 5
        %v3821 = vsel %vm3700, %v3819, %v3820
        %v3822 = vrot.slane %v3820, 4
        %v3823 = vrot.slane %v2080, 5
        %v3824 = vsel %vm3700, %v3822, %v3823
        %v3825 = vrot.slane %v3823, 4
        %v3826 = vrot.slane %v2081, 5
        %v3827 = vsel %vm3700, %v3825, %v3826
        %v3828 = vrot.slane %v3826, 4
        %v3829 = vrot.slane %v2082, 5
        %v3830 = vsel %vm3700, %v3828, %v3829
        %v3831 = vrot.slane %v2083, 5
        %v3832 = vrot.slane %v3831, 4
        %v3833 = vrot.slane %v2084, 5
        %v3834 = vsel %vm3700, %v3832, %v3833
        %v3835 = vrot.slane %v3833, 4
        %v3836 = vrot.slane %v2085, 5
        %v3837 = vsel %vm3700, %v3835, %v3836
        %v3838 = vrot.slane %v3836, 4
        %v3839 = vrot.slane %v2086, 5
        %v3840 = vsel %vm3700, %v3838, %v3839
        %v3841 = vrot.slane %v3839, 4
        %v3842 = vrot.slane %v2087, 5
        %v3843 = vsel %vm3700, %v3841, %v3842
        %v3844 = vrot.slane %v2088, 5
        %v3845 = vrot.slane %v3844, 4
        %v3846 = vrot.slane %v2089, 5
        %v3847 = vsel %vm3700, %v3845, %v3846
        %v3848 = vrot.slane %v3846, 4
        %v3849 = vrot.slane %v2090, 5
        %v3850 = vsel %vm3700, %v3848, %v3849
        %v3851 = vrot.slane %v3849, 4
        %v3852 = vrot.slane %v2091, 5
        %v3853 = vsel %vm3700, %v3851, %v3852
        %v3854 = vrot.slane %v3852, 4
        %v3855 = vrot.slane %v2092, 5
        %v3856 = vsel %vm3700, %v3854, %v3855
        %v3857 = vrot.slane %v2093, 5
        %v3858 = vrot.slane %v3857, 4
        %v3859 = vrot.slane %v2094, 5
        %v3860 = vsel %vm3700, %v3858, %v3859
        %v3861 = vrot.slane %v3859, 4
        %v3862 = vrot.slane %v2095, 5
        %v3863 = vsel %vm3700, %v3861, %v3862
        %v3864 = vrot.slane %v3862, 4
        %v3865 = vrot.slane %v2096, 5
        %v3866 = vsel %vm3700, %v3864, %v3865
        %v3867 = vrot.slane %v3865, 4
        %v3868 = vrot.slane %v2097, 5
        %v3869 = vsel %vm3700, %v3867, %v3868
        %v3870 = vrot.slane %v2098, 5
        %v3871 = vrot.slane %v3870, 4
        %v3872 = vrot.slane %v2099, 5
        %v3873 = vsel %vm3700, %v3871, %v3872
        %v3874 = vrot.slane %v3872, 4
        %v3875 = vrot.slane %v2100, 5
        %v3876 = vsel %vm3700, %v3874, %v3875
        %v3877 = vrot.slane %v3875, 4
        %v3878 = vrot.slane %v2101, 5
        %v3879 = vsel %vm3700, %v3877, %v3878
        %v3880 = vrot.slane %v3878, 4
        %v3881 = vrot.slane %v2102, 5
        %v3882 = vsel %vm3700, %v3880, %v3881
        %v3883 = vrot.slane %v2103, 5
        %v3884 = vrot.slane %v3883, 4
        %v3885 = vrot.slane %v2104, 5
        %v3886 = vsel %vm3700, %v3884, %v3885
        %v3887 = vrot.slane %v3885, 4
        %v3888 = vrot.slane %v2105, 5
        %v3889 = vsel %vm3700, %v3887, %v3888
        %v3890 = vrot.slane %v3888, 4
        %v3891 = vrot.slane %v2106, 5
        %v3892 = vsel %vm3700, %v3890, %v3891
        %v3893 = vrot.slane %v3891, 4
        %v3894 = vrot.slane %v2107, 5
        %v3895 = vsel %vm3700, %v3893, %v3894
        %v3896 = vrot.slane %v2108, 5
        %v3897 = vrot.slane %v3896, 4
        %v3898 = vrot.slane %v2109, 5
        %v3899 = vsel %vm3700, %v3897, %v3898
        %v3900 = vrot.slane %v3898, 4
        %v3901 = vrot.slane %v2110, 5
        %v3902 = vsel %vm3700, %v3900, %v3901
        %v3903 = vrot.slane %v3901, 4
        %v3904 = vrot.slane %v2111, 5
        %v3905 = vsel %vm3700, %v3903, %v3904
        %v3906 = vrot.slane %v3904, 4
        %v3907 = vrot.slane %v2112, 5
        %v3908 = vsel %vm3700, %v3906, %v3907
        %s3909 = scalar_lea.vmem [#allocation7], 64
        %v3910 = vld [vmem:[%s3909] sm:$0xf]
        %v3911 = vld [vmem:[%s3909 + $0x4] sm:$0xf]
        %v3912 = vld [vmem:[%s3909 + $0x8] sm:$0xf]
        %v3913 = vld [vmem:[%s3909 + $0xc] sm:$0xf]
        %v3914 = vld [vmem:[%s3909 + $0x10] sm:$0xf]
        %v3915 = vld [vmem:[%s3909 + $0x14] sm:$0xf]
        %v3916 = vld [vmem:[%s3909 + $0x18] sm:$0xf]
        %v3917 = vld [vmem:[%s3909 + $0x1c] sm:$0xf]
        %v3918 = vunpack.c.l.b16 %v3704
        %v3919 = vunpack.c.l.b16 %v3707
        %v3920 = vunpack.c.l.b16 %v3710
        %v3921 = vunpack.c.l.b16 %v3713
        %v3922 = vunpack.c.l.b16 %v3717
        %v3923 = vunpack.c.l.b16 %v3720
        %v3924 = vunpack.c.l.b16 %v3723
        %v3925 = vunpack.c.l.b16 %v3726
        %v3926 = vunpack.c.l.b16 %v3730
        %v3927 = vunpack.c.l.b16 %v3733
        %v3928 = vunpack.c.l.b16 %v3736
        %v3929 = vunpack.c.l.b16 %v3739
        %v3930 = vunpack.c.l.b16 %v3743
        %v3931 = vunpack.c.l.b16 %v3746
        %v3932 = vunpack.c.l.b16 %v3749
        %v3933 = vunpack.c.l.b16 %v3752
        %v3934 = vunpack.c.l.b16 %v3756
        %v3935 = vunpack.c.l.b16 %v3759
        %v3936 = vunpack.c.l.b16 %v3762
        %v3937 = vunpack.c.l.b16 %v3765
        %v3938 = vunpack.c.l.b16 %v3769
        %v3939 = vunpack.c.l.b16 %v3772
        %v3940 = vunpack.c.l.b16 %v3775
        %v3941 = vunpack.c.l.b16 %v3778
        %v3942 = vunpack.c.l.b16 %v3782
        %v3943 = vunpack.c.l.b16 %v3785
        %v3944 = vunpack.c.l.b16 %v3788
        %v3945 = vunpack.c.l.b16 %v3791
        %v3946 = vunpack.c.l.b16 %v3795
        %v3947 = vunpack.c.l.b16 %v3798
        %v3948 = vunpack.c.l.b16 %v3801
        %v3949 = vunpack.c.l.b16 %v3804
        %v3950 = vunpack.c.l.b16 %v3808
        %v3951 = vunpack.c.l.b16 %v3811
        %v3952 = vunpack.c.l.b16 %v3814
        %v3953 = vunpack.c.l.b16 %v3817
        %v3954 = vunpack.c.l.b16 %v3821
        %v3955 = vunpack.c.l.b16 %v3824
        %v3956 = vunpack.c.l.b16 %v3827
        %v3957 = vunpack.c.l.b16 %v3830
        %v3958 = vunpack.c.l.b16 %v3834
        %v3959 = vunpack.c.l.b16 %v3837
        %v3960 = vunpack.c.l.b16 %v3840
        %v3961 = vunpack.c.l.b16 %v3843
        %v3962 = vunpack.c.l.b16 %v3847
        %v3963 = vunpack.c.l.b16 %v3850
        %v3964 = vunpack.c.l.b16 %v3853
        %v3965 = vunpack.c.l.b16 %v3856
        %v3966 = vunpack.c.l.b16 %v3860
        %v3967 = vunpack.c.l.b16 %v3863
        %v3968 = vunpack.c.l.b16 %v3866
        %v3969 = vunpack.c.l.b16 %v3869
        %v3970 = vunpack.c.l.b16 %v3873
        %v3971 = vunpack.c.l.b16 %v3876
        %v3972 = vunpack.c.l.b16 %v3879
        %v3973 = vunpack.c.l.b16 %v3882
        %v3974 = vunpack.c.l.b16 %v3886
        %v3975 = vunpack.c.l.b16 %v3889
        %v3976 = vunpack.c.l.b16 %v3892
        %v3977 = vunpack.c.l.b16 %v3895
        %v3978 = vunpack.c.l.b16 %v3899
        %v3979 = vunpack.c.l.b16 %v3902
        %v3980 = vunpack.c.l.b16 %v3905
        %v3981 = vunpack.c.l.b16 %v3908
        %v3982 = vpack.c.b16 %v3919, %v3918
        %v3983 = vpack.c.b16 %v3921, %v3920
        %v3984 = vpack.c.b16 %v3923, %v3922
        %v3985 = vpack.c.b16 %v3925, %v3924
        %v3986 = vpack.c.b16 %v3927, %v3926
        %v3987 = vpack.c.b16 %v3929, %v3928
        %v3988 = vpack.c.b16 %v3931, %v3930
        %v3989 = vpack.c.b16 %v3933, %v3932
        %v3990 = vpack.c.b16 %v3935, %v3934
        %v3991 = vpack.c.b16 %v3937, %v3936
        %v3992 = vpack.c.b16 %v3939, %v3938
        %v3993 = vpack.c.b16 %v3941, %v3940
        %v3994 = vpack.c.b16 %v3943, %v3942
        %v3995 = vpack.c.b16 %v3945, %v3944
        %v3996 = vpack.c.b16 %v3947, %v3946
        %v3997 = vpack.c.b16 %v3949, %v3948
        %v3998 = vpack.c.b16 %v3951, %v3950
        %v3999 = vpack.c.b16 %v3953, %v3952
        %v4000 = vpack.c.b16 %v3955, %v3954
        %v4001 = vpack.c.b16 %v3957, %v3956
        %v4002 = vpack.c.b16 %v3959, %v3958
        %v4003 = vpack.c.b16 %v3961, %v3960
        %v4004 = vpack.c.b16 %v3963, %v3962
        %v4005 = vpack.c.b16 %v3965, %v3964
        %v4006 = vpack.c.b16 %v3967, %v3966
        %v4007 = vpack.c.b16 %v3969, %v3968
        %v4008 = vpack.c.b16 %v3971, %v3970
        %v4009 = vpack.c.b16 %v3973, %v3972
        %v4010 = vpack.c.b16 %v3975, %v3974
        %v4011 = vpack.c.b16 %v3977, %v3976
        %v4012 = vpack.c.b16 %v3979, %v3978
        %v4013 = vpack.c.b16 %v3981, %v3980
        %v4022 = vunpack.c.l.b16 %v3910
        %v4023 = vunpack.c.l.b16 %v3911
        %v4024 = vunpack.c.l.b16 %v3912
        %v4025 = vunpack.c.l.b16 %v3913
        %v4026 = vunpack.c.l.b16 %v3914
        %v4027 = vunpack.c.l.b16 %v3915
        %v4028 = vunpack.c.l.b16 %v3916
        %v4029 = vunpack.c.l.b16 %v3917
        %v4030 = vpack.c.b16 %v4023, %v4022
        %v4031 = vpack.c.b16 %v4025, %v4024
        %v4032 = vpack.c.b16 %v4027, %v4026
        %v4033 = vpack.c.b16 %v4029, %v4028
        %v4039 = vsel %vm2967, %v3982, 0
        %v4042 = vsel %vm2967, %v3983, 0
        %v4045 = vsel %vm2967, %v3984, 0
        %v4048 = vsel %vm2967, %v3985, 0
        %v4051 = vsel %vm2967, %v3986, 0
        %v4054 = vsel %vm2967, %v3987, 0
        %v4057 = vsel %vm2967, %v3988, 0
        %v4060 = vsel %vm2967, %v3989, 0
        %v4063 = vsel %vm2967, %v3990, 0
        %v4066 = vsel %vm2967, %v3991, 0
        %v4069 = vsel %vm2967, %v3992, 0
        %v4072 = vsel %vm2967, %v3993, 0
        %v4075 = vsel %vm2967, %v3994, 0
        %v4078 = vsel %vm2967, %v3995, 0
        %v4081 = vsel %vm2967, %v3996, 0
        %v4084 = vsel %vm2967, %v3997, 0
        %v4087 = vsel %vm2967, %v3998, 0
        %v4090 = vsel %vm2967, %v3999, 0
        %v4093 = vsel %vm2967, %v4000, 0
        %v4096 = vsel %vm2967, %v4001, 0
        %v4099 = vsel %vm2967, %v4002, 0
        %v4102 = vsel %vm2967, %v4003, 0
        %v4105 = vsel %vm2967, %v4004, 0
        %v4108 = vsel %vm2967, %v4005, 0
        %v4111 = vsel %vm2967, %v4006, 0
        %v4114 = vsel %vm2967, %v4007, 0
        %v4117 = vsel %vm2967, %v4008, 0
        %v4120 = vsel %vm2967, %v4009, 0
        %v4123 = vsel %vm2967, %v4010, 0
        %v4126 = vsel %vm2967, %v4011, 0
        %v4129 = vsel %vm2967, %v4012, 0
        %v4132 = vsel %vm2967, %v4013, 0
        %4134 = vmatpush.bf16.msra.mxu0 0
        %4135 = vmatpush.bf16.msra.mxu0 0
        %4136 = vmatpush.bf16.msra.mxu0 0
        %4137 = vmatpush.bf16.msra.mxu0 0
        %4138 = vmatpush.bf16.msra.mxu0 %v4033
        %4139 = vmatpush.bf16.msra.mxu0 %v4032
        %4140 = vmatpush.bf16.msra.mxu0 %v4031
        %4141 = vmatpush.bf16.msra.mxu0 %v4030
        %4142 = vmatmul.bf16.gmra.mxu0 %v4039
        %v4143 = vpop.f32.mrf.mxu0
        %v4144 = vadd.f32 0.0, %v4143
        %v4145 = vpop.f32.mrf.mxu0
        %v4146 = vadd.f32 0.0, %v4145
        %4147 = vmatmul.bf16.gmra.mxu0 %v4042
        %v4148 = vpop.f32.mrf.mxu0
        %v4149 = vadd.f32 0.0, %v4148
        %v4150 = vpop.f32.mrf.mxu0
        %v4151 = vadd.f32 0.0, %v4150
        %4152 = vmatmul.bf16.gmra.mxu0 %v4045
        %v4153 = vpop.f32.mrf.mxu0
        %v4154 = vadd.f32 0.0, %v4153
        %v4155 = vpop.f32.mrf.mxu0
        %v4156 = vadd.f32 0.0, %v4155
        %4157 = vmatmul.bf16.gmra.mxu0 %v4048
        %v4158 = vpop.f32.mrf.mxu0
        %v4159 = vadd.f32 0.0, %v4158
        %v4160 = vpop.f32.mrf.mxu0
        %v4161 = vadd.f32 0.0, %v4160
        %4162 = vmatmul.bf16.gmra.mxu0 %v4051
        %v4163 = vpop.f32.mrf.mxu0
        %v4164 = vadd.f32 0.0, %v4163
        %v4165 = vpop.f32.mrf.mxu0
        %v4166 = vadd.f32 0.0, %v4165
        %4167 = vmatmul.bf16.gmra.mxu0 %v4054
        %v4168 = vpop.f32.mrf.mxu0
        %v4169 = vadd.f32 0.0, %v4168
        %v4170 = vpop.f32.mrf.mxu0
        %v4171 = vadd.f32 0.0, %v4170
        %4172 = vmatmul.bf16.gmra.mxu0 %v4057
        %v4173 = vpop.f32.mrf.mxu0
        %v4174 = vadd.f32 0.0, %v4173
        %v4175 = vpop.f32.mrf.mxu0
        %v4176 = vadd.f32 0.0, %v4175
        %4177 = vmatmul.bf16.gmra.mxu0 %v4060
        %v4178 = vpop.f32.mrf.mxu0
        %v4179 = vadd.f32 0.0, %v4178
        %v4180 = vpop.f32.mrf.mxu0
        %v4181 = vadd.f32 0.0, %v4180
        %4182 = vmatmul.bf16.gmra.mxu0 %v4063
        %v4183 = vpop.f32.mrf.mxu0
        %v4184 = vadd.f32 0.0, %v4183
        %v4185 = vpop.f32.mrf.mxu0
        %v4186 = vadd.f32 0.0, %v4185
        %4187 = vmatmul.bf16.gmra.mxu0 %v4066
        %v4188 = vpop.f32.mrf.mxu0
        %v4189 = vadd.f32 0.0, %v4188
        %v4190 = vpop.f32.mrf.mxu0
        %v4191 = vadd.f32 0.0, %v4190
        %4192 = vmatmul.bf16.gmra.mxu0 %v4069
        %v4193 = vpop.f32.mrf.mxu0
        %v4194 = vadd.f32 0.0, %v4193
        %v4195 = vpop.f32.mrf.mxu0
        %v4196 = vadd.f32 0.0, %v4195
        %4197 = vmatmul.bf16.gmra.mxu0 %v4072
        %v4198 = vpop.f32.mrf.mxu0
        %v4199 = vadd.f32 0.0, %v4198
        %v4200 = vpop.f32.mrf.mxu0
        %v4201 = vadd.f32 0.0, %v4200
        %4202 = vmatmul.bf16.gmra.mxu0 %v4075
        %v4203 = vpop.f32.mrf.mxu0
        %v4204 = vadd.f32 0.0, %v4203
        %v4205 = vpop.f32.mrf.mxu0
        %v4206 = vadd.f32 0.0, %v4205
        %4207 = vmatmul.bf16.gmra.mxu0 %v4078
        %v4208 = vpop.f32.mrf.mxu0
        %v4209 = vadd.f32 0.0, %v4208
        %v4210 = vpop.f32.mrf.mxu0
        %v4211 = vadd.f32 0.0, %v4210
        %4212 = vmatmul.bf16.gmra.mxu0 %v4081
        %v4213 = vpop.f32.mrf.mxu0
        %v4214 = vadd.f32 0.0, %v4213
        %v4215 = vpop.f32.mrf.mxu0
        %v4216 = vadd.f32 0.0, %v4215
        %4217 = vmatmul.bf16.gmra.mxu0 %v4084
        %v4218 = vpop.f32.mrf.mxu0
        %v4219 = vadd.f32 0.0, %v4218
        %v4220 = vpop.f32.mrf.mxu0
        %v4221 = vadd.f32 0.0, %v4220
        %4222 = vmatmul.bf16.gmra.mxu0 %v4087
        %v4223 = vpop.f32.mrf.mxu0
        %v4224 = vadd.f32 0.0, %v4223
        %v4225 = vpop.f32.mrf.mxu0
        %v4226 = vadd.f32 0.0, %v4225
        %4227 = vmatmul.bf16.gmra.mxu0 %v4090
        %v4228 = vpop.f32.mrf.mxu0
        %v4229 = vadd.f32 0.0, %v4228
        %v4230 = vpop.f32.mrf.mxu0
        %v4231 = vadd.f32 0.0, %v4230
        %4232 = vmatmul.bf16.gmra.mxu0 %v4093
        %v4233 = vpop.f32.mrf.mxu0
        %v4234 = vadd.f32 0.0, %v4233
        %v4235 = vpop.f32.mrf.mxu0
        %v4236 = vadd.f32 0.0, %v4235
        %4237 = vmatmul.bf16.gmra.mxu0 %v4096
        %v4238 = vpop.f32.mrf.mxu0
        %v4239 = vadd.f32 0.0, %v4238
        %v4240 = vpop.f32.mrf.mxu0
        %v4241 = vadd.f32 0.0, %v4240
        %4242 = vmatmul.bf16.gmra.mxu0 %v4099
        %v4243 = vpop.f32.mrf.mxu0
        %v4244 = vadd.f32 0.0, %v4243
        %v4245 = vpop.f32.mrf.mxu0
        %v4246 = vadd.f32 0.0, %v4245
        %4247 = vmatmul.bf16.gmra.mxu0 %v4102
        %v4248 = vpop.f32.mrf.mxu0
        %v4249 = vadd.f32 0.0, %v4248
        %v4250 = vpop.f32.mrf.mxu0
        %v4251 = vadd.f32 0.0, %v4250
        %4252 = vmatmul.bf16.gmra.mxu0 %v4105
        %v4253 = vpop.f32.mrf.mxu0
        %v4254 = vadd.f32 0.0, %v4253
        %v4255 = vpop.f32.mrf.mxu0
        %v4256 = vadd.f32 0.0, %v4255
        %4257 = vmatmul.bf16.gmra.mxu0 %v4108
        %v4258 = vpop.f32.mrf.mxu0
        %v4259 = vadd.f32 0.0, %v4258
        %v4260 = vpop.f32.mrf.mxu0
        %v4261 = vadd.f32 0.0, %v4260
        %4262 = vmatmul.bf16.gmra.mxu0 %v4111
        %v4263 = vpop.f32.mrf.mxu0
        %v4264 = vadd.f32 0.0, %v4263
        %v4265 = vpop.f32.mrf.mxu0
        %v4266 = vadd.f32 0.0, %v4265
        %4267 = vmatmul.bf16.gmra.mxu0 %v4114
        %v4268 = vpop.f32.mrf.mxu0
        %v4269 = vadd.f32 0.0, %v4268
        %v4270 = vpop.f32.mrf.mxu0
        %v4271 = vadd.f32 0.0, %v4270
        %4272 = vmatmul.bf16.gmra.mxu0 %v4117
        %v4273 = vpop.f32.mrf.mxu0
        %v4274 = vadd.f32 0.0, %v4273
        %v4275 = vpop.f32.mrf.mxu0
        %v4276 = vadd.f32 0.0, %v4275
        %4277 = vmatmul.bf16.gmra.mxu0 %v4120
        %v4278 = vpop.f32.mrf.mxu0
        %v4279 = vadd.f32 0.0, %v4278
        %v4280 = vpop.f32.mrf.mxu0
        %v4281 = vadd.f32 0.0, %v4280
        %4282 = vmatmul.bf16.gmra.mxu0 %v4123
        %v4283 = vpop.f32.mrf.mxu0
        %v4284 = vadd.f32 0.0, %v4283
        %v4285 = vpop.f32.mrf.mxu0
        %v4286 = vadd.f32 0.0, %v4285
        %4287 = vmatmul.bf16.gmra.mxu0 %v4126
        %v4288 = vpop.f32.mrf.mxu0
        %v4289 = vadd.f32 0.0, %v4288
        %v4290 = vpop.f32.mrf.mxu0
        %v4291 = vadd.f32 0.0, %v4290
        %4292 = vmatmul.bf16.gmra.mxu0 %v4129
        %v4293 = vpop.f32.mrf.mxu0
        %v4294 = vadd.f32 0.0, %v4293
        %v4295 = vpop.f32.mrf.mxu0
        %v4296 = vadd.f32 0.0, %v4295
        %4297 = vmatmul.bf16.gmra.mxu0 %v4132
        %v4298 = vpop.f32.mrf.mxu0
        %v4299 = vadd.f32 0.0, %v4298
        %v4300 = vpop.f32.mrf.mxu0
        %v4301 = vadd.f32 0.0, %v4300
        %4302 = vdwg.mxu0
        %v4303 = vadd.f32 %v3523, %v4144
        %v4304 = vadd.f32 %v3525, %v4146
        %v4305 = vadd.f32 %v3528, %v4149
        %v4306 = vadd.f32 %v3530, %v4151
        %v4307 = vadd.f32 %v3533, %v4154
        %v4308 = vadd.f32 %v3535, %v4156
        %v4309 = vadd.f32 %v3538, %v4159
        %v4310 = vadd.f32 %v3540, %v4161
        %v4311 = vadd.f32 %v3543, %v4164
        %v4312 = vadd.f32 %v3545, %v4166
        %v4313 = vadd.f32 %v3548, %v4169
        %v4314 = vadd.f32 %v3550, %v4171
        %v4315 = vadd.f32 %v3553, %v4174
        %v4316 = vadd.f32 %v3555, %v4176
        %v4317 = vadd.f32 %v3558, %v4179
        %v4318 = vadd.f32 %v3560, %v4181
        %v4319 = vadd.f32 %v3563, %v4184
        %v4320 = vadd.f32 %v3565, %v4186
        %v4321 = vadd.f32 %v3568, %v4189
        %v4322 = vadd.f32 %v3570, %v4191
        %v4323 = vadd.f32 %v3573, %v4194
        %v4324 = vadd.f32 %v3575, %v4196
        %v4325 = vadd.f32 %v3578, %v4199
        %v4326 = vadd.f32 %v3580, %v4201
        %v4327 = vadd.f32 %v3583, %v4204
        %v4328 = vadd.f32 %v3585, %v4206
        %v4329 = vadd.f32 %v3588, %v4209
        %v4330 = vadd.f32 %v3590, %v4211
        %v4331 = vadd.f32 %v3593, %v4214
        %v4332 = vadd.f32 %v3595, %v4216
        %v4333 = vadd.f32 %v3598, %v4219
        %v4334 = vadd.f32 %v3600, %v4221
        %v4335 = vadd.f32 %v3603, %v4224
        %v4336 = vadd.f32 %v3605, %v4226
        %v4337 = vadd.f32 %v3608, %v4229
        %v4338 = vadd.f32 %v3610, %v4231
        %v4339 = vadd.f32 %v3613, %v4234
        %v4340 = vadd.f32 %v3615, %v4236
        %v4341 = vadd.f32 %v3618, %v4239
        %v4342 = vadd.f32 %v3620, %v4241
        %v4343 = vadd.f32 %v3623, %v4244
        %v4344 = vadd.f32 %v3625, %v4246
        %v4345 = vadd.f32 %v3628, %v4249
        %v4346 = vadd.f32 %v3630, %v4251
        %v4347 = vadd.f32 %v3633, %v4254
        %v4348 = vadd.f32 %v3635, %v4256
        %v4349 = vadd.f32 %v3638, %v4259
        %v4350 = vadd.f32 %v3640, %v4261
        %v4351 = vadd.f32 %v3643, %v4264
        %v4352 = vadd.f32 %v3645, %v4266
        %v4353 = vadd.f32 %v3648, %v4269
        %v4354 = vadd.f32 %v3650, %v4271
        %v4355 = vadd.f32 %v3653, %v4274
        %v4356 = vadd.f32 %v3655, %v4276
        %v4357 = vadd.f32 %v3658, %v4279
        %v4358 = vadd.f32 %v3660, %v4281
        %v4359 = vadd.f32 %v3663, %v4284
        %v4360 = vadd.f32 %v3665, %v4286
        %v4361 = vadd.f32 %v3668, %v4289
        %v4362 = vadd.f32 %v3670, %v4291
        %v4363 = vadd.f32 %v3673, %v4294
        %v4364 = vadd.f32 %v3675, %v4296
        %v4365 = vadd.f32 %v3678, %v4299
        %v4366 = vadd.f32 %v3680, %v4301
        %s4367 = scalar_lea.vmem [#allocation7], 96
        %v4368 = vld [vmem:[%s4367] sm:$0xf]
        %v4369 = vld [vmem:[%s4367 + $0x4] sm:$0xf]
        %v4370 = vld [vmem:[%s4367 + $0x8] sm:$0xf]
        %v4371 = vld [vmem:[%s4367 + $0xc] sm:$0xf]
        %v4372 = vld [vmem:[%s4367 + $0x10] sm:$0xf]
        %v4373 = vld [vmem:[%s4367 + $0x14] sm:$0xf]
        %v4374 = vld [vmem:[%s4367 + $0x18] sm:$0xf]
        %v4375 = vld [vmem:[%s4367 + $0x1c] sm:$0xf]
        %v4380 = vunpack.c.l.b16 %v2113
        %v4381 = vunpack.c.l.b16 %v2114
        %v4382 = vunpack.c.l.b16 %v2115
        %v4383 = vunpack.c.l.b16 %v2116
        %v4384 = vpack.c.b16 %v4381, %v4380
        %v4385 = vpack.c.b16 %v4383, %v4382
        %v4394 = vunpack.c.l.b16 %v4368
        %v4395 = vunpack.c.l.b16 %v4369
        %v4396 = vunpack.c.l.b16 %v4370
        %v4397 = vunpack.c.l.b16 %v4371
        %v4398 = vunpack.c.l.b16 %v4372
        %v4399 = vunpack.c.l.b16 %v4373
        %v4400 = vunpack.c.l.b16 %v4374
        %v4401 = vunpack.c.l.b16 %v4375
        %v4402 = vpack.c.b16 %v4395, %v4394
        %v4403 = vpack.c.b16 %v4397, %v4396
        %v4404 = vpack.c.b16 %v4399, %v4398
        %v4405 = vpack.c.b16 %v4401, %v4400
        %v4411 = vsel %vm2967, %v4384, 0
        %v4414 = vsel %vm2967, %v4385, 0
        %4416 = vmatpush.bf16.msra.mxu0 0
        %4417 = vmatpush.bf16.msra.mxu0 0
        %4418 = vmatpush.bf16.msra.mxu0 0
        %4419 = vmatpush.bf16.msra.mxu0 0
        %4420 = vmatpush.bf16.msra.mxu0 %v4405
        %4421 = vmatpush.bf16.msra.mxu0 %v4404
        %4422 = vmatpush.bf16.msra.mxu0 %v4403
        %4423 = vmatpush.bf16.msra.mxu0 %v4402
        %4424 = vmatmul.bf16.gmra.mxu0 %v3424
        %v4425 = vpop.f32.mrf.mxu0
        %v4426 = vadd.f32 0.0, %v4425
        %v4427 = vpop.f32.mrf.mxu0
        %v4428 = vadd.f32 0.0, %v4427
        %4429 = vmatmul.bf16.gmra.mxu0 %v3427
        %v4430 = vpop.f32.mrf.mxu0
        %v4431 = vadd.f32 0.0, %v4430
        %v4432 = vpop.f32.mrf.mxu0
        %v4433 = vadd.f32 0.0, %v4432
        %4434 = vmatmul.bf16.gmra.mxu0 %v3430
        %v4435 = vpop.f32.mrf.mxu0
        %v4436 = vadd.f32 0.0, %v4435
        %v4437 = vpop.f32.mrf.mxu0
        %v4438 = vadd.f32 0.0, %v4437
        %4439 = vmatmul.bf16.gmra.mxu0 %v3433
        %v4440 = vpop.f32.mrf.mxu0
        %v4441 = vadd.f32 0.0, %v4440
        %v4442 = vpop.f32.mrf.mxu0
        %v4443 = vadd.f32 0.0, %v4442
        %4444 = vmatmul.bf16.gmra.mxu0 %v3436
        %v4445 = vpop.f32.mrf.mxu0
        %v4446 = vadd.f32 0.0, %v4445
        %v4447 = vpop.f32.mrf.mxu0
        %v4448 = vadd.f32 0.0, %v4447
        %4449 = vmatmul.bf16.gmra.mxu0 %v3439
        %v4450 = vpop.f32.mrf.mxu0
        %v4451 = vadd.f32 0.0, %v4450
        %v4452 = vpop.f32.mrf.mxu0
        %v4453 = vadd.f32 0.0, %v4452
        %4454 = vmatmul.bf16.gmra.mxu0 %v3442
        %v4455 = vpop.f32.mrf.mxu0
        %v4456 = vadd.f32 0.0, %v4455
        %v4457 = vpop.f32.mrf.mxu0
        %v4458 = vadd.f32 0.0, %v4457
        %4459 = vmatmul.bf16.gmra.mxu0 %v3445
        %v4460 = vpop.f32.mrf.mxu0
        %v4461 = vadd.f32 0.0, %v4460
        %v4462 = vpop.f32.mrf.mxu0
        %v4463 = vadd.f32 0.0, %v4462
        %4464 = vmatmul.bf16.gmra.mxu0 %v3448
        %v4465 = vpop.f32.mrf.mxu0
        %v4466 = vadd.f32 0.0, %v4465
        %v4467 = vpop.f32.mrf.mxu0
        %v4468 = vadd.f32 0.0, %v4467
        %4469 = vmatmul.bf16.gmra.mxu0 %v3451
        %v4470 = vpop.f32.mrf.mxu0
        %v4471 = vadd.f32 0.0, %v4470
        %v4472 = vpop.f32.mrf.mxu0
        %v4473 = vadd.f32 0.0, %v4472
        %4474 = vmatmul.bf16.gmra.mxu0 %v3454
        %v4475 = vpop.f32.mrf.mxu0
        %v4476 = vadd.f32 0.0, %v4475
        %v4477 = vpop.f32.mrf.mxu0
        %v4478 = vadd.f32 0.0, %v4477
        %4479 = vmatmul.bf16.gmra.mxu0 %v3457
        %v4480 = vpop.f32.mrf.mxu0
        %v4481 = vadd.f32 0.0, %v4480
        %v4482 = vpop.f32.mrf.mxu0
        %v4483 = vadd.f32 0.0, %v4482
        %4484 = vmatmul.bf16.gmra.mxu0 %v3460
        %v4485 = vpop.f32.mrf.mxu0
        %v4486 = vadd.f32 0.0, %v4485
        %v4487 = vpop.f32.mrf.mxu0
        %v4488 = vadd.f32 0.0, %v4487
        %4489 = vmatmul.bf16.gmra.mxu0 %v3463
        %v4490 = vpop.f32.mrf.mxu0
        %v4491 = vadd.f32 0.0, %v4490
        %v4492 = vpop.f32.mrf.mxu0
        %v4493 = vadd.f32 0.0, %v4492
        %4494 = vmatmul.bf16.gmra.mxu0 %v3466
        %v4495 = vpop.f32.mrf.mxu0
        %v4496 = vadd.f32 0.0, %v4495
        %v4497 = vpop.f32.mrf.mxu0
        %v4498 = vadd.f32 0.0, %v4497
        %4499 = vmatmul.bf16.gmra.mxu0 %v3469
        %v4500 = vpop.f32.mrf.mxu0
        %v4501 = vadd.f32 0.0, %v4500
        %v4502 = vpop.f32.mrf.mxu0
        %v4503 = vadd.f32 0.0, %v4502
        %4504 = vmatmul.bf16.gmra.mxu0 %v3472
        %v4505 = vpop.f32.mrf.mxu0
        %v4506 = vadd.f32 0.0, %v4505
        %v4507 = vpop.f32.mrf.mxu0
        %v4508 = vadd.f32 0.0, %v4507
        %4509 = vmatmul.bf16.gmra.mxu0 %v3475
        %v4510 = vpop.f32.mrf.mxu0
        %v4511 = vadd.f32 0.0, %v4510
        %v4512 = vpop.f32.mrf.mxu0
        %v4513 = vadd.f32 0.0, %v4512
        %4514 = vmatmul.bf16.gmra.mxu0 %v3478
        %v4515 = vpop.f32.mrf.mxu0
        %v4516 = vadd.f32 0.0, %v4515
        %v4517 = vpop.f32.mrf.mxu0
        %v4518 = vadd.f32 0.0, %v4517
        %4519 = vmatmul.bf16.gmra.mxu0 %v3481
        %v4520 = vpop.f32.mrf.mxu0
        %v4521 = vadd.f32 0.0, %v4520
        %v4522 = vpop.f32.mrf.mxu0
        %v4523 = vadd.f32 0.0, %v4522
        %4524 = vmatmul.bf16.gmra.mxu0 %v3484
        %v4525 = vpop.f32.mrf.mxu0
        %v4526 = vadd.f32 0.0, %v4525
        %v4527 = vpop.f32.mrf.mxu0
        %v4528 = vadd.f32 0.0, %v4527
        %4529 = vmatmul.bf16.gmra.mxu0 %v3487
        %v4530 = vpop.f32.mrf.mxu0
        %v4531 = vadd.f32 0.0, %v4530
        %v4532 = vpop.f32.mrf.mxu0
        %v4533 = vadd.f32 0.0, %v4532
        %4534 = vmatmul.bf16.gmra.mxu0 %v3490
        %v4535 = vpop.f32.mrf.mxu0
        %v4536 = vadd.f32 0.0, %v4535
        %v4537 = vpop.f32.mrf.mxu0
        %v4538 = vadd.f32 0.0, %v4537
        %4539 = vmatmul.bf16.gmra.mxu0 %v3493
        %v4540 = vpop.f32.mrf.mxu0
        %v4541 = vadd.f32 0.0, %v4540
        %v4542 = vpop.f32.mrf.mxu0
        %v4543 = vadd.f32 0.0, %v4542
        %4544 = vmatmul.bf16.gmra.mxu0 %v3496
        %v4545 = vpop.f32.mrf.mxu0
        %v4546 = vadd.f32 0.0, %v4545
        %v4547 = vpop.f32.mrf.mxu0
        %v4548 = vadd.f32 0.0, %v4547
        %4549 = vmatmul.bf16.gmra.mxu0 %v3499
        %v4550 = vpop.f32.mrf.mxu0
        %v4551 = vadd.f32 0.0, %v4550
        %v4552 = vpop.f32.mrf.mxu0
        %v4553 = vadd.f32 0.0, %v4552
        %4554 = vmatmul.bf16.gmra.mxu0 %v3502
        %v4555 = vpop.f32.mrf.mxu0
        %v4556 = vadd.f32 0.0, %v4555
        %v4557 = vpop.f32.mrf.mxu0
        %v4558 = vadd.f32 0.0, %v4557
        %4559 = vmatmul.bf16.gmra.mxu0 %v3505
        %v4560 = vpop.f32.mrf.mxu0
        %v4561 = vadd.f32 0.0, %v4560
        %v4562 = vpop.f32.mrf.mxu0
        %v4563 = vadd.f32 0.0, %v4562
        %4564 = vmatmul.bf16.gmra.mxu0 %v3508
        %v4565 = vpop.f32.mrf.mxu0
        %v4566 = vadd.f32 0.0, %v4565
        %v4567 = vpop.f32.mrf.mxu0
        %v4568 = vadd.f32 0.0, %v4567
        %4569 = vmatmul.bf16.gmra.mxu0 %v3511
        %v4570 = vpop.f32.mrf.mxu0
        %v4571 = vadd.f32 0.0, %v4570
        %v4572 = vpop.f32.mrf.mxu0
        %v4573 = vadd.f32 0.0, %v4572
        %4574 = vmatmul.bf16.gmra.mxu0 %v4411
        %v4575 = vpop.f32.mrf.mxu0
        %v4576 = vadd.f32 0.0, %v4575
        %v4577 = vpop.f32.mrf.mxu0
        %v4578 = vadd.f32 0.0, %v4577
        %4579 = vmatmul.bf16.gmra.mxu0 %v4414
        %v4580 = vpop.f32.mrf.mxu0
        %v4581 = vadd.f32 0.0, %v4580
        %v4582 = vpop.f32.mrf.mxu0
        %v4583 = vadd.f32 0.0, %v4582
        %4584 = vdwg.mxu0
        %v4585 = vadd.f32 %v4303, %v4426
        %v4586 = vadd.f32 %v4304, %v4428
        %v4587 = vadd.f32 %v4305, %v4431
        %v4588 = vadd.f32 %v4306, %v4433
        %v4589 = vadd.f32 %v4307, %v4436
        %v4590 = vadd.f32 %v4308, %v4438
        %v4591 = vadd.f32 %v4309, %v4441
        %v4592 = vadd.f32 %v4310, %v4443
        %v4593 = vadd.f32 %v4311, %v4446
        %v4594 = vadd.f32 %v4312, %v4448
        %v4595 = vadd.f32 %v4313, %v4451
        %v4596 = vadd.f32 %v4314, %v4453
        %v4597 = vadd.f32 %v4315, %v4456
        %v4598 = vadd.f32 %v4316, %v4458
        %v4599 = vadd.f32 %v4317, %v4461
        %v4600 = vadd.f32 %v4318, %v4463
        %v4601 = vadd.f32 %v4319, %v4466
        %v4602 = vadd.f32 %v4320, %v4468
        %v4603 = vadd.f32 %v4321, %v4471
        %v4604 = vadd.f32 %v4322, %v4473
        %v4605 = vadd.f32 %v4323, %v4476
        %v4606 = vadd.f32 %v4324, %v4478
        %v4607 = vadd.f32 %v4325, %v4481
        %v4608 = vadd.f32 %v4326, %v4483
        %v4609 = vadd.f32 %v4327, %v4486
        %v4610 = vadd.f32 %v4328, %v4488
        %v4611 = vadd.f32 %v4329, %v4491
        %v4612 = vadd.f32 %v4330, %v4493
        %v4613 = vadd.f32 %v4331, %v4496
        %v4614 = vadd.f32 %v4332, %v4498
        %v4615 = vadd.f32 %v4333, %v4501
        %v4616 = vadd.f32 %v4334, %v4503
        %v4617 = vadd.f32 %v4335, %v4506
        %v4618 = vadd.f32 %v4336, %v4508
        %v4619 = vadd.f32 %v4337, %v4511
        %v4620 = vadd.f32 %v4338, %v4513
        %v4621 = vadd.f32 %v4339, %v4516
        %v4622 = vadd.f32 %v4340, %v4518
        %v4623 = vadd.f32 %v4341, %v4521
        %v4624 = vadd.f32 %v4342, %v4523
        %v4625 = vadd.f32 %v4343, %v4526
        %v4626 = vadd.f32 %v4344, %v4528
        %v4627 = vadd.f32 %v4345, %v4531
        %v4628 = vadd.f32 %v4346, %v4533
        %v4629 = vadd.f32 %v4347, %v4536
        %v4630 = vadd.f32 %v4348, %v4538
        %v4631 = vadd.f32 %v4349, %v4541
        %v4632 = vadd.f32 %v4350, %v4543
        %v4633 = vadd.f32 %v4351, %v4546
        %v4634 = vadd.f32 %v4352, %v4548
        %v4635 = vadd.f32 %v4353, %v4551
        %v4636 = vadd.f32 %v4354, %v4553
        %v4637 = vadd.f32 %v4355, %v4556
        %v4638 = vadd.f32 %v4356, %v4558
        %v4639 = vadd.f32 %v4357, %v4561
        %v4640 = vadd.f32 %v4358, %v4563
        %v4641 = vadd.f32 %v4359, %v4566
        %v4642 = vadd.f32 %v4360, %v4568
        %v4643 = vadd.f32 %v4361, %v4571
        %v4644 = vadd.f32 %v4362, %v4573
        %v4645 = vadd.f32 %v4363, %v4576
        %v4646 = vadd.f32 %v4364, %v4578
        %v4647 = vadd.f32 %v4365, %v4581
        %v4648 = vadd.f32 %v4366, %v4583
        %v4650 = vshrl.u32 %v2113, 16
        %v4652 = vrot.slane %v4650, 4
        %v4653 = vshll.u32 %v2113, 16
        %v4655 = vrot.slane %v4653, 5
        %v4656 = vor.u32 %v4652, %v4655
        %v4657 = vrot.slane %v4656, 4
        %v4659 = vshll.u32 %v2114, 16
        %v4661 = vrot.slane %v4659, 5
        %v4662 = vsel %vm2133, %v4657, %v4661
        %v4663 = vshrl.u32 %v2114, 16
        %v4665 = vrot.slane %v4663, 4
        %v4666 = vor.u32 %v4665, %v4661
        %v4667 = vrot.slane %v4666, 4
        %v4669 = vshll.u32 %v2115, 16
        %v4671 = vrot.slane %v4669, 5
        %v4672 = vsel %vm2133, %v4667, %v4671
        %v4673 = vshrl.u32 %v2115, 16
        %v4675 = vrot.slane %v4673, 4
        %v4676 = vor.u32 %v4675, %v4671
        %v4677 = vrot.slane %v4676, 4
        %v4679 = vshll.u32 %v2116, 16
        %v4681 = vrot.slane %v4679, 5
        %v4682 = vsel %vm2133, %v4677, %v4681
        %v4683 = vshrl.u32 %v2116, 16
        %v4685 = vrot.slane %v4683, 4
        %v4686 = vor.u32 %v4685, %v4681
        %v4687 = vrot.slane %v4686, 4
        %v4689 = vshll.u32 %v2117, 16
        %v4691 = vrot.slane %v4689, 5
        %v4692 = vsel %vm2133, %v4687, %v4691
        %s4693 = scalar_lea.vmem [#allocation7], 128
        %v4694 = vld [vmem:[%s4693] sm:$0xf]
        %v4695 = vld [vmem:[%s4693 + $0x4] sm:$0xf]
        %v4696 = vld [vmem:[%s4693 + $0x8] sm:$0xf]
        %v4697 = vld [vmem:[%s4693 + $0xc] sm:$0xf]
        %v4698 = vld [vmem:[%s4693 + $0x10] sm:$0xf]
        %v4699 = vld [vmem:[%s4693 + $0x14] sm:$0xf]
        %v4700 = vld [vmem:[%s4693 + $0x18] sm:$0xf]
        %v4701 = vld [vmem:[%s4693 + $0x1c] sm:$0xf]
        %v4702 = vunpack.c.l.b16 %v4662
        %v4703 = vunpack.c.l.b16 %v4672
        %v4704 = vunpack.c.l.b16 %v4682
        %v4705 = vunpack.c.l.b16 %v4692
        %v4706 = vpack.c.b16 %v4703, %v4702
        %v4707 = vpack.c.b16 %v4705, %v4704
        %v4716 = vunpack.c.l.b16 %v4694
        %v4717 = vunpack.c.l.b16 %v4695
        %v4718 = vunpack.c.l.b16 %v4696
        %v4719 = vunpack.c.l.b16 %v4697
        %v4720 = vunpack.c.l.b16 %v4698
        %v4721 = vunpack.c.l.b16 %v4699
        %v4722 = vunpack.c.l.b16 %v4700
        %v4723 = vunpack.c.l.b16 %v4701
        %v4724 = vpack.c.b16 %v4717, %v4716
        %v4725 = vpack.c.b16 %v4719, %v4718
        %v4726 = vpack.c.b16 %v4721, %v4720
        %v4727 = vpack.c.b16 %v4723, %v4722
        %v4733 = vsel %vm2967, %v4706, 0
        %v4736 = vsel %vm2967, %v4707, 0
        %4738 = vmatpush.bf16.msra.mxu0 0
        %4739 = vmatpush.bf16.msra.mxu0 0
        %4740 = vmatpush.bf16.msra.mxu0 0
        %4741 = vmatpush.bf16.msra.mxu0 0
        %4742 = vmatpush.bf16.msra.mxu0 %v4727
        %4743 = vmatpush.bf16.msra.mxu0 %v4726
        %4744 = vmatpush.bf16.msra.mxu0 %v4725
        %4745 = vmatpush.bf16.msra.mxu0 %v4724
        %4746 = vmatmul.bf16.gmra.mxu0 %v2975
        %v4747 = vpop.f32.mrf.mxu0
        %v4748 = vadd.f32 0.0, %v4747
        %v4749 = vpop.f32.mrf.mxu0
        %v4750 = vadd.f32 0.0, %v4749
        %4751 = vmatmul.bf16.gmra.mxu0 %v2978
        %v4752 = vpop.f32.mrf.mxu0
        %v4753 = vadd.f32 0.0, %v4752
        %v4754 = vpop.f32.mrf.mxu0
        %v4755 = vadd.f32 0.0, %v4754
        %4756 = vmatmul.bf16.gmra.mxu0 %v2981
        %v4757 = vpop.f32.mrf.mxu0
        %v4758 = vadd.f32 0.0, %v4757
        %v4759 = vpop.f32.mrf.mxu0
        %v4760 = vadd.f32 0.0, %v4759
        %4761 = vmatmul.bf16.gmra.mxu0 %v2984
        %v4762 = vpop.f32.mrf.mxu0
        %v4763 = vadd.f32 0.0, %v4762
        %v4764 = vpop.f32.mrf.mxu0
        %v4765 = vadd.f32 0.0, %v4764
        %4766 = vmatmul.bf16.gmra.mxu0 %v2987
        %v4767 = vpop.f32.mrf.mxu0
        %v4768 = vadd.f32 0.0, %v4767
        %v4769 = vpop.f32.mrf.mxu0
        %v4770 = vadd.f32 0.0, %v4769
        %4771 = vmatmul.bf16.gmra.mxu0 %v2990
        %v4772 = vpop.f32.mrf.mxu0
        %v4773 = vadd.f32 0.0, %v4772
        %v4774 = vpop.f32.mrf.mxu0
        %v4775 = vadd.f32 0.0, %v4774
        %4776 = vmatmul.bf16.gmra.mxu0 %v2993
        %v4777 = vpop.f32.mrf.mxu0
        %v4778 = vadd.f32 0.0, %v4777
        %v4779 = vpop.f32.mrf.mxu0
        %v4780 = vadd.f32 0.0, %v4779
        %4781 = vmatmul.bf16.gmra.mxu0 %v2996
        %v4782 = vpop.f32.mrf.mxu0
        %v4783 = vadd.f32 0.0, %v4782
        %v4784 = vpop.f32.mrf.mxu0
        %v4785 = vadd.f32 0.0, %v4784
        %4786 = vmatmul.bf16.gmra.mxu0 %v2999
        %v4787 = vpop.f32.mrf.mxu0
        %v4788 = vadd.f32 0.0, %v4787
        %v4789 = vpop.f32.mrf.mxu0
        %v4790 = vadd.f32 0.0, %v4789
        %4791 = vmatmul.bf16.gmra.mxu0 %v3002
        %v4792 = vpop.f32.mrf.mxu0
        %v4793 = vadd.f32 0.0, %v4792
        %v4794 = vpop.f32.mrf.mxu0
        %v4795 = vadd.f32 0.0, %v4794
        %4796 = vmatmul.bf16.gmra.mxu0 %v3005
        %v4797 = vpop.f32.mrf.mxu0
        %v4798 = vadd.f32 0.0, %v4797
        %v4799 = vpop.f32.mrf.mxu0
        %v4800 = vadd.f32 0.0, %v4799
        %4801 = vmatmul.bf16.gmra.mxu0 %v3008
        %v4802 = vpop.f32.mrf.mxu0
        %v4803 = vadd.f32 0.0, %v4802
        %v4804 = vpop.f32.mrf.mxu0
        %v4805 = vadd.f32 0.0, %v4804
        %4806 = vmatmul.bf16.gmra.mxu0 %v3011
        %v4807 = vpop.f32.mrf.mxu0
        %v4808 = vadd.f32 0.0, %v4807
        %v4809 = vpop.f32.mrf.mxu0
        %v4810 = vadd.f32 0.0, %v4809
        %4811 = vmatmul.bf16.gmra.mxu0 %v3014
        %v4812 = vpop.f32.mrf.mxu0
        %v4813 = vadd.f32 0.0, %v4812
        %v4814 = vpop.f32.mrf.mxu0
        %v4815 = vadd.f32 0.0, %v4814
        %4816 = vmatmul.bf16.gmra.mxu0 %v3017
        %v4817 = vpop.f32.mrf.mxu0
        %v4818 = vadd.f32 0.0, %v4817
        %v4819 = vpop.f32.mrf.mxu0
        %v4820 = vadd.f32 0.0, %v4819
        %4821 = vmatmul.bf16.gmra.mxu0 %v3020
        %v4822 = vpop.f32.mrf.mxu0
        %v4823 = vadd.f32 0.0, %v4822
        %v4824 = vpop.f32.mrf.mxu0
        %v4825 = vadd.f32 0.0, %v4824
        %4826 = vmatmul.bf16.gmra.mxu0 %v3023
        %v4827 = vpop.f32.mrf.mxu0
        %v4828 = vadd.f32 0.0, %v4827
        %v4829 = vpop.f32.mrf.mxu0
        %v4830 = vadd.f32 0.0, %v4829
        %4831 = vmatmul.bf16.gmra.mxu0 %v3026
        %v4832 = vpop.f32.mrf.mxu0
        %v4833 = vadd.f32 0.0, %v4832
        %v4834 = vpop.f32.mrf.mxu0
        %v4835 = vadd.f32 0.0, %v4834
        %4836 = vmatmul.bf16.gmra.mxu0 %v3029
        %v4837 = vpop.f32.mrf.mxu0
        %v4838 = vadd.f32 0.0, %v4837
        %v4839 = vpop.f32.mrf.mxu0
        %v4840 = vadd.f32 0.0, %v4839
        %4841 = vmatmul.bf16.gmra.mxu0 %v3032
        %v4842 = vpop.f32.mrf.mxu0
        %v4843 = vadd.f32 0.0, %v4842
        %v4844 = vpop.f32.mrf.mxu0
        %v4845 = vadd.f32 0.0, %v4844
        %4846 = vmatmul.bf16.gmra.mxu0 %v3035
        %v4847 = vpop.f32.mrf.mxu0
        %v4848 = vadd.f32 0.0, %v4847
        %v4849 = vpop.f32.mrf.mxu0
        %v4850 = vadd.f32 0.0, %v4849
        %4851 = vmatmul.bf16.gmra.mxu0 %v3038
        %v4852 = vpop.f32.mrf.mxu0
        %v4853 = vadd.f32 0.0, %v4852
        %v4854 = vpop.f32.mrf.mxu0
        %v4855 = vadd.f32 0.0, %v4854
        %4856 = vmatmul.bf16.gmra.mxu0 %v3041
        %v4857 = vpop.f32.mrf.mxu0
        %v4858 = vadd.f32 0.0, %v4857
        %v4859 = vpop.f32.mrf.mxu0
        %v4860 = vadd.f32 0.0, %v4859
        %4861 = vmatmul.bf16.gmra.mxu0 %v3044
        %v4862 = vpop.f32.mrf.mxu0
        %v4863 = vadd.f32 0.0, %v4862
        %v4864 = vpop.f32.mrf.mxu0
        %v4865 = vadd.f32 0.0, %v4864
        %4866 = vmatmul.bf16.gmra.mxu0 %v3047
        %v4867 = vpop.f32.mrf.mxu0
        %v4868 = vadd.f32 0.0, %v4867
        %v4869 = vpop.f32.mrf.mxu0
        %v4870 = vadd.f32 0.0, %v4869
        %4871 = vmatmul.bf16.gmra.mxu0 %v3050
        %v4872 = vpop.f32.mrf.mxu0
        %v4873 = vadd.f32 0.0, %v4872
        %v4874 = vpop.f32.mrf.mxu0
        %v4875 = vadd.f32 0.0, %v4874
        %4876 = vmatmul.bf16.gmra.mxu0 %v3053
        %v4877 = vpop.f32.mrf.mxu0
        %v4878 = vadd.f32 0.0, %v4877
        %v4879 = vpop.f32.mrf.mxu0
        %v4880 = vadd.f32 0.0, %v4879
        %4881 = vmatmul.bf16.gmra.mxu0 %v3056
        %v4882 = vpop.f32.mrf.mxu0
        %v4883 = vadd.f32 0.0, %v4882
        %v4884 = vpop.f32.mrf.mxu0
        %v4885 = vadd.f32 0.0, %v4884
        %4886 = vmatmul.bf16.gmra.mxu0 %v3059
        %v4887 = vpop.f32.mrf.mxu0
        %v4888 = vadd.f32 0.0, %v4887
        %v4889 = vpop.f32.mrf.mxu0
        %v4890 = vadd.f32 0.0, %v4889
        %4891 = vmatmul.bf16.gmra.mxu0 %v3062
        %v4892 = vpop.f32.mrf.mxu0
        %v4893 = vadd.f32 0.0, %v4892
        %v4894 = vpop.f32.mrf.mxu0
        %v4895 = vadd.f32 0.0, %v4894
        %4896 = vmatmul.bf16.gmra.mxu0 %v4733
        %v4897 = vpop.f32.mrf.mxu0
        %v4898 = vadd.f32 0.0, %v4897
        %v4899 = vpop.f32.mrf.mxu0
        %v4900 = vadd.f32 0.0, %v4899
        %4901 = vmatmul.bf16.gmra.mxu0 %v4736
        %v4902 = vpop.f32.mrf.mxu0
        %v4903 = vadd.f32 0.0, %v4902
        %v4904 = vpop.f32.mrf.mxu0
        %v4905 = vadd.f32 0.0, %v4904
        %4906 = vdwg.mxu0
        %v4907 = vadd.f32 %v4585, %v4748
        %v4908 = vadd.f32 %v4586, %v4750
        %v4909 = vadd.f32 %v4587, %v4753
        %v4910 = vadd.f32 %v4588, %v4755
        %v4911 = vadd.f32 %v4589, %v4758
        %v4912 = vadd.f32 %v4590, %v4760
        %v4913 = vadd.f32 %v4591, %v4763
        %v4914 = vadd.f32 %v4592, %v4765
        %v4915 = vadd.f32 %v4593, %v4768
        %v4916 = vadd.f32 %v4594, %v4770
        %v4917 = vadd.f32 %v4595, %v4773
        %v4918 = vadd.f32 %v4596, %v4775
        %v4919 = vadd.f32 %v4597, %v4778
        %v4920 = vadd.f32 %v4598, %v4780
        %v4921 = vadd.f32 %v4599, %v4783
        %v4922 = vadd.f32 %v4600, %v4785
        %v4923 = vadd.f32 %v4601, %v4788
        %v4924 = vadd.f32 %v4602, %v4790
        %v4925 = vadd.f32 %v4603, %v4793
        %v4926 = vadd.f32 %v4604, %v4795
        %v4927 = vadd.f32 %v4605, %v4798
        %v4928 = vadd.f32 %v4606, %v4800
        %v4929 = vadd.f32 %v4607, %v4803
        %v4930 = vadd.f32 %v4608, %v4805
        %v4931 = vadd.f32 %v4609, %v4808
        %v4932 = vadd.f32 %v4610, %v4810
        %v4933 = vadd.f32 %v4611, %v4813
        %v4934 = vadd.f32 %v4612, %v4815
        %v4935 = vadd.f32 %v4613, %v4818
        %v4936 = vadd.f32 %v4614, %v4820
        %v4937 = vadd.f32 %v4615, %v4823
        %v4938 = vadd.f32 %v4616, %v4825
        %v4939 = vadd.f32 %v4617, %v4828
        %v4940 = vadd.f32 %v4618, %v4830
        %v4941 = vadd.f32 %v4619, %v4833
        %v4942 = vadd.f32 %v4620, %v4835
        %v4943 = vadd.f32 %v4621, %v4838
        %v4944 = vadd.f32 %v4622, %v4840
        %v4945 = vadd.f32 %v4623, %v4843
        %v4946 = vadd.f32 %v4624, %v4845
        %v4947 = vadd.f32 %v4625, %v4848
        %v4948 = vadd.f32 %v4626, %v4850
        %v4949 = vadd.f32 %v4627, %v4853
        %v4950 = vadd.f32 %v4628, %v4855
        %v4951 = vadd.f32 %v4629, %v4858
        %v4952 = vadd.f32 %v4630, %v4860
        %v4953 = vadd.f32 %v4631, %v4863
        %v4954 = vadd.f32 %v4632, %v4865
        %v4955 = vadd.f32 %v4633, %v4868
        %v4956 = vadd.f32 %v4634, %v4870
        %v4957 = vadd.f32 %v4635, %v4873
        %v4958 = vadd.f32 %v4636, %v4875
        %v4959 = vadd.f32 %v4637, %v4878
        %v4960 = vadd.f32 %v4638, %v4880
        %v4961 = vadd.f32 %v4639, %v4883
        %v4962 = vadd.f32 %v4640, %v4885
        %v4963 = vadd.f32 %v4641, %v4888
        %v4964 = vadd.f32 %v4642, %v4890
        %v4965 = vadd.f32 %v4643, %v4893
        %v4966 = vadd.f32 %v4644, %v4895
        %v4967 = vadd.f32 %v4645, %v4898
        %v4968 = vadd.f32 %v4646, %v4900
        %v4969 = vadd.f32 %v4647, %v4903
        %v4970 = vadd.f32 %v4648, %v4905
        %v4972 = vrot.slane %v2113, 5
        %v4973 = vrot.slane %v4972, 4
        %v4974 = vrot.slane %v2114, 5
        %v4975 = vsel %vm3700, %v4973, %v4974
        %v4976 = vrot.slane %v4974, 4
        %v4977 = vrot.slane %v2115, 5
        %v4978 = vsel %vm3700, %v4976, %v4977
        %v4979 = vrot.slane %v4977, 4
        %v4980 = vrot.slane %v2116, 5
        %v4981 = vsel %vm3700, %v4979, %v4980
        %v4982 = vrot.slane %v4980, 4
        %v4983 = vrot.slane %v2117, 5
        %v4984 = vsel %vm3700, %v4982, %v4983
        %s4985 = scalar_lea.vmem [#allocation7], 160
        %v4986 = vld [vmem:[%s4985] sm:$0xf]
        %v4987 = vld [vmem:[%s4985 + $0x4] sm:$0xf]
        %v4988 = vld [vmem:[%s4985 + $0x8] sm:$0xf]
        %v4989 = vld [vmem:[%s4985 + $0xc] sm:$0xf]
        %v4990 = vld [vmem:[%s4985 + $0x10] sm:$0xf]
        %v4991 = vld [vmem:[%s4985 + $0x14] sm:$0xf]
        %v4992 = vld [vmem:[%s4985 + $0x18] sm:$0xf]
        %v4993 = vld [vmem:[%s4985 + $0x1c] sm:$0xf]
        %v4994 = vunpack.c.l.b16 %v4975
        %v4995 = vunpack.c.l.b16 %v4978
        %v4996 = vunpack.c.l.b16 %v4981
        %v4997 = vunpack.c.l.b16 %v4984
        %v4998 = vpack.c.b16 %v4995, %v4994
        %v4999 = vpack.c.b16 %v4997, %v4996
        %v5008 = vunpack.c.l.b16 %v4986
        %v5009 = vunpack.c.l.b16 %v4987
        %v5010 = vunpack.c.l.b16 %v4988
        %v5011 = vunpack.c.l.b16 %v4989
        %v5012 = vunpack.c.l.b16 %v4990
        %v5013 = vunpack.c.l.b16 %v4991
        %v5014 = vunpack.c.l.b16 %v4992
        %v5015 = vunpack.c.l.b16 %v4993
        %v5016 = vpack.c.b16 %v5009, %v5008
        %v5017 = vpack.c.b16 %v5011, %v5010
        %v5018 = vpack.c.b16 %v5013, %v5012
        %v5019 = vpack.c.b16 %v5015, %v5014
        %v5025 = vsel %vm2967, %v4998, 0
        %v5028 = vsel %vm2967, %v4999, 0
        %5030 = vmatpush.bf16.msra.mxu0 0
        %5031 = vmatpush.bf16.msra.mxu0 0
        %5032 = vmatpush.bf16.msra.mxu0 0
        %5033 = vmatpush.bf16.msra.mxu0 0
        %5034 = vmatpush.bf16.msra.mxu0 %v5019
        %5035 = vmatpush.bf16.msra.mxu0 %v5018
        %5036 = vmatpush.bf16.msra.mxu0 %v5017
        %5037 = vmatpush.bf16.msra.mxu0 %v5016
        %5038 = vmatmul.bf16.gmra.mxu0 %v4045
        %v5039 = vpop.f32.mrf.mxu0
        %v5040 = vadd.f32 0.0, %v5039
        %v5041 = vpop.f32.mrf.mxu0
        %v5042 = vadd.f32 0.0, %v5041
        %5043 = vmatmul.bf16.gmra.mxu0 %v4048
        %v5044 = vpop.f32.mrf.mxu0
        %v5045 = vadd.f32 0.0, %v5044
        %v5046 = vpop.f32.mrf.mxu0
        %v5047 = vadd.f32 0.0, %v5046
        %5048 = vmatmul.bf16.gmra.mxu0 %v4051
        %v5049 = vpop.f32.mrf.mxu0
        %v5050 = vadd.f32 0.0, %v5049
        %v5051 = vpop.f32.mrf.mxu0
        %v5052 = vadd.f32 0.0, %v5051
        %5053 = vmatmul.bf16.gmra.mxu0 %v4054
        %v5054 = vpop.f32.mrf.mxu0
        %v5055 = vadd.f32 0.0, %v5054
        %v5056 = vpop.f32.mrf.mxu0
        %v5057 = vadd.f32 0.0, %v5056
        %5058 = vmatmul.bf16.gmra.mxu0 %v4057
        %v5059 = vpop.f32.mrf.mxu0
        %v5060 = vadd.f32 0.0, %v5059
        %v5061 = vpop.f32.mrf.mxu0
        %v5062 = vadd.f32 0.0, %v5061
        %5063 = vmatmul.bf16.gmra.mxu0 %v4060
        %v5064 = vpop.f32.mrf.mxu0
        %v5065 = vadd.f32 0.0, %v5064
        %v5066 = vpop.f32.mrf.mxu0
        %v5067 = vadd.f32 0.0, %v5066
        %5068 = vmatmul.bf16.gmra.mxu0 %v4063
        %v5069 = vpop.f32.mrf.mxu0
        %v5070 = vadd.f32 0.0, %v5069
        %v5071 = vpop.f32.mrf.mxu0
        %v5072 = vadd.f32 0.0, %v5071
        %5073 = vmatmul.bf16.gmra.mxu0 %v4066
        %v5074 = vpop.f32.mrf.mxu0
        %v5075 = vadd.f32 0.0, %v5074
        %v5076 = vpop.f32.mrf.mxu0
        %v5077 = vadd.f32 0.0, %v5076
        %5078 = vmatmul.bf16.gmra.mxu0 %v4069
        %v5079 = vpop.f32.mrf.mxu0
        %v5080 = vadd.f32 0.0, %v5079
        %v5081 = vpop.f32.mrf.mxu0
        %v5082 = vadd.f32 0.0, %v5081
        %5083 = vmatmul.bf16.gmra.mxu0 %v4072
        %v5084 = vpop.f32.mrf.mxu0
        %v5085 = vadd.f32 0.0, %v5084
        %v5086 = vpop.f32.mrf.mxu0
        %v5087 = vadd.f32 0.0, %v5086
        %5088 = vmatmul.bf16.gmra.mxu0 %v4075
        %v5089 = vpop.f32.mrf.mxu0
        %v5090 = vadd.f32 0.0, %v5089
        %v5091 = vpop.f32.mrf.mxu0
        %v5092 = vadd.f32 0.0, %v5091
        %5093 = vmatmul.bf16.gmra.mxu0 %v4078
        %v5094 = vpop.f32.mrf.mxu0
        %v5095 = vadd.f32 0.0, %v5094
        %v5096 = vpop.f32.mrf.mxu0
        %v5097 = vadd.f32 0.0, %v5096
        %5098 = vmatmul.bf16.gmra.mxu0 %v4081
        %v5099 = vpop.f32.mrf.mxu0
        %v5100 = vadd.f32 0.0, %v5099
        %v5101 = vpop.f32.mrf.mxu0
        %v5102 = vadd.f32 0.0, %v5101
        %5103 = vmatmul.bf16.gmra.mxu0 %v4084
        %v5104 = vpop.f32.mrf.mxu0
        %v5105 = vadd.f32 0.0, %v5104
        %v5106 = vpop.f32.mrf.mxu0
        %v5107 = vadd.f32 0.0, %v5106
        %5108 = vmatmul.bf16.gmra.mxu0 %v4087
        %v5109 = vpop.f32.mrf.mxu0
        %v5110 = vadd.f32 0.0, %v5109
        %v5111 = vpop.f32.mrf.mxu0
        %v5112 = vadd.f32 0.0, %v5111
        %5113 = vmatmul.bf16.gmra.mxu0 %v4090
        %v5114 = vpop.f32.mrf.mxu0
        %v5115 = vadd.f32 0.0, %v5114
        %v5116 = vpop.f32.mrf.mxu0
        %v5117 = vadd.f32 0.0, %v5116
        %5118 = vmatmul.bf16.gmra.mxu0 %v4093
        %v5119 = vpop.f32.mrf.mxu0
        %v5120 = vadd.f32 0.0, %v5119
        %v5121 = vpop.f32.mrf.mxu0
        %v5122 = vadd.f32 0.0, %v5121
        %5123 = vmatmul.bf16.gmra.mxu0 %v4096
        %v5124 = vpop.f32.mrf.mxu0
        %v5125 = vadd.f32 0.0, %v5124
        %v5126 = vpop.f32.mrf.mxu0
        %v5127 = vadd.f32 0.0, %v5126
        %5128 = vmatmul.bf16.gmra.mxu0 %v4099
        %v5129 = vpop.f32.mrf.mxu0
        %v5130 = vadd.f32 0.0, %v5129
        %v5131 = vpop.f32.mrf.mxu0
        %v5132 = vadd.f32 0.0, %v5131
        %5133 = vmatmul.bf16.gmra.mxu0 %v4102
        %v5134 = vpop.f32.mrf.mxu0
        %v5135 = vadd.f32 0.0, %v5134
        %v5136 = vpop.f32.mrf.mxu0
        %v5137 = vadd.f32 0.0, %v5136
        %5138 = vmatmul.bf16.gmra.mxu0 %v4105
        %v5139 = vpop.f32.mrf.mxu0
        %v5140 = vadd.f32 0.0, %v5139
        %v5141 = vpop.f32.mrf.mxu0
        %v5142 = vadd.f32 0.0, %v5141
        %5143 = vmatmul.bf16.gmra.mxu0 %v4108
        %v5144 = vpop.f32.mrf.mxu0
        %v5145 = vadd.f32 0.0, %v5144
        %v5146 = vpop.f32.mrf.mxu0
        %v5147 = vadd.f32 0.0, %v5146
        %5148 = vmatmul.bf16.gmra.mxu0 %v4111
        %v5149 = vpop.f32.mrf.mxu0
        %v5150 = vadd.f32 0.0, %v5149
        %v5151 = vpop.f32.mrf.mxu0
        %v5152 = vadd.f32 0.0, %v5151
        %5153 = vmatmul.bf16.gmra.mxu0 %v4114
        %v5154 = vpop.f32.mrf.mxu0
        %v5155 = vadd.f32 0.0, %v5154
        %v5156 = vpop.f32.mrf.mxu0
        %v5157 = vadd.f32 0.0, %v5156
        %5158 = vmatmul.bf16.gmra.mxu0 %v4117
        %v5159 = vpop.f32.mrf.mxu0
        %v5160 = vadd.f32 0.0, %v5159
        %v5161 = vpop.f32.mrf.mxu0
        %v5162 = vadd.f32 0.0, %v5161
        %5163 = vmatmul.bf16.gmra.mxu0 %v4120
        %v5164 = vpop.f32.mrf.mxu0
        %v5165 = vadd.f32 0.0, %v5164
        %v5166 = vpop.f32.mrf.mxu0
        %v5167 = vadd.f32 0.0, %v5166
        %5168 = vmatmul.bf16.gmra.mxu0 %v4123
        %v5169 = vpop.f32.mrf.mxu0
        %v5170 = vadd.f32 0.0, %v5169
        %v5171 = vpop.f32.mrf.mxu0
        %v5172 = vadd.f32 0.0, %v5171
        %5173 = vmatmul.bf16.gmra.mxu0 %v4126
        %v5174 = vpop.f32.mrf.mxu0
        %v5175 = vadd.f32 0.0, %v5174
        %v5176 = vpop.f32.mrf.mxu0
        %v5177 = vadd.f32 0.0, %v5176
        %5178 = vmatmul.bf16.gmra.mxu0 %v4129
        %v5179 = vpop.f32.mrf.mxu0
        %v5180 = vadd.f32 0.0, %v5179
        %v5181 = vpop.f32.mrf.mxu0
        %v5182 = vadd.f32 0.0, %v5181
        %5183 = vmatmul.bf16.gmra.mxu0 %v4132
        %v5184 = vpop.f32.mrf.mxu0
        %v5185 = vadd.f32 0.0, %v5184
        %v5186 = vpop.f32.mrf.mxu0
        %v5187 = vadd.f32 0.0, %v5186
        %5188 = vmatmul.bf16.gmra.mxu0 %v5025
        %v5189 = vpop.f32.mrf.mxu0
        %v5190 = vadd.f32 0.0, %v5189
        %v5191 = vpop.f32.mrf.mxu0
        %v5192 = vadd.f32 0.0, %v5191
        %5193 = vmatmul.bf16.gmra.mxu0 %v5028
        %v5194 = vpop.f32.mrf.mxu0
        %v5195 = vadd.f32 0.0, %v5194
        %v5196 = vpop.f32.mrf.mxu0
        %v5197 = vadd.f32 0.0, %v5196
        %5198 = vdwg.mxu0
        %v5199 = vadd.f32 %v4907, %v5040
        %v5200 = vadd.f32 %v4908, %v5042
        %v5201 = vadd.f32 %v4909, %v5045
        %v5202 = vadd.f32 %v4910, %v5047
        %v5203 = vadd.f32 %v4911, %v5050
        %v5204 = vadd.f32 %v4912, %v5052
        %v5205 = vadd.f32 %v4913, %v5055
        %v5206 = vadd.f32 %v4914, %v5057
        %v5207 = vadd.f32 %v4915, %v5060
        %v5208 = vadd.f32 %v4916, %v5062
        %v5209 = vadd.f32 %v4917, %v5065
        %v5210 = vadd.f32 %v4918, %v5067
        %v5211 = vadd.f32 %v4919, %v5070
        %v5212 = vadd.f32 %v4920, %v5072
        %v5213 = vadd.f32 %v4921, %v5075
        %v5214 = vadd.f32 %v4922, %v5077
        %v5215 = vadd.f32 %v4923, %v5080
        %v5216 = vadd.f32 %v4924, %v5082
        %v5217 = vadd.f32 %v4925, %v5085
        %v5218 = vadd.f32 %v4926, %v5087
        %v5219 = vadd.f32 %v4927, %v5090
        %v5220 = vadd.f32 %v4928, %v5092
        %v5221 = vadd.f32 %v4929, %v5095
        %v5222 = vadd.f32 %v4930, %v5097
        %v5223 = vadd.f32 %v4931, %v5100
        %v5224 = vadd.f32 %v4932, %v5102
        %v5225 = vadd.f32 %v4933, %v5105
        %v5226 = vadd.f32 %v4934, %v5107
        %v5227 = vadd.f32 %v4935, %v5110
        %v5228 = vadd.f32 %v4936, %v5112
        %v5229 = vadd.f32 %v4937, %v5115
        %v5230 = vadd.f32 %v4938, %v5117
        %v5231 = vadd.f32 %v4939, %v5120
        %v5232 = vadd.f32 %v4940, %v5122
        %v5233 = vadd.f32 %v4941, %v5125
        %v5234 = vadd.f32 %v4942, %v5127
        %v5235 = vadd.f32 %v4943, %v5130
        %v5236 = vadd.f32 %v4944, %v5132
        %v5237 = vadd.f32 %v4945, %v5135
        %v5238 = vadd.f32 %v4946, %v5137
        %v5239 = vadd.f32 %v4947, %v5140
        %v5240 = vadd.f32 %v4948, %v5142
        %v5241 = vadd.f32 %v4949, %v5145
        %v5242 = vadd.f32 %v4950, %v5147
        %v5243 = vadd.f32 %v4951, %v5150
        %v5244 = vadd.f32 %v4952, %v5152
        %v5245 = vadd.f32 %v4953, %v5155
        %v5246 = vadd.f32 %v4954, %v5157
        %v5247 = vadd.f32 %v4955, %v5160
        %v5248 = vadd.f32 %v4956, %v5162
        %v5249 = vadd.f32 %v4957, %v5165
        %v5250 = vadd.f32 %v4958, %v5167
        %v5251 = vadd.f32 %v4959, %v5170
        %v5252 = vadd.f32 %v4960, %v5172
        %v5253 = vadd.f32 %v4961, %v5175
        %v5254 = vadd.f32 %v4962, %v5177
        %v5255 = vadd.f32 %v4963, %v5180
        %v5256 = vadd.f32 %v4964, %v5182
        %v5257 = vadd.f32 %v4965, %v5185
        %v5258 = vadd.f32 %v4966, %v5187
        %v5259 = vadd.f32 %v4967, %v5190
        %v5260 = vadd.f32 %v4968, %v5192
        %v5261 = vadd.f32 %v4969, %v5195
        %v5262 = vadd.f32 %v4970, %v5197
        %s5263 = scalar_lea.vmem [#allocation7], 192
        %v5264 = vld [vmem:[%s5263] sm:$0xf]
        %v5265 = vld [vmem:[%s5263 + $0x4] sm:$0xf]
        %v5266 = vld [vmem:[%s5263 + $0x8] sm:$0xf]
        %v5267 = vld [vmem:[%s5263 + $0xc] sm:$0xf]
        %v5268 = vld [vmem:[%s5263 + $0x10] sm:$0xf]
        %v5269 = vld [vmem:[%s5263 + $0x14] sm:$0xf]
        %v5270 = vld [vmem:[%s5263 + $0x18] sm:$0xf]
        %v5271 = vld [vmem:[%s5263 + $0x1c] sm:$0xf]
        %v5276 = vunpack.c.l.b16 %v2118
        %v5277 = vunpack.c.l.b16 %v2119
        %v5278 = vunpack.c.l.b16 %v2120
        %v5279 = vunpack.c.l.b16 %v2121
        %v5280 = vpack.c.b16 %v5277, %v5276
        %v5281 = vpack.c.b16 %v5279, %v5278
        %v5290 = vunpack.c.l.b16 %v5264
        %v5291 = vunpack.c.l.b16 %v5265
        %v5292 = vunpack.c.l.b16 %v5266
        %v5293 = vunpack.c.l.b16 %v5267
        %v5294 = vunpack.c.l.b16 %v5268
        %v5295 = vunpack.c.l.b16 %v5269
        %v5296 = vunpack.c.l.b16 %v5270
        %v5297 = vunpack.c.l.b16 %v5271
        %v5298 = vpack.c.b16 %v5291, %v5290
        %v5299 = vpack.c.b16 %v5293, %v5292
        %v5300 = vpack.c.b16 %v5295, %v5294
        %v5301 = vpack.c.b16 %v5297, %v5296
        %v5307 = vsel %vm2967, %v5280, 0
        %v5310 = vsel %vm2967, %v5281, 0
        %5312 = vmatpush.bf16.msra.mxu0 0
        %5313 = vmatpush.bf16.msra.mxu0 0
        %5314 = vmatpush.bf16.msra.mxu0 0
        %5315 = vmatpush.bf16.msra.mxu0 0
        %5316 = vmatpush.bf16.msra.mxu0 %v5301
        %5317 = vmatpush.bf16.msra.mxu0 %v5300
        %5318 = vmatpush.bf16.msra.mxu0 %v5299
        %5319 = vmatpush.bf16.msra.mxu0 %v5298
        %5320 = vmatmul.bf16.gmra.mxu0 %v3430
        %v5321 = vpop.f32.mrf.mxu0
        %v5322 = vadd.f32 0.0, %v5321
        %v5323 = vpop.f32.mrf.mxu0
        %v5324 = vadd.f32 0.0, %v5323
        %5325 = vmatmul.bf16.gmra.mxu0 %v3433
        %v5326 = vpop.f32.mrf.mxu0
        %v5327 = vadd.f32 0.0, %v5326
        %v5328 = vpop.f32.mrf.mxu0
        %v5329 = vadd.f32 0.0, %v5328
        %5330 = vmatmul.bf16.gmra.mxu0 %v3436
        %v5331 = vpop.f32.mrf.mxu0
        %v5332 = vadd.f32 0.0, %v5331
        %v5333 = vpop.f32.mrf.mxu0
        %v5334 = vadd.f32 0.0, %v5333
        %5335 = vmatmul.bf16.gmra.mxu0 %v3439
        %v5336 = vpop.f32.mrf.mxu0
        %v5337 = vadd.f32 0.0, %v5336
        %v5338 = vpop.f32.mrf.mxu0
        %v5339 = vadd.f32 0.0, %v5338
        %5340 = vmatmul.bf16.gmra.mxu0 %v3442
        %v5341 = vpop.f32.mrf.mxu0
        %v5342 = vadd.f32 0.0, %v5341
        %v5343 = vpop.f32.mrf.mxu0
        %v5344 = vadd.f32 0.0, %v5343
        %5345 = vmatmul.bf16.gmra.mxu0 %v3445
        %v5346 = vpop.f32.mrf.mxu0
        %v5347 = vadd.f32 0.0, %v5346
        %v5348 = vpop.f32.mrf.mxu0
        %v5349 = vadd.f32 0.0, %v5348
        %5350 = vmatmul.bf16.gmra.mxu0 %v3448
        %v5351 = vpop.f32.mrf.mxu0
        %v5352 = vadd.f32 0.0, %v5351
        %v5353 = vpop.f32.mrf.mxu0
        %v5354 = vadd.f32 0.0, %v5353
        %5355 = vmatmul.bf16.gmra.mxu0 %v3451
        %v5356 = vpop.f32.mrf.mxu0
        %v5357 = vadd.f32 0.0, %v5356
        %v5358 = vpop.f32.mrf.mxu0
        %v5359 = vadd.f32 0.0, %v5358
        %5360 = vmatmul.bf16.gmra.mxu0 %v3454
        %v5361 = vpop.f32.mrf.mxu0
        %v5362 = vadd.f32 0.0, %v5361
        %v5363 = vpop.f32.mrf.mxu0
        %v5364 = vadd.f32 0.0, %v5363
        %5365 = vmatmul.bf16.gmra.mxu0 %v3457
        %v5366 = vpop.f32.mrf.mxu0
        %v5367 = vadd.f32 0.0, %v5366
        %v5368 = vpop.f32.mrf.mxu0
        %v5369 = vadd.f32 0.0, %v5368
        %5370 = vmatmul.bf16.gmra.mxu0 %v3460
        %v5371 = vpop.f32.mrf.mxu0
        %v5372 = vadd.f32 0.0, %v5371
        %v5373 = vpop.f32.mrf.mxu0
        %v5374 = vadd.f32 0.0, %v5373
        %5375 = vmatmul.bf16.gmra.mxu0 %v3463
        %v5376 = vpop.f32.mrf.mxu0
        %v5377 = vadd.f32 0.0, %v5376
        %v5378 = vpop.f32.mrf.mxu0
        %v5379 = vadd.f32 0.0, %v5378
        %5380 = vmatmul.bf16.gmra.mxu0 %v3466
        %v5381 = vpop.f32.mrf.mxu0
        %v5382 = vadd.f32 0.0, %v5381
        %v5383 = vpop.f32.mrf.mxu0
        %v5384 = vadd.f32 0.0, %v5383
        %5385 = vmatmul.bf16.gmra.mxu0 %v3469
        %v5386 = vpop.f32.mrf.mxu0
        %v5387 = vadd.f32 0.0, %v5386
        %v5388 = vpop.f32.mrf.mxu0
        %v5389 = vadd.f32 0.0, %v5388
        %5390 = vmatmul.bf16.gmra.mxu0 %v3472
        %v5391 = vpop.f32.mrf.mxu0
        %v5392 = vadd.f32 0.0, %v5391
        %v5393 = vpop.f32.mrf.mxu0
        %v5394 = vadd.f32 0.0, %v5393
        %5395 = vmatmul.bf16.gmra.mxu0 %v3475
        %v5396 = vpop.f32.mrf.mxu0
        %v5397 = vadd.f32 0.0, %v5396
        %v5398 = vpop.f32.mrf.mxu0
        %v5399 = vadd.f32 0.0, %v5398
        %5400 = vmatmul.bf16.gmra.mxu0 %v3478
        %v5401 = vpop.f32.mrf.mxu0
        %v5402 = vadd.f32 0.0, %v5401
        %v5403 = vpop.f32.mrf.mxu0
        %v5404 = vadd.f32 0.0, %v5403
        %5405 = vmatmul.bf16.gmra.mxu0 %v3481
        %v5406 = vpop.f32.mrf.mxu0
        %v5407 = vadd.f32 0.0, %v5406
        %v5408 = vpop.f32.mrf.mxu0
        %v5409 = vadd.f32 0.0, %v5408
        %5410 = vmatmul.bf16.gmra.mxu0 %v3484
        %v5411 = vpop.f32.mrf.mxu0
        %v5412 = vadd.f32 0.0, %v5411
        %v5413 = vpop.f32.mrf.mxu0
        %v5414 = vadd.f32 0.0, %v5413
        %5415 = vmatmul.bf16.gmra.mxu0 %v3487
        %v5416 = vpop.f32.mrf.mxu0
        %v5417 = vadd.f32 0.0, %v5416
        %v5418 = vpop.f32.mrf.mxu0
        %v5419 = vadd.f32 0.0, %v5418
        %5420 = vmatmul.bf16.gmra.mxu0 %v3490
        %v5421 = vpop.f32.mrf.mxu0
        %v5422 = vadd.f32 0.0, %v5421
        %v5423 = vpop.f32.mrf.mxu0
        %v5424 = vadd.f32 0.0, %v5423
        %5425 = vmatmul.bf16.gmra.mxu0 %v3493
        %v5426 = vpop.f32.mrf.mxu0
        %v5427 = vadd.f32 0.0, %v5426
        %v5428 = vpop.f32.mrf.mxu0
        %v5429 = vadd.f32 0.0, %v5428
        %5430 = vmatmul.bf16.gmra.mxu0 %v3496
        %v5431 = vpop.f32.mrf.mxu0
        %v5432 = vadd.f32 0.0, %v5431
        %v5433 = vpop.f32.mrf.mxu0
        %v5434 = vadd.f32 0.0, %v5433
        %5435 = vmatmul.bf16.gmra.mxu0 %v3499
        %v5436 = vpop.f32.mrf.mxu0
        %v5437 = vadd.f32 0.0, %v5436
        %v5438 = vpop.f32.mrf.mxu0
        %v5439 = vadd.f32 0.0, %v5438
        %5440 = vmatmul.bf16.gmra.mxu0 %v3502
        %v5441 = vpop.f32.mrf.mxu0
        %v5442 = vadd.f32 0.0, %v5441
        %v5443 = vpop.f32.mrf.mxu0
        %v5444 = vadd.f32 0.0, %v5443
        %5445 = vmatmul.bf16.gmra.mxu0 %v3505
        %v5446 = vpop.f32.mrf.mxu0
        %v5447 = vadd.f32 0.0, %v5446
        %v5448 = vpop.f32.mrf.mxu0
        %v5449 = vadd.f32 0.0, %v5448
        %5450 = vmatmul.bf16.gmra.mxu0 %v3508
        %v5451 = vpop.f32.mrf.mxu0
        %v5452 = vadd.f32 0.0, %v5451
        %v5453 = vpop.f32.mrf.mxu0
        %v5454 = vadd.f32 0.0, %v5453
        %5455 = vmatmul.bf16.gmra.mxu0 %v3511
        %v5456 = vpop.f32.mrf.mxu0
        %v5457 = vadd.f32 0.0, %v5456
        %v5458 = vpop.f32.mrf.mxu0
        %v5459 = vadd.f32 0.0, %v5458
        %5460 = vmatmul.bf16.gmra.mxu0 %v4411
        %v5461 = vpop.f32.mrf.mxu0
        %v5462 = vadd.f32 0.0, %v5461
        %v5463 = vpop.f32.mrf.mxu0
        %v5464 = vadd.f32 0.0, %v5463
        %5465 = vmatmul.bf16.gmra.mxu0 %v4414
        %v5466 = vpop.f32.mrf.mxu0
        %v5467 = vadd.f32 0.0, %v5466
        %v5468 = vpop.f32.mrf.mxu0
        %v5469 = vadd.f32 0.0, %v5468
        %5470 = vmatmul.bf16.gmra.mxu0 %v5307
        %v5471 = vpop.f32.mrf.mxu0
        %v5472 = vadd.f32 0.0, %v5471
        %v5473 = vpop.f32.mrf.mxu0
        %v5474 = vadd.f32 0.0, %v5473
        %5475 = vmatmul.bf16.gmra.mxu0 %v5310
        %v5476 = vpop.f32.mrf.mxu0
        %v5477 = vadd.f32 0.0, %v5476
        %v5478 = vpop.f32.mrf.mxu0
        %v5479 = vadd.f32 0.0, %v5478
        %5480 = vdwg.mxu0
        %v5481 = vadd.f32 %v5199, %v5322
        %v5482 = vadd.f32 %v5200, %v5324
        %v5483 = vadd.f32 %v5201, %v5327
        %v5484 = vadd.f32 %v5202, %v5329
        %v5485 = vadd.f32 %v5203, %v5332
        %v5486 = vadd.f32 %v5204, %v5334
        %v5487 = vadd.f32 %v5205, %v5337
        %v5488 = vadd.f32 %v5206, %v5339
        %v5489 = vadd.f32 %v5207, %v5342
        %v5490 = vadd.f32 %v5208, %v5344
        %v5491 = vadd.f32 %v5209, %v5347
        %v5492 = vadd.f32 %v5210, %v5349
        %v5493 = vadd.f32 %v5211, %v5352
        %v5494 = vadd.f32 %v5212, %v5354
        %v5495 = vadd.f32 %v5213, %v5357
        %v5496 = vadd.f32 %v5214, %v5359
        %v5497 = vadd.f32 %v5215, %v5362
        %v5498 = vadd.f32 %v5216, %v5364
        %v5499 = vadd.f32 %v5217, %v5367
        %v5500 = vadd.f32 %v5218, %v5369
        %v5501 = vadd.f32 %v5219, %v5372
        %v5502 = vadd.f32 %v5220, %v5374
        %v5503 = vadd.f32 %v5221, %v5377
        %v5504 = vadd.f32 %v5222, %v5379
        %v5505 = vadd.f32 %v5223, %v5382
        %v5506 = vadd.f32 %v5224, %v5384
        %v5507 = vadd.f32 %v5225, %v5387
        %v5508 = vadd.f32 %v5226, %v5389
        %v5509 = vadd.f32 %v5227, %v5392
        %v5510 = vadd.f32 %v5228, %v5394
        %v5511 = vadd.f32 %v5229, %v5397
        %v5512 = vadd.f32 %v5230, %v5399
        %v5513 = vadd.f32 %v5231, %v5402
        %v5514 = vadd.f32 %v5232, %v5404
        %v5515 = vadd.f32 %v5233, %v5407
        %v5516 = vadd.f32 %v5234, %v5409
        %v5517 = vadd.f32 %v5235, %v5412
        %v5518 = vadd.f32 %v5236, %v5414
        %v5519 = vadd.f32 %v5237, %v5417
        %v5520 = vadd.f32 %v5238, %v5419
        %v5521 = vadd.f32 %v5239, %v5422
        %v5522 = vadd.f32 %v5240, %v5424
        %v5523 = vadd.f32 %v5241, %v5427
        %v5524 = vadd.f32 %v5242, %v5429
        %v5525 = vadd.f32 %v5243, %v5432
        %v5526 = vadd.f32 %v5244, %v5434
        %v5527 = vadd.f32 %v5245, %v5437
        %v5528 = vadd.f32 %v5246, %v5439
        %v5529 = vadd.f32 %v5247, %v5442
        %v5530 = vadd.f32 %v5248, %v5444
        %v5531 = vadd.f32 %v5249, %v5447
        %v5532 = vadd.f32 %v5250, %v5449
        %v5533 = vadd.f32 %v5251, %v5452
        %v5534 = vadd.f32 %v5252, %v5454
        %v5535 = vadd.f32 %v5253, %v5457
        %v5536 = vadd.f32 %v5254, %v5459
        %v5537 = vadd.f32 %v5255, %v5462
        %v5538 = vadd.f32 %v5256, %v5464
        %v5539 = vadd.f32 %v5257, %v5467
        %v5540 = vadd.f32 %v5258, %v5469
        %v5541 = vadd.f32 %v5259, %v5472
        %v5542 = vadd.f32 %v5260, %v5474
        %v5543 = vadd.f32 %v5261, %v5477
        %v5544 = vadd.f32 %v5262, %v5479
        %v5546 = vshrl.u32 %v2118, 16
        %v5548 = vrot.slane %v5546, 4
        %v5549 = vshll.u32 %v2118, 16
        %v5551 = vrot.slane %v5549, 5
        %v5552 = vor.u32 %v5548, %v5551
        %v5553 = vrot.slane %v5552, 4
        %v5555 = vshll.u32 %v2119, 16
        %v5557 = vrot.slane %v5555, 5
        %v5558 = vsel %vm2133, %v5553, %v5557
        %v5559 = vshrl.u32 %v2119, 16
        %v5561 = vrot.slane %v5559, 4
        %v5562 = vor.u32 %v5561, %v5557
        %v5563 = vrot.slane %v5562, 4
        %v5565 = vshll.u32 %v2120, 16
        %v5567 = vrot.slane %v5565, 5
        %v5568 = vsel %vm2133, %v5563, %v5567
        %v5569 = vshrl.u32 %v2120, 16
        %v5571 = vrot.slane %v5569, 4
        %v5572 = vor.u32 %v5571, %v5567
        %v5573 = vrot.slane %v5572, 4
        %v5575 = vshll.u32 %v2121, 16
        %v5577 = vrot.slane %v5575, 5
        %v5578 = vsel %vm2133, %v5573, %v5577
        %v5579 = vshrl.u32 %v2121, 16
        %v5581 = vrot.slane %v5579, 4
        %v5582 = vor.u32 %v5581, %v5577
        %v5583 = vrot.slane %v5582, 4
        %v5585 = vshll.u32 %v2122, 16
        %v5587 = vrot.slane %v5585, 5
        %v5588 = vsel %vm2133, %v5583, %v5587
        %s5589 = scalar_lea.vmem [#allocation7], 224
        %v5590 = vld [vmem:[%s5589] sm:$0xf]
        %v5591 = vld [vmem:[%s5589 + $0x4] sm:$0xf]
        %v5592 = vld [vmem:[%s5589 + $0x8] sm:$0xf]
        %v5593 = vld [vmem:[%s5589 + $0xc] sm:$0xf]
        %v5594 = vld [vmem:[%s5589 + $0x10] sm:$0xf]
        %v5595 = vld [vmem:[%s5589 + $0x14] sm:$0xf]
        %v5596 = vld [vmem:[%s5589 + $0x18] sm:$0xf]
        %v5597 = vld [vmem:[%s5589 + $0x1c] sm:$0xf]
        %v5598 = vunpack.c.l.b16 %v5558
        %v5599 = vunpack.c.l.b16 %v5568
        %v5600 = vunpack.c.l.b16 %v5578
        %v5601 = vunpack.c.l.b16 %v5588
        %v5602 = vpack.c.b16 %v5599, %v5598
        %v5603 = vpack.c.b16 %v5601, %v5600
        %v5612 = vunpack.c.l.b16 %v5590
        %v5613 = vunpack.c.l.b16 %v5591
        %v5614 = vunpack.c.l.b16 %v5592
        %v5615 = vunpack.c.l.b16 %v5593
        %v5616 = vunpack.c.l.b16 %v5594
        %v5617 = vunpack.c.l.b16 %v5595
        %v5618 = vunpack.c.l.b16 %v5596
        %v5619 = vunpack.c.l.b16 %v5597
        %v5620 = vpack.c.b16 %v5613, %v5612
        %v5621 = vpack.c.b16 %v5615, %v5614
        %v5622 = vpack.c.b16 %v5617, %v5616
        %v5623 = vpack.c.b16 %v5619, %v5618
        %v5629 = vsel %vm2967, %v5602, 0
        %v5632 = vsel %vm2967, %v5603, 0
        %5634 = vmatpush.bf16.msra.mxu0 0
        %5635 = vmatpush.bf16.msra.mxu0 0
        %5636 = vmatpush.bf16.msra.mxu0 0
        %5637 = vmatpush.bf16.msra.mxu0 0
        %5638 = vmatpush.bf16.msra.mxu0 %v5623
        %5639 = vmatpush.bf16.msra.mxu0 %v5622
        %5640 = vmatpush.bf16.msra.mxu0 %v5621
        %5641 = vmatpush.bf16.msra.mxu0 %v5620
        %5642 = vmatmul.bf16.gmra.mxu0 %v2981
        %v5643 = vpop.f32.mrf.mxu0
        %v5644 = vadd.f32 0.0, %v5643
        %v5645 = vpop.f32.mrf.mxu0
        %v5646 = vadd.f32 0.0, %v5645
        %5647 = vmatmul.bf16.gmra.mxu0 %v2984
        %v5648 = vpop.f32.mrf.mxu0
        %v5649 = vadd.f32 0.0, %v5648
        %v5650 = vpop.f32.mrf.mxu0
        %v5651 = vadd.f32 0.0, %v5650
        %5652 = vmatmul.bf16.gmra.mxu0 %v2987
        %v5653 = vpop.f32.mrf.mxu0
        %v5654 = vadd.f32 0.0, %v5653
        %v5655 = vpop.f32.mrf.mxu0
        %v5656 = vadd.f32 0.0, %v5655
        %5657 = vmatmul.bf16.gmra.mxu0 %v2990
        %v5658 = vpop.f32.mrf.mxu0
        %v5659 = vadd.f32 0.0, %v5658
        %v5660 = vpop.f32.mrf.mxu0
        %v5661 = vadd.f32 0.0, %v5660
        %5662 = vmatmul.bf16.gmra.mxu0 %v2993
        %v5663 = vpop.f32.mrf.mxu0
        %v5664 = vadd.f32 0.0, %v5663
        %v5665 = vpop.f32.mrf.mxu0
        %v5666 = vadd.f32 0.0, %v5665
        %5667 = vmatmul.bf16.gmra.mxu0 %v2996
        %v5668 = vpop.f32.mrf.mxu0
        %v5669 = vadd.f32 0.0, %v5668
        %v5670 = vpop.f32.mrf.mxu0
        %v5671 = vadd.f32 0.0, %v5670
        %5672 = vmatmul.bf16.gmra.mxu0 %v2999
        %v5673 = vpop.f32.mrf.mxu0
        %v5674 = vadd.f32 0.0, %v5673
        %v5675 = vpop.f32.mrf.mxu0
        %v5676 = vadd.f32 0.0, %v5675
        %5677 = vmatmul.bf16.gmra.mxu0 %v3002
        %v5678 = vpop.f32.mrf.mxu0
        %v5679 = vadd.f32 0.0, %v5678
        %v5680 = vpop.f32.mrf.mxu0
        %v5681 = vadd.f32 0.0, %v5680
        %5682 = vmatmul.bf16.gmra.mxu0 %v3005
        %v5683 = vpop.f32.mrf.mxu0
        %v5684 = vadd.f32 0.0, %v5683
        %v5685 = vpop.f32.mrf.mxu0
        %v5686 = vadd.f32 0.0, %v5685
        %5687 = vmatmul.bf16.gmra.mxu0 %v3008
        %v5688 = vpop.f32.mrf.mxu0
        %v5689 = vadd.f32 0.0, %v5688
        %v5690 = vpop.f32.mrf.mxu0
        %v5691 = vadd.f32 0.0, %v5690
        %5692 = vmatmul.bf16.gmra.mxu0 %v3011
        %v5693 = vpop.f32.mrf.mxu0
        %v5694 = vadd.f32 0.0, %v5693
        %v5695 = vpop.f32.mrf.mxu0
        %v5696 = vadd.f32 0.0, %v5695
        %5697 = vmatmul.bf16.gmra.mxu0 %v3014
        %v5698 = vpop.f32.mrf.mxu0
        %v5699 = vadd.f32 0.0, %v5698
        %v5700 = vpop.f32.mrf.mxu0
        %v5701 = vadd.f32 0.0, %v5700
        %5702 = vmatmul.bf16.gmra.mxu0 %v3017
        %v5703 = vpop.f32.mrf.mxu0
        %v5704 = vadd.f32 0.0, %v5703
        %v5705 = vpop.f32.mrf.mxu0
        %v5706 = vadd.f32 0.0, %v5705
        %5707 = vmatmul.bf16.gmra.mxu0 %v3020
        %v5708 = vpop.f32.mrf.mxu0
        %v5709 = vadd.f32 0.0, %v5708
        %v5710 = vpop.f32.mrf.mxu0
        %v5711 = vadd.f32 0.0, %v5710
        %5712 = vmatmul.bf16.gmra.mxu0 %v3023
        %v5713 = vpop.f32.mrf.mxu0
        %v5714 = vadd.f32 0.0, %v5713
        %v5715 = vpop.f32.mrf.mxu0
        %v5716 = vadd.f32 0.0, %v5715
        %5717 = vmatmul.bf16.gmra.mxu0 %v3026
        %v5718 = vpop.f32.mrf.mxu0
        %v5719 = vadd.f32 0.0, %v5718
        %v5720 = vpop.f32.mrf.mxu0
        %v5721 = vadd.f32 0.0, %v5720
        %5722 = vmatmul.bf16.gmra.mxu0 %v3029
        %v5723 = vpop.f32.mrf.mxu0
        %v5724 = vadd.f32 0.0, %v5723
        %v5725 = vpop.f32.mrf.mxu0
        %v5726 = vadd.f32 0.0, %v5725
        %5727 = vmatmul.bf16.gmra.mxu0 %v3032
        %v5728 = vpop.f32.mrf.mxu0
        %v5729 = vadd.f32 0.0, %v5728
        %v5730 = vpop.f32.mrf.mxu0
        %v5731 = vadd.f32 0.0, %v5730
        %5732 = vmatmul.bf16.gmra.mxu0 %v3035
        %v5733 = vpop.f32.mrf.mxu0
        %v5734 = vadd.f32 0.0, %v5733
        %v5735 = vpop.f32.mrf.mxu0
        %v5736 = vadd.f32 0.0, %v5735
        %5737 = vmatmul.bf16.gmra.mxu0 %v3038
        %v5738 = vpop.f32.mrf.mxu0
        %v5739 = vadd.f32 0.0, %v5738
        %v5740 = vpop.f32.mrf.mxu0
        %v5741 = vadd.f32 0.0, %v5740
        %5742 = vmatmul.bf16.gmra.mxu0 %v3041
        %v5743 = vpop.f32.mrf.mxu0
        %v5744 = vadd.f32 0.0, %v5743
        %v5745 = vpop.f32.mrf.mxu0
        %v5746 = vadd.f32 0.0, %v5745
        %5747 = vmatmul.bf16.gmra.mxu0 %v3044
        %v5748 = vpop.f32.mrf.mxu0
        %v5749 = vadd.f32 0.0, %v5748
        %v5750 = vpop.f32.mrf.mxu0
        %v5751 = vadd.f32 0.0, %v5750
        %5752 = vmatmul.bf16.gmra.mxu0 %v3047
        %v5753 = vpop.f32.mrf.mxu0
        %v5754 = vadd.f32 0.0, %v5753
        %v5755 = vpop.f32.mrf.mxu0
        %v5756 = vadd.f32 0.0, %v5755
        %5757 = vmatmul.bf16.gmra.mxu0 %v3050
        %v5758 = vpop.f32.mrf.mxu0
        %v5759 = vadd.f32 0.0, %v5758
        %v5760 = vpop.f32.mrf.mxu0
        %v5761 = vadd.f32 0.0, %v5760
        %5762 = vmatmul.bf16.gmra.mxu0 %v3053
        %v5763 = vpop.f32.mrf.mxu0
        %v5764 = vadd.f32 0.0, %v5763
        %v5765 = vpop.f32.mrf.mxu0
        %v5766 = vadd.f32 0.0, %v5765
        %5767 = vmatmul.bf16.gmra.mxu0 %v3056
        %v5768 = vpop.f32.mrf.mxu0
        %v5769 = vadd.f32 0.0, %v5768
        %v5770 = vpop.f32.mrf.mxu0
        %v5771 = vadd.f32 0.0, %v5770
        %5772 = vmatmul.bf16.gmra.mxu0 %v3059
        %v5773 = vpop.f32.mrf.mxu0
        %v5774 = vadd.f32 0.0, %v5773
        %v5775 = vpop.f32.mrf.mxu0
        %v5776 = vadd.f32 0.0, %v5775
        %5777 = vmatmul.bf16.gmra.mxu0 %v3062
        %v5778 = vpop.f32.mrf.mxu0
        %v5779 = vadd.f32 0.0, %v5778
        %v5780 = vpop.f32.mrf.mxu0
        %v5781 = vadd.f32 0.0, %v5780
        %5782 = vmatmul.bf16.gmra.mxu0 %v4733
        %v5783 = vpop.f32.mrf.mxu0
        %v5784 = vadd.f32 0.0, %v5783
        %v5785 = vpop.f32.mrf.mxu0
        %v5786 = vadd.f32 0.0, %v5785
        %5787 = vmatmul.bf16.gmra.mxu0 %v4736
        %v5788 = vpop.f32.mrf.mxu0
        %v5789 = vadd.f32 0.0, %v5788
        %v5790 = vpop.f32.mrf.mxu0
        %v5791 = vadd.f32 0.0, %v5790
        %5792 = vmatmul.bf16.gmra.mxu0 %v5629
        %v5793 = vpop.f32.mrf.mxu0
        %v5794 = vadd.f32 0.0, %v5793
        %v5795 = vpop.f32.mrf.mxu0
        %v5796 = vadd.f32 0.0, %v5795
        %5797 = vmatmul.bf16.gmra.mxu0 %v5632
        %v5798 = vpop.f32.mrf.mxu0
        %v5799 = vadd.f32 0.0, %v5798
        %v5800 = vpop.f32.mrf.mxu0
        %v5801 = vadd.f32 0.0, %v5800
        %5802 = vdwg.mxu0
        %v5803 = vadd.f32 %v5481, %v5644
        %v5804 = vadd.f32 %v5482, %v5646
        %v5805 = vadd.f32 %v5483, %v5649
        %v5806 = vadd.f32 %v5484, %v5651
        %v5807 = vadd.f32 %v5485, %v5654
        %v5808 = vadd.f32 %v5486, %v5656
        %v5809 = vadd.f32 %v5487, %v5659
        %v5810 = vadd.f32 %v5488, %v5661
        %v5811 = vadd.f32 %v5489, %v5664
        %v5812 = vadd.f32 %v5490, %v5666
        %v5813 = vadd.f32 %v5491, %v5669
        %v5814 = vadd.f32 %v5492, %v5671
        %v5815 = vadd.f32 %v5493, %v5674
        %v5816 = vadd.f32 %v5494, %v5676
        %v5817 = vadd.f32 %v5495, %v5679
        %v5818 = vadd.f32 %v5496, %v5681
        %v5819 = vadd.f32 %v5497, %v5684
        %v5820 = vadd.f32 %v5498, %v5686
        %v5821 = vadd.f32 %v5499, %v5689
        %v5822 = vadd.f32 %v5500, %v5691
        %v5823 = vadd.f32 %v5501, %v5694
        %v5824 = vadd.f32 %v5502, %v5696
        %v5825 = vadd.f32 %v5503, %v5699
        %v5826 = vadd.f32 %v5504, %v5701
        %v5827 = vadd.f32 %v5505, %v5704
        %v5828 = vadd.f32 %v5506, %v5706
        %v5829 = vadd.f32 %v5507, %v5709
        %v5830 = vadd.f32 %v5508, %v5711
        %v5831 = vadd.f32 %v5509, %v5714
        %v5832 = vadd.f32 %v5510, %v5716
        %v5833 = vadd.f32 %v5511, %v5719
        %v5834 = vadd.f32 %v5512, %v5721
        %v5835 = vadd.f32 %v5513, %v5724
        %v5836 = vadd.f32 %v5514, %v5726
        %v5837 = vadd.f32 %v5515, %v5729
        %v5838 = vadd.f32 %v5516, %v5731
        %v5839 = vadd.f32 %v5517, %v5734
        %v5840 = vadd.f32 %v5518, %v5736
        %v5841 = vadd.f32 %v5519, %v5739
        %v5842 = vadd.f32 %v5520, %v5741
        %v5843 = vadd.f32 %v5521, %v5744
        %v5844 = vadd.f32 %v5522, %v5746
        %v5845 = vadd.f32 %v5523, %v5749
        %v5846 = vadd.f32 %v5524, %v5751
        %v5847 = vadd.f32 %v5525, %v5754
        %v5848 = vadd.f32 %v5526, %v5756
        %v5849 = vadd.f32 %v5527, %v5759
        %v5850 = vadd.f32 %v5528, %v5761
        %v5851 = vadd.f32 %v5529, %v5764
        %v5852 = vadd.f32 %v5530, %v5766
        %v5853 = vadd.f32 %v5531, %v5769
        %v5854 = vadd.f32 %v5532, %v5771
        %v5855 = vadd.f32 %v5533, %v5774
        %v5856 = vadd.f32 %v5534, %v5776
        %v5857 = vadd.f32 %v5535, %v5779
        %v5858 = vadd.f32 %v5536, %v5781
        %v5859 = vadd.f32 %v5537, %v5784
        %v5860 = vadd.f32 %v5538, %v5786
        %v5861 = vadd.f32 %v5539, %v5789
        %v5862 = vadd.f32 %v5540, %v5791
        %v5863 = vadd.f32 %v5541, %v5794
        %v5864 = vadd.f32 %v5542, %v5796
        %v5865 = vadd.f32 %v5543, %v5799
        %v5866 = vadd.f32 %v5544, %v5801
        %v5868 = vrot.slane %v2118, 5
        %v5869 = vrot.slane %v5868, 4
        %v5870 = vrot.slane %v2119, 5
        %v5871 = vsel %vm3700, %v5869, %v5870
        %v5872 = vrot.slane %v5870, 4
        %v5873 = vrot.slane %v2120, 5
        %v5874 = vsel %vm3700, %v5872, %v5873
        %v5875 = vrot.slane %v5873, 4
        %v5876 = vrot.slane %v2121, 5
        %v5877 = vsel %vm3700, %v5875, %v5876
        %v5878 = vrot.slane %v5876, 4
        %v5879 = vrot.slane %v2122, 5
        %v5880 = vsel %vm3700, %v5878, %v5879
        %s5881 = scalar_lea.vmem [#allocation7], 256
        %v5882 = vld [vmem:[%s5881] sm:$0xf]
        %v5883 = vld [vmem:[%s5881 + $0x4] sm:$0xf]
        %v5884 = vld [vmem:[%s5881 + $0x8] sm:$0xf]
        %v5885 = vld [vmem:[%s5881 + $0xc] sm:$0xf]
        %v5886 = vld [vmem:[%s5881 + $0x10] sm:$0xf]
        %v5887 = vld [vmem:[%s5881 + $0x14] sm:$0xf]
        %v5888 = vld [vmem:[%s5881 + $0x18] sm:$0xf]
        %v5889 = vld [vmem:[%s5881 + $0x1c] sm:$0xf]
        %v5890 = vunpack.c.l.b16 %v5871
        %v5891 = vunpack.c.l.b16 %v5874
        %v5892 = vunpack.c.l.b16 %v5877
        %v5893 = vunpack.c.l.b16 %v5880
        %v5894 = vpack.c.b16 %v5891, %v5890
        %v5895 = vpack.c.b16 %v5893, %v5892
        %v5904 = vunpack.c.l.b16 %v5882
        %v5905 = vunpack.c.l.b16 %v5883
        %v5906 = vunpack.c.l.b16 %v5884
        %v5907 = vunpack.c.l.b16 %v5885
        %v5908 = vunpack.c.l.b16 %v5886
        %v5909 = vunpack.c.l.b16 %v5887
        %v5910 = vunpack.c.l.b16 %v5888
        %v5911 = vunpack.c.l.b16 %v5889
        %v5912 = vpack.c.b16 %v5905, %v5904
        %v5913 = vpack.c.b16 %v5907, %v5906
        %v5914 = vpack.c.b16 %v5909, %v5908
        %v5915 = vpack.c.b16 %v5911, %v5910
        %v5921 = vsel %vm2967, %v5894, 0
        %v5924 = vsel %vm2967, %v5895, 0
        %5926 = vmatpush.bf16.msra.mxu0 0
        %5927 = vmatpush.bf16.msra.mxu0 0
        %5928 = vmatpush.bf16.msra.mxu0 0
        %5929 = vmatpush.bf16.msra.mxu0 0
        %5930 = vmatpush.bf16.msra.mxu0 %v5915
        %5931 = vmatpush.bf16.msra.mxu0 %v5914
        %5932 = vmatpush.bf16.msra.mxu0 %v5913
        %5933 = vmatpush.bf16.msra.mxu0 %v5912
        %5934 = vmatmul.bf16.gmra.mxu0 %v4051
        %v5935 = vpop.f32.mrf.mxu0
        %v5936 = vadd.f32 0.0, %v5935
        %v5937 = vpop.f32.mrf.mxu0
        %v5938 = vadd.f32 0.0, %v5937
        %5939 = vmatmul.bf16.gmra.mxu0 %v4054
        %v5940 = vpop.f32.mrf.mxu0
        %v5941 = vadd.f32 0.0, %v5940
        %v5942 = vpop.f32.mrf.mxu0
        %v5943 = vadd.f32 0.0, %v5942
        %5944 = vmatmul.bf16.gmra.mxu0 %v4057
        %v5945 = vpop.f32.mrf.mxu0
        %v5946 = vadd.f32 0.0, %v5945
        %v5947 = vpop.f32.mrf.mxu0
        %v5948 = vadd.f32 0.0, %v5947
        %5949 = vmatmul.bf16.gmra.mxu0 %v4060
        %v5950 = vpop.f32.mrf.mxu0
        %v5951 = vadd.f32 0.0, %v5950
        %v5952 = vpop.f32.mrf.mxu0
        %v5953 = vadd.f32 0.0, %v5952
        %5954 = vmatmul.bf16.gmra.mxu0 %v4063
        %v5955 = vpop.f32.mrf.mxu0
        %v5956 = vadd.f32 0.0, %v5955
        %v5957 = vpop.f32.mrf.mxu0
        %v5958 = vadd.f32 0.0, %v5957
        %5959 = vmatmul.bf16.gmra.mxu0 %v4066
        %v5960 = vpop.f32.mrf.mxu0
        %v5961 = vadd.f32 0.0, %v5960
        %v5962 = vpop.f32.mrf.mxu0
        %v5963 = vadd.f32 0.0, %v5962
        %5964 = vmatmul.bf16.gmra.mxu0 %v4069
        %v5965 = vpop.f32.mrf.mxu0
        %v5966 = vadd.f32 0.0, %v5965
        %v5967 = vpop.f32.mrf.mxu0
        %v5968 = vadd.f32 0.0, %v5967
        %5969 = vmatmul.bf16.gmra.mxu0 %v4072
        %v5970 = vpop.f32.mrf.mxu0
        %v5971 = vadd.f32 0.0, %v5970
        %v5972 = vpop.f32.mrf.mxu0
        %v5973 = vadd.f32 0.0, %v5972
        %5974 = vmatmul.bf16.gmra.mxu0 %v4075
        %v5975 = vpop.f32.mrf.mxu0
        %v5976 = vadd.f32 0.0, %v5975
        %v5977 = vpop.f32.mrf.mxu0
        %v5978 = vadd.f32 0.0, %v5977
        %5979 = vmatmul.bf16.gmra.mxu0 %v4078
        %v5980 = vpop.f32.mrf.mxu0
        %v5981 = vadd.f32 0.0, %v5980
        %v5982 = vpop.f32.mrf.mxu0
        %v5983 = vadd.f32 0.0, %v5982
        %5984 = vmatmul.bf16.gmra.mxu0 %v4081
        %v5985 = vpop.f32.mrf.mxu0
        %v5986 = vadd.f32 0.0, %v5985
        %v5987 = vpop.f32.mrf.mxu0
        %v5988 = vadd.f32 0.0, %v5987
        %5989 = vmatmul.bf16.gmra.mxu0 %v4084
        %v5990 = vpop.f32.mrf.mxu0
        %v5991 = vadd.f32 0.0, %v5990
        %v5992 = vpop.f32.mrf.mxu0
        %v5993 = vadd.f32 0.0, %v5992
        %5994 = vmatmul.bf16.gmra.mxu0 %v4087
        %v5995 = vpop.f32.mrf.mxu0
        %v5996 = vadd.f32 0.0, %v5995
        %v5997 = vpop.f32.mrf.mxu0
        %v5998 = vadd.f32 0.0, %v5997
        %5999 = vmatmul.bf16.gmra.mxu0 %v4090
        %v6000 = vpop.f32.mrf.mxu0
        %v6001 = vadd.f32 0.0, %v6000
        %v6002 = vpop.f32.mrf.mxu0
        %v6003 = vadd.f32 0.0, %v6002
        %6004 = vmatmul.bf16.gmra.mxu0 %v4093
        %v6005 = vpop.f32.mrf.mxu0
        %v6006 = vadd.f32 0.0, %v6005
        %v6007 = vpop.f32.mrf.mxu0
        %v6008 = vadd.f32 0.0, %v6007
        %6009 = vmatmul.bf16.gmra.mxu0 %v4096
        %v6010 = vpop.f32.mrf.mxu0
        %v6011 = vadd.f32 0.0, %v6010
        %v6012 = vpop.f32.mrf.mxu0
        %v6013 = vadd.f32 0.0, %v6012
        %6014 = vmatmul.bf16.gmra.mxu0 %v4099
        %v6015 = vpop.f32.mrf.mxu0
        %v6016 = vadd.f32 0.0, %v6015
        %v6017 = vpop.f32.mrf.mxu0
        %v6018 = vadd.f32 0.0, %v6017
        %6019 = vmatmul.bf16.gmra.mxu0 %v4102
        %v6020 = vpop.f32.mrf.mxu0
        %v6021 = vadd.f32 0.0, %v6020
        %v6022 = vpop.f32.mrf.mxu0
        %v6023 = vadd.f32 0.0, %v6022
        %6024 = vmatmul.bf16.gmra.mxu0 %v4105
        %v6025 = vpop.f32.mrf.mxu0
        %v6026 = vadd.f32 0.0, %v6025
        %v6027 = vpop.f32.mrf.mxu0
        %v6028 = vadd.f32 0.0, %v6027
        %6029 = vmatmul.bf16.gmra.mxu0 %v4108
        %v6030 = vpop.f32.mrf.mxu0
        %v6031 = vadd.f32 0.0, %v6030
        %v6032 = vpop.f32.mrf.mxu0
        %v6033 = vadd.f32 0.0, %v6032
        %6034 = vmatmul.bf16.gmra.mxu0 %v4111
        %v6035 = vpop.f32.mrf.mxu0
        %v6036 = vadd.f32 0.0, %v6035
        %v6037 = vpop.f32.mrf.mxu0
        %v6038 = vadd.f32 0.0, %v6037
        %6039 = vmatmul.bf16.gmra.mxu0 %v4114
        %v6040 = vpop.f32.mrf.mxu0
        %v6041 = vadd.f32 0.0, %v6040
        %v6042 = vpop.f32.mrf.mxu0
        %v6043 = vadd.f32 0.0, %v6042
        %6044 = vmatmul.bf16.gmra.mxu0 %v4117
        %v6045 = vpop.f32.mrf.mxu0
        %v6046 = vadd.f32 0.0, %v6045
        %v6047 = vpop.f32.mrf.mxu0
        %v6048 = vadd.f32 0.0, %v6047
        %6049 = vmatmul.bf16.gmra.mxu0 %v4120
        %v6050 = vpop.f32.mrf.mxu0
        %v6051 = vadd.f32 0.0, %v6050
        %v6052 = vpop.f32.mrf.mxu0
        %v6053 = vadd.f32 0.0, %v6052
        %6054 = vmatmul.bf16.gmra.mxu0 %v4123
        %v6055 = vpop.f32.mrf.mxu0
        %v6056 = vadd.f32 0.0, %v6055
        %v6057 = vpop.f32.mrf.mxu0
        %v6058 = vadd.f32 0.0, %v6057
        %6059 = vmatmul.bf16.gmra.mxu0 %v4126
        %v6060 = vpop.f32.mrf.mxu0
        %v6061 = vadd.f32 0.0, %v6060
        %v6062 = vpop.f32.mrf.mxu0
        %v6063 = vadd.f32 0.0, %v6062
        %6064 = vmatmul.bf16.gmra.mxu0 %v4129
        %v6065 = vpop.f32.mrf.mxu0
        %v6066 = vadd.f32 0.0, %v6065
        %v6067 = vpop.f32.mrf.mxu0
        %v6068 = vadd.f32 0.0, %v6067
        %6069 = vmatmul.bf16.gmra.mxu0 %v4132
        %v6070 = vpop.f32.mrf.mxu0
        %v6071 = vadd.f32 0.0, %v6070
        %v6072 = vpop.f32.mrf.mxu0
        %v6073 = vadd.f32 0.0, %v6072
        %6074 = vmatmul.bf16.gmra.mxu0 %v5025
        %v6075 = vpop.f32.mrf.mxu0
        %v6076 = vadd.f32 0.0, %v6075
        %v6077 = vpop.f32.mrf.mxu0
        %v6078 = vadd.f32 0.0, %v6077
        %6079 = vmatmul.bf16.gmra.mxu0 %v5028
        %v6080 = vpop.f32.mrf.mxu0
        %v6081 = vadd.f32 0.0, %v6080
        %v6082 = vpop.f32.mrf.mxu0
        %v6083 = vadd.f32 0.0, %v6082
        %6084 = vmatmul.bf16.gmra.mxu0 %v5921
        %v6085 = vpop.f32.mrf.mxu0
        %v6086 = vadd.f32 0.0, %v6085
        %v6087 = vpop.f32.mrf.mxu0
        %v6088 = vadd.f32 0.0, %v6087
        %6089 = vmatmul.bf16.gmra.mxu0 %v5924
        %v6090 = vpop.f32.mrf.mxu0
        %v6091 = vadd.f32 0.0, %v6090
        %v6092 = vpop.f32.mrf.mxu0
        %v6093 = vadd.f32 0.0, %v6092
        %6094 = vdwg.mxu0
        %v6095 = vadd.f32 %v5803, %v5936
        %v6096 = vadd.f32 %v5804, %v5938
        %v6097 = vadd.f32 %v5805, %v5941
        %v6098 = vadd.f32 %v5806, %v5943
        %v6099 = vadd.f32 %v5807, %v5946
        %v6100 = vadd.f32 %v5808, %v5948
        %v6101 = vadd.f32 %v5809, %v5951
        %v6102 = vadd.f32 %v5810, %v5953
        %v6103 = vadd.f32 %v5811, %v5956
        %v6104 = vadd.f32 %v5812, %v5958
        %v6105 = vadd.f32 %v5813, %v5961
        %v6106 = vadd.f32 %v5814, %v5963
        %v6107 = vadd.f32 %v5815, %v5966
        %v6108 = vadd.f32 %v5816, %v5968
        %v6109 = vadd.f32 %v5817, %v5971
        %v6110 = vadd.f32 %v5818, %v5973
        %v6111 = vadd.f32 %v5819, %v5976
        %v6112 = vadd.f32 %v5820, %v5978
        %v6113 = vadd.f32 %v5821, %v5981
        %v6114 = vadd.f32 %v5822, %v5983
        %v6115 = vadd.f32 %v5823, %v5986
        %v6116 = vadd.f32 %v5824, %v5988
        %v6117 = vadd.f32 %v5825, %v5991
        %v6118 = vadd.f32 %v5826, %v5993
        %v6119 = vadd.f32 %v5827, %v5996
        %v6120 = vadd.f32 %v5828, %v5998
        %v6121 = vadd.f32 %v5829, %v6001
        %v6122 = vadd.f32 %v5830, %v6003
        %v6123 = vadd.f32 %v5831, %v6006
        %v6124 = vadd.f32 %v5832, %v6008
        %v6125 = vadd.f32 %v5833, %v6011
        %v6126 = vadd.f32 %v5834, %v6013
        %v6127 = vadd.f32 %v5835, %v6016
        %v6128 = vadd.f32 %v5836, %v6018
        %v6129 = vadd.f32 %v5837, %v6021
        %v6130 = vadd.f32 %v5838, %v6023
        %v6131 = vadd.f32 %v5839, %v6026
        %v6132 = vadd.f32 %v5840, %v6028
        %v6133 = vadd.f32 %v5841, %v6031
        %v6134 = vadd.f32 %v5842, %v6033
        %v6135 = vadd.f32 %v5843, %v6036
        %v6136 = vadd.f32 %v5844, %v6038
        %v6137 = vadd.f32 %v5845, %v6041
        %v6138 = vadd.f32 %v5846, %v6043
        %v6139 = vadd.f32 %v5847, %v6046
        %v6140 = vadd.f32 %v5848, %v6048
        %v6141 = vadd.f32 %v5849, %v6051
        %v6142 = vadd.f32 %v5850, %v6053
        %v6143 = vadd.f32 %v5851, %v6056
        %v6144 = vadd.f32 %v5852, %v6058
        %v6145 = vadd.f32 %v5853, %v6061
        %v6146 = vadd.f32 %v5854, %v6063
        %v6147 = vadd.f32 %v5855, %v6066
        %v6148 = vadd.f32 %v5856, %v6068
        %v6149 = vadd.f32 %v5857, %v6071
        %v6150 = vadd.f32 %v5858, %v6073
        %v6151 = vadd.f32 %v5859, %v6076
        %v6152 = vadd.f32 %v5860, %v6078
        %v6153 = vadd.f32 %v5861, %v6081
        %v6154 = vadd.f32 %v5862, %v6083
        %v6155 = vadd.f32 %v5863, %v6086
        %v6156 = vadd.f32 %v5864, %v6088
        %v6157 = vadd.f32 %v5865, %v6091
        %v6158 = vadd.f32 %v5866, %v6093
        %v6159 = vld [vmem:[#allocation12] sm:$0x1]
        %v6161 = vperm.slane %v6159, 0
        %v6163 = vadd.f32 %v6095, %v6161
        %v6164 = vadd.f32 %v6096, %v6161
        %v6165 = vadd.f32 %v6097, %v6161
        %v6166 = vadd.f32 %v6098, %v6161
        %v6167 = vadd.f32 %v6099, %v6161
        %v6168 = vadd.f32 %v6100, %v6161
        %v6169 = vadd.f32 %v6101, %v6161
        %v6170 = vadd.f32 %v6102, %v6161
        %v6171 = vadd.f32 %v6103, %v6161
        %v6172 = vadd.f32 %v6104, %v6161
        %v6173 = vadd.f32 %v6105, %v6161
        %v6174 = vadd.f32 %v6106, %v6161
        %v6175 = vadd.f32 %v6107, %v6161
        %v6176 = vadd.f32 %v6108, %v6161
        %v6177 = vadd.f32 %v6109, %v6161
        %v6178 = vadd.f32 %v6110, %v6161
        %v6179 = vadd.f32 %v6111, %v6161
        %v6180 = vadd.f32 %v6112, %v6161
        %v6181 = vadd.f32 %v6113, %v6161
        %v6182 = vadd.f32 %v6114, %v6161
        %v6183 = vadd.f32 %v6115, %v6161
        %v6184 = vadd.f32 %v6116, %v6161
        %v6185 = vadd.f32 %v6117, %v6161
        %v6186 = vadd.f32 %v6118, %v6161
        %v6187 = vadd.f32 %v6119, %v6161
        %v6188 = vadd.f32 %v6120, %v6161
        %v6189 = vadd.f32 %v6121, %v6161
        %v6190 = vadd.f32 %v6122, %v6161
        %v6191 = vadd.f32 %v6123, %v6161
        %v6192 = vadd.f32 %v6124, %v6161
        %v6193 = vadd.f32 %v6125, %v6161
        %v6194 = vadd.f32 %v6126, %v6161
        %v6195 = vadd.f32 %v6127, %v6161
        %v6196 = vadd.f32 %v6128, %v6161
        %v6197 = vadd.f32 %v6129, %v6161
        %v6198 = vadd.f32 %v6130, %v6161
        %v6199 = vadd.f32 %v6131, %v6161
        %v6200 = vadd.f32 %v6132, %v6161
        %v6201 = vadd.f32 %v6133, %v6161
        %v6202 = vadd.f32 %v6134, %v6161
        %v6203 = vadd.f32 %v6135, %v6161
        %v6204 = vadd.f32 %v6136, %v6161
        %v6205 = vadd.f32 %v6137, %v6161
        %v6206 = vadd.f32 %v6138, %v6161
        %v6207 = vadd.f32 %v6139, %v6161
        %v6208 = vadd.f32 %v6140, %v6161
        %v6209 = vadd.f32 %v6141, %v6161
        %v6210 = vadd.f32 %v6142, %v6161
        %v6211 = vadd.f32 %v6143, %v6161
        %v6212 = vadd.f32 %v6144, %v6161
        %v6213 = vadd.f32 %v6145, %v6161
        %v6214 = vadd.f32 %v6146, %v6161
        %v6215 = vadd.f32 %v6147, %v6161
        %v6216 = vadd.f32 %v6148, %v6161
        %v6217 = vadd.f32 %v6149, %v6161
        %v6218 = vadd.f32 %v6150, %v6161
        %v6219 = vadd.f32 %v6151, %v6161
        %v6220 = vadd.f32 %v6152, %v6161
        %v6221 = vadd.f32 %v6153, %v6161
        %v6222 = vadd.f32 %v6154, %v6161
        %v6223 = vadd.f32 %v6155, %v6161
        %v6224 = vadd.f32 %v6156, %v6161
        %v6225 = vadd.f32 %v6157, %v6161
        %v6226 = vadd.f32 %v6158, %v6161
        %v6227 = vmax.f32 %v6163, 0.0
        %v6228 = vmax.f32 %v6164, 0.0
        %v6229 = vmax.f32 %v6165, 0.0
        %v6230 = vmax.f32 %v6166, 0.0
        %v6231 = vmax.f32 %v6167, 0.0
        %v6232 = vmax.f32 %v6168, 0.0
        %v6233 = vmax.f32 %v6169, 0.0
        %v6234 = vmax.f32 %v6170, 0.0
        %v6235 = vmax.f32 %v6171, 0.0
        %v6236 = vmax.f32 %v6172, 0.0
        %v6237 = vmax.f32 %v6173, 0.0
        %v6238 = vmax.f32 %v6174, 0.0
        %v6239 = vmax.f32 %v6175, 0.0
        %v6240 = vmax.f32 %v6176, 0.0
        %v6241 = vmax.f32 %v6177, 0.0
        %v6242 = vmax.f32 %v6178, 0.0
        %v6243 = vmax.f32 %v6179, 0.0
        %v6244 = vmax.f32 %v6180, 0.0
        %v6245 = vmax.f32 %v6181, 0.0
        %v6246 = vmax.f32 %v6182, 0.0
        %v6247 = vmax.f32 %v6183, 0.0
        %v6248 = vmax.f32 %v6184, 0.0
        %v6249 = vmax.f32 %v6185, 0.0
        %v6250 = vmax.f32 %v6186, 0.0
        %v6251 = vmax.f32 %v6187, 0.0
        %v6252 = vmax.f32 %v6188, 0.0
        %v6253 = vmax.f32 %v6189, 0.0
        %v6254 = vmax.f32 %v6190, 0.0
        %v6255 = vmax.f32 %v6191, 0.0
        %v6256 = vmax.f32 %v6192, 0.0
        %v6257 = vmax.f32 %v6193, 0.0
        %v6258 = vmax.f32 %v6194, 0.0
        %v6259 = vmax.f32 %v6195, 0.0
        %v6260 = vmax.f32 %v6196, 0.0
        %v6261 = vmax.f32 %v6197, 0.0
        %v6262 = vmax.f32 %v6198, 0.0
        %v6263 = vmax.f32 %v6199, 0.0
        %v6264 = vmax.f32 %v6200, 0.0
        %v6265 = vmax.f32 %v6201, 0.0
        %v6266 = vmax.f32 %v6202, 0.0
        %v6267 = vmax.f32 %v6203, 0.0
        %v6268 = vmax.f32 %v6204, 0.0
        %v6269 = vmax.f32 %v6205, 0.0
        %v6270 = vmax.f32 %v6206, 0.0
        %v6271 = vmax.f32 %v6207, 0.0
        %v6272 = vmax.f32 %v6208, 0.0
        %v6273 = vmax.f32 %v6209, 0.0
        %v6274 = vmax.f32 %v6210, 0.0
        %v6275 = vmax.f32 %v6211, 0.0
        %v6276 = vmax.f32 %v6212, 0.0
        %v6277 = vmax.f32 %v6213, 0.0
        %v6278 = vmax.f32 %v6214, 0.0
        %v6279 = vmax.f32 %v6215, 0.0
        %v6280 = vmax.f32 %v6216, 0.0
        %v6281 = vmax.f32 %v6217, 0.0
        %v6282 = vmax.f32 %v6218, 0.0
        %v6283 = vmax.f32 %v6219, 0.0
        %v6284 = vmax.f32 %v6220, 0.0
        %v6285 = vmax.f32 %v6221, 0.0
        %v6286 = vmax.f32 %v6222, 0.0
        %v6287 = vmax.f32 %v6223, 0.0
        %v6288 = vmax.f32 %v6224, 0.0
        %v6289 = vmax.f32 %v6225, 0.0
        %v6290 = vmax.f32 %v6226, 0.0
        %v6291 = vpack.c.bf16 %v6228, %v6227
        %v6292 = vpack.c.bf16 %v6230, %v6229
        %v6293 = vpack.c.bf16 %v6232, %v6231
        %v6294 = vpack.c.bf16 %v6234, %v6233
        %v6295 = vpack.c.bf16 %v6236, %v6235
        %v6296 = vpack.c.bf16 %v6238, %v6237
        %v6297 = vpack.c.bf16 %v6240, %v6239
        %v6298 = vpack.c.bf16 %v6242, %v6241
        %v6299 = vpack.c.bf16 %v6244, %v6243
        %v6300 = vpack.c.bf16 %v6246, %v6245
        %v6301 = vpack.c.bf16 %v6248, %v6247
        %v6302 = vpack.c.bf16 %v6250, %v6249
        %v6303 = vpack.c.bf16 %v6252, %v6251
        %v6304 = vpack.c.bf16 %v6254, %v6253
        %v6305 = vpack.c.bf16 %v6256, %v6255
        %v6306 = vpack.c.bf16 %v6258, %v6257
        %v6307 = vpack.c.bf16 %v6260, %v6259
        %v6308 = vpack.c.bf16 %v6262, %v6261
        %v6309 = vpack.c.bf16 %v6264, %v6263
        %v6310 = vpack.c.bf16 %v6266, %v6265
        %v6311 = vpack.c.bf16 %v6268, %v6267
        %v6312 = vpack.c.bf16 %v6270, %v6269
        %v6313 = vpack.c.bf16 %v6272, %v6271
        %v6314 = vpack.c.bf16 %v6274, %v6273
        %v6315 = vpack.c.bf16 %v6276, %v6275
        %v6316 = vpack.c.bf16 %v6278, %v6277
        %v6317 = vpack.c.bf16 %v6280, %v6279
        %v6318 = vpack.c.bf16 %v6282, %v6281
        %v6319 = vpack.c.bf16 %v6284, %v6283
        %v6320 = vpack.c.bf16 %v6286, %v6285
        %v6321 = vpack.c.bf16 %v6288, %v6287
        %v6322 = vpack.c.bf16 %v6290, %v6289
        %v6323 = vld [vmem:[#allocation9] sm:$0xff]
        %v6324 = vld [vmem:[#allocation9 + $0x8] sm:$0xff]
        %v6325 = vld [vmem:[#allocation9 + $0x10] sm:$0xff]
        %v6326 = vld [vmem:[#allocation9 + $0x18] sm:$0xff]
        %v6327 = vld [vmem:[#allocation9 + $0x20] sm:$0xff]
        %v6328 = vld [vmem:[#allocation9 + $0x28] sm:$0xff]
        %v6329 = vld [vmem:[#allocation9 + $0x30] sm:$0xff]
        %v6330 = vld [vmem:[#allocation9 + $0x38] sm:$0xff]
        %v6331 = vld [vmem:[#allocation13] sm:$0x3]
        %v6333 = vperm.slane %v6331, 0
        %v6334 = vperm.slane %v6331, 1
        %v6345 = vunpack.c.l.b16 %v6323
        %v6346 = vunpack.c.h.b16 %v6323
        %v6347 = vunpack.c.l.b16 %v6324
        %v6348 = vunpack.c.h.b16 %v6324
        %v6349 = vunpack.c.l.b16 %v6325
        %v6350 = vunpack.c.h.b16 %v6325
        %v6351 = vunpack.c.l.b16 %v6326
        %v6352 = vunpack.c.h.b16 %v6326
        %v6353 = vunpack.c.l.b16 %v6327
        %v6354 = vunpack.c.h.b16 %v6327
        %v6355 = vunpack.c.l.b16 %v6328
        %v6356 = vunpack.c.h.b16 %v6328
        %v6357 = vunpack.c.l.b16 %v6329
        %v6358 = vunpack.c.h.b16 %v6329
        %v6359 = vunpack.c.l.b16 %v6330
        %v6360 = vunpack.c.h.b16 %v6330
        %v6361 = vpack.c.b16 %v6347, %v6345
        %v6362 = vpack.c.b16 %v6348, %v6346
        %v6363 = vpack.c.b16 %v6351, %v6349
        %v6364 = vpack.c.b16 %v6352, %v6350
        %v6365 = vpack.c.b16 %v6355, %v6353
        %v6366 = vpack.c.b16 %v6356, %v6354
        %v6367 = vpack.c.b16 %v6359, %v6357
        %v6368 = vpack.c.b16 %v6360, %v6358
        %v6378 = vsel %vm2967, %v6291, 0
        %v6381 = vsel %vm2967, %v6292, 0
        %v6384 = vsel %vm2967, %v6293, 0
        %v6387 = vsel %vm2967, %v6294, 0
        %v6390 = vsel %vm2967, %v6295, 0
        %v6393 = vsel %vm2967, %v6296, 0
        %v6396 = vsel %vm2967, %v6297, 0
        %v6399 = vsel %vm2967, %v6298, 0
        %v6402 = vsel %vm2967, %v6299, 0
        %v6405 = vsel %vm2967, %v6300, 0
        %v6408 = vsel %vm2967, %v6301, 0
        %v6411 = vsel %vm2967, %v6302, 0
        %v6414 = vsel %vm2967, %v6303, 0
        %v6417 = vsel %vm2967, %v6304, 0
        %v6420 = vsel %vm2967, %v6305, 0
        %v6423 = vsel %vm2967, %v6306, 0
        %v6426 = vsel %vm2967, %v6307, 0
        %v6429 = vsel %vm2967, %v6308, 0
        %v6432 = vsel %vm2967, %v6309, 0
        %v6435 = vsel %vm2967, %v6310, 0
        %v6438 = vsel %vm2967, %v6311, 0
        %v6441 = vsel %vm2967, %v6312, 0
        %v6444 = vsel %vm2967, %v6313, 0
        %v6447 = vsel %vm2967, %v6314, 0
        %v6450 = vsel %vm2967, %v6315, 0
        %v6453 = vsel %vm2967, %v6316, 0
        %v6456 = vsel %vm2967, %v6317, 0
        %v6459 = vsel %vm2967, %v6318, 0
        %v6462 = vsel %vm2967, %v6319, 0
        %v6465 = vsel %vm2967, %v6320, 0
        %v6468 = vsel %vm2967, %v6321, 0
        %v6471 = vsel %vm2967, %v6322, 0
        %6473 = vmatpush.bf16.msra.mxu0 0
        %6474 = vmatpush.bf16.msra.mxu0 0
        %6475 = vmatpush.bf16.msra.mxu0 0
        %6476 = vmatpush.bf16.msra.mxu0 0
        %6477 = vmatpush.bf16.msra.mxu0 %v6367
        %6478 = vmatpush.bf16.msra.mxu0 %v6365
        %6479 = vmatpush.bf16.msra.mxu0 %v6363
        %6480 = vmatpush.bf16.msra.mxu0 %v6361
        %6481 = vmatmul.bf16.gmra.mxu0 %v6378
        %v6482 = vpop.f32.mrf.mxu0
        %v6483 = vadd.f32 %v6333, %v6482
        %v6484 = vpop.f32.mrf.mxu0
        %v6485 = vadd.f32 %v6333, %v6484
        %6486 = vmatmul.bf16.gmra.mxu0 %v6381
        %v6487 = vpop.f32.mrf.mxu0
        %v6488 = vadd.f32 %v6333, %v6487
        %v6489 = vpop.f32.mrf.mxu0
        %v6490 = vadd.f32 %v6333, %v6489
        %6491 = vmatmul.bf16.gmra.mxu0 %v6384
        %v6492 = vpop.f32.mrf.mxu0
        %v6493 = vadd.f32 %v6333, %v6492
        %v6494 = vpop.f32.mrf.mxu0
        %v6495 = vadd.f32 %v6333, %v6494
        %6496 = vmatmul.bf16.gmra.mxu0 %v6387
        %v6497 = vpop.f32.mrf.mxu0
        %v6498 = vadd.f32 %v6333, %v6497
        %v6499 = vpop.f32.mrf.mxu0
        %v6500 = vadd.f32 %v6333, %v6499
        %6501 = vmatmul.bf16.gmra.mxu0 %v6390
        %v6502 = vpop.f32.mrf.mxu0
        %v6503 = vadd.f32 %v6333, %v6502
        %v6504 = vpop.f32.mrf.mxu0
        %v6505 = vadd.f32 %v6333, %v6504
        %6506 = vmatmul.bf16.gmra.mxu0 %v6393
        %v6507 = vpop.f32.mrf.mxu0
        %v6508 = vadd.f32 %v6333, %v6507
        %v6509 = vpop.f32.mrf.mxu0
        %v6510 = vadd.f32 %v6333, %v6509
        %6511 = vmatmul.bf16.gmra.mxu0 %v6396
        %v6512 = vpop.f32.mrf.mxu0
        %v6513 = vadd.f32 %v6333, %v6512
        %v6514 = vpop.f32.mrf.mxu0
        %v6515 = vadd.f32 %v6333, %v6514
        %6516 = vmatmul.bf16.gmra.mxu0 %v6399
        %v6517 = vpop.f32.mrf.mxu0
        %v6518 = vadd.f32 %v6333, %v6517
        %v6519 = vpop.f32.mrf.mxu0
        %v6520 = vadd.f32 %v6333, %v6519
        %6521 = vmatmul.bf16.gmra.mxu0 %v6402
        %v6522 = vpop.f32.mrf.mxu0
        %v6523 = vadd.f32 %v6333, %v6522
        %v6524 = vpop.f32.mrf.mxu0
        %v6525 = vadd.f32 %v6333, %v6524
        %6526 = vmatmul.bf16.gmra.mxu0 %v6405
        %v6527 = vpop.f32.mrf.mxu0
        %v6528 = vadd.f32 %v6333, %v6527
        %v6529 = vpop.f32.mrf.mxu0
        %v6530 = vadd.f32 %v6333, %v6529
        %6531 = vmatmul.bf16.gmra.mxu0 %v6408
        %v6532 = vpop.f32.mrf.mxu0
        %v6533 = vadd.f32 %v6333, %v6532
        %v6534 = vpop.f32.mrf.mxu0
        %v6535 = vadd.f32 %v6333, %v6534
        %6536 = vmatmul.bf16.gmra.mxu0 %v6411
        %v6537 = vpop.f32.mrf.mxu0
        %v6538 = vadd.f32 %v6333, %v6537
        %v6539 = vpop.f32.mrf.mxu0
        %v6540 = vadd.f32 %v6333, %v6539
        %6541 = vmatmul.bf16.gmra.mxu0 %v6414
        %v6542 = vpop.f32.mrf.mxu0
        %v6543 = vadd.f32 %v6333, %v6542
        %v6544 = vpop.f32.mrf.mxu0
        %v6545 = vadd.f32 %v6333, %v6544
        %6546 = vmatmul.bf16.gmra.mxu0 %v6417
        %v6547 = vpop.f32.mrf.mxu0
        %v6548 = vadd.f32 %v6333, %v6547
        %v6549 = vpop.f32.mrf.mxu0
        %v6550 = vadd.f32 %v6333, %v6549
        %6551 = vmatmul.bf16.gmra.mxu0 %v6420
        %v6552 = vpop.f32.mrf.mxu0
        %v6553 = vadd.f32 %v6333, %v6552
        %v6554 = vpop.f32.mrf.mxu0
        %v6555 = vadd.f32 %v6333, %v6554
        %6556 = vmatmul.bf16.gmra.mxu0 %v6423
        %v6557 = vpop.f32.mrf.mxu0
        %v6558 = vadd.f32 %v6333, %v6557
        %v6559 = vpop.f32.mrf.mxu0
        %v6560 = vadd.f32 %v6333, %v6559
        %6561 = vmatmul.bf16.gmra.mxu0 %v6426
        %v6562 = vpop.f32.mrf.mxu0
        %v6563 = vadd.f32 %v6333, %v6562
        %v6564 = vpop.f32.mrf.mxu0
        %v6565 = vadd.f32 %v6333, %v6564
        %6566 = vmatmul.bf16.gmra.mxu0 %v6429
        %v6567 = vpop.f32.mrf.mxu0
        %v6568 = vadd.f32 %v6333, %v6567
        %v6569 = vpop.f32.mrf.mxu0
        %v6570 = vadd.f32 %v6333, %v6569
        %6571 = vmatmul.bf16.gmra.mxu0 %v6432
        %v6572 = vpop.f32.mrf.mxu0
        %v6573 = vadd.f32 %v6333, %v6572
        %v6574 = vpop.f32.mrf.mxu0
        %v6575 = vadd.f32 %v6333, %v6574
        %6576 = vmatmul.bf16.gmra.mxu0 %v6435
        %v6577 = vpop.f32.mrf.mxu0
        %v6578 = vadd.f32 %v6333, %v6577
        %v6579 = vpop.f32.mrf.mxu0
        %v6580 = vadd.f32 %v6333, %v6579
        %6581 = vmatmul.bf16.gmra.mxu0 %v6438
        %v6582 = vpop.f32.mrf.mxu0
        %v6583 = vadd.f32 %v6333, %v6582
        %v6584 = vpop.f32.mrf.mxu0
        %v6585 = vadd.f32 %v6333, %v6584
        %6586 = vmatmul.bf16.gmra.mxu0 %v6441
        %v6587 = vpop.f32.mrf.mxu0
        %v6588 = vadd.f32 %v6333, %v6587
        %v6589 = vpop.f32.mrf.mxu0
        %v6590 = vadd.f32 %v6333, %v6589
        %6591 = vmatmul.bf16.gmra.mxu0 %v6444
        %v6592 = vpop.f32.mrf.mxu0
        %v6593 = vadd.f32 %v6333, %v6592
        %v6594 = vpop.f32.mrf.mxu0
        %v6595 = vadd.f32 %v6333, %v6594
        %6596 = vmatmul.bf16.gmra.mxu0 %v6447
        %v6597 = vpop.f32.mrf.mxu0
        %v6598 = vadd.f32 %v6333, %v6597
        %v6599 = vpop.f32.mrf.mxu0
        %v6600 = vadd.f32 %v6333, %v6599
        %6601 = vmatmul.bf16.gmra.mxu0 %v6450
        %v6602 = vpop.f32.mrf.mxu0
        %v6603 = vadd.f32 %v6333, %v6602
        %v6604 = vpop.f32.mrf.mxu0
        %v6605 = vadd.f32 %v6333, %v6604
        %6606 = vmatmul.bf16.gmra.mxu0 %v6453
        %v6607 = vpop.f32.mrf.mxu0
        %v6608 = vadd.f32 %v6333, %v6607
        %v6609 = vpop.f32.mrf.mxu0
        %v6610 = vadd.f32 %v6333, %v6609
        %6611 = vmatmul.bf16.gmra.mxu0 %v6456
        %v6612 = vpop.f32.mrf.mxu0
        %v6613 = vadd.f32 %v6333, %v6612
        %v6614 = vpop.f32.mrf.mxu0
        %v6615 = vadd.f32 %v6333, %v6614
        %6616 = vmatmul.bf16.gmra.mxu0 %v6459
        %v6617 = vpop.f32.mrf.mxu0
        %v6618 = vadd.f32 %v6333, %v6617
        %v6619 = vpop.f32.mrf.mxu0
        %v6620 = vadd.f32 %v6333, %v6619
        %6621 = vmatmul.bf16.gmra.mxu0 %v6462
        %v6622 = vpop.f32.mrf.mxu0
        %v6623 = vadd.f32 %v6333, %v6622
        %v6624 = vpop.f32.mrf.mxu0
        %v6625 = vadd.f32 %v6333, %v6624
        %6626 = vmatmul.bf16.gmra.mxu0 %v6465
        %v6627 = vpop.f32.mrf.mxu0
        %v6628 = vadd.f32 %v6333, %v6627
        %v6629 = vpop.f32.mrf.mxu0
        %v6630 = vadd.f32 %v6333, %v6629
        %6631 = vmatmul.bf16.gmra.mxu0 %v6468
        %v6632 = vpop.f32.mrf.mxu0
        %v6633 = vadd.f32 %v6333, %v6632
        %v6634 = vpop.f32.mrf.mxu0
        %v6635 = vadd.f32 %v6333, %v6634
        %6636 = vmatmul.bf16.gmra.mxu0 %v6471
        %v6637 = vpop.f32.mrf.mxu0
        %v6638 = vadd.f32 %v6333, %v6637
        %v6639 = vpop.f32.mrf.mxu0
        %v6640 = vadd.f32 %v6333, %v6639
        %6641 = vdwg.mxu0
        %6642 = vmatpush.bf16.msra.mxu0 0
        %6643 = vmatpush.bf16.msra.mxu0 0
        %6644 = vmatpush.bf16.msra.mxu0 0
        %6645 = vmatpush.bf16.msra.mxu0 0
        %6646 = vmatpush.bf16.msra.mxu0 %v6368
        %6647 = vmatpush.bf16.msra.mxu0 %v6366
        %6648 = vmatpush.bf16.msra.mxu0 %v6364
        %6649 = vmatpush.bf16.msra.mxu0 %v6362
        %6650 = vmatmul.bf16.gmra.mxu0 %v6378
        %v6651 = vpop.f32.mrf.mxu0
        %v6652 = vadd.f32 %v6334, %v6651
        %v6653 = vpop.f32.mrf.mxu0
        %v6654 = vadd.f32 %v6334, %v6653
        %6655 = vmatmul.bf16.gmra.mxu0 %v6381
        %v6656 = vpop.f32.mrf.mxu0
        %v6657 = vadd.f32 %v6334, %v6656
        %v6658 = vpop.f32.mrf.mxu0
        %v6659 = vadd.f32 %v6334, %v6658
        %6660 = vmatmul.bf16.gmra.mxu0 %v6384
        %v6661 = vpop.f32.mrf.mxu0
        %v6662 = vadd.f32 %v6334, %v6661
        %v6663 = vpop.f32.mrf.mxu0
        %v6664 = vadd.f32 %v6334, %v6663
        %6665 = vmatmul.bf16.gmra.mxu0 %v6387
        %v6666 = vpop.f32.mrf.mxu0
        %v6667 = vadd.f32 %v6334, %v6666
        %v6668 = vpop.f32.mrf.mxu0
        %v6669 = vadd.f32 %v6334, %v6668
        %6670 = vmatmul.bf16.gmra.mxu0 %v6390
        %v6671 = vpop.f32.mrf.mxu0
        %v6672 = vadd.f32 %v6334, %v6671
        %v6673 = vpop.f32.mrf.mxu0
        %v6674 = vadd.f32 %v6334, %v6673
        %6675 = vmatmul.bf16.gmra.mxu0 %v6393
        %v6676 = vpop.f32.mrf.mxu0
        %v6677 = vadd.f32 %v6334, %v6676
        %v6678 = vpop.f32.mrf.mxu0
        %v6679 = vadd.f32 %v6334, %v6678
        %6680 = vmatmul.bf16.gmra.mxu0 %v6396
        %v6681 = vpop.f32.mrf.mxu0
        %v6682 = vadd.f32 %v6334, %v6681
        %v6683 = vpop.f32.mrf.mxu0
        %v6684 = vadd.f32 %v6334, %v6683
        %6685 = vmatmul.bf16.gmra.mxu0 %v6399
        %v6686 = vpop.f32.mrf.mxu0
        %v6687 = vadd.f32 %v6334, %v6686
        %v6688 = vpop.f32.mrf.mxu0
        %v6689 = vadd.f32 %v6334, %v6688
        %6690 = vmatmul.bf16.gmra.mxu0 %v6402
        %v6691 = vpop.f32.mrf.mxu0
        %v6692 = vadd.f32 %v6334, %v6691
        %v6693 = vpop.f32.mrf.mxu0
        %v6694 = vadd.f32 %v6334, %v6693
        %6695 = vmatmul.bf16.gmra.mxu0 %v6405
        %v6696 = vpop.f32.mrf.mxu0
        %v6697 = vadd.f32 %v6334, %v6696
        %v6698 = vpop.f32.mrf.mxu0
        %v6699 = vadd.f32 %v6334, %v6698
        %6700 = vmatmul.bf16.gmra.mxu0 %v6408
        %v6701 = vpop.f32.mrf.mxu0
        %v6702 = vadd.f32 %v6334, %v6701
        %v6703 = vpop.f32.mrf.mxu0
        %v6704 = vadd.f32 %v6334, %v6703
        %6705 = vmatmul.bf16.gmra.mxu0 %v6411
        %v6706 = vpop.f32.mrf.mxu0
        %v6707 = vadd.f32 %v6334, %v6706
        %v6708 = vpop.f32.mrf.mxu0
        %v6709 = vadd.f32 %v6334, %v6708
        %6710 = vmatmul.bf16.gmra.mxu0 %v6414
        %v6711 = vpop.f32.mrf.mxu0
        %v6712 = vadd.f32 %v6334, %v6711
        %v6713 = vpop.f32.mrf.mxu0
        %v6714 = vadd.f32 %v6334, %v6713
        %6715 = vmatmul.bf16.gmra.mxu0 %v6417
        %v6716 = vpop.f32.mrf.mxu0
        %v6717 = vadd.f32 %v6334, %v6716
        %v6718 = vpop.f32.mrf.mxu0
        %v6719 = vadd.f32 %v6334, %v6718
        %6720 = vmatmul.bf16.gmra.mxu0 %v6420
        %v6721 = vpop.f32.mrf.mxu0
        %v6722 = vadd.f32 %v6334, %v6721
        %v6723 = vpop.f32.mrf.mxu0
        %v6724 = vadd.f32 %v6334, %v6723
        %6725 = vmatmul.bf16.gmra.mxu0 %v6423
        %v6726 = vpop.f32.mrf.mxu0
        %v6727 = vadd.f32 %v6334, %v6726
        %v6728 = vpop.f32.mrf.mxu0
        %v6729 = vadd.f32 %v6334, %v6728
        %6730 = vmatmul.bf16.gmra.mxu0 %v6426
        %v6731 = vpop.f32.mrf.mxu0
        %v6732 = vadd.f32 %v6334, %v6731
        %v6733 = vpop.f32.mrf.mxu0
        %v6734 = vadd.f32 %v6334, %v6733
        %6735 = vmatmul.bf16.gmra.mxu0 %v6429
        %v6736 = vpop.f32.mrf.mxu0
        %v6737 = vadd.f32 %v6334, %v6736
        %v6738 = vpop.f32.mrf.mxu0
        %v6739 = vadd.f32 %v6334, %v6738
        %6740 = vmatmul.bf16.gmra.mxu0 %v6432
        %v6741 = vpop.f32.mrf.mxu0
        %v6742 = vadd.f32 %v6334, %v6741
        %v6743 = vpop.f32.mrf.mxu0
        %v6744 = vadd.f32 %v6334, %v6743
        %6745 = vmatmul.bf16.gmra.mxu0 %v6435
        %v6746 = vpop.f32.mrf.mxu0
        %v6747 = vadd.f32 %v6334, %v6746
        %v6748 = vpop.f32.mrf.mxu0
        %v6749 = vadd.f32 %v6334, %v6748
        %6750 = vmatmul.bf16.gmra.mxu0 %v6438
        %v6751 = vpop.f32.mrf.mxu0
        %v6752 = vadd.f32 %v6334, %v6751
        %v6753 = vpop.f32.mrf.mxu0
        %v6754 = vadd.f32 %v6334, %v6753
        %6755 = vmatmul.bf16.gmra.mxu0 %v6441
        %v6756 = vpop.f32.mrf.mxu0
        %v6757 = vadd.f32 %v6334, %v6756
        %v6758 = vpop.f32.mrf.mxu0
        %v6759 = vadd.f32 %v6334, %v6758
        %6760 = vmatmul.bf16.gmra.mxu0 %v6444
        %v6761 = vpop.f32.mrf.mxu0
        %v6762 = vadd.f32 %v6334, %v6761
        %v6763 = vpop.f32.mrf.mxu0
        %v6764 = vadd.f32 %v6334, %v6763
        %6765 = vmatmul.bf16.gmra.mxu0 %v6447
        %v6766 = vpop.f32.mrf.mxu0
        %v6767 = vadd.f32 %v6334, %v6766
        %v6768 = vpop.f32.mrf.mxu0
        %v6769 = vadd.f32 %v6334, %v6768
        %6770 = vmatmul.bf16.gmra.mxu0 %v6450
        %v6771 = vpop.f32.mrf.mxu0
        %v6772 = vadd.f32 %v6334, %v6771
        %v6773 = vpop.f32.mrf.mxu0
        %v6774 = vadd.f32 %v6334, %v6773
        %6775 = vmatmul.bf16.gmra.mxu0 %v6453
        %v6776 = vpop.f32.mrf.mxu0
        %v6777 = vadd.f32 %v6334, %v6776
        %v6778 = vpop.f32.mrf.mxu0
        %v6779 = vadd.f32 %v6334, %v6778
        %6780 = vmatmul.bf16.gmra.mxu0 %v6456
        %v6781 = vpop.f32.mrf.mxu0
        %v6782 = vadd.f32 %v6334, %v6781
        %v6783 = vpop.f32.mrf.mxu0
        %v6784 = vadd.f32 %v6334, %v6783
        %6785 = vmatmul.bf16.gmra.mxu0 %v6459
        %v6786 = vpop.f32.mrf.mxu0
        %v6787 = vadd.f32 %v6334, %v6786
        %v6788 = vpop.f32.mrf.mxu0
        %v6789 = vadd.f32 %v6334, %v6788
        %6790 = vmatmul.bf16.gmra.mxu0 %v6462
        %v6791 = vpop.f32.mrf.mxu0
        %v6792 = vadd.f32 %v6334, %v6791
        %v6793 = vpop.f32.mrf.mxu0
        %v6794 = vadd.f32 %v6334, %v6793
        %6795 = vmatmul.bf16.gmra.mxu0 %v6465
        %v6796 = vpop.f32.mrf.mxu0
        %v6797 = vadd.f32 %v6334, %v6796
        %v6798 = vpop.f32.mrf.mxu0
        %v6799 = vadd.f32 %v6334, %v6798
        %6800 = vmatmul.bf16.gmra.mxu0 %v6468
        %v6801 = vpop.f32.mrf.mxu0
        %v6802 = vadd.f32 %v6334, %v6801
        %v6803 = vpop.f32.mrf.mxu0
        %v6804 = vadd.f32 %v6334, %v6803
        %6805 = vmatmul.bf16.gmra.mxu0 %v6471
        %v6806 = vpop.f32.mrf.mxu0
        %v6807 = vadd.f32 %v6334, %v6806
        %v6808 = vpop.f32.mrf.mxu0
        %v6809 = vadd.f32 %v6334, %v6808
        %6810 = vdwg.mxu0
        %v6811 = vld [vmem:[%s339] sm:$0xff]
        %v6812 = vld [vmem:[%s339 + $0x8] sm:$0xff]
        %v6813 = vld [vmem:[%s339 + $0x10] sm:$0xff]
        %v6814 = vld [vmem:[%s339 + $0x18] sm:$0xff]
        %v6815 = vld [vmem:[%s339 + $0x20] sm:$0xff]
        %v6816 = vld [vmem:[%s339 + $0x28] sm:$0xff]
        %v6817 = vld [vmem:[%s339 + $0x30] sm:$0xff]
        %v6818 = vld [vmem:[%s339 + $0x38] sm:$0xff]
        %v6819 = vld [vmem:[%s339 + $0x40] sm:$0xff]
        %v6820 = vld [vmem:[%s339 + $0x48] sm:$0xff]
        %v6821 = vld [vmem:[%s339 + $0x50] sm:$0xff]
        %v6822 = vld [vmem:[%s339 + $0x58] sm:$0xff]
        %v6823 = vld [vmem:[%s339 + $0x60] sm:$0xff]
        %v6824 = vld [vmem:[%s339 + $0x68] sm:$0xff]
        %v6825 = vld [vmem:[%s339 + $0x70] sm:$0xff]
        %v6826 = vld [vmem:[%s339 + $0x78] sm:$0xff]
        %v6827 = vld [vmem:[%s339 + $0x80] sm:$0xff]
        %v6828 = vld [vmem:[%s339 + $0x88] sm:$0xff]
        %v6829 = vld [vmem:[%s339 + $0x90] sm:$0xff]
        %v6830 = vld [vmem:[%s339 + $0x98] sm:$0xff]
        %v6831 = vld [vmem:[%s339 + $0xa0] sm:$0xff]
        %v6832 = vld [vmem:[%s339 + $0xa8] sm:$0xff]
        %v6833 = vld [vmem:[%s339 + $0xb0] sm:$0xff]
        %v6834 = vld [vmem:[%s339 + $0xb8] sm:$0xff]
        %v6835 = vld [vmem:[%s339 + $0xc0] sm:$0xff]
        %v6836 = vld [vmem:[%s339 + $0xc8] sm:$0xff]
        %v6837 = vld [vmem:[%s339 + $0xd0] sm:$0xff]
        %v6838 = vld [vmem:[%s339 + $0xd8] sm:$0xff]
        %v6839 = vld [vmem:[%s339 + $0xe0] sm:$0xff]
        %v6840 = vld [vmem:[%s339 + $0xe8] sm:$0xff]
        %v6841 = vld [vmem:[%s339 + $0xf0] sm:$0xff]
        %v6842 = vld [vmem:[%s339 + $0xf8] sm:$0xff]
        %v6843 = vld [vmem:[%s339 + $0x100] sm:$0xff]
        %v6844 = vld [vmem:[%s339 + $0x108] sm:$0xff]
        %v6845 = vld [vmem:[%s339 + $0x110] sm:$0xff]
        %v6846 = vld [vmem:[%s339 + $0x118] sm:$0xff]
        %v6847 = vld [vmem:[%s339 + $0x120] sm:$0xff]
        %v6848 = vld [vmem:[%s339 + $0x128] sm:$0xff]
        %v6849 = vld [vmem:[%s339 + $0x130] sm:$0xff]
        %v6850 = vld [vmem:[%s339 + $0x138] sm:$0xff]
        %v6851 = vld [vmem:[%s339 + $0x140] sm:$0xff]
        %v6852 = vld [vmem:[%s339 + $0x148] sm:$0xff]
        %v6853 = vld [vmem:[%s339 + $0x150] sm:$0xff]
        %v6854 = vld [vmem:[%s339 + $0x158] sm:$0xff]
        %v6855 = vld [vmem:[%s339 + $0x160] sm:$0xff]
        %v6856 = vld [vmem:[%s339 + $0x168] sm:$0xff]
        %v6857 = vld [vmem:[%s339 + $0x170] sm:$0xff]
        %v6858 = vld [vmem:[%s339 + $0x178] sm:$0xff]
        %v6859 = vld [vmem:[%s339 + $0x180] sm:$0xff]
        %v6860 = vld [vmem:[%s339 + $0x188] sm:$0xff]
        %v6861 = vld [vmem:[%s339 + $0x190] sm:$0xff]
        %v6862 = vld [vmem:[%s339 + $0x198] sm:$0xff]
        %v6863 = vld [vmem:[%s339 + $0x1a0] sm:$0xff]
        %v6864 = vld [vmem:[%s339 + $0x1a8] sm:$0xff]
        %v6865 = vld [vmem:[%s339 + $0x1b0] sm:$0xff]
        %v6866 = vld [vmem:[%s339 + $0x1b8] sm:$0xff]
        %v6867 = vld [vmem:[%s339 + $0x1c0] sm:$0xff]
        %v6868 = vld [vmem:[%s339 + $0x1c8] sm:$0xff]
        %v6869 = vld [vmem:[%s339 + $0x1d0] sm:$0xff]
        %v6870 = vld [vmem:[%s339 + $0x1d8] sm:$0xff]
        %v6871 = vld [vmem:[%s339 + $0x1e0] sm:$0xff]
        %v6872 = vld [vmem:[%s339 + $0x1e8] sm:$0xff]
        %v6873 = vld [vmem:[%s339 + $0x1f0] sm:$0xff]
        %v6874 = vld [vmem:[%s339 + $0x1f8] sm:$0xff]
        %v6875 = vunpack.c.l.bf16 %v6811
        %v6876 = vunpack.c.h.bf16 %v6811
        %v6877 = vunpack.c.l.bf16 %v6812
        %v6878 = vunpack.c.h.bf16 %v6812
        %v6879 = vunpack.c.l.bf16 %v6813
        %v6880 = vunpack.c.h.bf16 %v6813
        %v6881 = vunpack.c.l.bf16 %v6814
        %v6882 = vunpack.c.h.bf16 %v6814
        %v6883 = vunpack.c.l.bf16 %v6815
        %v6884 = vunpack.c.h.bf16 %v6815
        %v6885 = vunpack.c.l.bf16 %v6816
        %v6886 = vunpack.c.h.bf16 %v6816
        %v6887 = vunpack.c.l.bf16 %v6817
        %v6888 = vunpack.c.h.bf16 %v6817
        %v6889 = vunpack.c.l.bf16 %v6818
        %v6890 = vunpack.c.h.bf16 %v6818
        %v6891 = vunpack.c.l.bf16 %v6819
        %v6892 = vunpack.c.h.bf16 %v6819
        %v6893 = vunpack.c.l.bf16 %v6820
        %v6894 = vunpack.c.h.bf16 %v6820
        %v6895 = vunpack.c.l.bf16 %v6821
        %v6896 = vunpack.c.h.bf16 %v6821
        %v6897 = vunpack.c.l.bf16 %v6822
        %v6898 = vunpack.c.h.bf16 %v6822
        %v6899 = vunpack.c.l.bf16 %v6823
        %v6900 = vunpack.c.h.bf16 %v6823
        %v6901 = vunpack.c.l.bf16 %v6824
        %v6902 = vunpack.c.h.bf16 %v6824
        %v6903 = vunpack.c.l.bf16 %v6825
        %v6904 = vunpack.c.h.bf16 %v6825
        %v6905 = vunpack.c.l.bf16 %v6826
        %v6906 = vunpack.c.h.bf16 %v6826
        %v6907 = vunpack.c.l.bf16 %v6827
        %v6908 = vunpack.c.h.bf16 %v6827
        %v6909 = vunpack.c.l.bf16 %v6828
        %v6910 = vunpack.c.h.bf16 %v6828
        %v6911 = vunpack.c.l.bf16 %v6829
        %v6912 = vunpack.c.h.bf16 %v6829
        %v6913 = vunpack.c.l.bf16 %v6830
        %v6914 = vunpack.c.h.bf16 %v6830
        %v6915 = vunpack.c.l.bf16 %v6831
        %v6916 = vunpack.c.h.bf16 %v6831
        %v6917 = vunpack.c.l.bf16 %v6832
        %v6918 = vunpack.c.h.bf16 %v6832
        %v6919 = vunpack.c.l.bf16 %v6833
        %v6920 = vunpack.c.h.bf16 %v6833
        %v6921 = vunpack.c.l.bf16 %v6834
        %v6922 = vunpack.c.h.bf16 %v6834
        %v6923 = vunpack.c.l.bf16 %v6835
        %v6924 = vunpack.c.h.bf16 %v6835
        %v6925 = vunpack.c.l.bf16 %v6836
        %v6926 = vunpack.c.h.bf16 %v6836
        %v6927 = vunpack.c.l.bf16 %v6837
        %v6928 = vunpack.c.h.bf16 %v6837
        %v6929 = vunpack.c.l.bf16 %v6838
        %v6930 = vunpack.c.h.bf16 %v6838
        %v6931 = vunpack.c.l.bf16 %v6839
        %v6932 = vunpack.c.h.bf16 %v6839
        %v6933 = vunpack.c.l.bf16 %v6840
        %v6934 = vunpack.c.h.bf16 %v6840
        %v6935 = vunpack.c.l.bf16 %v6841
        %v6936 = vunpack.c.h.bf16 %v6841
        %v6937 = vunpack.c.l.bf16 %v6842
        %v6938 = vunpack.c.h.bf16 %v6842
        %v6939 = vunpack.c.l.bf16 %v6843
        %v6940 = vunpack.c.h.bf16 %v6843
        %v6941 = vunpack.c.l.bf16 %v6844
        %v6942 = vunpack.c.h.bf16 %v6844
        %v6943 = vunpack.c.l.bf16 %v6845
        %v6944 = vunpack.c.h.bf16 %v6845
        %v6945 = vunpack.c.l.bf16 %v6846
        %v6946 = vunpack.c.h.bf16 %v6846
        %v6947 = vunpack.c.l.bf16 %v6847
        %v6948 = vunpack.c.h.bf16 %v6847
        %v6949 = vunpack.c.l.bf16 %v6848
        %v6950 = vunpack.c.h.bf16 %v6848
        %v6951 = vunpack.c.l.bf16 %v6849
        %v6952 = vunpack.c.h.bf16 %v6849
        %v6953 = vunpack.c.l.bf16 %v6850
        %v6954 = vunpack.c.h.bf16 %v6850
        %v6955 = vunpack.c.l.bf16 %v6851
        %v6956 = vunpack.c.h.bf16 %v6851
        %v6957 = vunpack.c.l.bf16 %v6852
        %v6958 = vunpack.c.h.bf16 %v6852
        %v6959 = vunpack.c.l.bf16 %v6853
        %v6960 = vunpack.c.h.bf16 %v6853
        %v6961 = vunpack.c.l.bf16 %v6854
        %v6962 = vunpack.c.h.bf16 %v6854
        %v6963 = vunpack.c.l.bf16 %v6855
        %v6964 = vunpack.c.h.bf16 %v6855
        %v6965 = vunpack.c.l.bf16 %v6856
        %v6966 = vunpack.c.h.bf16 %v6856
        %v6967 = vunpack.c.l.bf16 %v6857
        %v6968 = vunpack.c.h.bf16 %v6857
        %v6969 = vunpack.c.l.bf16 %v6858
        %v6970 = vunpack.c.h.bf16 %v6858
        %v6971 = vunpack.c.l.bf16 %v6859
        %v6972 = vunpack.c.h.bf16 %v6859
        %v6973 = vunpack.c.l.bf16 %v6860
        %v6974 = vunpack.c.h.bf16 %v6860
        %v6975 = vunpack.c.l.bf16 %v6861
        %v6976 = vunpack.c.h.bf16 %v6861
        %v6977 = vunpack.c.l.bf16 %v6862
        %v6978 = vunpack.c.h.bf16 %v6862
        %v6979 = vunpack.c.l.bf16 %v6863
        %v6980 = vunpack.c.h.bf16 %v6863
        %v6981 = vunpack.c.l.bf16 %v6864
        %v6982 = vunpack.c.h.bf16 %v6864
        %v6983 = vunpack.c.l.bf16 %v6865
        %v6984 = vunpack.c.h.bf16 %v6865
        %v6985 = vunpack.c.l.bf16 %v6866
        %v6986 = vunpack.c.h.bf16 %v6866
        %v6987 = vunpack.c.l.bf16 %v6867
        %v6988 = vunpack.c.h.bf16 %v6867
        %v6989 = vunpack.c.l.bf16 %v6868
        %v6990 = vunpack.c.h.bf16 %v6868
        %v6991 = vunpack.c.l.bf16 %v6869
        %v6992 = vunpack.c.h.bf16 %v6869
        %v6993 = vunpack.c.l.bf16 %v6870
        %v6994 = vunpack.c.h.bf16 %v6870
        %v6995 = vunpack.c.l.bf16 %v6871
        %v6996 = vunpack.c.h.bf16 %v6871
        %v6997 = vunpack.c.l.bf16 %v6872
        %v6998 = vunpack.c.h.bf16 %v6872
        %v6999 = vunpack.c.l.bf16 %v6873
        %v7000 = vunpack.c.h.bf16 %v6873
        %v7001 = vunpack.c.l.bf16 %v6874
        %v7002 = vunpack.c.h.bf16 %v6874
        %v7003 = vadd.f32 %v6483, %v6875
        %v7004 = vadd.f32 %v6652, %v6876
        %v7005 = vadd.f32 %v6485, %v6877
        %v7006 = vadd.f32 %v6654, %v6878
        %v7007 = vadd.f32 %v6488, %v6879
        %v7008 = vadd.f32 %v6657, %v6880
        %v7009 = vadd.f32 %v6490, %v6881
        %v7010 = vadd.f32 %v6659, %v6882
        %v7011 = vadd.f32 %v6493, %v6883
        %v7012 = vadd.f32 %v6662, %v6884
        %v7013 = vadd.f32 %v6495, %v6885
        %v7014 = vadd.f32 %v6664, %v6886
        %v7015 = vadd.f32 %v6498, %v6887
        %v7016 = vadd.f32 %v6667, %v6888
        %v7017 = vadd.f32 %v6500, %v6889
        %v7018 = vadd.f32 %v6669, %v6890
        %v7019 = vadd.f32 %v6503, %v6891
        %v7020 = vadd.f32 %v6672, %v6892
        %v7021 = vadd.f32 %v6505, %v6893
        %v7022 = vadd.f32 %v6674, %v6894
        %v7023 = vadd.f32 %v6508, %v6895
        %v7024 = vadd.f32 %v6677, %v6896
        %v7025 = vadd.f32 %v6510, %v6897
        %v7026 = vadd.f32 %v6679, %v6898
        %v7027 = vadd.f32 %v6513, %v6899
        %v7028 = vadd.f32 %v6682, %v6900
        %v7029 = vadd.f32 %v6515, %v6901
        %v7030 = vadd.f32 %v6684, %v6902
        %v7031 = vadd.f32 %v6518, %v6903
        %v7032 = vadd.f32 %v6687, %v6904
        %v7033 = vadd.f32 %v6520, %v6905
        %v7034 = vadd.f32 %v6689, %v6906
        %v7035 = vadd.f32 %v6523, %v6907
        %v7036 = vadd.f32 %v6692, %v6908
        %v7037 = vadd.f32 %v6525, %v6909
        %v7038 = vadd.f32 %v6694, %v6910
        %v7039 = vadd.f32 %v6528, %v6911
        %v7040 = vadd.f32 %v6697, %v6912
        %v7041 = vadd.f32 %v6530, %v6913
        %v7042 = vadd.f32 %v6699, %v6914
        %v7043 = vadd.f32 %v6533, %v6915
        %v7044 = vadd.f32 %v6702, %v6916
        %v7045 = vadd.f32 %v6535, %v6917
        %v7046 = vadd.f32 %v6704, %v6918
        %v7047 = vadd.f32 %v6538, %v6919
        %v7048 = vadd.f32 %v6707, %v6920
        %v7049 = vadd.f32 %v6540, %v6921
        %v7050 = vadd.f32 %v6709, %v6922
        %v7051 = vadd.f32 %v6543, %v6923
        %v7052 = vadd.f32 %v6712, %v6924
        %v7053 = vadd.f32 %v6545, %v6925
        %v7054 = vadd.f32 %v6714, %v6926
        %v7055 = vadd.f32 %v6548, %v6927
        %v7056 = vadd.f32 %v6717, %v6928
        %v7057 = vadd.f32 %v6550, %v6929
        %v7058 = vadd.f32 %v6719, %v6930
        %v7059 = vadd.f32 %v6553, %v6931
        %v7060 = vadd.f32 %v6722, %v6932
        %v7061 = vadd.f32 %v6555, %v6933
        %v7062 = vadd.f32 %v6724, %v6934
        %v7063 = vadd.f32 %v6558, %v6935
        %v7064 = vadd.f32 %v6727, %v6936
        %v7065 = vadd.f32 %v6560, %v6937
        %v7066 = vadd.f32 %v6729, %v6938
        %v7067 = vadd.f32 %v6563, %v6939
        %v7068 = vadd.f32 %v6732, %v6940
        %v7069 = vadd.f32 %v6565, %v6941
        %v7070 = vadd.f32 %v6734, %v6942
        %v7071 = vadd.f32 %v6568, %v6943
        %v7072 = vadd.f32 %v6737, %v6944
        %v7073 = vadd.f32 %v6570, %v6945
        %v7074 = vadd.f32 %v6739, %v6946
        %v7075 = vadd.f32 %v6573, %v6947
        %v7076 = vadd.f32 %v6742, %v6948
        %v7077 = vadd.f32 %v6575, %v6949
        %v7078 = vadd.f32 %v6744, %v6950
        %v7079 = vadd.f32 %v6578, %v6951
        %v7080 = vadd.f32 %v6747, %v6952
        %v7081 = vadd.f32 %v6580, %v6953
        %v7082 = vadd.f32 %v6749, %v6954
        %v7083 = vadd.f32 %v6583, %v6955
        %v7084 = vadd.f32 %v6752, %v6956
        %v7085 = vadd.f32 %v6585, %v6957
        %v7086 = vadd.f32 %v6754, %v6958
        %v7087 = vadd.f32 %v6588, %v6959
        %v7088 = vadd.f32 %v6757, %v6960
        %v7089 = vadd.f32 %v6590, %v6961
        %v7090 = vadd.f32 %v6759, %v6962
        %v7091 = vadd.f32 %v6593, %v6963
        %v7092 = vadd.f32 %v6762, %v6964
        %v7093 = vadd.f32 %v6595, %v6965
        %v7094 = vadd.f32 %v6764, %v6966
        %v7095 = vadd.f32 %v6598, %v6967
        %v7096 = vadd.f32 %v6767, %v6968
        %v7097 = vadd.f32 %v6600, %v6969
        %v7098 = vadd.f32 %v6769, %v6970
        %v7099 = vadd.f32 %v6603, %v6971
        %v7100 = vadd.f32 %v6772, %v6972
        %v7101 = vadd.f32 %v6605, %v6973
        %v7102 = vadd.f32 %v6774, %v6974
        %v7103 = vadd.f32 %v6608, %v6975
        %v7104 = vadd.f32 %v6777, %v6976
        %v7105 = vadd.f32 %v6610, %v6977
        %v7106 = vadd.f32 %v6779, %v6978
        %v7107 = vadd.f32 %v6613, %v6979
        %v7108 = vadd.f32 %v6782, %v6980
        %v7109 = vadd.f32 %v6615, %v6981
        %v7110 = vadd.f32 %v6784, %v6982
        %v7111 = vadd.f32 %v6618, %v6983
        %v7112 = vadd.f32 %v6787, %v6984
        %v7113 = vadd.f32 %v6620, %v6985
        %v7114 = vadd.f32 %v6789, %v6986
        %v7115 = vadd.f32 %v6623, %v6987
        %v7116 = vadd.f32 %v6792, %v6988
        %v7117 = vadd.f32 %v6625, %v6989
        %v7118 = vadd.f32 %v6794, %v6990
        %v7119 = vadd.f32 %v6628, %v6991
        %v7120 = vadd.f32 %v6797, %v6992
        %v7121 = vadd.f32 %v6630, %v6993
        %v7122 = vadd.f32 %v6799, %v6994
        %v7123 = vadd.f32 %v6633, %v6995
        %v7124 = vadd.f32 %v6802, %v6996
        %v7125 = vadd.f32 %v6635, %v6997
        %v7126 = vadd.f32 %v6804, %v6998
        %v7127 = vadd.f32 %v6638, %v6999
        %v7128 = vadd.f32 %v6807, %v7000
        %v7129 = vadd.f32 %v6640, %v7001
        %v7130 = vadd.f32 %v6809, %v7002
        %v7131 = vmax.f32 %v7003, 0.0
        %v7132 = vmax.f32 %v7004, 0.0
        %v7133 = vmax.f32 %v7005, 0.0
        %v7134 = vmax.f32 %v7006, 0.0
        %v7135 = vmax.f32 %v7007, 0.0
        %v7136 = vmax.f32 %v7008, 0.0
        %v7137 = vmax.f32 %v7009, 0.0
        %v7138 = vmax.f32 %v7010, 0.0
        %v7139 = vmax.f32 %v7011, 0.0
        %v7140 = vmax.f32 %v7012, 0.0
        %v7141 = vmax.f32 %v7013, 0.0
        %v7142 = vmax.f32 %v7014, 0.0
        %v7143 = vmax.f32 %v7015, 0.0
        %v7144 = vmax.f32 %v7016, 0.0
        %v7145 = vmax.f32 %v7017, 0.0
        %v7146 = vmax.f32 %v7018, 0.0
        %v7147 = vmax.f32 %v7019, 0.0
        %v7148 = vmax.f32 %v7020, 0.0
        %v7149 = vmax.f32 %v7021, 0.0
        %v7150 = vmax.f32 %v7022, 0.0
        %v7151 = vmax.f32 %v7023, 0.0
        %v7152 = vmax.f32 %v7024, 0.0
        %v7153 = vmax.f32 %v7025, 0.0
        %v7154 = vmax.f32 %v7026, 0.0
        %v7155 = vmax.f32 %v7027, 0.0
        %v7156 = vmax.f32 %v7028, 0.0
        %v7157 = vmax.f32 %v7029, 0.0
        %v7158 = vmax.f32 %v7030, 0.0
        %v7159 = vmax.f32 %v7031, 0.0
        %v7160 = vmax.f32 %v7032, 0.0
        %v7161 = vmax.f32 %v7033, 0.0
        %v7162 = vmax.f32 %v7034, 0.0
        %v7163 = vmax.f32 %v7035, 0.0
        %v7164 = vmax.f32 %v7036, 0.0
        %v7165 = vmax.f32 %v7037, 0.0
        %v7166 = vmax.f32 %v7038, 0.0
        %v7167 = vmax.f32 %v7039, 0.0
        %v7168 = vmax.f32 %v7040, 0.0
        %v7169 = vmax.f32 %v7041, 0.0
        %v7170 = vmax.f32 %v7042, 0.0
        %v7171 = vmax.f32 %v7043, 0.0
        %v7172 = vmax.f32 %v7044, 0.0
        %v7173 = vmax.f32 %v7045, 0.0
        %v7174 = vmax.f32 %v7046, 0.0
        %v7175 = vmax.f32 %v7047, 0.0
        %v7176 = vmax.f32 %v7048, 0.0
        %v7177 = vmax.f32 %v7049, 0.0
        %v7178 = vmax.f32 %v7050, 0.0
        %v7179 = vmax.f32 %v7051, 0.0
        %v7180 = vmax.f32 %v7052, 0.0
        %v7181 = vmax.f32 %v7053, 0.0
        %v7182 = vmax.f32 %v7054, 0.0
        %v7183 = vmax.f32 %v7055, 0.0
        %v7184 = vmax.f32 %v7056, 0.0
        %v7185 = vmax.f32 %v7057, 0.0
        %v7186 = vmax.f32 %v7058, 0.0
        %v7187 = vmax.f32 %v7059, 0.0
        %v7188 = vmax.f32 %v7060, 0.0
        %v7189 = vmax.f32 %v7061, 0.0
        %v7190 = vmax.f32 %v7062, 0.0
        %v7191 = vmax.f32 %v7063, 0.0
        %v7192 = vmax.f32 %v7064, 0.0
        %v7193 = vmax.f32 %v7065, 0.0
        %v7194 = vmax.f32 %v7066, 0.0
        %v7195 = vmax.f32 %v7067, 0.0
        %v7196 = vmax.f32 %v7068, 0.0
        %v7197 = vmax.f32 %v7069, 0.0
        %v7198 = vmax.f32 %v7070, 0.0
        %v7199 = vmax.f32 %v7071, 0.0
        %v7200 = vmax.f32 %v7072, 0.0
        %v7201 = vmax.f32 %v7073, 0.0
        %v7202 = vmax.f32 %v7074, 0.0
        %v7203 = vmax.f32 %v7075, 0.0
        %v7204 = vmax.f32 %v7076, 0.0
        %v7205 = vmax.f32 %v7077, 0.0
        %v7206 = vmax.f32 %v7078, 0.0
        %v7207 = vmax.f32 %v7079, 0.0
        %v7208 = vmax.f32 %v7080, 0.0
        %v7209 = vmax.f32 %v7081, 0.0
        %v7210 = vmax.f32 %v7082, 0.0
        %v7211 = vmax.f32 %v7083, 0.0
        %v7212 = vmax.f32 %v7084, 0.0
        %v7213 = vmax.f32 %v7085, 0.0
        %v7214 = vmax.f32 %v7086, 0.0
        %v7215 = vmax.f32 %v7087, 0.0
        %v7216 = vmax.f32 %v7088, 0.0
        %v7217 = vmax.f32 %v7089, 0.0
        %v7218 = vmax.f32 %v7090, 0.0
        %v7219 = vmax.f32 %v7091, 0.0
        %v7220 = vmax.f32 %v7092, 0.0
        %v7221 = vmax.f32 %v7093, 0.0
        %v7222 = vmax.f32 %v7094, 0.0
        %v7223 = vmax.f32 %v7095, 0.0
        %v7224 = vmax.f32 %v7096, 0.0
        %v7225 = vmax.f32 %v7097, 0.0
        %v7226 = vmax.f32 %v7098, 0.0
        %v7227 = vmax.f32 %v7099, 0.0
        %v7228 = vmax.f32 %v7100, 0.0
        %v7229 = vmax.f32 %v7101, 0.0
        %v7230 = vmax.f32 %v7102, 0.0
        %v7231 = vmax.f32 %v7103, 0.0
        %v7232 = vmax.f32 %v7104, 0.0
        %v7233 = vmax.f32 %v7105, 0.0
        %v7234 = vmax.f32 %v7106, 0.0
        %v7235 = vmax.f32 %v7107, 0.0
        %v7236 = vmax.f32 %v7108, 0.0
        %v7237 = vmax.f32 %v7109, 0.0
        %v7238 = vmax.f32 %v7110, 0.0
        %v7239 = vmax.f32 %v7111, 0.0
        %v7240 = vmax.f32 %v7112, 0.0
        %v7241 = vmax.f32 %v7113, 0.0
        %v7242 = vmax.f32 %v7114, 0.0
        %v7243 = vmax.f32 %v7115, 0.0
        %v7244 = vmax.f32 %v7116, 0.0
        %v7245 = vmax.f32 %v7117, 0.0
        %v7246 = vmax.f32 %v7118, 0.0
        %v7247 = vmax.f32 %v7119, 0.0
        %v7248 = vmax.f32 %v7120, 0.0
        %v7249 = vmax.f32 %v7121, 0.0
        %v7250 = vmax.f32 %v7122, 0.0
        %v7251 = vmax.f32 %v7123, 0.0
        %v7252 = vmax.f32 %v7124, 0.0
        %v7253 = vmax.f32 %v7125, 0.0
        %v7254 = vmax.f32 %v7126, 0.0
        %v7255 = vmax.f32 %v7127, 0.0
        %v7256 = vmax.f32 %v7128, 0.0
        %v7257 = vmax.f32 %v7129, 0.0
        %v7258 = vmax.f32 %v7130, 0.0
        %v7259 = vpack.c.bf16 %v7132, %v7131
        %v7260 = vpack.c.bf16 %v7134, %v7133
        %v7261 = vpack.c.bf16 %v7136, %v7135
        %v7262 = vpack.c.bf16 %v7138, %v7137
        %v7263 = vpack.c.bf16 %v7140, %v7139
        %v7264 = vpack.c.bf16 %v7142, %v7141
        %v7265 = vpack.c.bf16 %v7144, %v7143
        %v7266 = vpack.c.bf16 %v7146, %v7145
        %v7267 = vpack.c.bf16 %v7148, %v7147
        %v7268 = vpack.c.bf16 %v7150, %v7149
        %v7269 = vpack.c.bf16 %v7152, %v7151
        %v7270 = vpack.c.bf16 %v7154, %v7153
        %v7271 = vpack.c.bf16 %v7156, %v7155
        %v7272 = vpack.c.bf16 %v7158, %v7157
        %v7273 = vpack.c.bf16 %v7160, %v7159
        %v7274 = vpack.c.bf16 %v7162, %v7161
        %v7275 = vpack.c.bf16 %v7164, %v7163
        %v7276 = vpack.c.bf16 %v7166, %v7165
        %v7277 = vpack.c.bf16 %v7168, %v7167
        %v7278 = vpack.c.bf16 %v7170, %v7169
        %v7279 = vpack.c.bf16 %v7172, %v7171
        %v7280 = vpack.c.bf16 %v7174, %v7173
        %v7281 = vpack.c.bf16 %v7176, %v7175
        %v7282 = vpack.c.bf16 %v7178, %v7177
        %v7283 = vpack.c.bf16 %v7180, %v7179
        %v7284 = vpack.c.bf16 %v7182, %v7181
        %v7285 = vpack.c.bf16 %v7184, %v7183
        %v7286 = vpack.c.bf16 %v7186, %v7185
        %v7287 = vpack.c.bf16 %v7188, %v7187
        %v7288 = vpack.c.bf16 %v7190, %v7189
        %v7289 = vpack.c.bf16 %v7192, %v7191
        %v7290 = vpack.c.bf16 %v7194, %v7193
        %v7291 = vpack.c.bf16 %v7196, %v7195
        %v7292 = vpack.c.bf16 %v7198, %v7197
        %v7293 = vpack.c.bf16 %v7200, %v7199
        %v7294 = vpack.c.bf16 %v7202, %v7201
        %v7295 = vpack.c.bf16 %v7204, %v7203
        %v7296 = vpack.c.bf16 %v7206, %v7205
        %v7297 = vpack.c.bf16 %v7208, %v7207
        %v7298 = vpack.c.bf16 %v7210, %v7209
        %v7299 = vpack.c.bf16 %v7212, %v7211
        %v7300 = vpack.c.bf16 %v7214, %v7213
        %v7301 = vpack.c.bf16 %v7216, %v7215
        %v7302 = vpack.c.bf16 %v7218, %v7217
        %v7303 = vpack.c.bf16 %v7220, %v7219
        %v7304 = vpack.c.bf16 %v7222, %v7221
        %v7305 = vpack.c.bf16 %v7224, %v7223
        %v7306 = vpack.c.bf16 %v7226, %v7225
        %v7307 = vpack.c.bf16 %v7228, %v7227
        %v7308 = vpack.c.bf16 %v7230, %v7229
        %v7309 = vpack.c.bf16 %v7232, %v7231
        %v7310 = vpack.c.bf16 %v7234, %v7233
        %v7311 = vpack.c.bf16 %v7236, %v7235
        %v7312 = vpack.c.bf16 %v7238, %v7237
        %v7313 = vpack.c.bf16 %v7240, %v7239
        %v7314 = vpack.c.bf16 %v7242, %v7241
        %v7315 = vpack.c.bf16 %v7244, %v7243
        %v7316 = vpack.c.bf16 %v7246, %v7245
        %v7317 = vpack.c.bf16 %v7248, %v7247
        %v7318 = vpack.c.bf16 %v7250, %v7249
        %v7319 = vpack.c.bf16 %v7252, %v7251
        %v7320 = vpack.c.bf16 %v7254, %v7253
        %v7321 = vpack.c.bf16 %v7256, %v7255
        %v7322 = vpack.c.bf16 %v7258, %v7257
        %7323 = vst [vmem:[%s395] sm:$0xff] %v7259
        %7324 = vst [vmem:[%s395 + $0x8] sm:$0xff] %v7260
        %7325 = vst [vmem:[%s395 + $0x10] sm:$0xff] %v7261
        %7326 = vst [vmem:[%s395 + $0x18] sm:$0xff] %v7262
        %7327 = vst [vmem:[%s395 + $0x20] sm:$0xff] %v7263
        %7328 = vst [vmem:[%s395 + $0x28] sm:$0xff] %v7264
        %7329 = vst [vmem:[%s395 + $0x30] sm:$0xff] %v7265
        %7330 = vst [vmem:[%s395 + $0x38] sm:$0xff] %v7266
        %7331 = vst [vmem:[%s395 + $0x40] sm:$0xff] %v7267
        %7332 = vst [vmem:[%s395 + $0x48] sm:$0xff] %v7268
        %7333 = vst [vmem:[%s395 + $0x50] sm:$0xff] %v7269
        %7334 = vst [vmem:[%s395 + $0x58] sm:$0xff] %v7270
        %7335 = vst [vmem:[%s395 + $0x60] sm:$0xff] %v7271
        %7336 = vst [vmem:[%s395 + $0x68] sm:$0xff] %v7272
        %7337 = vst [vmem:[%s395 + $0x70] sm:$0xff] %v7273
        %7338 = vst [vmem:[%s395 + $0x78] sm:$0xff] %v7274
        %7339 = vst [vmem:[%s395 + $0x80] sm:$0xff] %v7275
        %7340 = vst [vmem:[%s395 + $0x88] sm:$0xff] %v7276
        %7341 = vst [vmem:[%s395 + $0x90] sm:$0xff] %v7277
        %7342 = vst [vmem:[%s395 + $0x98] sm:$0xff] %v7278
        %7343 = vst [vmem:[%s395 + $0xa0] sm:$0xff] %v7279
        %7344 = vst [vmem:[%s395 + $0xa8] sm:$0xff] %v7280
        %7345 = vst [vmem:[%s395 + $0xb0] sm:$0xff] %v7281
        %7346 = vst [vmem:[%s395 + $0xb8] sm:$0xff] %v7282
        %7347 = vst [vmem:[%s395 + $0xc0] sm:$0xff] %v7283
        %7348 = vst [vmem:[%s395 + $0xc8] sm:$0xff] %v7284
        %7349 = vst [vmem:[%s395 + $0xd0] sm:$0xff] %v7285
        %7350 = vst [vmem:[%s395 + $0xd8] sm:$0xff] %v7286
        %7351 = vst [vmem:[%s395 + $0xe0] sm:$0xff] %v7287
        %7352 = vst [vmem:[%s395 + $0xe8] sm:$0xff] %v7288
        %7353 = vst [vmem:[%s395 + $0xf0] sm:$0xff] %v7289
        %7354 = vst [vmem:[%s395 + $0xf8] sm:$0xff] %v7290
        %7355 = vst [vmem:[%s395 + $0x100] sm:$0xff] %v7291
        %7356 = vst [vmem:[%s395 + $0x108] sm:$0xff] %v7292
        %7357 = vst [vmem:[%s395 + $0x110] sm:$0xff] %v7293
        %7358 = vst [vmem:[%s395 + $0x118] sm:$0xff] %v7294
        %7359 = vst [vmem:[%s395 + $0x120] sm:$0xff] %v7295
        %7360 = vst [vmem:[%s395 + $0x128] sm:$0xff] %v7296
        %7361 = vst [vmem:[%s395 + $0x130] sm:$0xff] %v7297
        %7362 = vst [vmem:[%s395 + $0x138] sm:$0xff] %v7298
        %7363 = vst [vmem:[%s395 + $0x140] sm:$0xff] %v7299
        %7364 = vst [vmem:[%s395 + $0x148] sm:$0xff] %v7300
        %7365 = vst [vmem:[%s395 + $0x150] sm:$0xff] %v7301
        %7366 = vst [vmem:[%s395 + $0x158] sm:$0xff] %v7302
        %7367 = vst [vmem:[%s395 + $0x160] sm:$0xff] %v7303
        %7368 = vst [vmem:[%s395 + $0x168] sm:$0xff] %v7304
        %7369 = vst [vmem:[%s395 + $0x170] sm:$0xff] %v7305
        %7370 = vst [vmem:[%s395 + $0x178] sm:$0xff] %v7306
        %7371 = vst [vmem:[%s395 + $0x180] sm:$0xff] %v7307
        %7372 = vst [vmem:[%s395 + $0x188] sm:$0xff] %v7308
        %7373 = vst [vmem:[%s395 + $0x190] sm:$0xff] %v7309
        %7374 = vst [vmem:[%s395 + $0x198] sm:$0xff] %v7310
        %7375 = vst [vmem:[%s395 + $0x1a0] sm:$0xff] %v7311
        %7376 = vst [vmem:[%s395 + $0x1a8] sm:$0xff] %v7312
        %7377 = vst [vmem:[%s395 + $0x1b0] sm:$0xff] %v7313
        %7378 = vst [vmem:[%s395 + $0x1b8] sm:$0xff] %v7314
        %7379 = vst [vmem:[%s395 + $0x1c0] sm:$0xff] %v7315
        %7380 = vst [vmem:[%s395 + $0x1c8] sm:$0xff] %v7316
        %7381 = vst [vmem:[%s395 + $0x1d0] sm:$0xff] %v7317
        %7382 = vst [vmem:[%s395 + $0x1d8] sm:$0xff] %v7318
        %7383 = vst [vmem:[%s395 + $0x1e0] sm:$0xff] %v7319
        %7384 = vst [vmem:[%s395 + $0x1e8] sm:$0xff] %v7320
        %7385 = vst [vmem:[%s395 + $0x1f0] sm:$0xff] %v7321
        %7386 = vst [vmem:[%s395 + $0x1f8] sm:$0xff] %v7322
        %s7387 = sand.u32 %s204, 1
        %s7388 = scalar_lea.sflag [#allocation6], %s7387
        %s7389 = sand.u32 %s204, 1
        %s7390 = smul.addr %s7389, 512
        %s7391 = scalar_lea.vmem [#allocation15], %s7390
        // Predicated region
        $region89: #{tpu_custom_call.1} parent=47 // pred_check
          %p7392 = pneg %p214
        $region90: #{tpu_custom_call.1} parent=47 // pred_check_branch
          %7394 = sbr.rel (%p7392) target = $region92
        $region91: #{tpu_custom_call.1} parent=47 // pred_region
          %s7395 = smul.u32 64, %s33
          %7397 = vsyncadd %s7388, 0
          %s7398 = smul.addr %s7395, 2
          %s7399 = smul.addr %s32, 256
          %s7400 = sadd.s32 %s7398, %s7399
          %s7401 = smul.addr %s7400, 4
          %s7402 = scalar_lea.hbm %s8, %s7401
          %s7403 = sshll.u32 %s7391, 4
          %s7404 = int_to_ptr.vmem [resolvable:$true] %s7403
          %s7405 = sshll.u32 %s7402, 4
          %s7406 = int_to_ptr.hbm [resolvable:$true] %s7405
          %7411 = dma.vmem_to_hbm [thread:$0]  %s7404, 8192, %s7406, %s7388, 128, 128, 8
        $region92: #{tpu_custom_call.1} parent=47 // pred_fallthru
          _
      $region48: #{tpu_custom_call.1} parent=5 // pred_fallthru
        _
      %p7412 = scmp.le.s32.totalorder 2, %s23
      // Predicated region
      $region93: #{tpu_custom_call.1} parent=5 // pred_check
        %p7413 = pneg %p7412
      $region94: #{tpu_custom_call.1} parent=5 // pred_check_branch
        %7415 = sbr.rel (%p7413) target = $region96
      $region95: #{tpu_custom_call.1} parent=5 // pred_region
        %s7416 = ssub.s32 %s23, 2
        // Predicated region
        $region97: #{tpu_custom_call.1} parent=95 // pred_check
          %p7417 = pneg %p220
        $region98: #{tpu_custom_call.1} parent=95 // pred_check_branch
          %7419 = sbr.rel (%p7417) target = $region100
        $region99: #{tpu_custom_call.1} parent=95 // pred_region
          %s7420 = sand.u32 %s205, 1
          %s7421 = scalar_lea.sflag [#allocation6], %s7420
          %s7422 = sand.u32 %s205, 1
          %s7423 = smul.addr %s7422, 512
          %s7424 = scalar_lea.vmem [#allocation15], %s7423
          %7426 = dma.done %s7421, 8192
        $region100: #{tpu_custom_call.1} parent=95 // pred_fallthru
          _
      $region96: #{tpu_custom_call.1} parent=5 // pred_fallthru
        _
    $region6: #{tpu_custom_call.1} parent=1 // loop_footer
      %s27 = sadd.s32 1, %s23
    $region7: #{tpu_custom_call.1} parent=1 // loop_footer_branch
      %22 = sbr.rel target = $region3
    $region8: #{tpu_custom_call.1} parent=1 // loop_exit
      _
    %7427 = vsyncpa [#allocation5], 1
    %s7428 = scalar_lea.sflag [#allocation5], 1
    %7429 = vsyncpa %s7428, 1
    %7430 = vsyncpa [#allocation8], 1
    %7431 = vsyncpa [#allocation11], 1
    %7432 = vsyncpa [#allocation14], 1
    %7433 = vsyncpa [#allocation6], 1
    %s7434 = scalar_lea.sflag [#allocation6], 1
    %7435 = vsyncpa %s7434, 1
  %7436 = vsyncmov [#allocation3]
  %s7437 = vpop.sfrf %7436
  %p7438 = scmp.eq.s32.totalorder %s7437, 0
  %p7439 = pneg %p7438
  %7441 = shalt.err (%p7439)
  %s7442 = scalar_lea.sflag [#allocation3], 1
  %7443 = vsyncmov %s7442
  %s7444 = vpop.sfrf %7443
  %p7445 = scmp.eq.s32.totalorder %s7444, 0
  %p7446 = pneg %p7445
  %7448 = shalt.err (%p7446)

</llo_original>
